<compile_context>
chip_gen: v7x
topology: tpu7x:2x2x1
jax: 0.10.0
libtpu: 0.0.40
codegen_flags: <defaults>
</compile_context>

<pallas_src>
import functools

import jax
import jax.numpy as jnp
import numpy as np
from jax.experimental import pallas as pl
from jax.experimental.pallas import tpu as pltpu

# ---- module hyper-parameters (globals in the original PyTorch file) ----
I_CHANNEL = 4      # input channels
O_CHANNEL = 8      # working channels
C_NUM = 2          # 3x3 conv+bn+relu layers per ds block
S_NUM = 2          # number of downsample (ds) blocks
HEIGHT = 16
WIDTH = 16
FC1_NODES = 32
DIM_LATENT = 8
BN_EPS = 1e-5

MARGIN = 32        # scratch lane margin; largest 3x3 tap shift is (WIDTH+2)+1 = 19 < 32


# --------------------------------------------------------------------------
# The single fused encoder kernel
# --------------------------------------------------------------------------
def encoder_kernel(x_ref, w3_ref, wds_ref, cp_ref, bds1m_ref, valid_ref,
                   sel1_ref, sel2_ref, w1exp_ref, lmat_ref, fc1b_ref, fco_ref,
                   out_ref, buf1_ref, buf2_ref, *, batch):
    f32 = jnp.float32
    c = O_CHANNEL
    h1, w1 = HEIGHT, WIDTH
    h2, w2 = h1 // 2, w1 // 2
    row1, row2 = w1 + 2, w2 + 2                      # padded row strides (18, 10)
    p1, p2 = (h1 + 2) * (w1 + 2), (h2 + 2) * (w2 + 2)  # padded pixels/img (324, 100)
    n1, n2 = batch * p1, batch * p2
    cnt1, cnt2 = float(batch * h1 * w1), float(batch * h2 * w2)

    valid1 = valid_ref[0:1, 0:n1]                    # 1 at real pixels, 0 at halo
    valid2 = valid_ref[0:1, n1:n1 + n2]

    def conv3x3(src, layer, rowstride, n):
        # 9 accumulating (Cout, Cin) @ (Cin, N) MXU dots; taps are plain
        # static slices of the halo-padded buffer (borders read true zeros).
        acc = None
        for k in range(9):
            off = MARGIN + (k // 3 - 1) * rowstride + (k % 3 - 1)
            d = jnp.dot(w3_ref[layer, k], src[:, off:off + n],
                        preferred_element_type=f32)
            acc = d if acc is None else acc + d
        return acc

    def conv2x2(src, block, rowstride, n):
        # dense (stride-1) 2x2 conv; stride-2 selection is applied afterwards.
        acc = None
        for k in range(4):
            off = MARGIN + (k // 2) * rowstride + (k % 2)
            d = jnp.dot(wds_ref[block, k], src[:, off:off + n],
                        preferred_element_type=f32)
            acc = d if acc is None else acc + d
        return acc

    def bn_relu(y, gamma, beta, valid, count):
        # training-mode BatchNorm2d folded into a single scale/shift FMA.
        ym = y * valid                               # halo positions excluded
        inv = 1.0 / count
        mean = jnp.sum(ym, axis=1, keepdims=True) * inv
        meansq = jnp.sum(ym * ym, axis=1, keepdims=True) * inv
        a = gamma * jax.lax.rsqrt(meansq - mean * mean + BN_EPS)
        b = beta - mean * a
        return jnp.maximum(ym * a + b, 0.0) * valid  # halo re-zeroed for next conv

    # zero scratch once so margins / halo read as true zeros forever after
    buf1_ref[...] = jnp.zeros(buf1_ref.shape, f32)
    buf2_ref[...] = jnp.zeros(buf2_ref.shape, f32)

    # ---- input conv + ReLU ------------------------------------------------
    y0 = conv3x3(x_ref, 0, row1, n1) + cp_ref[0]
    buf1_ref[:, MARGIN:MARGIN + n1] = jnp.maximum(y0, 0.0) * valid1

    # ---- downsample blocks --------------------------------------------------
    stages = ((buf1_ref, row1, n1, p1, valid1, cnt1, sel1_ref),
              (buf2_ref, row2, n2, p2, valid2, cnt2, sel2_ref))
    x3 = None
    for s in range(S_NUM):
        buf, rowstride, n, per_img, valid, count, sel = stages[s]
        x_res = buf[:, MARGIN:MARGIN + n]            # residual (halo already zero)
        for i in range(C_NUM):
            y = conv3x3(buf, 1 + s * C_NUM + i, rowstride, n) + cp_ref[1 + 6 * s + i]
            t = bn_relu(y, cp_ref[3 + 6 * s + i], cp_ref[5 + 6 * s + i], valid, count)
            if i == C_NUM - 1:
                t = t + x_res                        # residual add after conv/bn/relu loop
            buf[:, MARGIN:MARGIN + n] = t
        dense = conv2x2(buf, s, rowstride, n)        # (C, n): 2x2 conv at full resolution
        if s == 0:
            # per-image stride-2 selection straight into the half-res buffer
            for b in range(batch):
                o = jnp.dot(dense[:, b * per_img:(b + 1) * per_img], sel[...],
                            preferred_element_type=f32)
                buf2_ref[:, MARGIN + b * p2:MARGIN + (b + 1) * p2] = jnp.maximum(
                    o + bds1m_ref[...], 0.0)         # bias pre-masked -> halo stays 0
        else:
            outs = [jnp.dot(dense[:, b * per_img:(b + 1) * per_img], sel[...],
                            preferred_element_type=f32)
                    for b in range(batch)]
            x3 = jnp.maximum(jnp.concatenate(outs, axis=1) + cp_ref[13], 0.0)

    # ---- FC head -------------------------------------------------------------
    # torch flatten order folded into w1exp[c,f,n] = W1[f, c*16 + n%16];
    # 8 broadcast-FMAs + one segment-sum matmul replace the old reorder chain.
    acc = w1exp_ref[0] * x3[0:1, :]
    for ci in range(1, c):
        acc = acc + w1exp_ref[ci] * x3[ci:ci + 1, :]
    hid = jnp.maximum(jnp.dot(acc, lmat_ref[...], preferred_element_type=f32)
                      + fc1b_ref[...], 0.0)                              # (F, B)
    out_ref[...] = (jnp.dot(fco_ref[:, 0:FC1_NODES], hid,
                            preferred_element_type=f32)
                    + fco_ref[:, FC1_NODES:FC1_NODES + 1])               # (D, B)


# --------------------------------------------------------------------------
# Host-side constant helpers
# --------------------------------------------------------------------------
def _conv_taps(w, cin_pad=None):
    """Torch conv weight (O, I, kh, kw) -> per-tap mats (kh*kw, O, I[padded])."""
    o, ci, kh, kw = w.shape
    t = jnp.transpose(w, (2, 3, 0, 1)).reshape(kh * kw, o, ci)
    if cin_pad is not None and cin_pad > ci:
        t = jnp.pad(t, ((0, 0), (0, 0), (0, cin_pad - ci)))
    return t


def _valid_mask(batch, h, w):
    """(1, batch*(h+2)*(w+2)) mask: 1 at real pixels of the halo-padded layout."""
    m = np.zeros((h + 2, w + 2), np.float32)
    m[1:h + 1, 1:w + 1] = 1.0
    return np.tile(m.reshape(-1), batch)[None, :]


def _sel_img(h, w, pad_out):
    """Per-image 0/1 selection: padded (h+2)(w+2) lanes -> stride-2 output lanes."""
    ho, wo = h // 2, w // 2
    n_in = (h + 2) * (w + 2)
    n_out = (ho + 2) * (wo + 2) if pad_out else ho * wo
    s = np.zeros((n_in, n_out), np.float32)
    for yo in range(ho):
        for xo in range(wo):
            nin = (2 * yo + 1) * (w + 2) + (2 * xo + 1)
            nout = (yo + 1) * (wo + 2) + (xo + 1) if pad_out else yo * wo + xo
            s[nin, nout] = 1.0
    return s


# --------------------------------------------------------------------------
# Wrapper: prepare weights/constants and launch the single fused kernel
# --------------------------------------------------------------------------
def encoder_forward(x_nchw, params):
    assert S_NUM == 2 and C_NUM == 2, "kernel specialized to the module constants"
    batch = x_nchw.shape[0]
    c = O_CHANNEL
    h1, w1 = HEIGHT, WIDTH
    h2, w2 = h1 // 2, w1 // 2
    pq = (h2 // 2) * (w2 // 2)
    p1, p2 = (h1 + 2) * (w1 + 2), (h2 + 2) * (w2 + 2)
    n1, n2 = batch * p1, batch * p2

    # input: halo-pad spatially, pad channels 4->8, channels in sublanes,
    # flattened (batch, padded-row, padded-col) in lanes, plus MARGIN zeros.
    xp = jnp.pad(x_nchw, ((0, 0), (0, c - I_CHANNEL), (1, 1), (1, 1)))
    xp = jnp.transpose(xp, (1, 0, 2, 3)).reshape(c, n1)
    xp = jnp.pad(xp, ((0, 0), (MARGIN, MARGIN)))

    blks = params["ds"]
    w3 = jnp.stack([_conv_taps(params["in_w"], c)]
                   + [_conv_taps(blks[s]["conv_w"][i])
                      for s in range(S_NUM) for i in range(C_NUM)])            # (5, 9, 8, 8)
    wds = jnp.stack([_conv_taps(blk["ds_w"]) for blk in blks])                  # (2, 4, 8, 8)

    chan = [params["in_b"]]
    for s in range(S_NUM):
        for key in ("conv_b", "bn_g", "bn_b"):
            chan += [blks[s][key][i] for i in range(C_NUM)]
    chan.append(blks[1]["ds_b"])
    cp = jnp.stack([v.reshape(c, 1) for v in chan])                             # (14, 8, 1)

    valid = jnp.asarray(np.concatenate(
        [_valid_mask(batch, h1, w1), _valid_mask(batch, h2, w2)], axis=1))      # (1, n1+n2)
    bds1m = blks[0]["ds_b"].reshape(c, 1) * jnp.asarray(_valid_mask(1, h2, w2))  # (8, p2)

    sel1 = jnp.asarray(_sel_img(h1, w1, pad_out=True))                          # (p1, p2)
    sel2 = jnp.asarray(_sel_img(h2, w2, pad_out=False))                         # (p2, pq)

    w1r = params["fc1_w"].reshape(FC1_NODES, c, pq)
    w1exp = jnp.tile(jnp.transpose(w1r, (1, 0, 2)), (1, 1, batch))              # (8, 32, B*pq)
    lmat = jnp.asarray((np.arange(batch * pq)[:, None] // pq
                        == np.arange(batch)[None, :]).astype(np.float32))       # (B*pq, B)
    fc1b = params["fc1_b"].reshape(FC1_NODES, 1)
    fco = jnp.concatenate(
        [params["out_w"], params["out_b"].reshape(DIM_LATENT, 1)], axis=1)      # (8, 33)

    kern = functools.partial(encoder_kernel, batch=batch)
    out_t = pl.pallas_call(
        kern,
        out_shape=jax.ShapeDtypeStruct((DIM_LATENT, batch), jnp.float32),
        scratch_shapes=[pltpu.VMEM((c, 2 * MARGIN + n1), jnp.float32),
                        pltpu.VMEM((c, 2 * MARGIN + n2), jnp.float32)],
    )(xp, w3, wds, cp, bds1m, valid, sel1, sel2, w1exp, lmat, fc1b, fco)
    return out_t.T                                   # (B, dim_latent)


# --------------------------------------------------------------------------
# Pure-JAX reference (mirrors the PyTorch module, training-mode BatchNorm)
# --------------------------------------------------------------------------
def encoder_reference(x_nchw, params):
    prec = jax.lax.Precision.HIGHEST

    def conv(x, w, bias, stride=1, pad=1):
        y = jax.lax.conv_general_dilated(
            x, w, window_strides=(stride, stride),
            padding=[(pad, pad), (pad, pad)],
            dimension_numbers=("NCHW", "OIHW", "NCHW"),
            precision=prec)
        return y + bias.reshape(1, -1, 1, 1)

    def bn(x, g, be):
        mean = jnp.mean(x, axis=(0, 2, 3), keepdims=True)
        var = jnp.mean(jnp.square(x - mean), axis=(0, 2, 3), keepdims=True)
        return ((x - mean) * jax.lax.rsqrt(var + BN_EPS)
                * g.reshape(1, -1, 1, 1) + be.reshape(1, -1, 1, 1))

    x = jax.nn.relu(conv(x_nchw, params["in_w"], params["in_b"]))
    for blk in params["ds"]:
        x_input = x
        for i in range(C_NUM):
            x = jax.nn.relu(bn(conv(x, blk["conv_w"][i], blk["conv_b"][i]),
                               blk["bn_g"][i], blk["bn_b"][i]))
        x = x + x_input
        x = jax.nn.relu(conv(x, blk["ds_w"], blk["ds_b"], stride=2, pad=0))
    feat = x.reshape(x.shape[0], -1)
    hid = jax.nn.relu(feat @ params["fc1_w"].T + params["fc1_b"])
    return hid @ params["out_w"].T + params["out_b"]


# --------------------------------------------------------------------------
# Deterministic synthetic parameters (torch layouts, shapes per __init__)
# --------------------------------------------------------------------------
def init_params(key):
    def nrm(k, shape, scale=0.1):
        return scale * jax.random.normal(k, shape, jnp.float32)

    keys = iter(jax.random.split(key, 64))
    params = {
        "in_w": nrm(next(keys), (O_CHANNEL, I_CHANNEL, 3, 3)),
        "in_b": nrm(next(keys), (O_CHANNEL,)),
        "ds": [],
    }
    for _ in range(S_NUM):
        blk = {
            "conv_w": [nrm(next(keys), (O_CHANNEL, O_CHANNEL, 3, 3))
                       for _ in range(C_NUM)],
            "conv_b": [nrm(next(keys), (O_CHANNEL,)) for _ in range(C_NUM)],
            "bn_g": [1.0 + nrm(next(keys), (O_CHANNEL,)) for _ in range(C_NUM)],
            "bn_b": [nrm(next(keys), (O_CHANNEL,)) for _ in range(C_NUM)],
            "ds_w": nrm(next(keys), (O_CHANNEL, O_CHANNEL, 2, 2)),
            "ds_b": nrm(next(keys), (O_CHANNEL,)),
        }
        params["ds"].append(blk)
    hs, ws = HEIGHT // 2 ** S_NUM, WIDTH // 2 ** S_NUM
    fc_in = O_CHANNEL * hs * ws
    params["fc1_w"] = nrm(next(keys), (FC1_NODES, fc_in))
    params["fc1_b"] = nrm(next(keys), (FC1_NODES,))
    params["out_w"] = nrm(next(keys), (DIM_LATENT, FC1_NODES))
    params["out_b"] = nrm(next(keys), (DIM_LATENT,))
    return params


if __name__ == "__main__":
    # TODO(synk): nn.BatchNorm2d running_mean/var buffer updates are stateful
    # bookkeeping that do not affect the training-mode forward output and are
    # not modeled (eval-mode normalization with running stats is not modeled).
    key = jax.random.PRNGKey(0)
    pkey, xkey = jax.random.split(key)
    params = init_params(pkey)
    x = jax.random.normal(xkey, (2, I_CHANNEL, HEIGHT, WIDTH), jnp.float32)

    out = jax.jit(lambda xx: encoder_forward(xx, params))(x)
    out = jax.block_until_ready(out)

    assert out.shape == (2, DIM_LATENT), out.shape
    assert out.dtype == jnp.float32
    assert bool(jnp.all(jnp.isfinite(out)))

    ref = jax.block_until_ready(jax.jit(lambda xx: encoder_reference(xx, params))(x))
    max_err = float(jnp.max(jnp.abs(out - ref)))
    assert bool(jnp.allclose(out, ref, atol=2e-2, rtol=2e-2)), max_err

    print("KERNEL_OK")
</pallas_src>

<mosaic_0001>
module attributes {stable_mosaic.version = 11 : i64} {
  func.func @encoder_kernel(%arg0: memref<8x712xf32, #tpu.memory_space<vmem>>, %arg1: memref<5x9x8x8xf32, #tpu.memory_space<vmem>>, %arg2: memref<2x4x8x8xf32, #tpu.memory_space<vmem>>, %arg3: memref<14x8x1xf32, #tpu.memory_space<vmem>>, %arg4: memref<8x100xf32, #tpu.memory_space<vmem>>, %arg5: memref<1x848xf32, #tpu.memory_space<vmem>>, %arg6: memref<324x100xf32, #tpu.memory_space<vmem>>, %arg7: memref<100x16xf32, #tpu.memory_space<vmem>>, %arg8: memref<8x32x32xf32, #tpu.memory_space<vmem>>, %arg9: memref<32x2xf32, #tpu.memory_space<vmem>>, %arg10: memref<32x1xf32, #tpu.memory_space<vmem>>, %arg11: memref<8x33xf32, #tpu.memory_space<vmem>>, %arg12: memref<8x2xf32, #tpu.memory_space<vmem>>, %arg13: memref<8x712xf32, #tpu.memory_space<vmem>>, %arg14: memref<8x264xf32, #tpu.memory_space<vmem>>) attributes {dimension_semantics = [], scalar_prefetch = 0 : i64, scratch_operands = 2 : i64, tpu.core_type = #tpu.core_type<tc>} {
    %c0 = arith.constant 0 : index
    %c0_0 = arith.constant 0 : index
    %0 = vector.load %arg5[%c0, %c0_0] : memref<1x848xf32, #tpu.memory_space<vmem>>, vector<1x648xf32>
    %c0_1 = arith.constant 0 : index
    %c648 = arith.constant 648 : index
    %1 = vector.load %arg5[%c0_1, %c648] : memref<1x848xf32, #tpu.memory_space<vmem>>, vector<1x200xf32>
    %cst = arith.constant 0.000000e+00 : f32
    %2 = vector.broadcast %cst : f32 to vector<8x712xf32>
    %c0_2 = arith.constant 0 : index
    %c0_3 = arith.constant 0 : index
    %3 = vector.load %arg13[%c0_2, %c0_3] : memref<8x712xf32, #tpu.memory_space<vmem>>, vector<8x712xf32>
    tpu.vector_store %arg13[%c0_2, %c0_3], %2 {strides = array<i32>} : memref<8x712xf32, #tpu.memory_space<vmem>>, vector<8x712xf32>,
    %cst_4 = arith.constant 0.000000e+00 : f32
    %4 = vector.broadcast %cst_4 : f32 to vector<8x264xf32>
    %c0_5 = arith.constant 0 : index
    %c0_6 = arith.constant 0 : index
    %5 = vector.load %arg14[%c0_5, %c0_6] : memref<8x264xf32, #tpu.memory_space<vmem>>, vector<8x264xf32>
    tpu.vector_store %arg14[%c0_5, %c0_6], %4 {strides = array<i32>} : memref<8x264xf32, #tpu.memory_space<vmem>>, vector<8x264xf32>,
    %c0_7 = arith.constant 0 : index
    %c0_8 = arith.constant 0 : index
    %c0_9 = arith.constant 0 : index
    %c0_10 = arith.constant 0 : index
    %6 = vector.load %arg1[%c0_7, %c0_8, %c0_9, %c0_10] : memref<5x9x8x8xf32, #tpu.memory_space<vmem>>, vector<1x1x8x8xf32>
    %7 = vector.shape_cast %6 : vector<1x1x8x8xf32> to vector<8x8xf32>
    %c0_11 = arith.constant 0 : index
    %c13 = arith.constant 13 : index
    %8 = vector.load %arg0[%c0_11, %c13] : memref<8x712xf32, #tpu.memory_space<vmem>>, vector<8x648xf32>
    %cst_12 = arith.constant dense<0.000000e+00> : vector<8x648xf32>
    %9 = tpu.matmul %7, %8, %cst_12 {dimension_numbers = #tpu.dot_dimension_numbers<[1], [0], [0], [1], [0, 0, 1, 1], [], []>} : vector<8x8xf32>, vector<8x648xf32>, vector<8x648xf32> -> vector<8x648xf32>
    %c0_13 = arith.constant 0 : index
    %c1 = arith.constant 1 : index
    %c0_14 = arith.constant 0 : index
    %c0_15 = arith.constant 0 : index
    %10 = vector.load %arg1[%c0_13, %c1, %c0_14, %c0_15] : memref<5x9x8x8xf32, #tpu.memory_space<vmem>>, vector<1x1x8x8xf32>
    %11 = vector.shape_cast %10 : vector<1x1x8x8xf32> to vector<8x8xf32>
    %c0_16 = arith.constant 0 : index
    %c14 = arith.constant 14 : index
    %12 = vector.load %arg0[%c0_16, %c14] : memref<8x712xf32, #tpu.memory_space<vmem>>, vector<8x648xf32>
    %cst_17 = arith.constant dense<0.000000e+00> : vector<8x648xf32>
    %13 = tpu.matmul %11, %12, %cst_17 {dimension_numbers = #tpu.dot_dimension_numbers<[1], [0], [0], [1], [0, 0, 1, 1], [], []>} : vector<8x8xf32>, vector<8x648xf32>, vector<8x648xf32> -> vector<8x648xf32>
    %14 = arith.addf %9, %13 : vector<8x648xf32>
    %c0_18 = arith.constant 0 : index
    %c2 = arith.constant 2 : index
    %c0_19 = arith.constant 0 : index
    %c0_20 = arith.constant 0 : index
    %15 = vector.load %arg1[%c0_18, %c2, %c0_19, %c0_20] : memref<5x9x8x8xf32, #tpu.memory_space<vmem>>, vector<1x1x8x8xf32>
    %16 = vector.shape_cast %15 : vector<1x1x8x8xf32> to vector<8x8xf32>
    %c0_21 = arith.constant 0 : index
    %c15 = arith.constant 15 : index
    %17 = vector.load %arg0[%c0_21, %c15] : memref<8x712xf32, #tpu.memory_space<vmem>>, vector<8x648xf32>
    %cst_22 = arith.constant dense<0.000000e+00> : vector<8x648xf32>
    %18 = tpu.matmul %16, %17, %cst_22 {dimension_numbers = #tpu.dot_dimension_numbers<[1], [0], [0], [1], [0, 0, 1, 1], [], []>} : vector<8x8xf32>, vector<8x648xf32>, vector<8x648xf32> -> vector<8x648xf32>
    %19 = arith.addf %14, %18 : vector<8x648xf32>
    %c0_23 = arith.constant 0 : index
    %c3 = arith.constant 3 : index
    %c0_24 = arith.constant 0 : index
    %c0_25 = arith.constant 0 : index
    %20 = vector.load %arg1[%c0_23, %c3, %c0_24, %c0_25] : memref<5x9x8x8xf32, #tpu.memory_space<vmem>>, vector<1x1x8x8xf32>
    %21 = vector.shape_cast %20 : vector<1x1x8x8xf32> to vector<8x8xf32>
    %c0_26 = arith.constant 0 : index
    %c31 = arith.constant 31 : index
    %22 = vector.load %arg0[%c0_26, %c31] : memref<8x712xf32, #tpu.memory_space<vmem>>, vector<8x648xf32>
    %cst_27 = arith.constant dense<0.000000e+00> : vector<8x648xf32>
    %23 = tpu.matmul %21, %22, %cst_27 {dimension_numbers = #tpu.dot_dimension_numbers<[1], [0], [0], [1], [0, 0, 1, 1], [], []>} : vector<8x8xf32>, vector<8x648xf32>, vector<8x648xf32> -> vector<8x648xf32>
    %24 = arith.addf %19, %23 : vector<8x648xf32>
    %c0_28 = arith.constant 0 : index
    %c4 = arith.constant 4 : index
    %c0_29 = arith.constant 0 : index
    %c0_30 = arith.constant 0 : index
    %25 = vector.load %arg1[%c0_28, %c4, %c0_29, %c0_30] : memref<5x9x8x8xf32, #tpu.memory_space<vmem>>, vector<1x1x8x8xf32>
    %26 = vector.shape_cast %25 : vector<1x1x8x8xf32> to vector<8x8xf32>
    %c0_31 = arith.constant 0 : index
    %c32 = arith.constant 32 : index
    %27 = vector.load %arg0[%c0_31, %c32] : memref<8x712xf32, #tpu.memory_space<vmem>>, vector<8x648xf32>
    %cst_32 = arith.constant dense<0.000000e+00> : vector<8x648xf32>
    %28 = tpu.matmul %26, %27, %cst_32 {dimension_numbers = #tpu.dot_dimension_numbers<[1], [0], [0], [1], [0, 0, 1, 1], [], []>} : vector<8x8xf32>, vector<8x648xf32>, vector<8x648xf32> -> vector<8x648xf32>
    %29 = arith.addf %24, %28 : vector<8x648xf32>
    %c0_33 = arith.constant 0 : index
    %c5 = arith.constant 5 : index
    %c0_34 = arith.constant 0 : index
    %c0_35 = arith.constant 0 : index
    %30 = vector.load %arg1[%c0_33, %c5, %c0_34, %c0_35] : memref<5x9x8x8xf32, #tpu.memory_space<vmem>>, vector<1x1x8x8xf32>
    %31 = vector.shape_cast %30 : vector<1x1x8x8xf32> to vector<8x8xf32>
    %c0_36 = arith.constant 0 : index
    %c33 = arith.constant 33 : index
    %32 = vector.load %arg0[%c0_36, %c33] : memref<8x712xf32, #tpu.memory_space<vmem>>, vector<8x648xf32>
    %cst_37 = arith.constant dense<0.000000e+00> : vector<8x648xf32>
    %33 = tpu.matmul %31, %32, %cst_37 {dimension_numbers = #tpu.dot_dimension_numbers<[1], [0], [0], [1], [0, 0, 1, 1], [], []>} : vector<8x8xf32>, vector<8x648xf32>, vector<8x648xf32> -> vector<8x648xf32>
    %34 = arith.addf %29, %33 : vector<8x648xf32>
    %c0_38 = arith.constant 0 : index
    %c6 = arith.constant 6 : index
    %c0_39 = arith.constant 0 : index
    %c0_40 = arith.constant 0 : index
    %35 = vector.load %arg1[%c0_38, %c6, %c0_39, %c0_40] : memref<5x9x8x8xf32, #tpu.memory_space<vmem>>, vector<1x1x8x8xf32>
    %36 = vector.shape_cast %35 : vector<1x1x8x8xf32> to vector<8x8xf32>
    %c0_41 = arith.constant 0 : index
    %c49 = arith.constant 49 : index
    %37 = vector.load %arg0[%c0_41, %c49] : memref<8x712xf32, #tpu.memory_space<vmem>>, vector<8x648xf32>
    %cst_42 = arith.constant dense<0.000000e+00> : vector<8x648xf32>
    %38 = tpu.matmul %36, %37, %cst_42 {dimension_numbers = #tpu.dot_dimension_numbers<[1], [0], [0], [1], [0, 0, 1, 1], [], []>} : vector<8x8xf32>, vector<8x648xf32>, vector<8x648xf32> -> vector<8x648xf32>
    %39 = arith.addf %34, %38 : vector<8x648xf32>
    %c0_43 = arith.constant 0 : index
    %c7 = arith.constant 7 : index
    %c0_44 = arith.constant 0 : index
    %c0_45 = arith.constant 0 : index
    %40 = vector.load %arg1[%c0_43, %c7, %c0_44, %c0_45] : memref<5x9x8x8xf32, #tpu.memory_space<vmem>>, vector<1x1x8x8xf32>
    %41 = vector.shape_cast %40 : vector<1x1x8x8xf32> to vector<8x8xf32>
    %c0_46 = arith.constant 0 : index
    %c50 = arith.constant 50 : index
    %42 = vector.load %arg0[%c0_46, %c50] : memref<8x712xf32, #tpu.memory_space<vmem>>, vector<8x648xf32>
    %cst_47 = arith.constant dense<0.000000e+00> : vector<8x648xf32>
    %43 = tpu.matmul %41, %42, %cst_47 {dimension_numbers = #tpu.dot_dimension_numbers<[1], [0], [0], [1], [0, 0, 1, 1], [], []>} : vector<8x8xf32>, vector<8x648xf32>, vector<8x648xf32> -> vector<8x648xf32>
    %44 = arith.addf %39, %43 : vector<8x648xf32>
    %c0_48 = arith.constant 0 : index
    %c8 = arith.constant 8 : index
    %c0_49 = arith.constant 0 : index
    %c0_50 = arith.constant 0 : index
    %45 = vector.load %arg1[%c0_48, %c8, %c0_49, %c0_50] : memref<5x9x8x8xf32, #tpu.memory_space<vmem>>, vector<1x1x8x8xf32>
    %46 = vector.shape_cast %45 : vector<1x1x8x8xf32> to vector<8x8xf32>
    %c0_51 = arith.constant 0 : index
    %c51 = arith.constant 51 : index
    %47 = vector.load %arg0[%c0_51, %c51] : memref<8x712xf32, #tpu.memory_space<vmem>>, vector<8x648xf32>
    %cst_52 = arith.constant dense<0.000000e+00> : vector<8x648xf32>
    %48 = tpu.matmul %46, %47, %cst_52 {dimension_numbers = #tpu.dot_dimension_numbers<[1], [0], [0], [1], [0, 0, 1, 1], [], []>} : vector<8x8xf32>, vector<8x648xf32>, vector<8x648xf32> -> vector<8x648xf32>
    %49 = arith.addf %44, %48 : vector<8x648xf32>
    %c0_53 = arith.constant 0 : index
    %c0_54 = arith.constant 0 : index
    %c0_55 = arith.constant 0 : index
    %50 = vector.load %arg3[%c0_53, %c0_54, %c0_55] : memref<14x8x1xf32, #tpu.memory_space<vmem>>, vector<1x8x1xf32>
    %51 = vector.shape_cast %50 : vector<1x8x1xf32> to vector<8x1xf32>
    %52 = vector.broadcast %51 : vector<8x1xf32> to vector<8x648xf32>
    %53 = arith.addf %49, %52 : vector<8x648xf32>
    %cst_56 = arith.constant 0.000000e+00 : f32
    %54 = vector.broadcast %cst_56 : f32 to vector<8x648xf32>
    %55 = arith.maximumf %53, %54 : vector<8x648xf32>
    %56 = vector.broadcast %0 : vector<1x648xf32> to vector<8x648xf32>
    %57 = arith.mulf %55, %56 : vector<8x648xf32>
    %c0_57 = arith.constant 0 : index
    %c32_58 = arith.constant 32 : index
    %58 = vector.load %arg13[%c0_57, %c32_58] : memref<8x712xf32, #tpu.memory_space<vmem>>, vector<8x648xf32>
    tpu.vector_store %arg13[%c0_57, %c32_58], %57 {strides = array<i32>} : memref<8x712xf32, #tpu.memory_space<vmem>>, vector<8x648xf32>,
    %c0_59 = arith.constant 0 : index
    %c32_60 = arith.constant 32 : index
    %59 = vector.load %arg13[%c0_59, %c32_60] : memref<8x712xf32, #tpu.memory_space<vmem>>, vector<8x648xf32>
    %c1_61 = arith.constant 1 : index
    %c0_62 = arith.constant 0 : index
    %c0_63 = arith.constant 0 : index
    %c0_64 = arith.constant 0 : index
    %60 = vector.load %arg1[%c1_61, %c0_62, %c0_63, %c0_64] : memref<5x9x8x8xf32, #tpu.memory_space<vmem>>, vector<1x1x8x8xf32>
    %61 = vector.shape_cast %60 : vector<1x1x8x8xf32> to vector<8x8xf32>
    %c0_65 = arith.constant 0 : index
    %c13_66 = arith.constant 13 : index
    %62 = vector.load %arg13[%c0_65, %c13_66] : memref<8x712xf32, #tpu.memory_space<vmem>>, vector<8x648xf32>
    %cst_67 = arith.constant dense<0.000000e+00> : vector<8x648xf32>
    %63 = tpu.matmul %61, %62, %cst_67 {dimension_numbers = #tpu.dot_dimension_numbers<[1], [0], [0], [1], [0, 0, 1, 1], [], []>} : vector<8x8xf32>, vector<8x648xf32>, vector<8x648xf32> -> vector<8x648xf32>
    %c1_68 = arith.constant 1 : index
    %c1_69 = arith.constant 1 : index
    %c0_70 = arith.constant 0 : index
    %c0_71 = arith.constant 0 : index
    %64 = vector.load %arg1[%c1_68, %c1_69, %c0_70, %c0_71] : memref<5x9x8x8xf32, #tpu.memory_space<vmem>>, vector<1x1x8x8xf32>
    %65 = vector.shape_cast %64 : vector<1x1x8x8xf32> to vector<8x8xf32>
    %c0_72 = arith.constant 0 : index
    %c14_73 = arith.constant 14 : index
    %66 = vector.load %arg13[%c0_72, %c14_73] : memref<8x712xf32, #tpu.memory_space<vmem>>, vector<8x648xf32>
    %cst_74 = arith.constant dense<0.000000e+00> : vector<8x648xf32>
    %67 = tpu.matmul %65, %66, %cst_74 {dimension_numbers = #tpu.dot_dimension_numbers<[1], [0], [0], [1], [0, 0, 1, 1], [], []>} : vector<8x8xf32>, vector<8x648xf32>, vector<8x648xf32> -> vector<8x648xf32>
    %68 = arith.addf %63, %67 : vector<8x648xf32>
    %c1_75 = arith.constant 1 : index
    %c2_76 = arith.constant 2 : index
    %c0_77 = arith.constant 0 : index
    %c0_78 = arith.constant 0 : index
    %69 = vector.load %arg1[%c1_75, %c2_76, %c0_77, %c0_78] : memref<5x9x8x8xf32, #tpu.memory_space<vmem>>, vector<1x1x8x8xf32>
    %70 = vector.shape_cast %69 : vector<1x1x8x8xf32> to vector<8x8xf32>
    %c0_79 = arith.constant 0 : index
    %c15_80 = arith.constant 15 : index
    %71 = vector.load %arg13[%c0_79, %c15_80] : memref<8x712xf32, #tpu.memory_space<vmem>>, vector<8x648xf32>
    %cst_81 = arith.constant dense<0.000000e+00> : vector<8x648xf32>
    %72 = tpu.matmul %70, %71, %cst_81 {dimension_numbers = #tpu.dot_dimension_numbers<[1], [0], [0], [1], [0, 0, 1, 1], [], []>} : vector<8x8xf32>, vector<8x648xf32>, vector<8x648xf32> -> vector<8x648xf32>
    %73 = arith.addf %68, %72 : vector<8x648xf32>
    %c1_82 = arith.constant 1 : index
    %c3_83 = arith.constant 3 : index
    %c0_84 = arith.constant 0 : index
    %c0_85 = arith.constant 0 : index
    %74 = vector.load %arg1[%c1_82, %c3_83, %c0_84, %c0_85] : memref<5x9x8x8xf32, #tpu.memory_space<vmem>>, vector<1x1x8x8xf32>
    %75 = vector.shape_cast %74 : vector<1x1x8x8xf32> to vector<8x8xf32>
    %c0_86 = arith.constant 0 : index
    %c31_87 = arith.constant 31 : index
    %76 = vector.load %arg13[%c0_86, %c31_87] : memref<8x712xf32, #tpu.memory_space<vmem>>, vector<8x648xf32>
    %cst_88 = arith.constant dense<0.000000e+00> : vector<8x648xf32>
    %77 = tpu.matmul %75, %76, %cst_88 {dimension_numbers = #tpu.dot_dimension_numbers<[1], [0], [0], [1], [0, 0, 1, 1], [], []>} : vector<8x8xf32>, vector<8x648xf32>, vector<8x648xf32> -> vector<8x648xf32>
    %78 = arith.addf %73, %77 : vector<8x648xf32>
    %c1_89 = arith.constant 1 : index
    %c4_90 = arith.constant 4 : index
    %c0_91 = arith.constant 0 : index
    %c0_92 = arith.constant 0 : index
    %79 = vector.load %arg1[%c1_89, %c4_90, %c0_91, %c0_92] : memref<5x9x8x8xf32, #tpu.memory_space<vmem>>, vector<1x1x8x8xf32>
    %80 = vector.shape_cast %79 : vector<1x1x8x8xf32> to vector<8x8xf32>
    %c0_93 = arith.constant 0 : index
    %c32_94 = arith.constant 32 : index
    %81 = vector.load %arg13[%c0_93, %c32_94] : memref<8x712xf32, #tpu.memory_space<vmem>>, vector<8x648xf32>
    %cst_95 = arith.constant dense<0.000000e+00> : vector<8x648xf32>
    %82 = tpu.matmul %80, %81, %cst_95 {dimension_numbers = #tpu.dot_dimension_numbers<[1], [0], [0], [1], [0, 0, 1, 1], [], []>} : vector<8x8xf32>, vector<8x648xf32>, vector<8x648xf32> -> vector<8x648xf32>
    %83 = arith.addf %78, %82 : vector<8x648xf32>
    %c1_96 = arith.constant 1 : index
    %c5_97 = arith.constant 5 : index
    %c0_98 = arith.constant 0 : index
    %c0_99 = arith.constant 0 : index
    %84 = vector.load %arg1[%c1_96, %c5_97, %c0_98, %c0_99] : memref<5x9x8x8xf32, #tpu.memory_space<vmem>>, vector<1x1x8x8xf32>
    %85 = vector.shape_cast %84 : vector<1x1x8x8xf32> to vector<8x8xf32>
    %c0_100 = arith.constant 0 : index
    %c33_101 = arith.constant 33 : index
    %86 = vector.load %arg13[%c0_100, %c33_101] : memref<8x712xf32, #tpu.memory_space<vmem>>, vector<8x648xf32>
    %cst_102 = arith.constant dense<0.000000e+00> : vector<8x648xf32>
    %87 = tpu.matmul %85, %86, %cst_102 {dimension_numbers = #tpu.dot_dimension_numbers<[1], [0], [0], [1], [0, 0, 1, 1], [], []>} : vector<8x8xf32>, vector<8x648xf32>, vector<8x648xf32> -> vector<8x648xf32>
    %88 = arith.addf %83, %87 : vector<8x648xf32>
    %c1_103 = arith.constant 1 : index
    %c6_104 = arith.constant 6 : index
    %c0_105 = arith.constant 0 : index
    %c0_106 = arith.constant 0 : index
    %89 = vector.load %arg1[%c1_103, %c6_104, %c0_105, %c0_106] : memref<5x9x8x8xf32, #tpu.memory_space<vmem>>, vector<1x1x8x8xf32>
    %90 = vector.shape_cast %89 : vector<1x1x8x8xf32> to vector<8x8xf32>
    %c0_107 = arith.constant 0 : index
    %c49_108 = arith.constant 49 : index
    %91 = vector.load %arg13[%c0_107, %c49_108] : memref<8x712xf32, #tpu.memory_space<vmem>>, vector<8x648xf32>
    %cst_109 = arith.constant dense<0.000000e+00> : vector<8x648xf32>
    %92 = tpu.matmul %90, %91, %cst_109 {dimension_numbers = #tpu.dot_dimension_numbers<[1], [0], [0], [1], [0, 0, 1, 1], [], []>} : vector<8x8xf32>, vector<8x648xf32>, vector<8x648xf32> -> vector<8x648xf32>
    %93 = arith.addf %88, %92 : vector<8x648xf32>
    %c1_110 = arith.constant 1 : index
    %c7_111 = arith.constant 7 : index
    %c0_112 = arith.constant 0 : index
    %c0_113 = arith.constant 0 : index
    %94 = vector.load %arg1[%c1_110, %c7_111, %c0_112, %c0_113] : memref<5x9x8x8xf32, #tpu.memory_space<vmem>>, vector<1x1x8x8xf32>
    %95 = vector.shape_cast %94 : vector<1x1x8x8xf32> to vector<8x8xf32>
    %c0_114 = arith.constant 0 : index
    %c50_115 = arith.constant 50 : index
    %96 = vector.load %arg13[%c0_114, %c50_115] : memref<8x712xf32, #tpu.memory_space<vmem>>, vector<8x648xf32>
    %cst_116 = arith.constant dense<0.000000e+00> : vector<8x648xf32>
    %97 = tpu.matmul %95, %96, %cst_116 {dimension_numbers = #tpu.dot_dimension_numbers<[1], [0], [0], [1], [0, 0, 1, 1], [], []>} : vector<8x8xf32>, vector<8x648xf32>, vector<8x648xf32> -> vector<8x648xf32>
    %98 = arith.addf %93, %97 : vector<8x648xf32>
    %c1_117 = arith.constant 1 : index
    %c8_118 = arith.constant 8 : index
    %c0_119 = arith.constant 0 : index
    %c0_120 = arith.constant 0 : index
    %99 = vector.load %arg1[%c1_117, %c8_118, %c0_119, %c0_120] : memref<5x9x8x8xf32, #tpu.memory_space<vmem>>, vector<1x1x8x8xf32>
    %100 = vector.shape_cast %99 : vector<1x1x8x8xf32> to vector<8x8xf32>
    %c0_121 = arith.constant 0 : index
    %c51_122 = arith.constant 51 : index
    %101 = vector.load %arg13[%c0_121, %c51_122] : memref<8x712xf32, #tpu.memory_space<vmem>>, vector<8x648xf32>
    %cst_123 = arith.constant dense<0.000000e+00> : vector<8x648xf32>
    %102 = tpu.matmul %100, %101, %cst_123 {dimension_numbers = #tpu.dot_dimension_numbers<[1], [0], [0], [1], [0, 0, 1, 1], [], []>} : vector<8x8xf32>, vector<8x648xf32>, vector<8x648xf32> -> vector<8x648xf32>
    %103 = arith.addf %98, %102 : vector<8x648xf32>
    %c1_124 = arith.constant 1 : index
    %c0_125 = arith.constant 0 : index
    %c0_126 = arith.constant 0 : index
    %104 = vector.load %arg3[%c1_124, %c0_125, %c0_126] : memref<14x8x1xf32, #tpu.memory_space<vmem>>, vector<1x8x1xf32>
    %105 = vector.shape_cast %104 : vector<1x8x1xf32> to vector<8x1xf32>
    %106 = vector.broadcast %105 : vector<8x1xf32> to vector<8x648xf32>
    %107 = arith.addf %103, %106 : vector<8x648xf32>
    %c3_127 = arith.constant 3 : index
    %c0_128 = arith.constant 0 : index
    %c0_129 = arith.constant 0 : index
    %108 = vector.load %arg3[%c3_127, %c0_128, %c0_129] : memref<14x8x1xf32, #tpu.memory_space<vmem>>, vector<1x8x1xf32>
    %109 = vector.shape_cast %108 : vector<1x8x1xf32> to vector<8x1xf32>
    %c5_130 = arith.constant 5 : index
    %c0_131 = arith.constant 0 : index
    %c0_132 = arith.constant 0 : index
    %110 = vector.load %arg3[%c5_130, %c0_131, %c0_132] : memref<14x8x1xf32, #tpu.memory_space<vmem>>, vector<1x8x1xf32>
    %111 = vector.shape_cast %110 : vector<1x8x1xf32> to vector<8x1xf32>
    %112 = vector.broadcast %0 : vector<1x648xf32> to vector<8x648xf32>
    %113 = arith.mulf %107, %112 : vector<8x648xf32>
    %cst_133 = arith.constant dense<0.000000e+00> : vector<8xf32>
    %114 = vector.multi_reduction <add>, %113, %cst_133 [1] : vector<8x648xf32> to vector<8xf32>
    %115 = vector.shape_cast %114 : vector<8xf32> to vector<8x1xf32>
    %cst_134 = arith.constant 0.001953125 : f32
    %116 = vector.broadcast %cst_134 : f32 to vector<8x1xf32>
    %117 = arith.mulf %115, %116 : vector<8x1xf32>
    %118 = arith.mulf %113, %113 : vector<8x648xf32>
    %cst_135 = arith.constant dense<0.000000e+00> : vector<8xf32>
    %119 = vector.multi_reduction <add>, %118, %cst_135 [1] : vector<8x648xf32> to vector<8xf32>
    %120 = vector.shape_cast %119 : vector<8xf32> to vector<8x1xf32>
    %cst_136 = arith.constant 0.001953125 : f32
    %121 = vector.broadcast %cst_136 : f32 to vector<8x1xf32>
    %122 = arith.mulf %120, %121 : vector<8x1xf32>
    %123 = arith.mulf %117, %117 : vector<8x1xf32>
    %124 = arith.subf %122, %123 : vector<8x1xf32>
    %cst_137 = arith.constant 9.99999974E-6 : f32
    %125 = vector.broadcast %cst_137 : f32 to vector<8x1xf32>
    %126 = arith.addf %124, %125 : vector<8x1xf32>
    %127 = math.rsqrt %126 : vector<8x1xf32>
    %128 = arith.mulf %109, %127 : vector<8x1xf32>
    %129 = arith.mulf %117, %128 : vector<8x1xf32>
    %130 = arith.subf %111, %129 : vector<8x1xf32>
    %131 = vector.broadcast %128 : vector<8x1xf32> to vector<8x648xf32>
    %132 = arith.mulf %113, %131 : vector<8x648xf32>
    %133 = vector.broadcast %130 : vector<8x1xf32> to vector<8x648xf32>
    %134 = arith.addf %132, %133 : vector<8x648xf32>
    %cst_138 = arith.constant 0.000000e+00 : f32
    %135 = vector.broadcast %cst_138 : f32 to vector<8x648xf32>
    %136 = arith.maximumf %134, %135 : vector<8x648xf32>
    %137 = vector.broadcast %0 : vector<1x648xf32> to vector<8x648xf32>
    %138 = arith.mulf %136, %137 : vector<8x648xf32>
    %c0_139 = arith.constant 0 : index
    %c32_140 = arith.constant 32 : index
    %139 = vector.load %arg13[%c0_139, %c32_140] : memref<8x712xf32, #tpu.memory_space<vmem>>, vector<8x648xf32>
    tpu.vector_store %arg13[%c0_139, %c32_140], %138 {strides = array<i32>} : memref<8x712xf32, #tpu.memory_space<vmem>>, vector<8x648xf32>,
    %c2_141 = arith.constant 2 : index
    %c0_142 = arith.constant 0 : index
    %c0_143 = arith.constant 0 : index
    %c0_144 = arith.constant 0 : index
    %140 = vector.load %arg1[%c2_141, %c0_142, %c0_143, %c0_144] : memref<5x9x8x8xf32, #tpu.memory_space<vmem>>, vector<1x1x8x8xf32>
    %141 = vector.shape_cast %140 : vector<1x1x8x8xf32> to vector<8x8xf32>
    %c0_145 = arith.constant 0 : index
    %c13_146 = arith.constant 13 : index
    %142 = vector.load %arg13[%c0_145, %c13_146] : memref<8x712xf32, #tpu.memory_space<vmem>>, vector<8x648xf32>
    %cst_147 = arith.constant dense<0.000000e+00> : vector<8x648xf32>
    %143 = tpu.matmul %141, %142, %cst_147 {dimension_numbers = #tpu.dot_dimension_numbers<[1], [0], [0], [1], [0, 0, 1, 1], [], []>} : vector<8x8xf32>, vector<8x648xf32>, vector<8x648xf32> -> vector<8x648xf32>
    %c2_148 = arith.constant 2 : index
    %c1_149 = arith.constant 1 : index
    %c0_150 = arith.constant 0 : index
    %c0_151 = arith.constant 0 : index
    %144 = vector.load %arg1[%c2_148, %c1_149, %c0_150, %c0_151] : memref<5x9x8x8xf32, #tpu.memory_space<vmem>>, vector<1x1x8x8xf32>
    %145 = vector.shape_cast %144 : vector<1x1x8x8xf32> to vector<8x8xf32>
    %c0_152 = arith.constant 0 : index
    %c14_153 = arith.constant 14 : index
    %146 = vector.load %arg13[%c0_152, %c14_153] : memref<8x712xf32, #tpu.memory_space<vmem>>, vector<8x648xf32>
    %cst_154 = arith.constant dense<0.000000e+00> : vector<8x648xf32>
    %147 = tpu.matmul %145, %146, %cst_154 {dimension_numbers = #tpu.dot_dimension_numbers<[1], [0], [0], [1], [0, 0, 1, 1], [], []>} : vector<8x8xf32>, vector<8x648xf32>, vector<8x648xf32> -> vector<8x648xf32>
    %148 = arith.addf %143, %147 : vector<8x648xf32>
    %c2_155 = arith.constant 2 : index
    %c2_156 = arith.constant 2 : index
    %c0_157 = arith.constant 0 : index
    %c0_158 = arith.constant 0 : index
    %149 = vector.load %arg1[%c2_155, %c2_156, %c0_157, %c0_158] : memref<5x9x8x8xf32, #tpu.memory_space<vmem>>, vector<1x1x8x8xf32>
    %150 = vector.shape_cast %149 : vector<1x1x8x8xf32> to vector<8x8xf32>
    %c0_159 = arith.constant 0 : index
    %c15_160 = arith.constant 15 : index
    %151 = vector.load %arg13[%c0_159, %c15_160] : memref<8x712xf32, #tpu.memory_space<vmem>>, vector<8x648xf32>
    %cst_161 = arith.constant dense<0.000000e+00> : vector<8x648xf32>
    %152 = tpu.matmul %150, %151, %cst_161 {dimension_numbers = #tpu.dot_dimension_numbers<[1], [0], [0], [1], [0, 0, 1, 1], [], []>} : vector<8x8xf32>, vector<8x648xf32>, vector<8x648xf32> -> vector<8x648xf32>
    %153 = arith.addf %148, %152 : vector<8x648xf32>
    %c2_162 = arith.constant 2 : index
    %c3_163 = arith.constant 3 : index
    %c0_164 = arith.constant 0 : index
    %c0_165 = arith.constant 0 : index
    %154 = vector.load %arg1[%c2_162, %c3_163, %c0_164, %c0_165] : memref<5x9x8x8xf32, #tpu.memory_space<vmem>>, vector<1x1x8x8xf32>
    %155 = vector.shape_cast %154 : vector<1x1x8x8xf32> to vector<8x8xf32>
    %c0_166 = arith.constant 0 : index
    %c31_167 = arith.constant 31 : index
    %156 = vector.load %arg13[%c0_166, %c31_167] : memref<8x712xf32, #tpu.memory_space<vmem>>, vector<8x648xf32>
    %cst_168 = arith.constant dense<0.000000e+00> : vector<8x648xf32>
    %157 = tpu.matmul %155, %156, %cst_168 {dimension_numbers = #tpu.dot_dimension_numbers<[1], [0], [0], [1], [0, 0, 1, 1], [], []>} : vector<8x8xf32>, vector<8x648xf32>, vector<8x648xf32> -> vector<8x648xf32>
    %158 = arith.addf %153, %157 : vector<8x648xf32>
    %c2_169 = arith.constant 2 : index
    %c4_170 = arith.constant 4 : index
    %c0_171 = arith.constant 0 : index
    %c0_172 = arith.constant 0 : index
    %159 = vector.load %arg1[%c2_169, %c4_170, %c0_171, %c0_172] : memref<5x9x8x8xf32, #tpu.memory_space<vmem>>, vector<1x1x8x8xf32>
    %160 = vector.shape_cast %159 : vector<1x1x8x8xf32> to vector<8x8xf32>
    %c0_173 = arith.constant 0 : index
    %c32_174 = arith.constant 32 : index
    %161 = vector.load %arg13[%c0_173, %c32_174] : memref<8x712xf32, #tpu.memory_space<vmem>>, vector<8x648xf32>
    %cst_175 = arith.constant dense<0.000000e+00> : vector<8x648xf32>
    %162 = tpu.matmul %160, %161, %cst_175 {dimension_numbers = #tpu.dot_dimension_numbers<[1], [0], [0], [1], [0, 0, 1, 1], [], []>} : vector<8x8xf32>, vector<8x648xf32>, vector<8x648xf32> -> vector<8x648xf32>
    %163 = arith.addf %158, %162 : vector<8x648xf32>
    %c2_176 = arith.constant 2 : index
    %c5_177 = arith.constant 5 : index
    %c0_178 = arith.constant 0 : index
    %c0_179 = arith.constant 0 : index
    %164 = vector.load %arg1[%c2_176, %c5_177, %c0_178, %c0_179] : memref<5x9x8x8xf32, #tpu.memory_space<vmem>>, vector<1x1x8x8xf32>
    %165 = vector.shape_cast %164 : vector<1x1x8x8xf32> to vector<8x8xf32>
    %c0_180 = arith.constant 0 : index
    %c33_181 = arith.constant 33 : index
    %166 = vector.load %arg13[%c0_180, %c33_181] : memref<8x712xf32, #tpu.memory_space<vmem>>, vector<8x648xf32>
    %cst_182 = arith.constant dense<0.000000e+00> : vector<8x648xf32>
    %167 = tpu.matmul %165, %166, %cst_182 {dimension_numbers = #tpu.dot_dimension_numbers<[1], [0], [0], [1], [0, 0, 1, 1], [], []>} : vector<8x8xf32>, vector<8x648xf32>, vector<8x648xf32> -> vector<8x648xf32>
    %168 = arith.addf %163, %167 : vector<8x648xf32>
    %c2_183 = arith.constant 2 : index
    %c6_184 = arith.constant 6 : index
    %c0_185 = arith.constant 0 : index
    %c0_186 = arith.constant 0 : index
    %169 = vector.load %arg1[%c2_183, %c6_184, %c0_185, %c0_186] : memref<5x9x8x8xf32, #tpu.memory_space<vmem>>, vector<1x1x8x8xf32>
    %170 = vector.shape_cast %169 : vector<1x1x8x8xf32> to vector<8x8xf32>
    %c0_187 = arith.constant 0 : index
    %c49_188 = arith.constant 49 : index
    %171 = vector.load %arg13[%c0_187, %c49_188] : memref<8x712xf32, #tpu.memory_space<vmem>>, vector<8x648xf32>
    %cst_189 = arith.constant dense<0.000000e+00> : vector<8x648xf32>
    %172 = tpu.matmul %170, %171, %cst_189 {dimension_numbers = #tpu.dot_dimension_numbers<[1], [0], [0], [1], [0, 0, 1, 1], [], []>} : vector<8x8xf32>, vector<8x648xf32>, vector<8x648xf32> -> vector<8x648xf32>
    %173 = arith.addf %168, %172 : vector<8x648xf32>
    %c2_190 = arith.constant 2 : index
    %c7_191 = arith.constant 7 : index
    %c0_192 = arith.constant 0 : index
    %c0_193 = arith.constant 0 : index
    %174 = vector.load %arg1[%c2_190, %c7_191, %c0_192, %c0_193] : memref<5x9x8x8xf32, #tpu.memory_space<vmem>>, vector<1x1x8x8xf32>
    %175 = vector.shape_cast %174 : vector<1x1x8x8xf32> to vector<8x8xf32>
    %c0_194 = arith.constant 0 : index
    %c50_195 = arith.constant 50 : index
    %176 = vector.load %arg13[%c0_194, %c50_195] : memref<8x712xf32, #tpu.memory_space<vmem>>, vector<8x648xf32>
    %cst_196 = arith.constant dense<0.000000e+00> : vector<8x648xf32>
    %177 = tpu.matmul %175, %176, %cst_196 {dimension_numbers = #tpu.dot_dimension_numbers<[1], [0], [0], [1], [0, 0, 1, 1], [], []>} : vector<8x8xf32>, vector<8x648xf32>, vector<8x648xf32> -> vector<8x648xf32>
    %178 = arith.addf %173, %177 : vector<8x648xf32>
    %c2_197 = arith.constant 2 : index
    %c8_198 = arith.constant 8 : index
    %c0_199 = arith.constant 0 : index
    %c0_200 = arith.constant 0 : index
    %179 = vector.load %arg1[%c2_197, %c8_198, %c0_199, %c0_200] : memref<5x9x8x8xf32, #tpu.memory_space<vmem>>, vector<1x1x8x8xf32>
    %180 = vector.shape_cast %179 : vector<1x1x8x8xf32> to vector<8x8xf32>
    %c0_201 = arith.constant 0 : index
    %c51_202 = arith.constant 51 : index
    %181 = vector.load %arg13[%c0_201, %c51_202] : memref<8x712xf32, #tpu.memory_space<vmem>>, vector<8x648xf32>
    %cst_203 = arith.constant dense<0.000000e+00> : vector<8x648xf32>
    %182 = tpu.matmul %180, %181, %cst_203 {dimension_numbers = #tpu.dot_dimension_numbers<[1], [0], [0], [1], [0, 0, 1, 1], [], []>} : vector<8x8xf32>, vector<8x648xf32>, vector<8x648xf32> -> vector<8x648xf32>
    %183 = arith.addf %178, %182 : vector<8x648xf32>
    %c2_204 = arith.constant 2 : index
    %c0_205 = arith.constant 0 : index
    %c0_206 = arith.constant 0 : index
    %184 = vector.load %arg3[%c2_204, %c0_205, %c0_206] : memref<14x8x1xf32, #tpu.memory_space<vmem>>, vector<1x8x1xf32>
    %185 = vector.shape_cast %184 : vector<1x8x1xf32> to vector<8x1xf32>
    %186 = vector.broadcast %185 : vector<8x1xf32> to vector<8x648xf32>
    %187 = arith.addf %183, %186 : vector<8x648xf32>
    %c4_207 = arith.constant 4 : index
    %c0_208 = arith.constant 0 : index
    %c0_209 = arith.constant 0 : index
    %188 = vector.load %arg3[%c4_207, %c0_208, %c0_209] : memref<14x8x1xf32, #tpu.memory_space<vmem>>, vector<1x8x1xf32>
    %189 = vector.shape_cast %188 : vector<1x8x1xf32> to vector<8x1xf32>
    %c6_210 = arith.constant 6 : index
    %c0_211 = arith.constant 0 : index
    %c0_212 = arith.constant 0 : index
    %190 = vector.load %arg3[%c6_210, %c0_211, %c0_212] : memref<14x8x1xf32, #tpu.memory_space<vmem>>, vector<1x8x1xf32>
    %191 = vector.shape_cast %190 : vector<1x8x1xf32> to vector<8x1xf32>
    %192 = vector.broadcast %0 : vector<1x648xf32> to vector<8x648xf32>
    %193 = arith.mulf %187, %192 : vector<8x648xf32>
    %cst_213 = arith.constant dense<0.000000e+00> : vector<8xf32>
    %194 = vector.multi_reduction <add>, %193, %cst_213 [1] : vector<8x648xf32> to vector<8xf32>
    %195 = vector.shape_cast %194 : vector<8xf32> to vector<8x1xf32>
    %cst_214 = arith.constant 0.001953125 : f32
    %196 = vector.broadcast %cst_214 : f32 to vector<8x1xf32>
    %197 = arith.mulf %195, %196 : vector<8x1xf32>
    %198 = arith.mulf %193, %193 : vector<8x648xf32>
    %cst_215 = arith.constant dense<0.000000e+00> : vector<8xf32>
    %199 = vector.multi_reduction <add>, %198, %cst_215 [1] : vector<8x648xf32> to vector<8xf32>
    %200 = vector.shape_cast %199 : vector<8xf32> to vector<8x1xf32>
    %cst_216 = arith.constant 0.001953125 : f32
    %201 = vector.broadcast %cst_216 : f32 to vector<8x1xf32>
    %202 = arith.mulf %200, %201 : vector<8x1xf32>
    %203 = arith.mulf %197, %197 : vector<8x1xf32>
    %204 = arith.subf %202, %203 : vector<8x1xf32>
    %cst_217 = arith.constant 9.99999974E-6 : f32
    %205 = vector.broadcast %cst_217 : f32 to vector<8x1xf32>
    %206 = arith.addf %204, %205 : vector<8x1xf32>
    %207 = math.rsqrt %206 : vector<8x1xf32>
    %208 = arith.mulf %189, %207 : vector<8x1xf32>
    %209 = arith.mulf %197, %208 : vector<8x1xf32>
    %210 = arith.subf %191, %209 : vector<8x1xf32>
    %211 = vector.broadcast %208 : vector<8x1xf32> to vector<8x648xf32>
    %212 = arith.mulf %193, %211 : vector<8x648xf32>
    %213 = vector.broadcast %210 : vector<8x1xf32> to vector<8x648xf32>
    %214 = arith.addf %212, %213 : vector<8x648xf32>
    %cst_218 = arith.constant 0.000000e+00 : f32
    %215 = vector.broadcast %cst_218 : f32 to vector<8x648xf32>
    %216 = arith.maximumf %214, %215 : vector<8x648xf32>
    %217 = vector.broadcast %0 : vector<1x648xf32> to vector<8x648xf32>
    %218 = arith.mulf %216, %217 : vector<8x648xf32>
    %219 = arith.addf %218, %59 : vector<8x648xf32>
    %c0_219 = arith.constant 0 : index
    %c32_220 = arith.constant 32 : index
    %220 = vector.load %arg13[%c0_219, %c32_220] : memref<8x712xf32, #tpu.memory_space<vmem>>, vector<8x648xf32>
    tpu.vector_store %arg13[%c0_219, %c32_220], %219 {strides = array<i32>} : memref<8x712xf32, #tpu.memory_space<vmem>>, vector<8x648xf32>,
    %c0_221 = arith.constant 0 : index
    %c0_222 = arith.constant 0 : index
    %c0_223 = arith.constant 0 : index
    %c0_224 = arith.constant 0 : index
    %221 = vector.load %arg2[%c0_221, %c0_222, %c0_223, %c0_224] : memref<2x4x8x8xf32, #tpu.memory_space<vmem>>, vector<1x1x8x8xf32>
    %222 = vector.shape_cast %221 : vector<1x1x8x8xf32> to vector<8x8xf32>
    %c0_225 = arith.constant 0 : index
    %c32_226 = arith.constant 32 : index
    %223 = vector.load %arg13[%c0_225, %c32_226] : memref<8x712xf32, #tpu.memory_space<vmem>>, vector<8x648xf32>
    %cst_227 = arith.constant dense<0.000000e+00> : vector<8x648xf32>
    %224 = tpu.matmul %222, %223, %cst_227 {dimension_numbers = #tpu.dot_dimension_numbers<[1], [0], [0], [1], [0, 0, 1, 1], [], []>} : vector<8x8xf32>, vector<8x648xf32>, vector<8x648xf32> -> vector<8x648xf32>
    %c0_228 = arith.constant 0 : index
    %c1_229 = arith.constant 1 : index
    %c0_230 = arith.constant 0 : index
    %c0_231 = arith.constant 0 : index
    %225 = vector.load %arg2[%c0_228, %c1_229, %c0_230, %c0_231] : memref<2x4x8x8xf32, #tpu.memory_space<vmem>>, vector<1x1x8x8xf32>
    %226 = vector.shape_cast %225 : vector<1x1x8x8xf32> to vector<8x8xf32>
    %c0_232 = arith.constant 0 : index
    %c33_233 = arith.constant 33 : index
    %227 = vector.load %arg13[%c0_232, %c33_233] : memref<8x712xf32, #tpu.memory_space<vmem>>, vector<8x648xf32>
    %cst_234 = arith.constant dense<0.000000e+00> : vector<8x648xf32>
    %228 = tpu.matmul %226, %227, %cst_234 {dimension_numbers = #tpu.dot_dimension_numbers<[1], [0], [0], [1], [0, 0, 1, 1], [], []>} : vector<8x8xf32>, vector<8x648xf32>, vector<8x648xf32> -> vector<8x648xf32>
    %229 = arith.addf %224, %228 : vector<8x648xf32>
    %c0_235 = arith.constant 0 : index
    %c2_236 = arith.constant 2 : index
    %c0_237 = arith.constant 0 : index
    %c0_238 = arith.constant 0 : index
    %230 = vector.load %arg2[%c0_235, %c2_236, %c0_237, %c0_238] : memref<2x4x8x8xf32, #tpu.memory_space<vmem>>, vector<1x1x8x8xf32>
    %231 = vector.shape_cast %230 : vector<1x1x8x8xf32> to vector<8x8xf32>
    %c0_239 = arith.constant 0 : index
    %c50_240 = arith.constant 50 : index
    %232 = vector.load %arg13[%c0_239, %c50_240] : memref<8x712xf32, #tpu.memory_space<vmem>>, vector<8x648xf32>
    %cst_241 = arith.constant dense<0.000000e+00> : vector<8x648xf32>
    %233 = tpu.matmul %231, %232, %cst_241 {dimension_numbers = #tpu.dot_dimension_numbers<[1], [0], [0], [1], [0, 0, 1, 1], [], []>} : vector<8x8xf32>, vector<8x648xf32>, vector<8x648xf32> -> vector<8x648xf32>
    %234 = arith.addf %229, %233 : vector<8x648xf32>
    %c0_242 = arith.constant 0 : index
    %c3_243 = arith.constant 3 : index
    %c0_244 = arith.constant 0 : index
    %c0_245 = arith.constant 0 : index
    %235 = vector.load %arg2[%c0_242, %c3_243, %c0_244, %c0_245] : memref<2x4x8x8xf32, #tpu.memory_space<vmem>>, vector<1x1x8x8xf32>
    %236 = vector.shape_cast %235 : vector<1x1x8x8xf32> to vector<8x8xf32>
    %c0_246 = arith.constant 0 : index
    %c51_247 = arith.constant 51 : index
    %237 = vector.load %arg13[%c0_246, %c51_247] : memref<8x712xf32, #tpu.memory_space<vmem>>, vector<8x648xf32>
    %cst_248 = arith.constant dense<0.000000e+00> : vector<8x648xf32>
    %238 = tpu.matmul %236, %237, %cst_248 {dimension_numbers = #tpu.dot_dimension_numbers<[1], [0], [0], [1], [0, 0, 1, 1], [], []>} : vector<8x8xf32>, vector<8x648xf32>, vector<8x648xf32> -> vector<8x648xf32>
    %239 = arith.addf %234, %238 : vector<8x648xf32>
    %240 = vector.extract_strided_slice %239 {offsets = [0, 0], sizes = [8, 324], strides = [1, 1]} : vector<8x648xf32> to vector<8x324xf32>
    %c0_249 = arith.constant 0 : index
    %c0_250 = arith.constant 0 : index
    %241 = vector.load %arg6[%c0_249, %c0_250] : memref<324x100xf32, #tpu.memory_space<vmem>>, vector<324x100xf32>
    %cst_251 = arith.constant dense<0.000000e+00> : vector<8x100xf32>
    %242 = tpu.matmul %240, %241, %cst_251 {dimension_numbers = #tpu.dot_dimension_numbers<[1], [0], [0], [1], [0, 0, 1, 1], [], []>} : vector<8x324xf32>, vector<324x100xf32>, vector<8x100xf32> -> vector<8x100xf32>
    %c0_252 = arith.constant 0 : index
    %c0_253 = arith.constant 0 : index
    %243 = vector.load %arg4[%c0_252, %c0_253] : memref<8x100xf32, #tpu.memory_space<vmem>>, vector<8x100xf32>
    %244 = arith.addf %242, %243 : vector<8x100xf32>
    %cst_254 = arith.constant 0.000000e+00 : f32
    %245 = vector.broadcast %cst_254 : f32 to vector<8x100xf32>
    %246 = arith.maximumf %244, %245 : vector<8x100xf32>
    %c0_255 = arith.constant 0 : index
    %c32_256 = arith.constant 32 : index
    %247 = vector.load %arg14[%c0_255, %c32_256] : memref<8x264xf32, #tpu.memory_space<vmem>>, vector<8x100xf32>
    tpu.vector_store %arg14[%c0_255, %c32_256], %246 {strides = array<i32>} : memref<8x264xf32, #tpu.memory_space<vmem>>, vector<8x100xf32>,
    %248 = vector.extract_strided_slice %239 {offsets = [0, 324], sizes = [8, 324], strides = [1, 1]} : vector<8x648xf32> to vector<8x324xf32>
    %c0_257 = arith.constant 0 : index
    %c0_258 = arith.constant 0 : index
    %249 = vector.load %arg6[%c0_257, %c0_258] : memref<324x100xf32, #tpu.memory_space<vmem>>, vector<324x100xf32>
    %cst_259 = arith.constant dense<0.000000e+00> : vector<8x100xf32>
    %250 = tpu.matmul %248, %249, %cst_259 {dimension_numbers = #tpu.dot_dimension_numbers<[1], [0], [0], [1], [0, 0, 1, 1], [], []>} : vector<8x324xf32>, vector<324x100xf32>, vector<8x100xf32> -> vector<8x100xf32>
    %c0_260 = arith.constant 0 : index
    %c0_261 = arith.constant 0 : index
    %251 = vector.load %arg4[%c0_260, %c0_261] : memref<8x100xf32, #tpu.memory_space<vmem>>, vector<8x100xf32>
    %252 = arith.addf %250, %251 : vector<8x100xf32>
    %cst_262 = arith.constant 0.000000e+00 : f32
    %253 = vector.broadcast %cst_262 : f32 to vector<8x100xf32>
    %254 = arith.maximumf %252, %253 : vector<8x100xf32>
    %c0_263 = arith.constant 0 : index
    %c132 = arith.constant 132 : index
    %255 = vector.load %arg14[%c0_263, %c132] : memref<8x264xf32, #tpu.memory_space<vmem>>, vector<8x100xf32>
    tpu.vector_store %arg14[%c0_263, %c132], %254 {strides = array<i32>} : memref<8x264xf32, #tpu.memory_space<vmem>>, vector<8x100xf32>,
    %c0_264 = arith.constant 0 : index
    %c32_265 = arith.constant 32 : index
    %256 = vector.load %arg14[%c0_264, %c32_265] : memref<8x264xf32, #tpu.memory_space<vmem>>, vector<8x200xf32>
    %c3_266 = arith.constant 3 : index
    %c0_267 = arith.constant 0 : index
    %c0_268 = arith.constant 0 : index
    %c0_269 = arith.constant 0 : index
    %257 = vector.load %arg1[%c3_266, %c0_267, %c0_268, %c0_269] : memref<5x9x8x8xf32, #tpu.memory_space<vmem>>, vector<1x1x8x8xf32>
    %258 = vector.shape_cast %257 : vector<1x1x8x8xf32> to vector<8x8xf32>
    %c0_270 = arith.constant 0 : index
    %c21 = arith.constant 21 : index
    %259 = vector.load %arg14[%c0_270, %c21] : memref<8x264xf32, #tpu.memory_space<vmem>>, vector<8x200xf32>
    %cst_271 = arith.constant dense<0.000000e+00> : vector<8x200xf32>
    %260 = tpu.matmul %258, %259, %cst_271 {dimension_numbers = #tpu.dot_dimension_numbers<[1], [0], [0], [1], [0, 0, 1, 1], [], []>} : vector<8x8xf32>, vector<8x200xf32>, vector<8x200xf32> -> vector<8x200xf32>
    %c3_272 = arith.constant 3 : index
    %c1_273 = arith.constant 1 : index
    %c0_274 = arith.constant 0 : index
    %c0_275 = arith.constant 0 : index
    %261 = vector.load %arg1[%c3_272, %c1_273, %c0_274, %c0_275] : memref<5x9x8x8xf32, #tpu.memory_space<vmem>>, vector<1x1x8x8xf32>
    %262 = vector.shape_cast %261 : vector<1x1x8x8xf32> to vector<8x8xf32>
    %c0_276 = arith.constant 0 : index
    %c22 = arith.constant 22 : index
    %263 = vector.load %arg14[%c0_276, %c22] : memref<8x264xf32, #tpu.memory_space<vmem>>, vector<8x200xf32>
    %cst_277 = arith.constant dense<0.000000e+00> : vector<8x200xf32>
    %264 = tpu.matmul %262, %263, %cst_277 {dimension_numbers = #tpu.dot_dimension_numbers<[1], [0], [0], [1], [0, 0, 1, 1], [], []>} : vector<8x8xf32>, vector<8x200xf32>, vector<8x200xf32> -> vector<8x200xf32>
    %265 = arith.addf %260, %264 : vector<8x200xf32>
    %c3_278 = arith.constant 3 : index
    %c2_279 = arith.constant 2 : index
    %c0_280 = arith.constant 0 : index
    %c0_281 = arith.constant 0 : index
    %266 = vector.load %arg1[%c3_278, %c2_279, %c0_280, %c0_281] : memref<5x9x8x8xf32, #tpu.memory_space<vmem>>, vector<1x1x8x8xf32>
    %267 = vector.shape_cast %266 : vector<1x1x8x8xf32> to vector<8x8xf32>
    %c0_282 = arith.constant 0 : index
    %c23 = arith.constant 23 : index
    %268 = vector.load %arg14[%c0_282, %c23] : memref<8x264xf32, #tpu.memory_space<vmem>>, vector<8x200xf32>
    %cst_283 = arith.constant dense<0.000000e+00> : vector<8x200xf32>
    %269 = tpu.matmul %267, %268, %cst_283 {dimension_numbers = #tpu.dot_dimension_numbers<[1], [0], [0], [1], [0, 0, 1, 1], [], []>} : vector<8x8xf32>, vector<8x200xf32>, vector<8x200xf32> -> vector<8x200xf32>
    %270 = arith.addf %265, %269 : vector<8x200xf32>
    %c3_284 = arith.constant 3 : index
    %c3_285 = arith.constant 3 : index
    %c0_286 = arith.constant 0 : index
    %c0_287 = arith.constant 0 : index
    %271 = vector.load %arg1[%c3_284, %c3_285, %c0_286, %c0_287] : memref<5x9x8x8xf32, #tpu.memory_space<vmem>>, vector<1x1x8x8xf32>
    %272 = vector.shape_cast %271 : vector<1x1x8x8xf32> to vector<8x8xf32>
    %c0_288 = arith.constant 0 : index
    %c31_289 = arith.constant 31 : index
    %273 = vector.load %arg14[%c0_288, %c31_289] : memref<8x264xf32, #tpu.memory_space<vmem>>, vector<8x200xf32>
    %cst_290 = arith.constant dense<0.000000e+00> : vector<8x200xf32>
    %274 = tpu.matmul %272, %273, %cst_290 {dimension_numbers = #tpu.dot_dimension_numbers<[1], [0], [0], [1], [0, 0, 1, 1], [], []>} : vector<8x8xf32>, vector<8x200xf32>, vector<8x200xf32> -> vector<8x200xf32>
    %275 = arith.addf %270, %274 : vector<8x200xf32>
    %c3_291 = arith.constant 3 : index
    %c4_292 = arith.constant 4 : index
    %c0_293 = arith.constant 0 : index
    %c0_294 = arith.constant 0 : index
    %276 = vector.load %arg1[%c3_291, %c4_292, %c0_293, %c0_294] : memref<5x9x8x8xf32, #tpu.memory_space<vmem>>, vector<1x1x8x8xf32>
    %277 = vector.shape_cast %276 : vector<1x1x8x8xf32> to vector<8x8xf32>
    %c0_295 = arith.constant 0 : index
    %c32_296 = arith.constant 32 : index
    %278 = vector.load %arg14[%c0_295, %c32_296] : memref<8x264xf32, #tpu.memory_space<vmem>>, vector<8x200xf32>
    %cst_297 = arith.constant dense<0.000000e+00> : vector<8x200xf32>
    %279 = tpu.matmul %277, %278, %cst_297 {dimension_numbers = #tpu.dot_dimension_numbers<[1], [0], [0], [1], [0, 0, 1, 1], [], []>} : vector<8x8xf32>, vector<8x200xf32>, vector<8x200xf32> -> vector<8x200xf32>
    %280 = arith.addf %275, %279 : vector<8x200xf32>
    %c3_298 = arith.constant 3 : index
    %c5_299 = arith.constant 5 : index
    %c0_300 = arith.constant 0 : index
    %c0_301 = arith.constant 0 : index
    %281 = vector.load %arg1[%c3_298, %c5_299, %c0_300, %c0_301] : memref<5x9x8x8xf32, #tpu.memory_space<vmem>>, vector<1x1x8x8xf32>
    %282 = vector.shape_cast %281 : vector<1x1x8x8xf32> to vector<8x8xf32>
    %c0_302 = arith.constant 0 : index
    %c33_303 = arith.constant 33 : index
    %283 = vector.load %arg14[%c0_302, %c33_303] : memref<8x264xf32, #tpu.memory_space<vmem>>, vector<8x200xf32>
    %cst_304 = arith.constant dense<0.000000e+00> : vector<8x200xf32>
    %284 = tpu.matmul %282, %283, %cst_304 {dimension_numbers = #tpu.dot_dimension_numbers<[1], [0], [0], [1], [0, 0, 1, 1], [], []>} : vector<8x8xf32>, vector<8x200xf32>, vector<8x200xf32> -> vector<8x200xf32>
    %285 = arith.addf %280, %284 : vector<8x200xf32>
    %c3_305 = arith.constant 3 : index
    %c6_306 = arith.constant 6 : index
    %c0_307 = arith.constant 0 : index
    %c0_308 = arith.constant 0 : index
    %286 = vector.load %arg1[%c3_305, %c6_306, %c0_307, %c0_308] : memref<5x9x8x8xf32, #tpu.memory_space<vmem>>, vector<1x1x8x8xf32>
    %287 = vector.shape_cast %286 : vector<1x1x8x8xf32> to vector<8x8xf32>
    %c0_309 = arith.constant 0 : index
    %c41 = arith.constant 41 : index
    %288 = vector.load %arg14[%c0_309, %c41] : memref<8x264xf32, #tpu.memory_space<vmem>>, vector<8x200xf32>
    %cst_310 = arith.constant dense<0.000000e+00> : vector<8x200xf32>
    %289 = tpu.matmul %287, %288, %cst_310 {dimension_numbers = #tpu.dot_dimension_numbers<[1], [0], [0], [1], [0, 0, 1, 1], [], []>} : vector<8x8xf32>, vector<8x200xf32>, vector<8x200xf32> -> vector<8x200xf32>
    %290 = arith.addf %285, %289 : vector<8x200xf32>
    %c3_311 = arith.constant 3 : index
    %c7_312 = arith.constant 7 : index
    %c0_313 = arith.constant 0 : index
    %c0_314 = arith.constant 0 : index
    %291 = vector.load %arg1[%c3_311, %c7_312, %c0_313, %c0_314] : memref<5x9x8x8xf32, #tpu.memory_space<vmem>>, vector<1x1x8x8xf32>
    %292 = vector.shape_cast %291 : vector<1x1x8x8xf32> to vector<8x8xf32>
    %c0_315 = arith.constant 0 : index
    %c42 = arith.constant 42 : index
    %293 = vector.load %arg14[%c0_315, %c42] : memref<8x264xf32, #tpu.memory_space<vmem>>, vector<8x200xf32>
    %cst_316 = arith.constant dense<0.000000e+00> : vector<8x200xf32>
    %294 = tpu.matmul %292, %293, %cst_316 {dimension_numbers = #tpu.dot_dimension_numbers<[1], [0], [0], [1], [0, 0, 1, 1], [], []>} : vector<8x8xf32>, vector<8x200xf32>, vector<8x200xf32> -> vector<8x200xf32>
    %295 = arith.addf %290, %294 : vector<8x200xf32>
    %c3_317 = arith.constant 3 : index
    %c8_318 = arith.constant 8 : index
    %c0_319 = arith.constant 0 : index
    %c0_320 = arith.constant 0 : index
    %296 = vector.load %arg1[%c3_317, %c8_318, %c0_319, %c0_320] : memref<5x9x8x8xf32, #tpu.memory_space<vmem>>, vector<1x1x8x8xf32>
    %297 = vector.shape_cast %296 : vector<1x1x8x8xf32> to vector<8x8xf32>
    %c0_321 = arith.constant 0 : index
    %c43 = arith.constant 43 : index
    %298 = vector.load %arg14[%c0_321, %c43] : memref<8x264xf32, #tpu.memory_space<vmem>>, vector<8x200xf32>
    %cst_322 = arith.constant dense<0.000000e+00> : vector<8x200xf32>
    %299 = tpu.matmul %297, %298, %cst_322 {dimension_numbers = #tpu.dot_dimension_numbers<[1], [0], [0], [1], [0, 0, 1, 1], [], []>} : vector<8x8xf32>, vector<8x200xf32>, vector<8x200xf32> -> vector<8x200xf32>
    %300 = arith.addf %295, %299 : vector<8x200xf32>
    %c7_323 = arith.constant 7 : index
    %c0_324 = arith.constant 0 : index
    %c0_325 = arith.constant 0 : index
    %301 = vector.load %arg3[%c7_323, %c0_324, %c0_325] : memref<14x8x1xf32, #tpu.memory_space<vmem>>, vector<1x8x1xf32>
    %302 = vector.shape_cast %301 : vector<1x8x1xf32> to vector<8x1xf32>
    %303 = vector.broadcast %302 : vector<8x1xf32> to vector<8x200xf32>
    %304 = arith.addf %300, %303 : vector<8x200xf32>
    %c9 = arith.constant 9 : index
    %c0_326 = arith.constant 0 : index
    %c0_327 = arith.constant 0 : index
    %305 = vector.load %arg3[%c9, %c0_326, %c0_327] : memref<14x8x1xf32, #tpu.memory_space<vmem>>, vector<1x8x1xf32>
    %306 = vector.shape_cast %305 : vector<1x8x1xf32> to vector<8x1xf32>
    %c11 = arith.constant 11 : index
    %c0_328 = arith.constant 0 : index
    %c0_329 = arith.constant 0 : index
    %307 = vector.load %arg3[%c11, %c0_328, %c0_329] : memref<14x8x1xf32, #tpu.memory_space<vmem>>, vector<1x8x1xf32>
    %308 = vector.shape_cast %307 : vector<1x8x1xf32> to vector<8x1xf32>
    %309 = vector.broadcast %1 : vector<1x200xf32> to vector<8x200xf32>
    %310 = arith.mulf %304, %309 : vector<8x200xf32>
    %cst_330 = arith.constant dense<0.000000e+00> : vector<8xf32>
    %311 = vector.multi_reduction <add>, %310, %cst_330 [1] : vector<8x200xf32> to vector<8xf32>
    %312 = vector.shape_cast %311 : vector<8xf32> to vector<8x1xf32>
    %cst_331 = arith.constant 7.812500e-03 : f32
    %313 = vector.broadcast %cst_331 : f32 to vector<8x1xf32>
    %314 = arith.mulf %312, %313 : vector<8x1xf32>
    %315 = arith.mulf %310, %310 : vector<8x200xf32>
    %cst_332 = arith.constant dense<0.000000e+00> : vector<8xf32>
    %316 = vector.multi_reduction <add>, %315, %cst_332 [1] : vector<8x200xf32> to vector<8xf32>
    %317 = vector.shape_cast %316 : vector<8xf32> to vector<8x1xf32>
    %cst_333 = arith.constant 7.812500e-03 : f32
    %318 = vector.broadcast %cst_333 : f32 to vector<8x1xf32>
    %319 = arith.mulf %317, %318 : vector<8x1xf32>
    %320 = arith.mulf %314, %314 : vector<8x1xf32>
    %321 = arith.subf %319, %320 : vector<8x1xf32>
    %cst_334 = arith.constant 9.99999974E-6 : f32
    %322 = vector.broadcast %cst_334 : f32 to vector<8x1xf32>
    %323 = arith.addf %321, %322 : vector<8x1xf32>
    %324 = math.rsqrt %323 : vector<8x1xf32>
    %325 = arith.mulf %306, %324 : vector<8x1xf32>
    %326 = arith.mulf %314, %325 : vector<8x1xf32>
    %327 = arith.subf %308, %326 : vector<8x1xf32>
    %328 = vector.broadcast %325 : vector<8x1xf32> to vector<8x200xf32>
    %329 = arith.mulf %310, %328 : vector<8x200xf32>
    %330 = vector.broadcast %327 : vector<8x1xf32> to vector<8x200xf32>
    %331 = arith.addf %329, %330 : vector<8x200xf32>
    %cst_335 = arith.constant 0.000000e+00 : f32
    %332 = vector.broadcast %cst_335 : f32 to vector<8x200xf32>
    %333 = arith.maximumf %331, %332 : vector<8x200xf32>
    %334 = vector.broadcast %1 : vector<1x200xf32> to vector<8x200xf32>
    %335 = arith.mulf %333, %334 : vector<8x200xf32>
    %c0_336 = arith.constant 0 : index
    %c32_337 = arith.constant 32 : index
    %336 = vector.load %arg14[%c0_336, %c32_337] : memref<8x264xf32, #tpu.memory_space<vmem>>, vector<8x200xf32>
    tpu.vector_store %arg14[%c0_336, %c32_337], %335 {strides = array<i32>} : memref<8x264xf32, #tpu.memory_space<vmem>>, vector<8x200xf32>,
    %c4_338 = arith.constant 4 : index
    %c0_339 = arith.constant 0 : index
    %c0_340 = arith.constant 0 : index
    %c0_341 = arith.constant 0 : index
    %337 = vector.load %arg1[%c4_338, %c0_339, %c0_340, %c0_341] : memref<5x9x8x8xf32, #tpu.memory_space<vmem>>, vector<1x1x8x8xf32>
    %338 = vector.shape_cast %337 : vector<1x1x8x8xf32> to vector<8x8xf32>
    %c0_342 = arith.constant 0 : index
    %c21_343 = arith.constant 21 : index
    %339 = vector.load %arg14[%c0_342, %c21_343] : memref<8x264xf32, #tpu.memory_space<vmem>>, vector<8x200xf32>
    %cst_344 = arith.constant dense<0.000000e+00> : vector<8x200xf32>
    %340 = tpu.matmul %338, %339, %cst_344 {dimension_numbers = #tpu.dot_dimension_numbers<[1], [0], [0], [1], [0, 0, 1, 1], [], []>} : vector<8x8xf32>, vector<8x200xf32>, vector<8x200xf32> -> vector<8x200xf32>
    %c4_345 = arith.constant 4 : index
    %c1_346 = arith.constant 1 : index
    %c0_347 = arith.constant 0 : index
    %c0_348 = arith.constant 0 : index
    %341 = vector.load %arg1[%c4_345, %c1_346, %c0_347, %c0_348] : memref<5x9x8x8xf32, #tpu.memory_space<vmem>>, vector<1x1x8x8xf32>
    %342 = vector.shape_cast %341 : vector<1x1x8x8xf32> to vector<8x8xf32>
    %c0_349 = arith.constant 0 : index
    %c22_350 = arith.constant 22 : index
    %343 = vector.load %arg14[%c0_349, %c22_350] : memref<8x264xf32, #tpu.memory_space<vmem>>, vector<8x200xf32>
    %cst_351 = arith.constant dense<0.000000e+00> : vector<8x200xf32>
    %344 = tpu.matmul %342, %343, %cst_351 {dimension_numbers = #tpu.dot_dimension_numbers<[1], [0], [0], [1], [0, 0, 1, 1], [], []>} : vector<8x8xf32>, vector<8x200xf32>, vector<8x200xf32> -> vector<8x200xf32>
    %345 = arith.addf %340, %344 : vector<8x200xf32>
    %c4_352 = arith.constant 4 : index
    %c2_353 = arith.constant 2 : index
    %c0_354 = arith.constant 0 : index
    %c0_355 = arith.constant 0 : index
    %346 = vector.load %arg1[%c4_352, %c2_353, %c0_354, %c0_355] : memref<5x9x8x8xf32, #tpu.memory_space<vmem>>, vector<1x1x8x8xf32>
    %347 = vector.shape_cast %346 : vector<1x1x8x8xf32> to vector<8x8xf32>
    %c0_356 = arith.constant 0 : index
    %c23_357 = arith.constant 23 : index
    %348 = vector.load %arg14[%c0_356, %c23_357] : memref<8x264xf32, #tpu.memory_space<vmem>>, vector<8x200xf32>
    %cst_358 = arith.constant dense<0.000000e+00> : vector<8x200xf32>
    %349 = tpu.matmul %347, %348, %cst_358 {dimension_numbers = #tpu.dot_dimension_numbers<[1], [0], [0], [1], [0, 0, 1, 1], [], []>} : vector<8x8xf32>, vector<8x200xf32>, vector<8x200xf32> -> vector<8x200xf32>
    %350 = arith.addf %345, %349 : vector<8x200xf32>
    %c4_359 = arith.constant 4 : index
    %c3_360 = arith.constant 3 : index
    %c0_361 = arith.constant 0 : index
    %c0_362 = arith.constant 0 : index
    %351 = vector.load %arg1[%c4_359, %c3_360, %c0_361, %c0_362] : memref<5x9x8x8xf32, #tpu.memory_space<vmem>>, vector<1x1x8x8xf32>
    %352 = vector.shape_cast %351 : vector<1x1x8x8xf32> to vector<8x8xf32>
    %c0_363 = arith.constant 0 : index
    %c31_364 = arith.constant 31 : index
    %353 = vector.load %arg14[%c0_363, %c31_364] : memref<8x264xf32, #tpu.memory_space<vmem>>, vector<8x200xf32>
    %cst_365 = arith.constant dense<0.000000e+00> : vector<8x200xf32>
    %354 = tpu.matmul %352, %353, %cst_365 {dimension_numbers = #tpu.dot_dimension_numbers<[1], [0], [0], [1], [0, 0, 1, 1], [], []>} : vector<8x8xf32>, vector<8x200xf32>, vector<8x200xf32> -> vector<8x200xf32>
    %355 = arith.addf %350, %354 : vector<8x200xf32>
    %c4_366 = arith.constant 4 : index
    %c4_367 = arith.constant 4 : index
    %c0_368 = arith.constant 0 : index
    %c0_369 = arith.constant 0 : index
    %356 = vector.load %arg1[%c4_366, %c4_367, %c0_368, %c0_369] : memref<5x9x8x8xf32, #tpu.memory_space<vmem>>, vector<1x1x8x8xf32>
    %357 = vector.shape_cast %356 : vector<1x1x8x8xf32> to vector<8x8xf32>
    %c0_370 = arith.constant 0 : index
    %c32_371 = arith.constant 32 : index
    %358 = vector.load %arg14[%c0_370, %c32_371] : memref<8x264xf32, #tpu.memory_space<vmem>>, vector<8x200xf32>
    %cst_372 = arith.constant dense<0.000000e+00> : vector<8x200xf32>
    %359 = tpu.matmul %357, %358, %cst_372 {dimension_numbers = #tpu.dot_dimension_numbers<[1], [0], [0], [1], [0, 0, 1, 1], [], []>} : vector<8x8xf32>, vector<8x200xf32>, vector<8x200xf32> -> vector<8x200xf32>
    %360 = arith.addf %355, %359 : vector<8x200xf32>
    %c4_373 = arith.constant 4 : index
    %c5_374 = arith.constant 5 : index
    %c0_375 = arith.constant 0 : index
    %c0_376 = arith.constant 0 : index
    %361 = vector.load %arg1[%c4_373, %c5_374, %c0_375, %c0_376] : memref<5x9x8x8xf32, #tpu.memory_space<vmem>>, vector<1x1x8x8xf32>
    %362 = vector.shape_cast %361 : vector<1x1x8x8xf32> to vector<8x8xf32>
    %c0_377 = arith.constant 0 : index
    %c33_378 = arith.constant 33 : index
    %363 = vector.load %arg14[%c0_377, %c33_378] : memref<8x264xf32, #tpu.memory_space<vmem>>, vector<8x200xf32>
    %cst_379 = arith.constant dense<0.000000e+00> : vector<8x200xf32>
    %364 = tpu.matmul %362, %363, %cst_379 {dimension_numbers = #tpu.dot_dimension_numbers<[1], [0], [0], [1], [0, 0, 1, 1], [], []>} : vector<8x8xf32>, vector<8x200xf32>, vector<8x200xf32> -> vector<8x200xf32>
    %365 = arith.addf %360, %364 : vector<8x200xf32>
    %c4_380 = arith.constant 4 : index
    %c6_381 = arith.constant 6 : index
    %c0_382 = arith.constant 0 : index
    %c0_383 = arith.constant 0 : index
    %366 = vector.load %arg1[%c4_380, %c6_381, %c0_382, %c0_383] : memref<5x9x8x8xf32, #tpu.memory_space<vmem>>, vector<1x1x8x8xf32>
    %367 = vector.shape_cast %366 : vector<1x1x8x8xf32> to vector<8x8xf32>
    %c0_384 = arith.constant 0 : index
    %c41_385 = arith.constant 41 : index
    %368 = vector.load %arg14[%c0_384, %c41_385] : memref<8x264xf32, #tpu.memory_space<vmem>>, vector<8x200xf32>
    %cst_386 = arith.constant dense<0.000000e+00> : vector<8x200xf32>
    %369 = tpu.matmul %367, %368, %cst_386 {dimension_numbers = #tpu.dot_dimension_numbers<[1], [0], [0], [1], [0, 0, 1, 1], [], []>} : vector<8x8xf32>, vector<8x200xf32>, vector<8x200xf32> -> vector<8x200xf32>
    %370 = arith.addf %365, %369 : vector<8x200xf32>
    %c4_387 = arith.constant 4 : index
    %c7_388 = arith.constant 7 : index
    %c0_389 = arith.constant 0 : index
    %c0_390 = arith.constant 0 : index
    %371 = vector.load %arg1[%c4_387, %c7_388, %c0_389, %c0_390] : memref<5x9x8x8xf32, #tpu.memory_space<vmem>>, vector<1x1x8x8xf32>
    %372 = vector.shape_cast %371 : vector<1x1x8x8xf32> to vector<8x8xf32>
    %c0_391 = arith.constant 0 : index
    %c42_392 = arith.constant 42 : index
    %373 = vector.load %arg14[%c0_391, %c42_392] : memref<8x264xf32, #tpu.memory_space<vmem>>, vector<8x200xf32>
    %cst_393 = arith.constant dense<0.000000e+00> : vector<8x200xf32>
    %374 = tpu.matmul %372, %373, %cst_393 {dimension_numbers = #tpu.dot_dimension_numbers<[1], [0], [0], [1], [0, 0, 1, 1], [], []>} : vector<8x8xf32>, vector<8x200xf32>, vector<8x200xf32> -> vector<8x200xf32>
    %375 = arith.addf %370, %374 : vector<8x200xf32>
    %c4_394 = arith.constant 4 : index
    %c8_395 = arith.constant 8 : index
    %c0_396 = arith.constant 0 : index
    %c0_397 = arith.constant 0 : index
    %376 = vector.load %arg1[%c4_394, %c8_395, %c0_396, %c0_397] : memref<5x9x8x8xf32, #tpu.memory_space<vmem>>, vector<1x1x8x8xf32>
    %377 = vector.shape_cast %376 : vector<1x1x8x8xf32> to vector<8x8xf32>
    %c0_398 = arith.constant 0 : index
    %c43_399 = arith.constant 43 : index
    %378 = vector.load %arg14[%c0_398, %c43_399] : memref<8x264xf32, #tpu.memory_space<vmem>>, vector<8x200xf32>
    %cst_400 = arith.constant dense<0.000000e+00> : vector<8x200xf32>
    %379 = tpu.matmul %377, %378, %cst_400 {dimension_numbers = #tpu.dot_dimension_numbers<[1], [0], [0], [1], [0, 0, 1, 1], [], []>} : vector<8x8xf32>, vector<8x200xf32>, vector<8x200xf32> -> vector<8x200xf32>
    %380 = arith.addf %375, %379 : vector<8x200xf32>
    %c8_401 = arith.constant 8 : index
    %c0_402 = arith.constant 0 : index
    %c0_403 = arith.constant 0 : index
    %381 = vector.load %arg3[%c8_401, %c0_402, %c0_403] : memref<14x8x1xf32, #tpu.memory_space<vmem>>, vector<1x8x1xf32>
    %382 = vector.shape_cast %381 : vector<1x8x1xf32> to vector<8x1xf32>
    %383 = vector.broadcast %382 : vector<8x1xf32> to vector<8x200xf32>
    %384 = arith.addf %380, %383 : vector<8x200xf32>
    %c10 = arith.constant 10 : index
    %c0_404 = arith.constant 0 : index
    %c0_405 = arith.constant 0 : index
    %385 = vector.load %arg3[%c10, %c0_404, %c0_405] : memref<14x8x1xf32, #tpu.memory_space<vmem>>, vector<1x8x1xf32>
    %386 = vector.shape_cast %385 : vector<1x8x1xf32> to vector<8x1xf32>
    %c12 = arith.constant 12 : index
    %c0_406 = arith.constant 0 : index
    %c0_407 = arith.constant 0 : index
    %387 = vector.load %arg3[%c12, %c0_406, %c0_407] : memref<14x8x1xf32, #tpu.memory_space<vmem>>, vector<1x8x1xf32>
    %388 = vector.shape_cast %387 : vector<1x8x1xf32> to vector<8x1xf32>
    %389 = vector.broadcast %1 : vector<1x200xf32> to vector<8x200xf32>
    %390 = arith.mulf %384, %389 : vector<8x200xf32>
    %cst_408 = arith.constant dense<0.000000e+00> : vector<8xf32>
    %391 = vector.multi_reduction <add>, %390, %cst_408 [1] : vector<8x200xf32> to vector<8xf32>
    %392 = vector.shape_cast %391 : vector<8xf32> to vector<8x1xf32>
    %cst_409 = arith.constant 7.812500e-03 : f32
    %393 = vector.broadcast %cst_409 : f32 to vector<8x1xf32>
    %394 = arith.mulf %392, %393 : vector<8x1xf32>
    %395 = arith.mulf %390, %390 : vector<8x200xf32>
    %cst_410 = arith.constant dense<0.000000e+00> : vector<8xf32>
    %396 = vector.multi_reduction <add>, %395, %cst_410 [1] : vector<8x200xf32> to vector<8xf32>
    %397 = vector.shape_cast %396 : vector<8xf32> to vector<8x1xf32>
    %cst_411 = arith.constant 7.812500e-03 : f32
    %398 = vector.broadcast %cst_411 : f32 to vector<8x1xf32>
    %399 = arith.mulf %397, %398 : vector<8x1xf32>
    %400 = arith.mulf %394, %394 : vector<8x1xf32>
    %401 = arith.subf %399, %400 : vector<8x1xf32>
    %cst_412 = arith.constant 9.99999974E-6 : f32
    %402 = vector.broadcast %cst_412 : f32 to vector<8x1xf32>
    %403 = arith.addf %401, %402 : vector<8x1xf32>
    %404 = math.rsqrt %403 : vector<8x1xf32>
    %405 = arith.mulf %386, %404 : vector<8x1xf32>
    %406 = arith.mulf %394, %405 : vector<8x1xf32>
    %407 = arith.subf %388, %406 : vector<8x1xf32>
    %408 = vector.broadcast %405 : vector<8x1xf32> to vector<8x200xf32>
    %409 = arith.mulf %390, %408 : vector<8x200xf32>
    %410 = vector.broadcast %407 : vector<8x1xf32> to vector<8x200xf32>
    %411 = arith.addf %409, %410 : vector<8x200xf32>
    %cst_413 = arith.constant 0.000000e+00 : f32
    %412 = vector.broadcast %cst_413 : f32 to vector<8x200xf32>
    %413 = arith.maximumf %411, %412 : vector<8x200xf32>
    %414 = vector.broadcast %1 : vector<1x200xf32> to vector<8x200xf32>
    %415 = arith.mulf %413, %414 : vector<8x200xf32>
    %416 = arith.addf %415, %256 : vector<8x200xf32>
    %c0_414 = arith.constant 0 : index
    %c32_415 = arith.constant 32 : index
    %417 = vector.load %arg14[%c0_414, %c32_415] : memref<8x264xf32, #tpu.memory_space<vmem>>, vector<8x200xf32>
    tpu.vector_store %arg14[%c0_414, %c32_415], %416 {strides = array<i32>} : memref<8x264xf32, #tpu.memory_space<vmem>>, vector<8x200xf32>,
    %c1_416 = arith.constant 1 : index
    %c0_417 = arith.constant 0 : index
    %c0_418 = arith.constant 0 : index
    %c0_419 = arith.constant 0 : index
    %418 = vector.load %arg2[%c1_416, %c0_417, %c0_418, %c0_419] : memref<2x4x8x8xf32, #tpu.memory_space<vmem>>, vector<1x1x8x8xf32>
    %419 = vector.shape_cast %418 : vector<1x1x8x8xf32> to vector<8x8xf32>
    %c0_420 = arith.constant 0 : index
    %c32_421 = arith.constant 32 : index
    %420 = vector.load %arg14[%c0_420, %c32_421] : memref<8x264xf32, #tpu.memory_space<vmem>>, vector<8x200xf32>
    %cst_422 = arith.constant dense<0.000000e+00> : vector<8x200xf32>
    %421 = tpu.matmul %419, %420, %cst_422 {dimension_numbers = #tpu.dot_dimension_numbers<[1], [0], [0], [1], [0, 0, 1, 1], [], []>} : vector<8x8xf32>, vector<8x200xf32>, vector<8x200xf32> -> vector<8x200xf32>
    %c1_423 = arith.constant 1 : index
    %c1_424 = arith.constant 1 : index
    %c0_425 = arith.constant 0 : index
    %c0_426 = arith.constant 0 : index
    %422 = vector.load %arg2[%c1_423, %c1_424, %c0_425, %c0_426] : memref<2x4x8x8xf32, #tpu.memory_space<vmem>>, vector<1x1x8x8xf32>
    %423 = vector.shape_cast %422 : vector<1x1x8x8xf32> to vector<8x8xf32>
    %c0_427 = arith.constant 0 : index
    %c33_428 = arith.constant 33 : index
    %424 = vector.load %arg14[%c0_427, %c33_428] : memref<8x264xf32, #tpu.memory_space<vmem>>, vector<8x200xf32>
    %cst_429 = arith.constant dense<0.000000e+00> : vector<8x200xf32>
    %425 = tpu.matmul %423, %424, %cst_429 {dimension_numbers = #tpu.dot_dimension_numbers<[1], [0], [0], [1], [0, 0, 1, 1], [], []>} : vector<8x8xf32>, vector<8x200xf32>, vector<8x200xf32> -> vector<8x200xf32>
    %426 = arith.addf %421, %425 : vector<8x200xf32>
    %c1_430 = arith.constant 1 : index
    %c2_431 = arith.constant 2 : index
    %c0_432 = arith.constant 0 : index
    %c0_433 = arith.constant 0 : index
    %427 = vector.load %arg2[%c1_430, %c2_431, %c0_432, %c0_433] : memref<2x4x8x8xf32, #tpu.memory_space<vmem>>, vector<1x1x8x8xf32>
    %428 = vector.shape_cast %427 : vector<1x1x8x8xf32> to vector<8x8xf32>
    %c0_434 = arith.constant 0 : index
    %c42_435 = arith.constant 42 : index
    %429 = vector.load %arg14[%c0_434, %c42_435] : memref<8x264xf32, #tpu.memory_space<vmem>>, vector<8x200xf32>
    %cst_436 = arith.constant dense<0.000000e+00> : vector<8x200xf32>
    %430 = tpu.matmul %428, %429, %cst_436 {dimension_numbers = #tpu.dot_dimension_numbers<[1], [0], [0], [1], [0, 0, 1, 1], [], []>} : vector<8x8xf32>, vector<8x200xf32>, vector<8x200xf32> -> vector<8x200xf32>
    %431 = arith.addf %426, %430 : vector<8x200xf32>
    %c1_437 = arith.constant 1 : index
    %c3_438 = arith.constant 3 : index
    %c0_439 = arith.constant 0 : index
    %c0_440 = arith.constant 0 : index
    %432 = vector.load %arg2[%c1_437, %c3_438, %c0_439, %c0_440] : memref<2x4x8x8xf32, #tpu.memory_space<vmem>>, vector<1x1x8x8xf32>
    %433 = vector.shape_cast %432 : vector<1x1x8x8xf32> to vector<8x8xf32>
    %c0_441 = arith.constant 0 : index
    %c43_442 = arith.constant 43 : index
    %434 = vector.load %arg14[%c0_441, %c43_442] : memref<8x264xf32, #tpu.memory_space<vmem>>, vector<8x200xf32>
    %cst_443 = arith.constant dense<0.000000e+00> : vector<8x200xf32>
    %435 = tpu.matmul %433, %434, %cst_443 {dimension_numbers = #tpu.dot_dimension_numbers<[1], [0], [0], [1], [0, 0, 1, 1], [], []>} : vector<8x8xf32>, vector<8x200xf32>, vector<8x200xf32> -> vector<8x200xf32>
    %436 = arith.addf %431, %435 : vector<8x200xf32>
    %437 = vector.extract_strided_slice %436 {offsets = [0, 0], sizes = [8, 100], strides = [1, 1]} : vector<8x200xf32> to vector<8x100xf32>
    %c0_444 = arith.constant 0 : index
    %c0_445 = arith.constant 0 : index
    %438 = vector.load %arg7[%c0_444, %c0_445] : memref<100x16xf32, #tpu.memory_space<vmem>>, vector<100x16xf32>
    %cst_446 = arith.constant dense<0.000000e+00> : vector<8x16xf32>
    %439 = tpu.matmul %437, %438, %cst_446 {dimension_numbers = #tpu.dot_dimension_numbers<[1], [0], [0], [1], [0, 0, 1, 1], [], []>} : vector<8x100xf32>, vector<100x16xf32>, vector<8x16xf32> -> vector<8x16xf32>
    %440 = vector.extract_strided_slice %436 {offsets = [0, 100], sizes = [8, 100], strides = [1, 1]} : vector<8x200xf32> to vector<8x100xf32>
    %c0_447 = arith.constant 0 : index
    %c0_448 = arith.constant 0 : index
    %441 = vector.load %arg7[%c0_447, %c0_448] : memref<100x16xf32, #tpu.memory_space<vmem>>, vector<100x16xf32>
    %cst_449 = arith.constant dense<0.000000e+00> : vector<8x16xf32>
    %442 = tpu.matmul %440, %441, %cst_449 {dimension_numbers = #tpu.dot_dimension_numbers<[1], [0], [0], [1], [0, 0, 1, 1], [], []>} : vector<8x100xf32>, vector<100x16xf32>, vector<8x16xf32> -> vector<8x16xf32>
    %443 = tpu.concatenate %439, %442 in 1 : vector<8x16xf32>, vector<8x16xf32> -> vector<8x32xf32>
    %c13_450 = arith.constant 13 : index
    %c0_451 = arith.constant 0 : index
    %c0_452 = arith.constant 0 : index
    %444 = vector.load %arg3[%c13_450, %c0_451, %c0_452] : memref<14x8x1xf32, #tpu.memory_space<vmem>>, vector<1x8x1xf32>
    %445 = vector.shape_cast %444 : vector<1x8x1xf32> to vector<8x1xf32>
    %446 = vector.broadcast %445 : vector<8x1xf32> to vector<8x32xf32>
    %447 = arith.addf %443, %446 : vector<8x32xf32>
    %cst_453 = arith.constant 0.000000e+00 : f32
    %448 = vector.broadcast %cst_453 : f32 to vector<8x32xf32>
    %449 = arith.maximumf %447, %448 : vector<8x32xf32>
    %c0_454 = arith.constant 0 : index
    %c0_455 = arith.constant 0 : index
    %c0_456 = arith.constant 0 : index
    %450 = vector.load %arg8[%c0_454, %c0_455, %c0_456] : memref<8x32x32xf32, #tpu.memory_space<vmem>>, vector<1x32x32xf32>
    %451 = vector.shape_cast %450 : vector<1x32x32xf32> to vector<32x32xf32>
    %452 = vector.extract_strided_slice %449 {offsets = [0, 0], sizes = [1, 32], strides = [1, 1]} : vector<8x32xf32> to vector<1x32xf32>
    %453 = vector.broadcast %452 : vector<1x32xf32> to vector<32x32xf32>
    %454 = arith.mulf %451, %453 : vector<32x32xf32>
    %c1_457 = arith.constant 1 : index
    %c0_458 = arith.constant 0 : index
    %c0_459 = arith.constant 0 : index
    %455 = vector.load %arg8[%c1_457, %c0_458, %c0_459] : memref<8x32x32xf32, #tpu.memory_space<vmem>>, vector<1x32x32xf32>
    %456 = vector.shape_cast %455 : vector<1x32x32xf32> to vector<32x32xf32>
    %457 = vector.extract_strided_slice %449 {offsets = [1, 0], sizes = [1, 32], strides = [1, 1]} : vector<8x32xf32> to vector<1x32xf32>
    %458 = vector.broadcast %457 : vector<1x32xf32> to vector<32x32xf32>
    %459 = arith.mulf %456, %458 : vector<32x32xf32>
    %460 = arith.addf %454, %459 : vector<32x32xf32>
    %c2_460 = arith.constant 2 : index
    %c0_461 = arith.constant 0 : index
    %c0_462 = arith.constant 0 : index
    %461 = vector.load %arg8[%c2_460, %c0_461, %c0_462] : memref<8x32x32xf32, #tpu.memory_space<vmem>>, vector<1x32x32xf32>
    %462 = vector.shape_cast %461 : vector<1x32x32xf32> to vector<32x32xf32>
    %463 = vector.extract_strided_slice %449 {offsets = [2, 0], sizes = [1, 32], strides = [1, 1]} : vector<8x32xf32> to vector<1x32xf32>
    %464 = vector.broadcast %463 : vector<1x32xf32> to vector<32x32xf32>
    %465 = arith.mulf %462, %464 : vector<32x32xf32>
    %466 = arith.addf %460, %465 : vector<32x32xf32>
    %c3_463 = arith.constant 3 : index
    %c0_464 = arith.constant 0 : index
    %c0_465 = arith.constant 0 : index
    %467 = vector.load %arg8[%c3_463, %c0_464, %c0_465] : memref<8x32x32xf32, #tpu.memory_space<vmem>>, vector<1x32x32xf32>
    %468 = vector.shape_cast %467 : vector<1x32x32xf32> to vector<32x32xf32>
    %469 = vector.extract_strided_slice %449 {offsets = [3, 0], sizes = [1, 32], strides = [1, 1]} : vector<8x32xf32> to vector<1x32xf32>
    %470 = vector.broadcast %469 : vector<1x32xf32> to vector<32x32xf32>
    %471 = arith.mulf %468, %470 : vector<32x32xf32>
    %472 = arith.addf %466, %471 : vector<32x32xf32>
    %c4_466 = arith.constant 4 : index
    %c0_467 = arith.constant 0 : index
    %c0_468 = arith.constant 0 : index
    %473 = vector.load %arg8[%c4_466, %c0_467, %c0_468] : memref<8x32x32xf32, #tpu.memory_space<vmem>>, vector<1x32x32xf32>
    %474 = vector.shape_cast %473 : vector<1x32x32xf32> to vector<32x32xf32>
    %475 = vector.extract_strided_slice %449 {offsets = [4, 0], sizes = [1, 32], strides = [1, 1]} : vector<8x32xf32> to vector<1x32xf32>
    %476 = vector.broadcast %475 : vector<1x32xf32> to vector<32x32xf32>
    %477 = arith.mulf %474, %476 : vector<32x32xf32>
    %478 = arith.addf %472, %477 : vector<32x32xf32>
    %c5_469 = arith.constant 5 : index
    %c0_470 = arith.constant 0 : index
    %c0_471 = arith.constant 0 : index
    %479 = vector.load %arg8[%c5_469, %c0_470, %c0_471] : memref<8x32x32xf32, #tpu.memory_space<vmem>>, vector<1x32x32xf32>
    %480 = vector.shape_cast %479 : vector<1x32x32xf32> to vector<32x32xf32>
    %481 = vector.extract_strided_slice %449 {offsets = [5, 0], sizes = [1, 32], strides = [1, 1]} : vector<8x32xf32> to vector<1x32xf32>
    %482 = vector.broadcast %481 : vector<1x32xf32> to vector<32x32xf32>
    %483 = arith.mulf %480, %482 : vector<32x32xf32>
    %484 = arith.addf %478, %483 : vector<32x32xf32>
    %c6_472 = arith.constant 6 : index
    %c0_473 = arith.constant 0 : index
    %c0_474 = arith.constant 0 : index
    %485 = vector.load %arg8[%c6_472, %c0_473, %c0_474] : memref<8x32x32xf32, #tpu.memory_space<vmem>>, vector<1x32x32xf32>
    %486 = vector.shape_cast %485 : vector<1x32x32xf32> to vector<32x32xf32>
    %487 = vector.extract_strided_slice %449 {offsets = [6, 0], sizes = [1, 32], strides = [1, 1]} : vector<8x32xf32> to vector<1x32xf32>
    %488 = vector.broadcast %487 : vector<1x32xf32> to vector<32x32xf32>
    %489 = arith.mulf %486, %488 : vector<32x32xf32>
    %490 = arith.addf %484, %489 : vector<32x32xf32>
    %c7_475 = arith.constant 7 : index
    %c0_476 = arith.constant 0 : index
    %c0_477 = arith.constant 0 : index
    %491 = vector.load %arg8[%c7_475, %c0_476, %c0_477] : memref<8x32x32xf32, #tpu.memory_space<vmem>>, vector<1x32x32xf32>
    %492 = vector.shape_cast %491 : vector<1x32x32xf32> to vector<32x32xf32>
    %493 = vector.extract_strided_slice %449 {offsets = [7, 0], sizes = [1, 32], strides = [1, 1]} : vector<8x32xf32> to vector<1x32xf32>
    %494 = vector.broadcast %493 : vector<1x32xf32> to vector<32x32xf32>
    %495 = arith.mulf %492, %494 : vector<32x32xf32>
    %496 = arith.addf %490, %495 : vector<32x32xf32>
    %c0_478 = arith.constant 0 : index
    %c0_479 = arith.constant 0 : index
    %497 = vector.load %arg9[%c0_478, %c0_479] : memref<32x2xf32, #tpu.memory_space<vmem>>, vector<32x2xf32>
    %cst_480 = arith.constant dense<0.000000e+00> : vector<32x2xf32>
    %498 = tpu.matmul %496, %497, %cst_480 {dimension_numbers = #tpu.dot_dimension_numbers<[1], [0], [0], [1], [0, 0, 1, 1], [], []>} : vector<32x32xf32>, vector<32x2xf32>, vector<32x2xf32> -> vector<32x2xf32>
    %c0_481 = arith.constant 0 : index
    %c0_482 = arith.constant 0 : index
    %499 = vector.load %arg10[%c0_481, %c0_482] : memref<32x1xf32, #tpu.memory_space<vmem>>, vector<32x1xf32>
    %500 = vector.broadcast %499 : vector<32x1xf32> to vector<32x2xf32>
    %501 = arith.addf %498, %500 : vector<32x2xf32>
    %cst_483 = arith.constant 0.000000e+00 : f32
    %502 = vector.broadcast %cst_483 : f32 to vector<32x2xf32>
    %503 = arith.maximumf %501, %502 : vector<32x2xf32>
    %c0_484 = arith.constant 0 : index
    %c0_485 = arith.constant 0 : index
    %504 = vector.load %arg11[%c0_484, %c0_485] : memref<8x33xf32, #tpu.memory_space<vmem>>, vector<8x32xf32>
    %cst_486 = arith.constant dense<0.000000e+00> : vector<8x2xf32>
    %505 = tpu.matmul %504, %503, %cst_486 {dimension_numbers = #tpu.dot_dimension_numbers<[1], [0], [0], [1], [0, 0, 1, 1], [], []>} : vector<8x32xf32>, vector<32x2xf32>, vector<8x2xf32> -> vector<8x2xf32>
    %c0_487 = arith.constant 0 : index
    %c32_488 = arith.constant 32 : index
    %506 = vector.load %arg11[%c0_487, %c32_488] : memref<8x33xf32, #tpu.memory_space<vmem>>, vector<8x1xf32>
    %507 = vector.broadcast %506 : vector<8x1xf32> to vector<8x2xf32>
    %508 = arith.addf %505, %507 : vector<8x2xf32>
    %c0_489 = arith.constant 0 : index
    %c0_490 = arith.constant 0 : index
    %509 = vector.load %arg12[%c0_489, %c0_490] : memref<8x2xf32, #tpu.memory_space<vmem>>, vector<8x2xf32>
    tpu.vector_store %arg12[%c0_489, %c0_490], %508 {strides = array<i32>} : memref<8x2xf32, #tpu.memory_space<vmem>>, vector<8x2xf32>,
    return
  }
}

</mosaic_0001>

<llo_original>
// kernel: _lambda_.1
$region0: #{_lambda_.1}
  #allocation0 [shape = 'u32[]', space=smem, size = 0x4, offset = 0x4, fixed_abs, tag = 'smem constant byte address 0x4 - core index']
  #allocation1 [shape = 'u32[144,128]{1,0:T(1,128)}', space=vmem, size = 0x12000, scoped, tag = 'internal scratch']
  #allocation2 [shape = 'f32[8,712]{1,0:T(8,128)}', space=vmem, size = 0x6000, scoped, tag = 'scratch operand']
  #allocation3 [shape = 'f32[8,264]{1,0:T(8,128)}', space=vmem, size = 0x3000, scoped, tag = 'scratch operand']
  %s0 = inlined_call_operand.vmem [shape: f32[8,712], index: 0, kind: input, shape index: {}]
  %s1 = inlined_call_operand.vmem [shape: f32[5,9,8,8], index: 1, kind: input, shape index: {}]
  %s2 = inlined_call_operand.vmem [shape: f32[2,4,8,8], index: 2, kind: input, shape index: {}]
  %s3 = inlined_call_operand.vmem [shape: f32[14,8,1], index: 3, kind: input, shape index: {}]
  %s4 = inlined_call_operand.vmem [shape: f32[8,100], index: 4, kind: input, shape index: {}]
  %s5 = inlined_call_operand.vmem [shape: f32[1,848], index: 5, kind: input, shape index: {}]
  %s6 = inlined_call_operand.vmem [shape: f32[324,100], index: 6, kind: input, shape index: {}]
  %s7 = inlined_call_operand.vmem [shape: f32[100,16], index: 7, kind: input, shape index: {}]
  %s8 = inlined_call_operand.vmem [shape: f32[8,32,32], index: 8, kind: input, shape index: {}]
  %s9 = inlined_call_operand.vmem [shape: f32[32,2], index: 9, kind: input, shape index: {}]
  %s10 = inlined_call_operand.vmem [shape: f32[32,1], index: 10, kind: input, shape index: {}]
  %s11 = inlined_call_operand.vmem [shape: f32[8,33], index: 11, kind: input, shape index: {}]
  %s12 = inlined_call_operand.vmem [shape: f32[8,2], index: 12, kind: output, shape index: {}]
  %s13 = sld [smem:[#allocation0]]
  $region58: #{_lambda_.1} parent=0
    _
  %s15 = ssub.s32 1, %s13
  %s16 = scalar_select 0, %s15, %s13
  // Predicated region
  $region2: #{_lambda_.1} parent=0 // pred_check
    _
  $region3: #{_lambda_.1} parent=0 // pred_check_branch
    %18 = sbr.rel (0) target = $region5
  $region4: #{_lambda_.1} parent=0 // pred_region
    _
  $region5: #{_lambda_.1} parent=0 // pred_fallthru
    _
  // Predicated region
  $region6: #{_lambda_.1} parent=0 // pred_check
    _
  $region7: #{_lambda_.1} parent=0 // pred_check_branch
    %20 = sbr.rel (0) target = $region9
  $region8: #{_lambda_.1} parent=0 // pred_region
    _
  $region9: #{_lambda_.1} parent=0 // pred_fallthru
    _
  // Predicated region
  $region10: #{_lambda_.1} parent=0 // pred_check
    _
  $region11: #{_lambda_.1} parent=0 // pred_check_branch
    %22 = sbr.rel (0) target = $region13
  $region12: #{_lambda_.1} parent=0 // pred_region
    _
  $region13: #{_lambda_.1} parent=0 // pred_fallthru
    _
  // Predicated region
  $region14: #{_lambda_.1} parent=0 // pred_check
    _
  $region15: #{_lambda_.1} parent=0 // pred_check_branch
    %24 = sbr.rel (0) target = $region17
  $region16: #{_lambda_.1} parent=0 // pred_region
    _
  $region17: #{_lambda_.1} parent=0 // pred_fallthru
    _
  // Predicated region
  $region18: #{_lambda_.1} parent=0 // pred_check
    _
  $region19: #{_lambda_.1} parent=0 // pred_check_branch
    %26 = sbr.rel (0) target = $region21
  $region20: #{_lambda_.1} parent=0 // pred_region
    _
  $region21: #{_lambda_.1} parent=0 // pred_fallthru
    _
  // Predicated region
  $region22: #{_lambda_.1} parent=0 // pred_check
    _
  $region23: #{_lambda_.1} parent=0 // pred_check_branch
    %28 = sbr.rel (0) target = $region25
  $region24: #{_lambda_.1} parent=0 // pred_region
    _
  $region25: #{_lambda_.1} parent=0 // pred_fallthru
    _
  // Predicated region
  $region26: #{_lambda_.1} parent=0 // pred_check
    _
  $region27: #{_lambda_.1} parent=0 // pred_check_branch
    %30 = sbr.rel (0) target = $region29
  $region28: #{_lambda_.1} parent=0 // pred_region
    _
  $region29: #{_lambda_.1} parent=0 // pred_fallthru
    _
  // Predicated region
  $region30: #{_lambda_.1} parent=0 // pred_check
    _
  $region31: #{_lambda_.1} parent=0 // pred_check_branch
    %32 = sbr.rel (0) target = $region33
  $region32: #{_lambda_.1} parent=0 // pred_region
    _
  $region33: #{_lambda_.1} parent=0 // pred_fallthru
    _
  // Predicated region
  $region34: #{_lambda_.1} parent=0 // pred_check
    _
  $region35: #{_lambda_.1} parent=0 // pred_check_branch
    %34 = sbr.rel (0) target = $region37
  $region36: #{_lambda_.1} parent=0 // pred_region
    _
  $region37: #{_lambda_.1} parent=0 // pred_fallthru
    _
  // Predicated region
  $region38: #{_lambda_.1} parent=0 // pred_check
    _
  $region39: #{_lambda_.1} parent=0 // pred_check_branch
    %36 = sbr.rel (0) target = $region41
  $region40: #{_lambda_.1} parent=0 // pred_region
    _
  $region41: #{_lambda_.1} parent=0 // pred_fallthru
    _
  // Predicated region
  $region42: #{_lambda_.1} parent=0 // pred_check
    _
  $region43: #{_lambda_.1} parent=0 // pred_check_branch
    %38 = sbr.rel (0) target = $region45
  $region44: #{_lambda_.1} parent=0 // pred_region
    _
  $region45: #{_lambda_.1} parent=0 // pred_fallthru
    _
  // Predicated region
  $region46: #{_lambda_.1} parent=0 // pred_check
    _
  $region47: #{_lambda_.1} parent=0 // pred_check_branch
    %40 = sbr.rel (0) target = $region49
  $region48: #{_lambda_.1} parent=0 // pred_region
    _
  $region49: #{_lambda_.1} parent=0 // pred_fallthru
    _
  %v41 = vld [vmem:[%s5] sm:$0x3f]
  %v42 = vld [vmem:[%s5 + $0x5] sm:$0x3]
  %43 = vst [vmem:[#allocation2] sm:$0xff] 0.0
  %44 = vst [vmem:[#allocation2 + $0x8] sm:$0xff] 0.0
  %45 = vst [vmem:[#allocation2 + $0x10] sm:$0xff] 0.0
  %46 = vst [vmem:[#allocation2 + $0x18] sm:$0xff] 0.0
  %47 = vst [vmem:[#allocation2 + $0x20] sm:$0xff] 0.0
  %vm48 = vcmask 588800
  %49 = vst.msk [vmem:[#allocation2 + $0x28] sm:$0xff] %vm48, 0.0
  %50 = vst [vmem:[#allocation3] sm:$0xff] 0.0
  %51 = vst [vmem:[#allocation3 + $0x8] sm:$0xff] 0.0
  %vm52 = vcmask 64512
  %53 = vst.msk [vmem:[#allocation3 + $0x10] sm:$0xff] %vm52, 0.0
  %v54 = vld [vmem:[%s1] sm:$0xff]
  %v55 = vld [vmem:[%s0] sm:$0xff]
  %v56 = vld [vmem:[%s0 + $0x8] sm:$0xff]
  %v57 = vld [vmem:[%s0 + $0x10] sm:$0xff]
  %v58 = vld [vmem:[%s0 + $0x18] sm:$0xff]
  %v59 = vld [vmem:[%s0 + $0x20] sm:$0xff]
  %v60 = vld [vmem:[%s0 + $0x28] sm:$0xff]
  %s61 = scalar_lea.vmem %s1, 8
  %v62 = vld [vmem:[%s61] sm:$0xff]
  %69 = vrot.lane.b32.xlu0 %v55, 114
  %v70 = vpop.permute.xlu0 %69
  %71 = vrot.lane.b32.xlu0 %v56, 114
  %v72 = vpop.permute.xlu0 %71
  %73 = vrot.lane.b32.xlu0 %v57, 114
  %v74 = vpop.permute.xlu0 %73
  %75 = vrot.lane.b32.xlu0 %v58, 114
  %v76 = vpop.permute.xlu0 %75
  %77 = vrot.lane.b32.xlu0 %v59, 114
  %v78 = vpop.permute.xlu0 %77
  %79 = vrot.lane.b32.xlu0 %v60, 114
  %v80 = vpop.permute.xlu0 %79
  %vm81 = vcmask 932864
  %v82 = vsel %vm81, %v70, %v72
  %v83 = vsel %vm81, %v72, %v74
  %v84 = vsel %vm81, %v74, %v76
  %v85 = vsel %vm81, %v76, %v78
  %v86 = vsel %vm81, %v78, %v80
  %v94 = vsel %vm52, %v62, 0
  %96 = vmatprep.subr.mxu0 %v83
  %97 = vmatpush1.msra.mxu0 %v82
  %98 = vmatprep.subr.mxu0 0.0
  %99 = vmatpush1.msra.mxu0 0.0
  %100 = vmatprep.subr.mxu0 0.0
  %101 = vmatpush1.msra.mxu0 0.0
  %102 = vmatprep.subr.mxu0 0.0
  %103 = vmatpush1.msra.mxu0 0.0
  %104 = vmatprep.subr.mxu0 0.0
  %105 = vmatpush1.msra.mxu0 0.0
  %106 = vmatprep.subr.mxu0 0.0
  %107 = vmatpush1.msra.mxu0 0.0
  %108 = vmatprep.subr.mxu0 0.0
  %109 = vmatpush1.msra.mxu0 0.0
  %110 = vmatprep.subr.mxu0 0.0
  %111 = vmatpush1.msra.mxu0 0.0
  %112 = vmatprep.subr.mxu0 0.0
  %113 = vmatpush1.msra.mxu0 0.0
  %114 = vmatprep.subr.mxu0 0.0
  %115 = vmatpush1.msra.mxu0 0.0
  %116 = vmatprep.subr.mxu0 0.0
  %117 = vmatpush1.msra.mxu0 0.0
  %118 = vmatprep.subr.mxu0 0.0
  %119 = vmatpush1.msra.mxu0 0.0
  %120 = vmatprep.subr.mxu0 0.0
  %121 = vmatpush1.msra.mxu0 0.0
  %122 = vmatprep.subr.mxu0 0.0
  %123 = vmatpush1.msra.mxu0 0.0
  %124 = vmatprep.subr.mxu0 0.0
  %125 = vmatpush1.msra.mxu0 0.0
  %126 = vmatprep.subr.mxu0 0.0
  %127 = vmatpush1.msra.mxu0 0.0
  %128 = vmatprep.subr.mxu0 0.0
  %129 = vmatpush1.msra.mxu0 0.0
  %130 = vmatprep.subr.mxu0 0.0
  %131 = vmatpush1.msra.mxu0 0.0
  %132 = vmatprep.subr.mxu0 0.0
  %133 = vmatpush1.msra.mxu0 0.0
  %134 = vmatprep.subr.mxu0 0.0
  %135 = vmatpush1.msra.mxu0 0.0
  %136 = vmatprep.subr.mxu0 0.0
  %137 = vmatpush1.msra.mxu0 0.0
  %138 = vmatprep.subr.mxu0 0.0
  %139 = vmatpush1.msra.mxu0 0.0
  %140 = vmatprep.subr.mxu0 0.0
  %141 = vmatpush1.msra.mxu0 0.0
  %142 = vmatprep.subr.mxu0 0.0
  %143 = vmatpush1.msra.mxu0 0.0
  %144 = vmatprep.subr.mxu0 0.0
  %145 = vmatpush1.msra.mxu0 0.0
  %146 = vmatprep.subr.mxu0 0.0
  %147 = vmatpush1.msra.mxu0 0.0
  %148 = vmatprep.subr.mxu0 0.0
  %149 = vmatpush1.msra.mxu0 0.0
  %150 = vmatprep.subr.mxu0 0.0
  %151 = vmatpush1.msra.mxu0 0.0
  %152 = vmatprep.subr.mxu0 0.0
  %153 = vmatpush1.msra.mxu0 0.0
  %154 = vmatprep.subr.mxu0 0.0
  %155 = vmatpush1.msra.mxu0 0.0
  %156 = vmatprep.subr.mxu0 0.0
  %157 = vmatpush1.msra.mxu0 0.0
  %158 = vmatprep.subr.mxu0 0.0
  %159 = vmatpush1.msra.mxu0 0.0
  %160 = vmatprep.mubr.f32.mxu0 0.0
  %161 = vmatmul.mubr.f32.gmra.mrb[0].mxu0 %v94
  %v162 = vpop.f32.mrb[0].mxu0
  %v163 = vadd.f32 0.0, %v162
  %v164 = vpop.f32.mrb[0].mxu0
  %v165 = vadd.f32 0.0, %v164
  %166 = vdwg.mxu0
  %167 = vmatprep.subr.mxu0 %v85
  %168 = vmatpush1.msra.mxu0 %v84
  %169 = vmatprep.subr.mxu0 0.0
  %170 = vmatpush1.msra.mxu0 0.0
  %171 = vmatprep.subr.mxu0 0.0
  %172 = vmatpush1.msra.mxu0 0.0
  %173 = vmatprep.subr.mxu0 0.0
  %174 = vmatpush1.msra.mxu0 0.0
  %175 = vmatprep.subr.mxu0 0.0
  %176 = vmatpush1.msra.mxu0 0.0
  %177 = vmatprep.subr.mxu0 0.0
  %178 = vmatpush1.msra.mxu0 0.0
  %179 = vmatprep.subr.mxu0 0.0
  %180 = vmatpush1.msra.mxu0 0.0
  %181 = vmatprep.subr.mxu0 0.0
  %182 = vmatpush1.msra.mxu0 0.0
  %183 = vmatprep.subr.mxu0 0.0
  %184 = vmatpush1.msra.mxu0 0.0
  %185 = vmatprep.subr.mxu0 0.0
  %186 = vmatpush1.msra.mxu0 0.0
  %187 = vmatprep.subr.mxu0 0.0
  %188 = vmatpush1.msra.mxu0 0.0
  %189 = vmatprep.subr.mxu0 0.0
  %190 = vmatpush1.msra.mxu0 0.0
  %191 = vmatprep.subr.mxu0 0.0
  %192 = vmatpush1.msra.mxu0 0.0
  %193 = vmatprep.subr.mxu0 0.0
  %194 = vmatpush1.msra.mxu0 0.0
  %195 = vmatprep.subr.mxu0 0.0
  %196 = vmatpush1.msra.mxu0 0.0
  %197 = vmatprep.subr.mxu0 0.0
  %198 = vmatpush1.msra.mxu0 0.0
  %199 = vmatprep.subr.mxu0 0.0
  %200 = vmatpush1.msra.mxu0 0.0
  %201 = vmatprep.subr.mxu0 0.0
  %202 = vmatpush1.msra.mxu0 0.0
  %203 = vmatprep.subr.mxu0 0.0
  %204 = vmatpush1.msra.mxu0 0.0
  %205 = vmatprep.subr.mxu0 0.0
  %206 = vmatpush1.msra.mxu0 0.0
  %207 = vmatprep.subr.mxu0 0.0
  %208 = vmatpush1.msra.mxu0 0.0
  %209 = vmatprep.subr.mxu0 0.0
  %210 = vmatpush1.msra.mxu0 0.0
  %211 = vmatprep.subr.mxu0 0.0
  %212 = vmatpush1.msra.mxu0 0.0
  %213 = vmatprep.subr.mxu0 0.0
  %214 = vmatpush1.msra.mxu0 0.0
  %215 = vmatprep.subr.mxu0 0.0
  %216 = vmatpush1.msra.mxu0 0.0
  %217 = vmatprep.subr.mxu0 0.0
  %218 = vmatpush1.msra.mxu0 0.0
  %219 = vmatprep.subr.mxu0 0.0
  %220 = vmatpush1.msra.mxu0 0.0
  %221 = vmatprep.subr.mxu0 0.0
  %222 = vmatpush1.msra.mxu0 0.0
  %223 = vmatprep.subr.mxu0 0.0
  %224 = vmatpush1.msra.mxu0 0.0
  %225 = vmatprep.subr.mxu0 0.0
  %226 = vmatpush1.msra.mxu0 0.0
  %227 = vmatprep.subr.mxu0 0.0
  %228 = vmatpush1.msra.mxu0 0.0
  %229 = vmatprep.subr.mxu0 0.0
  %230 = vmatpush1.msra.mxu0 0.0
  %231 = vmatprep.mubr.f32.mxu0 0.0
  %232 = vmatmul.mubr.f32.gmra.mrb[0].mxu0 %v94
  %v233 = vpop.f32.mrb[0].mxu0
  %v234 = vadd.f32 0.0, %v233
  %v235 = vpop.f32.mrb[0].mxu0
  %v236 = vadd.f32 0.0, %v235
  %237 = vdwg.mxu0
  %238 = vmatprep.subr.mxu0 %v80
  %239 = vmatpush1.msra.mxu0 %v86
  %240 = vmatprep.subr.mxu0 0.0
  %241 = vmatpush1.msra.mxu0 0.0
  %242 = vmatprep.subr.mxu0 0.0
  %243 = vmatpush1.msra.mxu0 0.0
  %244 = vmatprep.subr.mxu0 0.0
  %245 = vmatpush1.msra.mxu0 0.0
  %246 = vmatprep.subr.mxu0 0.0
  %247 = vmatpush1.msra.mxu0 0.0
  %248 = vmatprep.subr.mxu0 0.0
  %249 = vmatpush1.msra.mxu0 0.0
  %250 = vmatprep.subr.mxu0 0.0
  %251 = vmatpush1.msra.mxu0 0.0
  %252 = vmatprep.subr.mxu0 0.0
  %253 = vmatpush1.msra.mxu0 0.0
  %254 = vmatprep.subr.mxu0 0.0
  %255 = vmatpush1.msra.mxu0 0.0
  %256 = vmatprep.subr.mxu0 0.0
  %257 = vmatpush1.msra.mxu0 0.0
  %258 = vmatprep.subr.mxu0 0.0
  %259 = vmatpush1.msra.mxu0 0.0
  %260 = vmatprep.subr.mxu0 0.0
  %261 = vmatpush1.msra.mxu0 0.0
  %262 = vmatprep.subr.mxu0 0.0
  %263 = vmatpush1.msra.mxu0 0.0
  %264 = vmatprep.subr.mxu0 0.0
  %265 = vmatpush1.msra.mxu0 0.0
  %266 = vmatprep.subr.mxu0 0.0
  %267 = vmatpush1.msra.mxu0 0.0
  %268 = vmatprep.subr.mxu0 0.0
  %269 = vmatpush1.msra.mxu0 0.0
  %270 = vmatprep.subr.mxu0 0.0
  %271 = vmatpush1.msra.mxu0 0.0
  %272 = vmatprep.subr.mxu0 0.0
  %273 = vmatpush1.msra.mxu0 0.0
  %274 = vmatprep.subr.mxu0 0.0
  %275 = vmatpush1.msra.mxu0 0.0
  %276 = vmatprep.subr.mxu0 0.0
  %277 = vmatpush1.msra.mxu0 0.0
  %278 = vmatprep.subr.mxu0 0.0
  %279 = vmatpush1.msra.mxu0 0.0
  %280 = vmatprep.subr.mxu0 0.0
  %281 = vmatpush1.msra.mxu0 0.0
  %282 = vmatprep.subr.mxu0 0.0
  %283 = vmatpush1.msra.mxu0 0.0
  %284 = vmatprep.subr.mxu0 0.0
  %285 = vmatpush1.msra.mxu0 0.0
  %286 = vmatprep.subr.mxu0 0.0
  %287 = vmatpush1.msra.mxu0 0.0
  %288 = vmatprep.subr.mxu0 0.0
  %289 = vmatpush1.msra.mxu0 0.0
  %290 = vmatprep.subr.mxu0 0.0
  %291 = vmatpush1.msra.mxu0 0.0
  %292 = vmatprep.subr.mxu0 0.0
  %293 = vmatpush1.msra.mxu0 0.0
  %294 = vmatprep.subr.mxu0 0.0
  %295 = vmatpush1.msra.mxu0 0.0
  %296 = vmatprep.subr.mxu0 0.0
  %297 = vmatpush1.msra.mxu0 0.0
  %298 = vmatprep.subr.mxu0 0.0
  %299 = vmatpush1.msra.mxu0 0.0
  %300 = vmatprep.subr.mxu0 0.0
  %301 = vmatpush1.msra.mxu0 0.0
  %302 = vmatprep.mubr.f32.mxu0 0.0
  %303 = vmatmul.mubr.f32.gmra.mrb[0].mxu0 %v94
  %v304 = vpop.f32.mrb[0].mxu0
  %v305 = vadd.f32 0.0, %v304
  %v306 = vpop.f32.mrb[0].mxu0
  %v307 = vadd.f32 0.0, %v306
  %308 = vdwg.mxu0
  %309 = vrot.lane.b32.xlu0 %v55, 115
  %v310 = vpop.permute.xlu0 %309
  %311 = vrot.lane.b32.xlu0 %v56, 115
  %v312 = vpop.permute.xlu0 %311
  %313 = vrot.lane.b32.xlu0 %v57, 115
  %v314 = vpop.permute.xlu0 %313
  %315 = vrot.lane.b32.xlu0 %v58, 115
  %v316 = vpop.permute.xlu0 %315
  %317 = vrot.lane.b32.xlu0 %v59, 115
  %v318 = vpop.permute.xlu0 %317
  %319 = vrot.lane.b32.xlu0 %v60, 115
  %v320 = vpop.permute.xlu0 %319
  %vm321 = vcmask 941056
  %v322 = vsel %vm321, %v310, %v312
  %v323 = vsel %vm321, %v312, %v314
  %v324 = vsel %vm321, %v314, %v316
  %v325 = vsel %vm321, %v316, %v318
  %v326 = vsel %vm321, %v318, %v320
  %v334 = vsel %vm52, %v54, 0
  %336 = vmatprep.subr.mxu0 %v323
  %337 = vmatpush1.msra.mxu0 %v322
  %338 = vmatprep.subr.mxu0 0.0
  %339 = vmatpush1.msra.mxu0 0.0
  %340 = vmatprep.subr.mxu0 0.0
  %341 = vmatpush1.msra.mxu0 0.0
  %342 = vmatprep.subr.mxu0 0.0
  %343 = vmatpush1.msra.mxu0 0.0
  %344 = vmatprep.subr.mxu0 0.0
  %345 = vmatpush1.msra.mxu0 0.0
  %346 = vmatprep.subr.mxu0 0.0
  %347 = vmatpush1.msra.mxu0 0.0
  %348 = vmatprep.subr.mxu0 0.0
  %349 = vmatpush1.msra.mxu0 0.0
  %350 = vmatprep.subr.mxu0 0.0
  %351 = vmatpush1.msra.mxu0 0.0
  %352 = vmatprep.subr.mxu0 0.0
  %353 = vmatpush1.msra.mxu0 0.0
  %354 = vmatprep.subr.mxu0 0.0
  %355 = vmatpush1.msra.mxu0 0.0
  %356 = vmatprep.subr.mxu0 0.0
  %357 = vmatpush1.msra.mxu0 0.0
  %358 = vmatprep.subr.mxu0 0.0
  %359 = vmatpush1.msra.mxu0 0.0
  %360 = vmatprep.subr.mxu0 0.0
  %361 = vmatpush1.msra.mxu0 0.0
  %362 = vmatprep.subr.mxu0 0.0
  %363 = vmatpush1.msra.mxu0 0.0
  %364 = vmatprep.subr.mxu0 0.0
  %365 = vmatpush1.msra.mxu0 0.0
  %366 = vmatprep.subr.mxu0 0.0
  %367 = vmatpush1.msra.mxu0 0.0
  %368 = vmatprep.subr.mxu0 0.0
  %369 = vmatpush1.msra.mxu0 0.0
  %370 = vmatprep.subr.mxu0 0.0
  %371 = vmatpush1.msra.mxu0 0.0
  %372 = vmatprep.subr.mxu0 0.0
  %373 = vmatpush1.msra.mxu0 0.0
  %374 = vmatprep.subr.mxu0 0.0
  %375 = vmatpush1.msra.mxu0 0.0
  %376 = vmatprep.subr.mxu0 0.0
  %377 = vmatpush1.msra.mxu0 0.0
  %378 = vmatprep.subr.mxu0 0.0
  %379 = vmatpush1.msra.mxu0 0.0
  %380 = vmatprep.subr.mxu0 0.0
  %381 = vmatpush1.msra.mxu0 0.0
  %382 = vmatprep.subr.mxu0 0.0
  %383 = vmatpush1.msra.mxu0 0.0
  %384 = vmatprep.subr.mxu0 0.0
  %385 = vmatpush1.msra.mxu0 0.0
  %386 = vmatprep.subr.mxu0 0.0
  %387 = vmatpush1.msra.mxu0 0.0
  %388 = vmatprep.subr.mxu0 0.0
  %389 = vmatpush1.msra.mxu0 0.0
  %390 = vmatprep.subr.mxu0 0.0
  %391 = vmatpush1.msra.mxu0 0.0
  %392 = vmatprep.subr.mxu0 0.0
  %393 = vmatpush1.msra.mxu0 0.0
  %394 = vmatprep.subr.mxu0 0.0
  %395 = vmatpush1.msra.mxu0 0.0
  %396 = vmatprep.subr.mxu0 0.0
  %397 = vmatpush1.msra.mxu0 0.0
  %398 = vmatprep.subr.mxu0 0.0
  %399 = vmatpush1.msra.mxu0 0.0
  %400 = vmatprep.mubr.f32.mxu0 0.0
  %401 = vmatmul.mubr.f32.gmra.mrb[0].mxu0 %v334
  %v402 = vpop.f32.mrb[0].mxu0
  %v403 = vadd.f32 %v163, %v402
  %v404 = vpop.f32.mrb[0].mxu0
  %v405 = vadd.f32 %v165, %v404
  %406 = vdwg.mxu0
  %407 = vmatprep.subr.mxu0 %v325
  %408 = vmatpush1.msra.mxu0 %v324
  %409 = vmatprep.subr.mxu0 0.0
  %410 = vmatpush1.msra.mxu0 0.0
  %411 = vmatprep.subr.mxu0 0.0
  %412 = vmatpush1.msra.mxu0 0.0
  %413 = vmatprep.subr.mxu0 0.0
  %414 = vmatpush1.msra.mxu0 0.0
  %415 = vmatprep.subr.mxu0 0.0
  %416 = vmatpush1.msra.mxu0 0.0
  %417 = vmatprep.subr.mxu0 0.0
  %418 = vmatpush1.msra.mxu0 0.0
  %419 = vmatprep.subr.mxu0 0.0
  %420 = vmatpush1.msra.mxu0 0.0
  %421 = vmatprep.subr.mxu0 0.0
  %422 = vmatpush1.msra.mxu0 0.0
  %423 = vmatprep.subr.mxu0 0.0
  %424 = vmatpush1.msra.mxu0 0.0
  %425 = vmatprep.subr.mxu0 0.0
  %426 = vmatpush1.msra.mxu0 0.0
  %427 = vmatprep.subr.mxu0 0.0
  %428 = vmatpush1.msra.mxu0 0.0
  %429 = vmatprep.subr.mxu0 0.0
  %430 = vmatpush1.msra.mxu0 0.0
  %431 = vmatprep.subr.mxu0 0.0
  %432 = vmatpush1.msra.mxu0 0.0
  %433 = vmatprep.subr.mxu0 0.0
  %434 = vmatpush1.msra.mxu0 0.0
  %435 = vmatprep.subr.mxu0 0.0
  %436 = vmatpush1.msra.mxu0 0.0
  %437 = vmatprep.subr.mxu0 0.0
  %438 = vmatpush1.msra.mxu0 0.0
  %439 = vmatprep.subr.mxu0 0.0
  %440 = vmatpush1.msra.mxu0 0.0
  %441 = vmatprep.subr.mxu0 0.0
  %442 = vmatpush1.msra.mxu0 0.0
  %443 = vmatprep.subr.mxu0 0.0
  %444 = vmatpush1.msra.mxu0 0.0
  %445 = vmatprep.subr.mxu0 0.0
  %446 = vmatpush1.msra.mxu0 0.0
  %447 = vmatprep.subr.mxu0 0.0
  %448 = vmatpush1.msra.mxu0 0.0
  %449 = vmatprep.subr.mxu0 0.0
  %450 = vmatpush1.msra.mxu0 0.0
  %451 = vmatprep.subr.mxu0 0.0
  %452 = vmatpush1.msra.mxu0 0.0
  %453 = vmatprep.subr.mxu0 0.0
  %454 = vmatpush1.msra.mxu0 0.0
  %455 = vmatprep.subr.mxu0 0.0
  %456 = vmatpush1.msra.mxu0 0.0
  %457 = vmatprep.subr.mxu0 0.0
  %458 = vmatpush1.msra.mxu0 0.0
  %459 = vmatprep.subr.mxu0 0.0
  %460 = vmatpush1.msra.mxu0 0.0
  %461 = vmatprep.subr.mxu0 0.0
  %462 = vmatpush1.msra.mxu0 0.0
  %463 = vmatprep.subr.mxu0 0.0
  %464 = vmatpush1.msra.mxu0 0.0
  %465 = vmatprep.subr.mxu0 0.0
  %466 = vmatpush1.msra.mxu0 0.0
  %467 = vmatprep.subr.mxu0 0.0
  %468 = vmatpush1.msra.mxu0 0.0
  %469 = vmatprep.subr.mxu0 0.0
  %470 = vmatpush1.msra.mxu0 0.0
  %471 = vmatprep.mubr.f32.mxu0 0.0
  %472 = vmatmul.mubr.f32.gmra.mrb[0].mxu0 %v334
  %v473 = vpop.f32.mrb[0].mxu0
  %v474 = vadd.f32 %v234, %v473
  %v475 = vpop.f32.mrb[0].mxu0
  %v476 = vadd.f32 %v236, %v475
  %477 = vdwg.mxu0
  %478 = vmatprep.subr.mxu0 %v320
  %479 = vmatpush1.msra.mxu0 %v326
  %480 = vmatprep.subr.mxu0 0.0
  %481 = vmatpush1.msra.mxu0 0.0
  %482 = vmatprep.subr.mxu0 0.0
  %483 = vmatpush1.msra.mxu0 0.0
  %484 = vmatprep.subr.mxu0 0.0
  %485 = vmatpush1.msra.mxu0 0.0
  %486 = vmatprep.subr.mxu0 0.0
  %487 = vmatpush1.msra.mxu0 0.0
  %488 = vmatprep.subr.mxu0 0.0
  %489 = vmatpush1.msra.mxu0 0.0
  %490 = vmatprep.subr.mxu0 0.0
  %491 = vmatpush1.msra.mxu0 0.0
  %492 = vmatprep.subr.mxu0 0.0
  %493 = vmatpush1.msra.mxu0 0.0
  %494 = vmatprep.subr.mxu0 0.0
  %495 = vmatpush1.msra.mxu0 0.0
  %496 = vmatprep.subr.mxu0 0.0
  %497 = vmatpush1.msra.mxu0 0.0
  %498 = vmatprep.subr.mxu0 0.0
  %499 = vmatpush1.msra.mxu0 0.0
  %500 = vmatprep.subr.mxu0 0.0
  %501 = vmatpush1.msra.mxu0 0.0
  %502 = vmatprep.subr.mxu0 0.0
  %503 = vmatpush1.msra.mxu0 0.0
  %504 = vmatprep.subr.mxu0 0.0
  %505 = vmatpush1.msra.mxu0 0.0
  %506 = vmatprep.subr.mxu0 0.0
  %507 = vmatpush1.msra.mxu0 0.0
  %508 = vmatprep.subr.mxu0 0.0
  %509 = vmatpush1.msra.mxu0 0.0
  %510 = vmatprep.subr.mxu0 0.0
  %511 = vmatpush1.msra.mxu0 0.0
  %512 = vmatprep.subr.mxu0 0.0
  %513 = vmatpush1.msra.mxu0 0.0
  %514 = vmatprep.subr.mxu0 0.0
  %515 = vmatpush1.msra.mxu0 0.0
  %516 = vmatprep.subr.mxu0 0.0
  %517 = vmatpush1.msra.mxu0 0.0
  %518 = vmatprep.subr.mxu0 0.0
  %519 = vmatpush1.msra.mxu0 0.0
  %520 = vmatprep.subr.mxu0 0.0
  %521 = vmatpush1.msra.mxu0 0.0
  %522 = vmatprep.subr.mxu0 0.0
  %523 = vmatpush1.msra.mxu0 0.0
  %524 = vmatprep.subr.mxu0 0.0
  %525 = vmatpush1.msra.mxu0 0.0
  %526 = vmatprep.subr.mxu0 0.0
  %527 = vmatpush1.msra.mxu0 0.0
  %528 = vmatprep.subr.mxu0 0.0
  %529 = vmatpush1.msra.mxu0 0.0
  %530 = vmatprep.subr.mxu0 0.0
  %531 = vmatpush1.msra.mxu0 0.0
  %532 = vmatprep.subr.mxu0 0.0
  %533 = vmatpush1.msra.mxu0 0.0
  %534 = vmatprep.subr.mxu0 0.0
  %535 = vmatpush1.msra.mxu0 0.0
  %536 = vmatprep.subr.mxu0 0.0
  %537 = vmatpush1.msra.mxu0 0.0
  %538 = vmatprep.subr.mxu0 0.0
  %539 = vmatpush1.msra.mxu0 0.0
  %540 = vmatprep.subr.mxu0 0.0
  %541 = vmatpush1.msra.mxu0 0.0
  %542 = vmatprep.mubr.f32.mxu0 0.0
  %543 = vmatmul.mubr.f32.gmra.mrb[0].mxu0 %v334
  %v544 = vpop.f32.mrb[0].mxu0
  %v545 = vadd.f32 %v305, %v544
  %v546 = vpop.f32.mrb[0].mxu0
  %v547 = vadd.f32 %v307, %v546
  %548 = vdwg.mxu0
  %s549 = scalar_lea.vmem %s1, 16
  %v550 = vld [vmem:[%s549] sm:$0xff]
  %551 = vrot.lane.b32.xlu0 %v55, 113
  %v552 = vpop.permute.xlu0 %551
  %553 = vrot.lane.b32.xlu0 %v56, 113
  %v554 = vpop.permute.xlu0 %553
  %555 = vrot.lane.b32.xlu0 %v57, 113
  %v556 = vpop.permute.xlu0 %555
  %557 = vrot.lane.b32.xlu0 %v58, 113
  %v558 = vpop.permute.xlu0 %557
  %559 = vrot.lane.b32.xlu0 %v59, 113
  %v560 = vpop.permute.xlu0 %559
  %561 = vrot.lane.b32.xlu0 %v60, 113
  %v562 = vpop.permute.xlu0 %561
  %vm563 = vcmask 924672
  %v564 = vsel %vm563, %v552, %v554
  %v565 = vsel %vm563, %v554, %v556
  %v566 = vsel %vm563, %v556, %v558
  %v567 = vsel %vm563, %v558, %v560
  %v568 = vsel %vm563, %v560, %v562
  %v576 = vsel %vm52, %v550, 0
  %578 = vmatprep.subr.mxu0 %v565
  %579 = vmatpush1.msra.mxu0 %v564
  %580 = vmatprep.subr.mxu0 0.0
  %581 = vmatpush1.msra.mxu0 0.0
  %582 = vmatprep.subr.mxu0 0.0
  %583 = vmatpush1.msra.mxu0 0.0
  %584 = vmatprep.subr.mxu0 0.0
  %585 = vmatpush1.msra.mxu0 0.0
  %586 = vmatprep.subr.mxu0 0.0
  %587 = vmatpush1.msra.mxu0 0.0
  %588 = vmatprep.subr.mxu0 0.0
  %589 = vmatpush1.msra.mxu0 0.0
  %590 = vmatprep.subr.mxu0 0.0
  %591 = vmatpush1.msra.mxu0 0.0
  %592 = vmatprep.subr.mxu0 0.0
  %593 = vmatpush1.msra.mxu0 0.0
  %594 = vmatprep.subr.mxu0 0.0
  %595 = vmatpush1.msra.mxu0 0.0
  %596 = vmatprep.subr.mxu0 0.0
  %597 = vmatpush1.msra.mxu0 0.0
  %598 = vmatprep.subr.mxu0 0.0
  %599 = vmatpush1.msra.mxu0 0.0
  %600 = vmatprep.subr.mxu0 0.0
  %601 = vmatpush1.msra.mxu0 0.0
  %602 = vmatprep.subr.mxu0 0.0
  %603 = vmatpush1.msra.mxu0 0.0
  %604 = vmatprep.subr.mxu0 0.0
  %605 = vmatpush1.msra.mxu0 0.0
  %606 = vmatprep.subr.mxu0 0.0
  %607 = vmatpush1.msra.mxu0 0.0
  %608 = vmatprep.subr.mxu0 0.0
  %609 = vmatpush1.msra.mxu0 0.0
  %610 = vmatprep.subr.mxu0 0.0
  %611 = vmatpush1.msra.mxu0 0.0
  %612 = vmatprep.subr.mxu0 0.0
  %613 = vmatpush1.msra.mxu0 0.0
  %614 = vmatprep.subr.mxu0 0.0
  %615 = vmatpush1.msra.mxu0 0.0
  %616 = vmatprep.subr.mxu0 0.0
  %617 = vmatpush1.msra.mxu0 0.0
  %618 = vmatprep.subr.mxu0 0.0
  %619 = vmatpush1.msra.mxu0 0.0
  %620 = vmatprep.subr.mxu0 0.0
  %621 = vmatpush1.msra.mxu0 0.0
  %622 = vmatprep.subr.mxu0 0.0
  %623 = vmatpush1.msra.mxu0 0.0
  %624 = vmatprep.subr.mxu0 0.0
  %625 = vmatpush1.msra.mxu0 0.0
  %626 = vmatprep.subr.mxu0 0.0
  %627 = vmatpush1.msra.mxu0 0.0
  %628 = vmatprep.subr.mxu0 0.0
  %629 = vmatpush1.msra.mxu0 0.0
  %630 = vmatprep.subr.mxu0 0.0
  %631 = vmatpush1.msra.mxu0 0.0
  %632 = vmatprep.subr.mxu0 0.0
  %633 = vmatpush1.msra.mxu0 0.0
  %634 = vmatprep.subr.mxu0 0.0
  %635 = vmatpush1.msra.mxu0 0.0
  %636 = vmatprep.subr.mxu0 0.0
  %637 = vmatpush1.msra.mxu0 0.0
  %638 = vmatprep.subr.mxu0 0.0
  %639 = vmatpush1.msra.mxu0 0.0
  %640 = vmatprep.subr.mxu0 0.0
  %641 = vmatpush1.msra.mxu0 0.0
  %642 = vmatprep.mubr.f32.mxu0 0.0
  %643 = vmatmul.mubr.f32.gmra.mrb[0].mxu0 %v576
  %v644 = vpop.f32.mrb[0].mxu0
  %v645 = vadd.f32 0.0, %v644
  %v646 = vpop.f32.mrb[0].mxu0
  %v647 = vadd.f32 0.0, %v646
  %648 = vdwg.mxu0
  %649 = vmatprep.subr.mxu0 %v567
  %650 = vmatpush1.msra.mxu0 %v566
  %651 = vmatprep.subr.mxu0 0.0
  %652 = vmatpush1.msra.mxu0 0.0
  %653 = vmatprep.subr.mxu0 0.0
  %654 = vmatpush1.msra.mxu0 0.0
  %655 = vmatprep.subr.mxu0 0.0
  %656 = vmatpush1.msra.mxu0 0.0
  %657 = vmatprep.subr.mxu0 0.0
  %658 = vmatpush1.msra.mxu0 0.0
  %659 = vmatprep.subr.mxu0 0.0
  %660 = vmatpush1.msra.mxu0 0.0
  %661 = vmatprep.subr.mxu0 0.0
  %662 = vmatpush1.msra.mxu0 0.0
  %663 = vmatprep.subr.mxu0 0.0
  %664 = vmatpush1.msra.mxu0 0.0
  %665 = vmatprep.subr.mxu0 0.0
  %666 = vmatpush1.msra.mxu0 0.0
  %667 = vmatprep.subr.mxu0 0.0
  %668 = vmatpush1.msra.mxu0 0.0
  %669 = vmatprep.subr.mxu0 0.0
  %670 = vmatpush1.msra.mxu0 0.0
  %671 = vmatprep.subr.mxu0 0.0
  %672 = vmatpush1.msra.mxu0 0.0
  %673 = vmatprep.subr.mxu0 0.0
  %674 = vmatpush1.msra.mxu0 0.0
  %675 = vmatprep.subr.mxu0 0.0
  %676 = vmatpush1.msra.mxu0 0.0
  %677 = vmatprep.subr.mxu0 0.0
  %678 = vmatpush1.msra.mxu0 0.0
  %679 = vmatprep.subr.mxu0 0.0
  %680 = vmatpush1.msra.mxu0 0.0
  %681 = vmatprep.subr.mxu0 0.0
  %682 = vmatpush1.msra.mxu0 0.0
  %683 = vmatprep.subr.mxu0 0.0
  %684 = vmatpush1.msra.mxu0 0.0
  %685 = vmatprep.subr.mxu0 0.0
  %686 = vmatpush1.msra.mxu0 0.0
  %687 = vmatprep.subr.mxu0 0.0
  %688 = vmatpush1.msra.mxu0 0.0
  %689 = vmatprep.subr.mxu0 0.0
  %690 = vmatpush1.msra.mxu0 0.0
  %691 = vmatprep.subr.mxu0 0.0
  %692 = vmatpush1.msra.mxu0 0.0
  %693 = vmatprep.subr.mxu0 0.0
  %694 = vmatpush1.msra.mxu0 0.0
  %695 = vmatprep.subr.mxu0 0.0
  %696 = vmatpush1.msra.mxu0 0.0
  %697 = vmatprep.subr.mxu0 0.0
  %698 = vmatpush1.msra.mxu0 0.0
  %699 = vmatprep.subr.mxu0 0.0
  %700 = vmatpush1.msra.mxu0 0.0
  %701 = vmatprep.subr.mxu0 0.0
  %702 = vmatpush1.msra.mxu0 0.0
  %703 = vmatprep.subr.mxu0 0.0
  %704 = vmatpush1.msra.mxu0 0.0
  %705 = vmatprep.subr.mxu0 0.0
  %706 = vmatpush1.msra.mxu0 0.0
  %707 = vmatprep.subr.mxu0 0.0
  %708 = vmatpush1.msra.mxu0 0.0
  %709 = vmatprep.subr.mxu0 0.0
  %710 = vmatpush1.msra.mxu0 0.0
  %711 = vmatprep.subr.mxu0 0.0
  %712 = vmatpush1.msra.mxu0 0.0
  %713 = vmatprep.mubr.f32.mxu0 0.0
  %714 = vmatmul.mubr.f32.gmra.mrb[0].mxu0 %v576
  %v715 = vpop.f32.mrb[0].mxu0
  %v716 = vadd.f32 0.0, %v715
  %v717 = vpop.f32.mrb[0].mxu0
  %v718 = vadd.f32 0.0, %v717
  %719 = vdwg.mxu0
  %720 = vmatprep.subr.mxu0 %v562
  %721 = vmatpush1.msra.mxu0 %v568
  %722 = vmatprep.subr.mxu0 0.0
  %723 = vmatpush1.msra.mxu0 0.0
  %724 = vmatprep.subr.mxu0 0.0
  %725 = vmatpush1.msra.mxu0 0.0
  %726 = vmatprep.subr.mxu0 0.0
  %727 = vmatpush1.msra.mxu0 0.0
  %728 = vmatprep.subr.mxu0 0.0
  %729 = vmatpush1.msra.mxu0 0.0
  %730 = vmatprep.subr.mxu0 0.0
  %731 = vmatpush1.msra.mxu0 0.0
  %732 = vmatprep.subr.mxu0 0.0
  %733 = vmatpush1.msra.mxu0 0.0
  %734 = vmatprep.subr.mxu0 0.0
  %735 = vmatpush1.msra.mxu0 0.0
  %736 = vmatprep.subr.mxu0 0.0
  %737 = vmatpush1.msra.mxu0 0.0
  %738 = vmatprep.subr.mxu0 0.0
  %739 = vmatpush1.msra.mxu0 0.0
  %740 = vmatprep.subr.mxu0 0.0
  %741 = vmatpush1.msra.mxu0 0.0
  %742 = vmatprep.subr.mxu0 0.0
  %743 = vmatpush1.msra.mxu0 0.0
  %744 = vmatprep.subr.mxu0 0.0
  %745 = vmatpush1.msra.mxu0 0.0
  %746 = vmatprep.subr.mxu0 0.0
  %747 = vmatpush1.msra.mxu0 0.0
  %748 = vmatprep.subr.mxu0 0.0
  %749 = vmatpush1.msra.mxu0 0.0
  %750 = vmatprep.subr.mxu0 0.0
  %751 = vmatpush1.msra.mxu0 0.0
  %752 = vmatprep.subr.mxu0 0.0
  %753 = vmatpush1.msra.mxu0 0.0
  %754 = vmatprep.subr.mxu0 0.0
  %755 = vmatpush1.msra.mxu0 0.0
  %756 = vmatprep.subr.mxu0 0.0
  %757 = vmatpush1.msra.mxu0 0.0
  %758 = vmatprep.subr.mxu0 0.0
  %759 = vmatpush1.msra.mxu0 0.0
  %760 = vmatprep.subr.mxu0 0.0
  %761 = vmatpush1.msra.mxu0 0.0
  %762 = vmatprep.subr.mxu0 0.0
  %763 = vmatpush1.msra.mxu0 0.0
  %764 = vmatprep.subr.mxu0 0.0
  %765 = vmatpush1.msra.mxu0 0.0
  %766 = vmatprep.subr.mxu0 0.0
  %767 = vmatpush1.msra.mxu0 0.0
  %768 = vmatprep.subr.mxu0 0.0
  %769 = vmatpush1.msra.mxu0 0.0
  %770 = vmatprep.subr.mxu0 0.0
  %771 = vmatpush1.msra.mxu0 0.0
  %772 = vmatprep.subr.mxu0 0.0
  %773 = vmatpush1.msra.mxu0 0.0
  %774 = vmatprep.subr.mxu0 0.0
  %775 = vmatpush1.msra.mxu0 0.0
  %776 = vmatprep.subr.mxu0 0.0
  %777 = vmatpush1.msra.mxu0 0.0
  %778 = vmatprep.subr.mxu0 0.0
  %779 = vmatpush1.msra.mxu0 0.0
  %780 = vmatprep.subr.mxu0 0.0
  %781 = vmatpush1.msra.mxu0 0.0
  %782 = vmatprep.subr.mxu0 0.0
  %783 = vmatpush1.msra.mxu0 0.0
  %784 = vmatprep.mubr.f32.mxu0 0.0
  %785 = vmatmul.mubr.f32.gmra.mrb[0].mxu0 %v576
  %v786 = vpop.f32.mrb[0].mxu0
  %v787 = vadd.f32 0.0, %v786
  %v788 = vpop.f32.mrb[0].mxu0
  %v789 = vadd.f32 0.0, %v788
  %790 = vdwg.mxu0
  %v791 = vadd.f32 %v403, %v645
  %v792 = vadd.f32 %v405, %v647
  %v793 = vadd.f32 %v474, %v716
  %v794 = vadd.f32 %v476, %v718
  %v795 = vadd.f32 %v545, %v787
  %v796 = vadd.f32 %v547, %v789
  %s797 = scalar_lea.vmem %s1, 24
  %v798 = vld [vmem:[%s797] sm:$0xff]
  %799 = vrot.lane.b32.xlu0 %v55, 97
  %v800 = vpop.permute.xlu0 %799
  %801 = vrot.lane.b32.xlu0 %v56, 97
  %v802 = vpop.permute.xlu0 %801
  %803 = vrot.lane.b32.xlu0 %v57, 97
  %v804 = vpop.permute.xlu0 %803
  %805 = vrot.lane.b32.xlu0 %v58, 97
  %v806 = vpop.permute.xlu0 %805
  %807 = vrot.lane.b32.xlu0 %v59, 97
  %v808 = vpop.permute.xlu0 %807
  %809 = vrot.lane.b32.xlu0 %v60, 97
  %v810 = vpop.permute.xlu0 %809
  %vm811 = vcmask 793600
  %v812 = vsel %vm811, %v800, %v802
  %v813 = vsel %vm811, %v802, %v804
  %v814 = vsel %vm811, %v804, %v806
  %v815 = vsel %vm811, %v806, %v808
  %v816 = vsel %vm811, %v808, %v810
  %v824 = vsel %vm52, %v798, 0
  %826 = vmatprep.subr.mxu0 %v813
  %827 = vmatpush1.msra.mxu0 %v812
  %828 = vmatprep.subr.mxu0 0.0
  %829 = vmatpush1.msra.mxu0 0.0
  %830 = vmatprep.subr.mxu0 0.0
  %831 = vmatpush1.msra.mxu0 0.0
  %832 = vmatprep.subr.mxu0 0.0
  %833 = vmatpush1.msra.mxu0 0.0
  %834 = vmatprep.subr.mxu0 0.0
  %835 = vmatpush1.msra.mxu0 0.0
  %836 = vmatprep.subr.mxu0 0.0
  %837 = vmatpush1.msra.mxu0 0.0
  %838 = vmatprep.subr.mxu0 0.0
  %839 = vmatpush1.msra.mxu0 0.0
  %840 = vmatprep.subr.mxu0 0.0
  %841 = vmatpush1.msra.mxu0 0.0
  %842 = vmatprep.subr.mxu0 0.0
  %843 = vmatpush1.msra.mxu0 0.0
  %844 = vmatprep.subr.mxu0 0.0
  %845 = vmatpush1.msra.mxu0 0.0
  %846 = vmatprep.subr.mxu0 0.0
  %847 = vmatpush1.msra.mxu0 0.0
  %848 = vmatprep.subr.mxu0 0.0
  %849 = vmatpush1.msra.mxu0 0.0
  %850 = vmatprep.subr.mxu0 0.0
  %851 = vmatpush1.msra.mxu0 0.0
  %852 = vmatprep.subr.mxu0 0.0
  %853 = vmatpush1.msra.mxu0 0.0
  %854 = vmatprep.subr.mxu0 0.0
  %855 = vmatpush1.msra.mxu0 0.0
  %856 = vmatprep.subr.mxu0 0.0
  %857 = vmatpush1.msra.mxu0 0.0
  %858 = vmatprep.subr.mxu0 0.0
  %859 = vmatpush1.msra.mxu0 0.0
  %860 = vmatprep.subr.mxu0 0.0
  %861 = vmatpush1.msra.mxu0 0.0
  %862 = vmatprep.subr.mxu0 0.0
  %863 = vmatpush1.msra.mxu0 0.0
  %864 = vmatprep.subr.mxu0 0.0
  %865 = vmatpush1.msra.mxu0 0.0
  %866 = vmatprep.subr.mxu0 0.0
  %867 = vmatpush1.msra.mxu0 0.0
  %868 = vmatprep.subr.mxu0 0.0
  %869 = vmatpush1.msra.mxu0 0.0
  %870 = vmatprep.subr.mxu0 0.0
  %871 = vmatpush1.msra.mxu0 0.0
  %872 = vmatprep.subr.mxu0 0.0
  %873 = vmatpush1.msra.mxu0 0.0
  %874 = vmatprep.subr.mxu0 0.0
  %875 = vmatpush1.msra.mxu0 0.0
  %876 = vmatprep.subr.mxu0 0.0
  %877 = vmatpush1.msra.mxu0 0.0
  %878 = vmatprep.subr.mxu0 0.0
  %879 = vmatpush1.msra.mxu0 0.0
  %880 = vmatprep.subr.mxu0 0.0
  %881 = vmatpush1.msra.mxu0 0.0
  %882 = vmatprep.subr.mxu0 0.0
  %883 = vmatpush1.msra.mxu0 0.0
  %884 = vmatprep.subr.mxu0 0.0
  %885 = vmatpush1.msra.mxu0 0.0
  %886 = vmatprep.subr.mxu0 0.0
  %887 = vmatpush1.msra.mxu0 0.0
  %888 = vmatprep.subr.mxu0 0.0
  %889 = vmatpush1.msra.mxu0 0.0
  %890 = vmatprep.mubr.f32.mxu0 0.0
  %891 = vmatmul.mubr.f32.gmra.mrb[0].mxu0 %v824
  %v892 = vpop.f32.mrb[0].mxu0
  %v893 = vadd.f32 0.0, %v892
  %v894 = vpop.f32.mrb[0].mxu0
  %v895 = vadd.f32 0.0, %v894
  %896 = vdwg.mxu0
  %897 = vmatprep.subr.mxu0 %v815
  %898 = vmatpush1.msra.mxu0 %v814
  %899 = vmatprep.subr.mxu0 0.0
  %900 = vmatpush1.msra.mxu0 0.0
  %901 = vmatprep.subr.mxu0 0.0
  %902 = vmatpush1.msra.mxu0 0.0
  %903 = vmatprep.subr.mxu0 0.0
  %904 = vmatpush1.msra.mxu0 0.0
  %905 = vmatprep.subr.mxu0 0.0
  %906 = vmatpush1.msra.mxu0 0.0
  %907 = vmatprep.subr.mxu0 0.0
  %908 = vmatpush1.msra.mxu0 0.0
  %909 = vmatprep.subr.mxu0 0.0
  %910 = vmatpush1.msra.mxu0 0.0
  %911 = vmatprep.subr.mxu0 0.0
  %912 = vmatpush1.msra.mxu0 0.0
  %913 = vmatprep.subr.mxu0 0.0
  %914 = vmatpush1.msra.mxu0 0.0
  %915 = vmatprep.subr.mxu0 0.0
  %916 = vmatpush1.msra.mxu0 0.0
  %917 = vmatprep.subr.mxu0 0.0
  %918 = vmatpush1.msra.mxu0 0.0
  %919 = vmatprep.subr.mxu0 0.0
  %920 = vmatpush1.msra.mxu0 0.0
  %921 = vmatprep.subr.mxu0 0.0
  %922 = vmatpush1.msra.mxu0 0.0
  %923 = vmatprep.subr.mxu0 0.0
  %924 = vmatpush1.msra.mxu0 0.0
  %925 = vmatprep.subr.mxu0 0.0
  %926 = vmatpush1.msra.mxu0 0.0
  %927 = vmatprep.subr.mxu0 0.0
  %928 = vmatpush1.msra.mxu0 0.0
  %929 = vmatprep.subr.mxu0 0.0
  %930 = vmatpush1.msra.mxu0 0.0
  %931 = vmatprep.subr.mxu0 0.0
  %932 = vmatpush1.msra.mxu0 0.0
  %933 = vmatprep.subr.mxu0 0.0
  %934 = vmatpush1.msra.mxu0 0.0
  %935 = vmatprep.subr.mxu0 0.0
  %936 = vmatpush1.msra.mxu0 0.0
  %937 = vmatprep.subr.mxu0 0.0
  %938 = vmatpush1.msra.mxu0 0.0
  %939 = vmatprep.subr.mxu0 0.0
  %940 = vmatpush1.msra.mxu0 0.0
  %941 = vmatprep.subr.mxu0 0.0
  %942 = vmatpush1.msra.mxu0 0.0
  %943 = vmatprep.subr.mxu0 0.0
  %944 = vmatpush1.msra.mxu0 0.0
  %945 = vmatprep.subr.mxu0 0.0
  %946 = vmatpush1.msra.mxu0 0.0
  %947 = vmatprep.subr.mxu0 0.0
  %948 = vmatpush1.msra.mxu0 0.0
  %949 = vmatprep.subr.mxu0 0.0
  %950 = vmatpush1.msra.mxu0 0.0
  %951 = vmatprep.subr.mxu0 0.0
  %952 = vmatpush1.msra.mxu0 0.0
  %953 = vmatprep.subr.mxu0 0.0
  %954 = vmatpush1.msra.mxu0 0.0
  %955 = vmatprep.subr.mxu0 0.0
  %956 = vmatpush1.msra.mxu0 0.0
  %957 = vmatprep.subr.mxu0 0.0
  %958 = vmatpush1.msra.mxu0 0.0
  %959 = vmatprep.subr.mxu0 0.0
  %960 = vmatpush1.msra.mxu0 0.0
  %961 = vmatprep.mubr.f32.mxu0 0.0
  %962 = vmatmul.mubr.f32.gmra.mrb[0].mxu0 %v824
  %v963 = vpop.f32.mrb[0].mxu0
  %v964 = vadd.f32 0.0, %v963
  %v965 = vpop.f32.mrb[0].mxu0
  %v966 = vadd.f32 0.0, %v965
  %967 = vdwg.mxu0
  %968 = vmatprep.subr.mxu0 %v810
  %969 = vmatpush1.msra.mxu0 %v816
  %970 = vmatprep.subr.mxu0 0.0
  %971 = vmatpush1.msra.mxu0 0.0
  %972 = vmatprep.subr.mxu0 0.0
  %973 = vmatpush1.msra.mxu0 0.0
  %974 = vmatprep.subr.mxu0 0.0
  %975 = vmatpush1.msra.mxu0 0.0
  %976 = vmatprep.subr.mxu0 0.0
  %977 = vmatpush1.msra.mxu0 0.0
  %978 = vmatprep.subr.mxu0 0.0
  %979 = vmatpush1.msra.mxu0 0.0
  %980 = vmatprep.subr.mxu0 0.0
  %981 = vmatpush1.msra.mxu0 0.0
  %982 = vmatprep.subr.mxu0 0.0
  %983 = vmatpush1.msra.mxu0 0.0
  %984 = vmatprep.subr.mxu0 0.0
  %985 = vmatpush1.msra.mxu0 0.0
  %986 = vmatprep.subr.mxu0 0.0
  %987 = vmatpush1.msra.mxu0 0.0
  %988 = vmatprep.subr.mxu0 0.0
  %989 = vmatpush1.msra.mxu0 0.0
  %990 = vmatprep.subr.mxu0 0.0
  %991 = vmatpush1.msra.mxu0 0.0
  %992 = vmatprep.subr.mxu0 0.0
  %993 = vmatpush1.msra.mxu0 0.0
  %994 = vmatprep.subr.mxu0 0.0
  %995 = vmatpush1.msra.mxu0 0.0
  %996 = vmatprep.subr.mxu0 0.0
  %997 = vmatpush1.msra.mxu0 0.0
  %998 = vmatprep.subr.mxu0 0.0
  %999 = vmatpush1.msra.mxu0 0.0
  %1000 = vmatprep.subr.mxu0 0.0
  %1001 = vmatpush1.msra.mxu0 0.0
  %1002 = vmatprep.subr.mxu0 0.0
  %1003 = vmatpush1.msra.mxu0 0.0
  %1004 = vmatprep.subr.mxu0 0.0
  %1005 = vmatpush1.msra.mxu0 0.0
  %1006 = vmatprep.subr.mxu0 0.0
  %1007 = vmatpush1.msra.mxu0 0.0
  %1008 = vmatprep.subr.mxu0 0.0
  %1009 = vmatpush1.msra.mxu0 0.0
  %1010 = vmatprep.subr.mxu0 0.0
  %1011 = vmatpush1.msra.mxu0 0.0
  %1012 = vmatprep.subr.mxu0 0.0
  %1013 = vmatpush1.msra.mxu0 0.0
  %1014 = vmatprep.subr.mxu0 0.0
  %1015 = vmatpush1.msra.mxu0 0.0
  %1016 = vmatprep.subr.mxu0 0.0
  %1017 = vmatpush1.msra.mxu0 0.0
  %1018 = vmatprep.subr.mxu0 0.0
  %1019 = vmatpush1.msra.mxu0 0.0
  %1020 = vmatprep.subr.mxu0 0.0
  %1021 = vmatpush1.msra.mxu0 0.0
  %1022 = vmatprep.subr.mxu0 0.0
  %1023 = vmatpush1.msra.mxu0 0.0
  %1024 = vmatprep.subr.mxu0 0.0
  %1025 = vmatpush1.msra.mxu0 0.0
  %1026 = vmatprep.subr.mxu0 0.0
  %1027 = vmatpush1.msra.mxu0 0.0
  %1028 = vmatprep.subr.mxu0 0.0
  %1029 = vmatpush1.msra.mxu0 0.0
  %1030 = vmatprep.subr.mxu0 0.0
  %1031 = vmatpush1.msra.mxu0 0.0
  %1032 = vmatprep.mubr.f32.mxu0 0.0
  %1033 = vmatmul.mubr.f32.gmra.mrb[0].mxu0 %v824
  %v1034 = vpop.f32.mrb[0].mxu0
  %v1035 = vadd.f32 0.0, %v1034
  %v1036 = vpop.f32.mrb[0].mxu0
  %v1037 = vadd.f32 0.0, %v1036
  %1038 = vdwg.mxu0
  %v1039 = vadd.f32 %v791, %v893
  %v1040 = vadd.f32 %v792, %v895
  %v1041 = vadd.f32 %v793, %v964
  %v1042 = vadd.f32 %v794, %v966
  %v1043 = vadd.f32 %v795, %v1035
  %v1044 = vadd.f32 %v796, %v1037
  %s1045 = scalar_lea.vmem %s1, 32
  %v1046 = vld [vmem:[%s1045] sm:$0xff]
  %1047 = vrot.lane.b32.xlu0 %v55, 96
  %v1048 = vpop.permute.xlu0 %1047
  %1049 = vrot.lane.b32.xlu0 %v56, 96
  %v1050 = vpop.permute.xlu0 %1049
  %1051 = vrot.lane.b32.xlu0 %v57, 96
  %v1052 = vpop.permute.xlu0 %1051
  %1053 = vrot.lane.b32.xlu0 %v58, 96
  %v1054 = vpop.permute.xlu0 %1053
  %1055 = vrot.lane.b32.xlu0 %v59, 96
  %v1056 = vpop.permute.xlu0 %1055
  %1057 = vrot.lane.b32.xlu0 %v60, 96
  %v1058 = vpop.permute.xlu0 %1057
  %vm1059 = vcmask 785408
  %v1060 = vsel %vm1059, %v1048, %v1050
  %v1061 = vsel %vm1059, %v1050, %v1052
  %v1062 = vsel %vm1059, %v1052, %v1054
  %v1063 = vsel %vm1059, %v1054, %v1056
  %v1064 = vsel %vm1059, %v1056, %v1058
  %v1072 = vsel %vm52, %v1046, 0
  %1074 = vmatprep.subr.mxu0 %v1061
  %1075 = vmatpush1.msra.mxu0 %v1060
  %1076 = vmatprep.subr.mxu0 0.0
  %1077 = vmatpush1.msra.mxu0 0.0
  %1078 = vmatprep.subr.mxu0 0.0
  %1079 = vmatpush1.msra.mxu0 0.0
  %1080 = vmatprep.subr.mxu0 0.0
  %1081 = vmatpush1.msra.mxu0 0.0
  %1082 = vmatprep.subr.mxu0 0.0
  %1083 = vmatpush1.msra.mxu0 0.0
  %1084 = vmatprep.subr.mxu0 0.0
  %1085 = vmatpush1.msra.mxu0 0.0
  %1086 = vmatprep.subr.mxu0 0.0
  %1087 = vmatpush1.msra.mxu0 0.0
  %1088 = vmatprep.subr.mxu0 0.0
  %1089 = vmatpush1.msra.mxu0 0.0
  %1090 = vmatprep.subr.mxu0 0.0
  %1091 = vmatpush1.msra.mxu0 0.0
  %1092 = vmatprep.subr.mxu0 0.0
  %1093 = vmatpush1.msra.mxu0 0.0
  %1094 = vmatprep.subr.mxu0 0.0
  %1095 = vmatpush1.msra.mxu0 0.0
  %1096 = vmatprep.subr.mxu0 0.0
  %1097 = vmatpush1.msra.mxu0 0.0
  %1098 = vmatprep.subr.mxu0 0.0
  %1099 = vmatpush1.msra.mxu0 0.0
  %1100 = vmatprep.subr.mxu0 0.0
  %1101 = vmatpush1.msra.mxu0 0.0
  %1102 = vmatprep.subr.mxu0 0.0
  %1103 = vmatpush1.msra.mxu0 0.0
  %1104 = vmatprep.subr.mxu0 0.0
  %1105 = vmatpush1.msra.mxu0 0.0
  %1106 = vmatprep.subr.mxu0 0.0
  %1107 = vmatpush1.msra.mxu0 0.0
  %1108 = vmatprep.subr.mxu0 0.0
  %1109 = vmatpush1.msra.mxu0 0.0
  %1110 = vmatprep.subr.mxu0 0.0
  %1111 = vmatpush1.msra.mxu0 0.0
  %1112 = vmatprep.subr.mxu0 0.0
  %1113 = vmatpush1.msra.mxu0 0.0
  %1114 = vmatprep.subr.mxu0 0.0
  %1115 = vmatpush1.msra.mxu0 0.0
  %1116 = vmatprep.subr.mxu0 0.0
  %1117 = vmatpush1.msra.mxu0 0.0
  %1118 = vmatprep.subr.mxu0 0.0
  %1119 = vmatpush1.msra.mxu0 0.0
  %1120 = vmatprep.subr.mxu0 0.0
  %1121 = vmatpush1.msra.mxu0 0.0
  %1122 = vmatprep.subr.mxu0 0.0
  %1123 = vmatpush1.msra.mxu0 0.0
  %1124 = vmatprep.subr.mxu0 0.0
  %1125 = vmatpush1.msra.mxu0 0.0
  %1126 = vmatprep.subr.mxu0 0.0
  %1127 = vmatpush1.msra.mxu0 0.0
  %1128 = vmatprep.subr.mxu0 0.0
  %1129 = vmatpush1.msra.mxu0 0.0
  %1130 = vmatprep.subr.mxu0 0.0
  %1131 = vmatpush1.msra.mxu0 0.0
  %1132 = vmatprep.subr.mxu0 0.0
  %1133 = vmatpush1.msra.mxu0 0.0
  %1134 = vmatprep.subr.mxu0 0.0
  %1135 = vmatpush1.msra.mxu0 0.0
  %1136 = vmatprep.subr.mxu0 0.0
  %1137 = vmatpush1.msra.mxu0 0.0
  %1138 = vmatprep.mubr.f32.mxu0 0.0
  %1139 = vmatmul.mubr.f32.gmra.mrb[0].mxu0 %v1072
  %v1140 = vpop.f32.mrb[0].mxu0
  %v1141 = vadd.f32 0.0, %v1140
  %v1142 = vpop.f32.mrb[0].mxu0
  %v1143 = vadd.f32 0.0, %v1142
  %1144 = vdwg.mxu0
  %1145 = vmatprep.subr.mxu0 %v1063
  %1146 = vmatpush1.msra.mxu0 %v1062
  %1147 = vmatprep.subr.mxu0 0.0
  %1148 = vmatpush1.msra.mxu0 0.0
  %1149 = vmatprep.subr.mxu0 0.0
  %1150 = vmatpush1.msra.mxu0 0.0
  %1151 = vmatprep.subr.mxu0 0.0
  %1152 = vmatpush1.msra.mxu0 0.0
  %1153 = vmatprep.subr.mxu0 0.0
  %1154 = vmatpush1.msra.mxu0 0.0
  %1155 = vmatprep.subr.mxu0 0.0
  %1156 = vmatpush1.msra.mxu0 0.0
  %1157 = vmatprep.subr.mxu0 0.0
  %1158 = vmatpush1.msra.mxu0 0.0
  %1159 = vmatprep.subr.mxu0 0.0
  %1160 = vmatpush1.msra.mxu0 0.0
  %1161 = vmatprep.subr.mxu0 0.0
  %1162 = vmatpush1.msra.mxu0 0.0
  %1163 = vmatprep.subr.mxu0 0.0
  %1164 = vmatpush1.msra.mxu0 0.0
  %1165 = vmatprep.subr.mxu0 0.0
  %1166 = vmatpush1.msra.mxu0 0.0
  %1167 = vmatprep.subr.mxu0 0.0
  %1168 = vmatpush1.msra.mxu0 0.0
  %1169 = vmatprep.subr.mxu0 0.0
  %1170 = vmatpush1.msra.mxu0 0.0
  %1171 = vmatprep.subr.mxu0 0.0
  %1172 = vmatpush1.msra.mxu0 0.0
  %1173 = vmatprep.subr.mxu0 0.0
  %1174 = vmatpush1.msra.mxu0 0.0
  %1175 = vmatprep.subr.mxu0 0.0
  %1176 = vmatpush1.msra.mxu0 0.0
  %1177 = vmatprep.subr.mxu0 0.0
  %1178 = vmatpush1.msra.mxu0 0.0
  %1179 = vmatprep.subr.mxu0 0.0
  %1180 = vmatpush1.msra.mxu0 0.0
  %1181 = vmatprep.subr.mxu0 0.0
  %1182 = vmatpush1.msra.mxu0 0.0
  %1183 = vmatprep.subr.mxu0 0.0
  %1184 = vmatpush1.msra.mxu0 0.0
  %1185 = vmatprep.subr.mxu0 0.0
  %1186 = vmatpush1.msra.mxu0 0.0
  %1187 = vmatprep.subr.mxu0 0.0
  %1188 = vmatpush1.msra.mxu0 0.0
  %1189 = vmatprep.subr.mxu0 0.0
  %1190 = vmatpush1.msra.mxu0 0.0
  %1191 = vmatprep.subr.mxu0 0.0
  %1192 = vmatpush1.msra.mxu0 0.0
  %1193 = vmatprep.subr.mxu0 0.0
  %1194 = vmatpush1.msra.mxu0 0.0
  %1195 = vmatprep.subr.mxu0 0.0
  %1196 = vmatpush1.msra.mxu0 0.0
  %1197 = vmatprep.subr.mxu0 0.0
  %1198 = vmatpush1.msra.mxu0 0.0
  %1199 = vmatprep.subr.mxu0 0.0
  %1200 = vmatpush1.msra.mxu0 0.0
  %1201 = vmatprep.subr.mxu0 0.0
  %1202 = vmatpush1.msra.mxu0 0.0
  %1203 = vmatprep.subr.mxu0 0.0
  %1204 = vmatpush1.msra.mxu0 0.0
  %1205 = vmatprep.subr.mxu0 0.0
  %1206 = vmatpush1.msra.mxu0 0.0
  %1207 = vmatprep.subr.mxu0 0.0
  %1208 = vmatpush1.msra.mxu0 0.0
  %1209 = vmatprep.mubr.f32.mxu0 0.0
  %1210 = vmatmul.mubr.f32.gmra.mrb[0].mxu0 %v1072
  %v1211 = vpop.f32.mrb[0].mxu0
  %v1212 = vadd.f32 0.0, %v1211
  %v1213 = vpop.f32.mrb[0].mxu0
  %v1214 = vadd.f32 0.0, %v1213
  %1215 = vdwg.mxu0
  %1216 = vmatprep.subr.mxu0 %v1058
  %1217 = vmatpush1.msra.mxu0 %v1064
  %1218 = vmatprep.subr.mxu0 0.0
  %1219 = vmatpush1.msra.mxu0 0.0
  %1220 = vmatprep.subr.mxu0 0.0
  %1221 = vmatpush1.msra.mxu0 0.0
  %1222 = vmatprep.subr.mxu0 0.0
  %1223 = vmatpush1.msra.mxu0 0.0
  %1224 = vmatprep.subr.mxu0 0.0
  %1225 = vmatpush1.msra.mxu0 0.0
  %1226 = vmatprep.subr.mxu0 0.0
  %1227 = vmatpush1.msra.mxu0 0.0
  %1228 = vmatprep.subr.mxu0 0.0
  %1229 = vmatpush1.msra.mxu0 0.0
  %1230 = vmatprep.subr.mxu0 0.0
  %1231 = vmatpush1.msra.mxu0 0.0
  %1232 = vmatprep.subr.mxu0 0.0
  %1233 = vmatpush1.msra.mxu0 0.0
  %1234 = vmatprep.subr.mxu0 0.0
  %1235 = vmatpush1.msra.mxu0 0.0
  %1236 = vmatprep.subr.mxu0 0.0
  %1237 = vmatpush1.msra.mxu0 0.0
  %1238 = vmatprep.subr.mxu0 0.0
  %1239 = vmatpush1.msra.mxu0 0.0
  %1240 = vmatprep.subr.mxu0 0.0
  %1241 = vmatpush1.msra.mxu0 0.0
  %1242 = vmatprep.subr.mxu0 0.0
  %1243 = vmatpush1.msra.mxu0 0.0
  %1244 = vmatprep.subr.mxu0 0.0
  %1245 = vmatpush1.msra.mxu0 0.0
  %1246 = vmatprep.subr.mxu0 0.0
  %1247 = vmatpush1.msra.mxu0 0.0
  %1248 = vmatprep.subr.mxu0 0.0
  %1249 = vmatpush1.msra.mxu0 0.0
  %1250 = vmatprep.subr.mxu0 0.0
  %1251 = vmatpush1.msra.mxu0 0.0
  %1252 = vmatprep.subr.mxu0 0.0
  %1253 = vmatpush1.msra.mxu0 0.0
  %1254 = vmatprep.subr.mxu0 0.0
  %1255 = vmatpush1.msra.mxu0 0.0
  %1256 = vmatprep.subr.mxu0 0.0
  %1257 = vmatpush1.msra.mxu0 0.0
  %1258 = vmatprep.subr.mxu0 0.0
  %1259 = vmatpush1.msra.mxu0 0.0
  %1260 = vmatprep.subr.mxu0 0.0
  %1261 = vmatpush1.msra.mxu0 0.0
  %1262 = vmatprep.subr.mxu0 0.0
  %1263 = vmatpush1.msra.mxu0 0.0
  %1264 = vmatprep.subr.mxu0 0.0
  %1265 = vmatpush1.msra.mxu0 0.0
  %1266 = vmatprep.subr.mxu0 0.0
  %1267 = vmatpush1.msra.mxu0 0.0
  %1268 = vmatprep.subr.mxu0 0.0
  %1269 = vmatpush1.msra.mxu0 0.0
  %1270 = vmatprep.subr.mxu0 0.0
  %1271 = vmatpush1.msra.mxu0 0.0
  %1272 = vmatprep.subr.mxu0 0.0
  %1273 = vmatpush1.msra.mxu0 0.0
  %1274 = vmatprep.subr.mxu0 0.0
  %1275 = vmatpush1.msra.mxu0 0.0
  %1276 = vmatprep.subr.mxu0 0.0
  %1277 = vmatpush1.msra.mxu0 0.0
  %1278 = vmatprep.subr.mxu0 0.0
  %1279 = vmatpush1.msra.mxu0 0.0
  %1280 = vmatprep.mubr.f32.mxu0 0.0
  %1281 = vmatmul.mubr.f32.gmra.mrb[0].mxu0 %v1072
  %v1282 = vpop.f32.mrb[0].mxu0
  %v1283 = vadd.f32 0.0, %v1282
  %v1284 = vpop.f32.mrb[0].mxu0
  %v1285 = vadd.f32 0.0, %v1284
  %1286 = vdwg.mxu0
  %v1287 = vadd.f32 %v1039, %v1141
  %v1288 = vadd.f32 %v1040, %v1143
  %v1289 = vadd.f32 %v1041, %v1212
  %v1290 = vadd.f32 %v1042, %v1214
  %v1291 = vadd.f32 %v1043, %v1283
  %v1292 = vadd.f32 %v1044, %v1285
  %s1293 = scalar_lea.vmem %s1, 40
  %v1294 = vld [vmem:[%s1293] sm:$0xff]
  %1295 = vrot.lane.b32.xlu0 %v55, 95
  %v1296 = vpop.permute.xlu0 %1295
  %1297 = vrot.lane.b32.xlu0 %v56, 95
  %v1298 = vpop.permute.xlu0 %1297
  %1299 = vrot.lane.b32.xlu0 %v57, 95
  %v1300 = vpop.permute.xlu0 %1299
  %1301 = vrot.lane.b32.xlu0 %v58, 95
  %v1302 = vpop.permute.xlu0 %1301
  %1303 = vrot.lane.b32.xlu0 %v59, 95
  %v1304 = vpop.permute.xlu0 %1303
  %1305 = vrot.lane.b32.xlu0 %v60, 95
  %v1306 = vpop.permute.xlu0 %1305
  %vm1307 = vcmask 777216
  %v1308 = vsel %vm1307, %v1296, %v1298
  %v1309 = vsel %vm1307, %v1298, %v1300
  %v1310 = vsel %vm1307, %v1300, %v1302
  %v1311 = vsel %vm1307, %v1302, %v1304
  %v1312 = vsel %vm1307, %v1304, %v1306
  %v1320 = vsel %vm52, %v1294, 0
  %1322 = vmatprep.subr.mxu0 %v1309
  %1323 = vmatpush1.msra.mxu0 %v1308
  %1324 = vmatprep.subr.mxu0 0.0
  %1325 = vmatpush1.msra.mxu0 0.0
  %1326 = vmatprep.subr.mxu0 0.0
  %1327 = vmatpush1.msra.mxu0 0.0
  %1328 = vmatprep.subr.mxu0 0.0
  %1329 = vmatpush1.msra.mxu0 0.0
  %1330 = vmatprep.subr.mxu0 0.0
  %1331 = vmatpush1.msra.mxu0 0.0
  %1332 = vmatprep.subr.mxu0 0.0
  %1333 = vmatpush1.msra.mxu0 0.0
  %1334 = vmatprep.subr.mxu0 0.0
  %1335 = vmatpush1.msra.mxu0 0.0
  %1336 = vmatprep.subr.mxu0 0.0
  %1337 = vmatpush1.msra.mxu0 0.0
  %1338 = vmatprep.subr.mxu0 0.0
  %1339 = vmatpush1.msra.mxu0 0.0
  %1340 = vmatprep.subr.mxu0 0.0
  %1341 = vmatpush1.msra.mxu0 0.0
  %1342 = vmatprep.subr.mxu0 0.0
  %1343 = vmatpush1.msra.mxu0 0.0
  %1344 = vmatprep.subr.mxu0 0.0
  %1345 = vmatpush1.msra.mxu0 0.0
  %1346 = vmatprep.subr.mxu0 0.0
  %1347 = vmatpush1.msra.mxu0 0.0
  %1348 = vmatprep.subr.mxu0 0.0
  %1349 = vmatpush1.msra.mxu0 0.0
  %1350 = vmatprep.subr.mxu0 0.0
  %1351 = vmatpush1.msra.mxu0 0.0
  %1352 = vmatprep.subr.mxu0 0.0
  %1353 = vmatpush1.msra.mxu0 0.0
  %1354 = vmatprep.subr.mxu0 0.0
  %1355 = vmatpush1.msra.mxu0 0.0
  %1356 = vmatprep.subr.mxu0 0.0
  %1357 = vmatpush1.msra.mxu0 0.0
  %1358 = vmatprep.subr.mxu0 0.0
  %1359 = vmatpush1.msra.mxu0 0.0
  %1360 = vmatprep.subr.mxu0 0.0
  %1361 = vmatpush1.msra.mxu0 0.0
  %1362 = vmatprep.subr.mxu0 0.0
  %1363 = vmatpush1.msra.mxu0 0.0
  %1364 = vmatprep.subr.mxu0 0.0
  %1365 = vmatpush1.msra.mxu0 0.0
  %1366 = vmatprep.subr.mxu0 0.0
  %1367 = vmatpush1.msra.mxu0 0.0
  %1368 = vmatprep.subr.mxu0 0.0
  %1369 = vmatpush1.msra.mxu0 0.0
  %1370 = vmatprep.subr.mxu0 0.0
  %1371 = vmatpush1.msra.mxu0 0.0
  %1372 = vmatprep.subr.mxu0 0.0
  %1373 = vmatpush1.msra.mxu0 0.0
  %1374 = vmatprep.subr.mxu0 0.0
  %1375 = vmatpush1.msra.mxu0 0.0
  %1376 = vmatprep.subr.mxu0 0.0
  %1377 = vmatpush1.msra.mxu0 0.0
  %1378 = vmatprep.subr.mxu0 0.0
  %1379 = vmatpush1.msra.mxu0 0.0
  %1380 = vmatprep.subr.mxu0 0.0
  %1381 = vmatpush1.msra.mxu0 0.0
  %1382 = vmatprep.subr.mxu0 0.0
  %1383 = vmatpush1.msra.mxu0 0.0
  %1384 = vmatprep.subr.mxu0 0.0
  %1385 = vmatpush1.msra.mxu0 0.0
  %1386 = vmatprep.mubr.f32.mxu0 0.0
  %1387 = vmatmul.mubr.f32.gmra.mrb[0].mxu0 %v1320
  %v1388 = vpop.f32.mrb[0].mxu0
  %v1389 = vadd.f32 0.0, %v1388
  %v1390 = vpop.f32.mrb[0].mxu0
  %v1391 = vadd.f32 0.0, %v1390
  %1392 = vdwg.mxu0
  %1393 = vmatprep.subr.mxu0 %v1311
  %1394 = vmatpush1.msra.mxu0 %v1310
  %1395 = vmatprep.subr.mxu0 0.0
  %1396 = vmatpush1.msra.mxu0 0.0
  %1397 = vmatprep.subr.mxu0 0.0
  %1398 = vmatpush1.msra.mxu0 0.0
  %1399 = vmatprep.subr.mxu0 0.0
  %1400 = vmatpush1.msra.mxu0 0.0
  %1401 = vmatprep.subr.mxu0 0.0
  %1402 = vmatpush1.msra.mxu0 0.0
  %1403 = vmatprep.subr.mxu0 0.0
  %1404 = vmatpush1.msra.mxu0 0.0
  %1405 = vmatprep.subr.mxu0 0.0
  %1406 = vmatpush1.msra.mxu0 0.0
  %1407 = vmatprep.subr.mxu0 0.0
  %1408 = vmatpush1.msra.mxu0 0.0
  %1409 = vmatprep.subr.mxu0 0.0
  %1410 = vmatpush1.msra.mxu0 0.0
  %1411 = vmatprep.subr.mxu0 0.0
  %1412 = vmatpush1.msra.mxu0 0.0
  %1413 = vmatprep.subr.mxu0 0.0
  %1414 = vmatpush1.msra.mxu0 0.0
  %1415 = vmatprep.subr.mxu0 0.0
  %1416 = vmatpush1.msra.mxu0 0.0
  %1417 = vmatprep.subr.mxu0 0.0
  %1418 = vmatpush1.msra.mxu0 0.0
  %1419 = vmatprep.subr.mxu0 0.0
  %1420 = vmatpush1.msra.mxu0 0.0
  %1421 = vmatprep.subr.mxu0 0.0
  %1422 = vmatpush1.msra.mxu0 0.0
  %1423 = vmatprep.subr.mxu0 0.0
  %1424 = vmatpush1.msra.mxu0 0.0
  %1425 = vmatprep.subr.mxu0 0.0
  %1426 = vmatpush1.msra.mxu0 0.0
  %1427 = vmatprep.subr.mxu0 0.0
  %1428 = vmatpush1.msra.mxu0 0.0
  %1429 = vmatprep.subr.mxu0 0.0
  %1430 = vmatpush1.msra.mxu0 0.0
  %1431 = vmatprep.subr.mxu0 0.0
  %1432 = vmatpush1.msra.mxu0 0.0
  %1433 = vmatprep.subr.mxu0 0.0
  %1434 = vmatpush1.msra.mxu0 0.0
  %1435 = vmatprep.subr.mxu0 0.0
  %1436 = vmatpush1.msra.mxu0 0.0
  %1437 = vmatprep.subr.mxu0 0.0
  %1438 = vmatpush1.msra.mxu0 0.0
  %1439 = vmatprep.subr.mxu0 0.0
  %1440 = vmatpush1.msra.mxu0 0.0
  %1441 = vmatprep.subr.mxu0 0.0
  %1442 = vmatpush1.msra.mxu0 0.0
  %1443 = vmatprep.subr.mxu0 0.0
  %1444 = vmatpush1.msra.mxu0 0.0
  %1445 = vmatprep.subr.mxu0 0.0
  %1446 = vmatpush1.msra.mxu0 0.0
  %1447 = vmatprep.subr.mxu0 0.0
  %1448 = vmatpush1.msra.mxu0 0.0
  %1449 = vmatprep.subr.mxu0 0.0
  %1450 = vmatpush1.msra.mxu0 0.0
  %1451 = vmatprep.subr.mxu0 0.0
  %1452 = vmatpush1.msra.mxu0 0.0
  %1453 = vmatprep.subr.mxu0 0.0
  %1454 = vmatpush1.msra.mxu0 0.0
  %1455 = vmatprep.subr.mxu0 0.0
  %1456 = vmatpush1.msra.mxu0 0.0
  %1457 = vmatprep.mubr.f32.mxu0 0.0
  %1458 = vmatmul.mubr.f32.gmra.mrb[0].mxu0 %v1320
  %v1459 = vpop.f32.mrb[0].mxu0
  %v1460 = vadd.f32 0.0, %v1459
  %v1461 = vpop.f32.mrb[0].mxu0
  %v1462 = vadd.f32 0.0, %v1461
  %1463 = vdwg.mxu0
  %1464 = vmatprep.subr.mxu0 %v1306
  %1465 = vmatpush1.msra.mxu0 %v1312
  %1466 = vmatprep.subr.mxu0 0.0
  %1467 = vmatpush1.msra.mxu0 0.0
  %1468 = vmatprep.subr.mxu0 0.0
  %1469 = vmatpush1.msra.mxu0 0.0
  %1470 = vmatprep.subr.mxu0 0.0
  %1471 = vmatpush1.msra.mxu0 0.0
  %1472 = vmatprep.subr.mxu0 0.0
  %1473 = vmatpush1.msra.mxu0 0.0
  %1474 = vmatprep.subr.mxu0 0.0
  %1475 = vmatpush1.msra.mxu0 0.0
  %1476 = vmatprep.subr.mxu0 0.0
  %1477 = vmatpush1.msra.mxu0 0.0
  %1478 = vmatprep.subr.mxu0 0.0
  %1479 = vmatpush1.msra.mxu0 0.0
  %1480 = vmatprep.subr.mxu0 0.0
  %1481 = vmatpush1.msra.mxu0 0.0
  %1482 = vmatprep.subr.mxu0 0.0
  %1483 = vmatpush1.msra.mxu0 0.0
  %1484 = vmatprep.subr.mxu0 0.0
  %1485 = vmatpush1.msra.mxu0 0.0
  %1486 = vmatprep.subr.mxu0 0.0
  %1487 = vmatpush1.msra.mxu0 0.0
  %1488 = vmatprep.subr.mxu0 0.0
  %1489 = vmatpush1.msra.mxu0 0.0
  %1490 = vmatprep.subr.mxu0 0.0
  %1491 = vmatpush1.msra.mxu0 0.0
  %1492 = vmatprep.subr.mxu0 0.0
  %1493 = vmatpush1.msra.mxu0 0.0
  %1494 = vmatprep.subr.mxu0 0.0
  %1495 = vmatpush1.msra.mxu0 0.0
  %1496 = vmatprep.subr.mxu0 0.0
  %1497 = vmatpush1.msra.mxu0 0.0
  %1498 = vmatprep.subr.mxu0 0.0
  %1499 = vmatpush1.msra.mxu0 0.0
  %1500 = vmatprep.subr.mxu0 0.0
  %1501 = vmatpush1.msra.mxu0 0.0
  %1502 = vmatprep.subr.mxu0 0.0
  %1503 = vmatpush1.msra.mxu0 0.0
  %1504 = vmatprep.subr.mxu0 0.0
  %1505 = vmatpush1.msra.mxu0 0.0
  %1506 = vmatprep.subr.mxu0 0.0
  %1507 = vmatpush1.msra.mxu0 0.0
  %1508 = vmatprep.subr.mxu0 0.0
  %1509 = vmatpush1.msra.mxu0 0.0
  %1510 = vmatprep.subr.mxu0 0.0
  %1511 = vmatpush1.msra.mxu0 0.0
  %1512 = vmatprep.subr.mxu0 0.0
  %1513 = vmatpush1.msra.mxu0 0.0
  %1514 = vmatprep.subr.mxu0 0.0
  %1515 = vmatpush1.msra.mxu0 0.0
  %1516 = vmatprep.subr.mxu0 0.0
  %1517 = vmatpush1.msra.mxu0 0.0
  %1518 = vmatprep.subr.mxu0 0.0
  %1519 = vmatpush1.msra.mxu0 0.0
  %1520 = vmatprep.subr.mxu0 0.0
  %1521 = vmatpush1.msra.mxu0 0.0
  %1522 = vmatprep.subr.mxu0 0.0
  %1523 = vmatpush1.msra.mxu0 0.0
  %1524 = vmatprep.subr.mxu0 0.0
  %1525 = vmatpush1.msra.mxu0 0.0
  %1526 = vmatprep.subr.mxu0 0.0
  %1527 = vmatpush1.msra.mxu0 0.0
  %1528 = vmatprep.mubr.f32.mxu0 0.0
  %1529 = vmatmul.mubr.f32.gmra.mrb[0].mxu0 %v1320
  %v1530 = vpop.f32.mrb[0].mxu0
  %v1531 = vadd.f32 0.0, %v1530
  %v1532 = vpop.f32.mrb[0].mxu0
  %v1533 = vadd.f32 0.0, %v1532
  %1534 = vdwg.mxu0
  %v1535 = vadd.f32 %v1287, %v1389
  %v1536 = vadd.f32 %v1288, %v1391
  %v1537 = vadd.f32 %v1289, %v1460
  %v1538 = vadd.f32 %v1290, %v1462
  %v1539 = vadd.f32 %v1291, %v1531
  %v1540 = vadd.f32 %v1292, %v1533
  %s1541 = scalar_lea.vmem %s1, 48
  %v1542 = vld [vmem:[%s1541] sm:$0xff]
  %1543 = vrot.lane.b32.xlu0 %v55, 79
  %v1544 = vpop.permute.xlu0 %1543
  %1545 = vrot.lane.b32.xlu0 %v56, 79
  %v1546 = vpop.permute.xlu0 %1545
  %1547 = vrot.lane.b32.xlu0 %v57, 79
  %v1548 = vpop.permute.xlu0 %1547
  %1549 = vrot.lane.b32.xlu0 %v58, 79
  %v1550 = vpop.permute.xlu0 %1549
  %1551 = vrot.lane.b32.xlu0 %v59, 79
  %v1552 = vpop.permute.xlu0 %1551
  %1553 = vrot.lane.b32.xlu0 %v60, 79
  %v1554 = vpop.permute.xlu0 %1553
  %vm1555 = vcmask 646144
  %v1556 = vsel %vm1555, %v1544, %v1546
  %v1557 = vsel %vm1555, %v1546, %v1548
  %v1558 = vsel %vm1555, %v1548, %v1550
  %v1559 = vsel %vm1555, %v1550, %v1552
  %v1560 = vsel %vm1555, %v1552, %v1554
  %v1568 = vsel %vm52, %v1542, 0
  %1570 = vmatprep.subr.mxu0 %v1557
  %1571 = vmatpush1.msra.mxu0 %v1556
  %1572 = vmatprep.subr.mxu0 0.0
  %1573 = vmatpush1.msra.mxu0 0.0
  %1574 = vmatprep.subr.mxu0 0.0
  %1575 = vmatpush1.msra.mxu0 0.0
  %1576 = vmatprep.subr.mxu0 0.0
  %1577 = vmatpush1.msra.mxu0 0.0
  %1578 = vmatprep.subr.mxu0 0.0
  %1579 = vmatpush1.msra.mxu0 0.0
  %1580 = vmatprep.subr.mxu0 0.0
  %1581 = vmatpush1.msra.mxu0 0.0
  %1582 = vmatprep.subr.mxu0 0.0
  %1583 = vmatpush1.msra.mxu0 0.0
  %1584 = vmatprep.subr.mxu0 0.0
  %1585 = vmatpush1.msra.mxu0 0.0
  %1586 = vmatprep.subr.mxu0 0.0
  %1587 = vmatpush1.msra.mxu0 0.0
  %1588 = vmatprep.subr.mxu0 0.0
  %1589 = vmatpush1.msra.mxu0 0.0
  %1590 = vmatprep.subr.mxu0 0.0
  %1591 = vmatpush1.msra.mxu0 0.0
  %1592 = vmatprep.subr.mxu0 0.0
  %1593 = vmatpush1.msra.mxu0 0.0
  %1594 = vmatprep.subr.mxu0 0.0
  %1595 = vmatpush1.msra.mxu0 0.0
  %1596 = vmatprep.subr.mxu0 0.0
  %1597 = vmatpush1.msra.mxu0 0.0
  %1598 = vmatprep.subr.mxu0 0.0
  %1599 = vmatpush1.msra.mxu0 0.0
  %1600 = vmatprep.subr.mxu0 0.0
  %1601 = vmatpush1.msra.mxu0 0.0
  %1602 = vmatprep.subr.mxu0 0.0
  %1603 = vmatpush1.msra.mxu0 0.0
  %1604 = vmatprep.subr.mxu0 0.0
  %1605 = vmatpush1.msra.mxu0 0.0
  %1606 = vmatprep.subr.mxu0 0.0
  %1607 = vmatpush1.msra.mxu0 0.0
  %1608 = vmatprep.subr.mxu0 0.0
  %1609 = vmatpush1.msra.mxu0 0.0
  %1610 = vmatprep.subr.mxu0 0.0
  %1611 = vmatpush1.msra.mxu0 0.0
  %1612 = vmatprep.subr.mxu0 0.0
  %1613 = vmatpush1.msra.mxu0 0.0
  %1614 = vmatprep.subr.mxu0 0.0
  %1615 = vmatpush1.msra.mxu0 0.0
  %1616 = vmatprep.subr.mxu0 0.0
  %1617 = vmatpush1.msra.mxu0 0.0
  %1618 = vmatprep.subr.mxu0 0.0
  %1619 = vmatpush1.msra.mxu0 0.0
  %1620 = vmatprep.subr.mxu0 0.0
  %1621 = vmatpush1.msra.mxu0 0.0
  %1622 = vmatprep.subr.mxu0 0.0
  %1623 = vmatpush1.msra.mxu0 0.0
  %1624 = vmatprep.subr.mxu0 0.0
  %1625 = vmatpush1.msra.mxu0 0.0
  %1626 = vmatprep.subr.mxu0 0.0
  %1627 = vmatpush1.msra.mxu0 0.0
  %1628 = vmatprep.subr.mxu0 0.0
  %1629 = vmatpush1.msra.mxu0 0.0
  %1630 = vmatprep.subr.mxu0 0.0
  %1631 = vmatpush1.msra.mxu0 0.0
  %1632 = vmatprep.subr.mxu0 0.0
  %1633 = vmatpush1.msra.mxu0 0.0
  %1634 = vmatprep.mubr.f32.mxu0 0.0
  %1635 = vmatmul.mubr.f32.gmra.mrb[0].mxu0 %v1568
  %v1636 = vpop.f32.mrb[0].mxu0
  %v1637 = vadd.f32 0.0, %v1636
  %v1638 = vpop.f32.mrb[0].mxu0
  %v1639 = vadd.f32 0.0, %v1638
  %1640 = vdwg.mxu0
  %1641 = vmatprep.subr.mxu0 %v1559
  %1642 = vmatpush1.msra.mxu0 %v1558
  %1643 = vmatprep.subr.mxu0 0.0
  %1644 = vmatpush1.msra.mxu0 0.0
  %1645 = vmatprep.subr.mxu0 0.0
  %1646 = vmatpush1.msra.mxu0 0.0
  %1647 = vmatprep.subr.mxu0 0.0
  %1648 = vmatpush1.msra.mxu0 0.0
  %1649 = vmatprep.subr.mxu0 0.0
  %1650 = vmatpush1.msra.mxu0 0.0
  %1651 = vmatprep.subr.mxu0 0.0
  %1652 = vmatpush1.msra.mxu0 0.0
  %1653 = vmatprep.subr.mxu0 0.0
  %1654 = vmatpush1.msra.mxu0 0.0
  %1655 = vmatprep.subr.mxu0 0.0
  %1656 = vmatpush1.msra.mxu0 0.0
  %1657 = vmatprep.subr.mxu0 0.0
  %1658 = vmatpush1.msra.mxu0 0.0
  %1659 = vmatprep.subr.mxu0 0.0
  %1660 = vmatpush1.msra.mxu0 0.0
  %1661 = vmatprep.subr.mxu0 0.0
  %1662 = vmatpush1.msra.mxu0 0.0
  %1663 = vmatprep.subr.mxu0 0.0
  %1664 = vmatpush1.msra.mxu0 0.0
  %1665 = vmatprep.subr.mxu0 0.0
  %1666 = vmatpush1.msra.mxu0 0.0
  %1667 = vmatprep.subr.mxu0 0.0
  %1668 = vmatpush1.msra.mxu0 0.0
  %1669 = vmatprep.subr.mxu0 0.0
  %1670 = vmatpush1.msra.mxu0 0.0
  %1671 = vmatprep.subr.mxu0 0.0
  %1672 = vmatpush1.msra.mxu0 0.0
  %1673 = vmatprep.subr.mxu0 0.0
  %1674 = vmatpush1.msra.mxu0 0.0
  %1675 = vmatprep.subr.mxu0 0.0
  %1676 = vmatpush1.msra.mxu0 0.0
  %1677 = vmatprep.subr.mxu0 0.0
  %1678 = vmatpush1.msra.mxu0 0.0
  %1679 = vmatprep.subr.mxu0 0.0
  %1680 = vmatpush1.msra.mxu0 0.0
  %1681 = vmatprep.subr.mxu0 0.0
  %1682 = vmatpush1.msra.mxu0 0.0
  %1683 = vmatprep.subr.mxu0 0.0
  %1684 = vmatpush1.msra.mxu0 0.0
  %1685 = vmatprep.subr.mxu0 0.0
  %1686 = vmatpush1.msra.mxu0 0.0
  %1687 = vmatprep.subr.mxu0 0.0
  %1688 = vmatpush1.msra.mxu0 0.0
  %1689 = vmatprep.subr.mxu0 0.0
  %1690 = vmatpush1.msra.mxu0 0.0
  %1691 = vmatprep.subr.mxu0 0.0
  %1692 = vmatpush1.msra.mxu0 0.0
  %1693 = vmatprep.subr.mxu0 0.0
  %1694 = vmatpush1.msra.mxu0 0.0
  %1695 = vmatprep.subr.mxu0 0.0
  %1696 = vmatpush1.msra.mxu0 0.0
  %1697 = vmatprep.subr.mxu0 0.0
  %1698 = vmatpush1.msra.mxu0 0.0
  %1699 = vmatprep.subr.mxu0 0.0
  %1700 = vmatpush1.msra.mxu0 0.0
  %1701 = vmatprep.subr.mxu0 0.0
  %1702 = vmatpush1.msra.mxu0 0.0
  %1703 = vmatprep.subr.mxu0 0.0
  %1704 = vmatpush1.msra.mxu0 0.0
  %1705 = vmatprep.mubr.f32.mxu0 0.0
  %1706 = vmatmul.mubr.f32.gmra.mrb[0].mxu0 %v1568
  %v1707 = vpop.f32.mrb[0].mxu0
  %v1708 = vadd.f32 0.0, %v1707
  %v1709 = vpop.f32.mrb[0].mxu0
  %v1710 = vadd.f32 0.0, %v1709
  %1711 = vdwg.mxu0
  %1712 = vmatprep.subr.mxu0 %v1554
  %1713 = vmatpush1.msra.mxu0 %v1560
  %1714 = vmatprep.subr.mxu0 0.0
  %1715 = vmatpush1.msra.mxu0 0.0
  %1716 = vmatprep.subr.mxu0 0.0
  %1717 = vmatpush1.msra.mxu0 0.0
  %1718 = vmatprep.subr.mxu0 0.0
  %1719 = vmatpush1.msra.mxu0 0.0
  %1720 = vmatprep.subr.mxu0 0.0
  %1721 = vmatpush1.msra.mxu0 0.0
  %1722 = vmatprep.subr.mxu0 0.0
  %1723 = vmatpush1.msra.mxu0 0.0
  %1724 = vmatprep.subr.mxu0 0.0
  %1725 = vmatpush1.msra.mxu0 0.0
  %1726 = vmatprep.subr.mxu0 0.0
  %1727 = vmatpush1.msra.mxu0 0.0
  %1728 = vmatprep.subr.mxu0 0.0
  %1729 = vmatpush1.msra.mxu0 0.0
  %1730 = vmatprep.subr.mxu0 0.0
  %1731 = vmatpush1.msra.mxu0 0.0
  %1732 = vmatprep.subr.mxu0 0.0
  %1733 = vmatpush1.msra.mxu0 0.0
  %1734 = vmatprep.subr.mxu0 0.0
  %1735 = vmatpush1.msra.mxu0 0.0
  %1736 = vmatprep.subr.mxu0 0.0
  %1737 = vmatpush1.msra.mxu0 0.0
  %1738 = vmatprep.subr.mxu0 0.0
  %1739 = vmatpush1.msra.mxu0 0.0
  %1740 = vmatprep.subr.mxu0 0.0
  %1741 = vmatpush1.msra.mxu0 0.0
  %1742 = vmatprep.subr.mxu0 0.0
  %1743 = vmatpush1.msra.mxu0 0.0
  %1744 = vmatprep.subr.mxu0 0.0
  %1745 = vmatpush1.msra.mxu0 0.0
  %1746 = vmatprep.subr.mxu0 0.0
  %1747 = vmatpush1.msra.mxu0 0.0
  %1748 = vmatprep.subr.mxu0 0.0
  %1749 = vmatpush1.msra.mxu0 0.0
  %1750 = vmatprep.subr.mxu0 0.0
  %1751 = vmatpush1.msra.mxu0 0.0
  %1752 = vmatprep.subr.mxu0 0.0
  %1753 = vmatpush1.msra.mxu0 0.0
  %1754 = vmatprep.subr.mxu0 0.0
  %1755 = vmatpush1.msra.mxu0 0.0
  %1756 = vmatprep.subr.mxu0 0.0
  %1757 = vmatpush1.msra.mxu0 0.0
  %1758 = vmatprep.subr.mxu0 0.0
  %1759 = vmatpush1.msra.mxu0 0.0
  %1760 = vmatprep.subr.mxu0 0.0
  %1761 = vmatpush1.msra.mxu0 0.0
  %1762 = vmatprep.subr.mxu0 0.0
  %1763 = vmatpush1.msra.mxu0 0.0
  %1764 = vmatprep.subr.mxu0 0.0
  %1765 = vmatpush1.msra.mxu0 0.0
  %1766 = vmatprep.subr.mxu0 0.0
  %1767 = vmatpush1.msra.mxu0 0.0
  %1768 = vmatprep.subr.mxu0 0.0
  %1769 = vmatpush1.msra.mxu0 0.0
  %1770 = vmatprep.subr.mxu0 0.0
  %1771 = vmatpush1.msra.mxu0 0.0
  %1772 = vmatprep.subr.mxu0 0.0
  %1773 = vmatpush1.msra.mxu0 0.0
  %1774 = vmatprep.subr.mxu0 0.0
  %1775 = vmatpush1.msra.mxu0 0.0
  %1776 = vmatprep.mubr.f32.mxu0 0.0
  %1777 = vmatmul.mubr.f32.gmra.mrb[0].mxu0 %v1568
  %v1778 = vpop.f32.mrb[0].mxu0
  %v1779 = vadd.f32 0.0, %v1778
  %v1780 = vpop.f32.mrb[0].mxu0
  %v1781 = vadd.f32 0.0, %v1780
  %1782 = vdwg.mxu0
  %v1783 = vadd.f32 %v1535, %v1637
  %v1784 = vadd.f32 %v1536, %v1639
  %v1785 = vadd.f32 %v1537, %v1708
  %v1786 = vadd.f32 %v1538, %v1710
  %v1787 = vadd.f32 %v1539, %v1779
  %v1788 = vadd.f32 %v1540, %v1781
  %s1789 = scalar_lea.vmem %s1, 56
  %v1790 = vld [vmem:[%s1789] sm:$0xff]
  %1791 = vrot.lane.b32.xlu0 %v55, 78
  %v1792 = vpop.permute.xlu0 %1791
  %1793 = vrot.lane.b32.xlu0 %v56, 78
  %v1794 = vpop.permute.xlu0 %1793
  %1795 = vrot.lane.b32.xlu0 %v57, 78
  %v1796 = vpop.permute.xlu0 %1795
  %1797 = vrot.lane.b32.xlu0 %v58, 78
  %v1798 = vpop.permute.xlu0 %1797
  %1799 = vrot.lane.b32.xlu0 %v59, 78
  %v1800 = vpop.permute.xlu0 %1799
  %1801 = vrot.lane.b32.xlu0 %v60, 78
  %v1802 = vpop.permute.xlu0 %1801
  %vm1803 = vcmask 637952
  %v1804 = vsel %vm1803, %v1792, %v1794
  %v1805 = vsel %vm1803, %v1794, %v1796
  %v1806 = vsel %vm1803, %v1796, %v1798
  %v1807 = vsel %vm1803, %v1798, %v1800
  %v1808 = vsel %vm1803, %v1800, %v1802
  %v1816 = vsel %vm52, %v1790, 0
  %1818 = vmatprep.subr.mxu0 %v1805
  %1819 = vmatpush1.msra.mxu0 %v1804
  %1820 = vmatprep.subr.mxu0 0.0
  %1821 = vmatpush1.msra.mxu0 0.0
  %1822 = vmatprep.subr.mxu0 0.0
  %1823 = vmatpush1.msra.mxu0 0.0
  %1824 = vmatprep.subr.mxu0 0.0
  %1825 = vmatpush1.msra.mxu0 0.0
  %1826 = vmatprep.subr.mxu0 0.0
  %1827 = vmatpush1.msra.mxu0 0.0
  %1828 = vmatprep.subr.mxu0 0.0
  %1829 = vmatpush1.msra.mxu0 0.0
  %1830 = vmatprep.subr.mxu0 0.0
  %1831 = vmatpush1.msra.mxu0 0.0
  %1832 = vmatprep.subr.mxu0 0.0
  %1833 = vmatpush1.msra.mxu0 0.0
  %1834 = vmatprep.subr.mxu0 0.0
  %1835 = vmatpush1.msra.mxu0 0.0
  %1836 = vmatprep.subr.mxu0 0.0
  %1837 = vmatpush1.msra.mxu0 0.0
  %1838 = vmatprep.subr.mxu0 0.0
  %1839 = vmatpush1.msra.mxu0 0.0
  %1840 = vmatprep.subr.mxu0 0.0
  %1841 = vmatpush1.msra.mxu0 0.0
  %1842 = vmatprep.subr.mxu0 0.0
  %1843 = vmatpush1.msra.mxu0 0.0
  %1844 = vmatprep.subr.mxu0 0.0
  %1845 = vmatpush1.msra.mxu0 0.0
  %1846 = vmatprep.subr.mxu0 0.0
  %1847 = vmatpush1.msra.mxu0 0.0
  %1848 = vmatprep.subr.mxu0 0.0
  %1849 = vmatpush1.msra.mxu0 0.0
  %1850 = vmatprep.subr.mxu0 0.0
  %1851 = vmatpush1.msra.mxu0 0.0
  %1852 = vmatprep.subr.mxu0 0.0
  %1853 = vmatpush1.msra.mxu0 0.0
  %1854 = vmatprep.subr.mxu0 0.0
  %1855 = vmatpush1.msra.mxu0 0.0
  %1856 = vmatprep.subr.mxu0 0.0
  %1857 = vmatpush1.msra.mxu0 0.0
  %1858 = vmatprep.subr.mxu0 0.0
  %1859 = vmatpush1.msra.mxu0 0.0
  %1860 = vmatprep.subr.mxu0 0.0
  %1861 = vmatpush1.msra.mxu0 0.0
  %1862 = vmatprep.subr.mxu0 0.0
  %1863 = vmatpush1.msra.mxu0 0.0
  %1864 = vmatprep.subr.mxu0 0.0
  %1865 = vmatpush1.msra.mxu0 0.0
  %1866 = vmatprep.subr.mxu0 0.0
  %1867 = vmatpush1.msra.mxu0 0.0
  %1868 = vmatprep.subr.mxu0 0.0
  %1869 = vmatpush1.msra.mxu0 0.0
  %1870 = vmatprep.subr.mxu0 0.0
  %1871 = vmatpush1.msra.mxu0 0.0
  %1872 = vmatprep.subr.mxu0 0.0
  %1873 = vmatpush1.msra.mxu0 0.0
  %1874 = vmatprep.subr.mxu0 0.0
  %1875 = vmatpush1.msra.mxu0 0.0
  %1876 = vmatprep.subr.mxu0 0.0
  %1877 = vmatpush1.msra.mxu0 0.0
  %1878 = vmatprep.subr.mxu0 0.0
  %1879 = vmatpush1.msra.mxu0 0.0
  %1880 = vmatprep.subr.mxu0 0.0
  %1881 = vmatpush1.msra.mxu0 0.0
  %1882 = vmatprep.mubr.f32.mxu0 0.0
  %1883 = vmatmul.mubr.f32.gmra.mrb[0].mxu0 %v1816
  %v1884 = vpop.f32.mrb[0].mxu0
  %v1885 = vadd.f32 0.0, %v1884
  %v1886 = vpop.f32.mrb[0].mxu0
  %v1887 = vadd.f32 0.0, %v1886
  %1888 = vdwg.mxu0
  %1889 = vmatprep.subr.mxu0 %v1807
  %1890 = vmatpush1.msra.mxu0 %v1806
  %1891 = vmatprep.subr.mxu0 0.0
  %1892 = vmatpush1.msra.mxu0 0.0
  %1893 = vmatprep.subr.mxu0 0.0
  %1894 = vmatpush1.msra.mxu0 0.0
  %1895 = vmatprep.subr.mxu0 0.0
  %1896 = vmatpush1.msra.mxu0 0.0
  %1897 = vmatprep.subr.mxu0 0.0
  %1898 = vmatpush1.msra.mxu0 0.0
  %1899 = vmatprep.subr.mxu0 0.0
  %1900 = vmatpush1.msra.mxu0 0.0
  %1901 = vmatprep.subr.mxu0 0.0
  %1902 = vmatpush1.msra.mxu0 0.0
  %1903 = vmatprep.subr.mxu0 0.0
  %1904 = vmatpush1.msra.mxu0 0.0
  %1905 = vmatprep.subr.mxu0 0.0
  %1906 = vmatpush1.msra.mxu0 0.0
  %1907 = vmatprep.subr.mxu0 0.0
  %1908 = vmatpush1.msra.mxu0 0.0
  %1909 = vmatprep.subr.mxu0 0.0
  %1910 = vmatpush1.msra.mxu0 0.0
  %1911 = vmatprep.subr.mxu0 0.0
  %1912 = vmatpush1.msra.mxu0 0.0
  %1913 = vmatprep.subr.mxu0 0.0
  %1914 = vmatpush1.msra.mxu0 0.0
  %1915 = vmatprep.subr.mxu0 0.0
  %1916 = vmatpush1.msra.mxu0 0.0
  %1917 = vmatprep.subr.mxu0 0.0
  %1918 = vmatpush1.msra.mxu0 0.0
  %1919 = vmatprep.subr.mxu0 0.0
  %1920 = vmatpush1.msra.mxu0 0.0
  %1921 = vmatprep.subr.mxu0 0.0
  %1922 = vmatpush1.msra.mxu0 0.0
  %1923 = vmatprep.subr.mxu0 0.0
  %1924 = vmatpush1.msra.mxu0 0.0
  %1925 = vmatprep.subr.mxu0 0.0
  %1926 = vmatpush1.msra.mxu0 0.0
  %1927 = vmatprep.subr.mxu0 0.0
  %1928 = vmatpush1.msra.mxu0 0.0
  %1929 = vmatprep.subr.mxu0 0.0
  %1930 = vmatpush1.msra.mxu0 0.0
  %1931 = vmatprep.subr.mxu0 0.0
  %1932 = vmatpush1.msra.mxu0 0.0
  %1933 = vmatprep.subr.mxu0 0.0
  %1934 = vmatpush1.msra.mxu0 0.0
  %1935 = vmatprep.subr.mxu0 0.0
  %1936 = vmatpush1.msra.mxu0 0.0
  %1937 = vmatprep.subr.mxu0 0.0
  %1938 = vmatpush1.msra.mxu0 0.0
  %1939 = vmatprep.subr.mxu0 0.0
  %1940 = vmatpush1.msra.mxu0 0.0
  %1941 = vmatprep.subr.mxu0 0.0
  %1942 = vmatpush1.msra.mxu0 0.0
  %1943 = vmatprep.subr.mxu0 0.0
  %1944 = vmatpush1.msra.mxu0 0.0
  %1945 = vmatprep.subr.mxu0 0.0
  %1946 = vmatpush1.msra.mxu0 0.0
  %1947 = vmatprep.subr.mxu0 0.0
  %1948 = vmatpush1.msra.mxu0 0.0
  %1949 = vmatprep.subr.mxu0 0.0
  %1950 = vmatpush1.msra.mxu0 0.0
  %1951 = vmatprep.subr.mxu0 0.0
  %1952 = vmatpush1.msra.mxu0 0.0
  %1953 = vmatprep.mubr.f32.mxu0 0.0
  %1954 = vmatmul.mubr.f32.gmra.mrb[0].mxu0 %v1816
  %v1955 = vpop.f32.mrb[0].mxu0
  %v1956 = vadd.f32 0.0, %v1955
  %v1957 = vpop.f32.mrb[0].mxu0
  %v1958 = vadd.f32 0.0, %v1957
  %1959 = vdwg.mxu0
  %1960 = vmatprep.subr.mxu0 %v1802
  %1961 = vmatpush1.msra.mxu0 %v1808
  %1962 = vmatprep.subr.mxu0 0.0
  %1963 = vmatpush1.msra.mxu0 0.0
  %1964 = vmatprep.subr.mxu0 0.0
  %1965 = vmatpush1.msra.mxu0 0.0
  %1966 = vmatprep.subr.mxu0 0.0
  %1967 = vmatpush1.msra.mxu0 0.0
  %1968 = vmatprep.subr.mxu0 0.0
  %1969 = vmatpush1.msra.mxu0 0.0
  %1970 = vmatprep.subr.mxu0 0.0
  %1971 = vmatpush1.msra.mxu0 0.0
  %1972 = vmatprep.subr.mxu0 0.0
  %1973 = vmatpush1.msra.mxu0 0.0
  %1974 = vmatprep.subr.mxu0 0.0
  %1975 = vmatpush1.msra.mxu0 0.0
  %1976 = vmatprep.subr.mxu0 0.0
  %1977 = vmatpush1.msra.mxu0 0.0
  %1978 = vmatprep.subr.mxu0 0.0
  %1979 = vmatpush1.msra.mxu0 0.0
  %1980 = vmatprep.subr.mxu0 0.0
  %1981 = vmatpush1.msra.mxu0 0.0
  %1982 = vmatprep.subr.mxu0 0.0
  %1983 = vmatpush1.msra.mxu0 0.0
  %1984 = vmatprep.subr.mxu0 0.0
  %1985 = vmatpush1.msra.mxu0 0.0
  %1986 = vmatprep.subr.mxu0 0.0
  %1987 = vmatpush1.msra.mxu0 0.0
  %1988 = vmatprep.subr.mxu0 0.0
  %1989 = vmatpush1.msra.mxu0 0.0
  %1990 = vmatprep.subr.mxu0 0.0
  %1991 = vmatpush1.msra.mxu0 0.0
  %1992 = vmatprep.subr.mxu0 0.0
  %1993 = vmatpush1.msra.mxu0 0.0
  %1994 = vmatprep.subr.mxu0 0.0
  %1995 = vmatpush1.msra.mxu0 0.0
  %1996 = vmatprep.subr.mxu0 0.0
  %1997 = vmatpush1.msra.mxu0 0.0
  %1998 = vmatprep.subr.mxu0 0.0
  %1999 = vmatpush1.msra.mxu0 0.0
  %2000 = vmatprep.subr.mxu0 0.0
  %2001 = vmatpush1.msra.mxu0 0.0
  %2002 = vmatprep.subr.mxu0 0.0
  %2003 = vmatpush1.msra.mxu0 0.0
  %2004 = vmatprep.subr.mxu0 0.0
  %2005 = vmatpush1.msra.mxu0 0.0
  %2006 = vmatprep.subr.mxu0 0.0
  %2007 = vmatpush1.msra.mxu0 0.0
  %2008 = vmatprep.subr.mxu0 0.0
  %2009 = vmatpush1.msra.mxu0 0.0
  %2010 = vmatprep.subr.mxu0 0.0
  %2011 = vmatpush1.msra.mxu0 0.0
  %2012 = vmatprep.subr.mxu0 0.0
  %2013 = vmatpush1.msra.mxu0 0.0
  %2014 = vmatprep.subr.mxu0 0.0
  %2015 = vmatpush1.msra.mxu0 0.0
  %2016 = vmatprep.subr.mxu0 0.0
  %2017 = vmatpush1.msra.mxu0 0.0
  %2018 = vmatprep.subr.mxu0 0.0
  %2019 = vmatpush1.msra.mxu0 0.0
  %2020 = vmatprep.subr.mxu0 0.0
  %2021 = vmatpush1.msra.mxu0 0.0
  %2022 = vmatprep.subr.mxu0 0.0
  %2023 = vmatpush1.msra.mxu0 0.0
  %2024 = vmatprep.mubr.f32.mxu0 0.0
  %2025 = vmatmul.mubr.f32.gmra.mrb[0].mxu0 %v1816
  %v2026 = vpop.f32.mrb[0].mxu0
  %v2027 = vadd.f32 0.0, %v2026
  %v2028 = vpop.f32.mrb[0].mxu0
  %v2029 = vadd.f32 0.0, %v2028
  %2030 = vdwg.mxu0
  %v2031 = vadd.f32 %v1783, %v1885
  %v2032 = vadd.f32 %v1784, %v1887
  %v2033 = vadd.f32 %v1785, %v1956
  %v2034 = vadd.f32 %v1786, %v1958
  %v2035 = vadd.f32 %v1787, %v2027
  %v2036 = vadd.f32 %v1788, %v2029
  %s2037 = scalar_lea.vmem %s1, 64
  %v2038 = vld [vmem:[%s2037] sm:$0xff]
  %2039 = vrot.lane.b32.xlu0 %v55, 77
  %v2040 = vpop.permute.xlu0 %2039
  %2041 = vrot.lane.b32.xlu0 %v56, 77
  %v2042 = vpop.permute.xlu0 %2041
  %2043 = vrot.lane.b32.xlu0 %v57, 77
  %v2044 = vpop.permute.xlu0 %2043
  %2045 = vrot.lane.b32.xlu0 %v58, 77
  %v2046 = vpop.permute.xlu0 %2045
  %2047 = vrot.lane.b32.xlu0 %v59, 77
  %v2048 = vpop.permute.xlu0 %2047
  %2049 = vrot.lane.b32.xlu0 %v60, 77
  %v2050 = vpop.permute.xlu0 %2049
  %vm2051 = vcmask 629760
  %v2052 = vsel %vm2051, %v2040, %v2042
  %v2053 = vsel %vm2051, %v2042, %v2044
  %v2054 = vsel %vm2051, %v2044, %v2046
  %v2055 = vsel %vm2051, %v2046, %v2048
  %v2056 = vsel %vm2051, %v2048, %v2050
  %v2064 = vsel %vm52, %v2038, 0
  %2066 = vmatprep.subr.mxu0 %v2053
  %2067 = vmatpush1.msra.mxu0 %v2052
  %2068 = vmatprep.subr.mxu0 0.0
  %2069 = vmatpush1.msra.mxu0 0.0
  %2070 = vmatprep.subr.mxu0 0.0
  %2071 = vmatpush1.msra.mxu0 0.0
  %2072 = vmatprep.subr.mxu0 0.0
  %2073 = vmatpush1.msra.mxu0 0.0
  %2074 = vmatprep.subr.mxu0 0.0
  %2075 = vmatpush1.msra.mxu0 0.0
  %2076 = vmatprep.subr.mxu0 0.0
  %2077 = vmatpush1.msra.mxu0 0.0
  %2078 = vmatprep.subr.mxu0 0.0
  %2079 = vmatpush1.msra.mxu0 0.0
  %2080 = vmatprep.subr.mxu0 0.0
  %2081 = vmatpush1.msra.mxu0 0.0
  %2082 = vmatprep.subr.mxu0 0.0
  %2083 = vmatpush1.msra.mxu0 0.0
  %2084 = vmatprep.subr.mxu0 0.0
  %2085 = vmatpush1.msra.mxu0 0.0
  %2086 = vmatprep.subr.mxu0 0.0
  %2087 = vmatpush1.msra.mxu0 0.0
  %2088 = vmatprep.subr.mxu0 0.0
  %2089 = vmatpush1.msra.mxu0 0.0
  %2090 = vmatprep.subr.mxu0 0.0
  %2091 = vmatpush1.msra.mxu0 0.0
  %2092 = vmatprep.subr.mxu0 0.0
  %2093 = vmatpush1.msra.mxu0 0.0
  %2094 = vmatprep.subr.mxu0 0.0
  %2095 = vmatpush1.msra.mxu0 0.0
  %2096 = vmatprep.subr.mxu0 0.0
  %2097 = vmatpush1.msra.mxu0 0.0
  %2098 = vmatprep.subr.mxu0 0.0
  %2099 = vmatpush1.msra.mxu0 0.0
  %2100 = vmatprep.subr.mxu0 0.0
  %2101 = vmatpush1.msra.mxu0 0.0
  %2102 = vmatprep.subr.mxu0 0.0
  %2103 = vmatpush1.msra.mxu0 0.0
  %2104 = vmatprep.subr.mxu0 0.0
  %2105 = vmatpush1.msra.mxu0 0.0
  %2106 = vmatprep.subr.mxu0 0.0
  %2107 = vmatpush1.msra.mxu0 0.0
  %2108 = vmatprep.subr.mxu0 0.0
  %2109 = vmatpush1.msra.mxu0 0.0
  %2110 = vmatprep.subr.mxu0 0.0
  %2111 = vmatpush1.msra.mxu0 0.0
  %2112 = vmatprep.subr.mxu0 0.0
  %2113 = vmatpush1.msra.mxu0 0.0
  %2114 = vmatprep.subr.mxu0 0.0
  %2115 = vmatpush1.msra.mxu0 0.0
  %2116 = vmatprep.subr.mxu0 0.0
  %2117 = vmatpush1.msra.mxu0 0.0
  %2118 = vmatprep.subr.mxu0 0.0
  %2119 = vmatpush1.msra.mxu0 0.0
  %2120 = vmatprep.subr.mxu0 0.0
  %2121 = vmatpush1.msra.mxu0 0.0
  %2122 = vmatprep.subr.mxu0 0.0
  %2123 = vmatpush1.msra.mxu0 0.0
  %2124 = vmatprep.subr.mxu0 0.0
  %2125 = vmatpush1.msra.mxu0 0.0
  %2126 = vmatprep.subr.mxu0 0.0
  %2127 = vmatpush1.msra.mxu0 0.0
  %2128 = vmatprep.subr.mxu0 0.0
  %2129 = vmatpush1.msra.mxu0 0.0
  %2130 = vmatprep.mubr.f32.mxu0 0.0
  %2131 = vmatmul.mubr.f32.gmra.mrb[0].mxu0 %v2064
  %v2132 = vpop.f32.mrb[0].mxu0
  %v2133 = vadd.f32 0.0, %v2132
  %v2134 = vpop.f32.mrb[0].mxu0
  %v2135 = vadd.f32 0.0, %v2134
  %2136 = vdwg.mxu0
  %2137 = vmatprep.subr.mxu0 %v2055
  %2138 = vmatpush1.msra.mxu0 %v2054
  %2139 = vmatprep.subr.mxu0 0.0
  %2140 = vmatpush1.msra.mxu0 0.0
  %2141 = vmatprep.subr.mxu0 0.0
  %2142 = vmatpush1.msra.mxu0 0.0
  %2143 = vmatprep.subr.mxu0 0.0
  %2144 = vmatpush1.msra.mxu0 0.0
  %2145 = vmatprep.subr.mxu0 0.0
  %2146 = vmatpush1.msra.mxu0 0.0
  %2147 = vmatprep.subr.mxu0 0.0
  %2148 = vmatpush1.msra.mxu0 0.0
  %2149 = vmatprep.subr.mxu0 0.0
  %2150 = vmatpush1.msra.mxu0 0.0
  %2151 = vmatprep.subr.mxu0 0.0
  %2152 = vmatpush1.msra.mxu0 0.0
  %2153 = vmatprep.subr.mxu0 0.0
  %2154 = vmatpush1.msra.mxu0 0.0
  %2155 = vmatprep.subr.mxu0 0.0
  %2156 = vmatpush1.msra.mxu0 0.0
  %2157 = vmatprep.subr.mxu0 0.0
  %2158 = vmatpush1.msra.mxu0 0.0
  %2159 = vmatprep.subr.mxu0 0.0
  %2160 = vmatpush1.msra.mxu0 0.0
  %2161 = vmatprep.subr.mxu0 0.0
  %2162 = vmatpush1.msra.mxu0 0.0
  %2163 = vmatprep.subr.mxu0 0.0
  %2164 = vmatpush1.msra.mxu0 0.0
  %2165 = vmatprep.subr.mxu0 0.0
  %2166 = vmatpush1.msra.mxu0 0.0
  %2167 = vmatprep.subr.mxu0 0.0
  %2168 = vmatpush1.msra.mxu0 0.0
  %2169 = vmatprep.subr.mxu0 0.0
  %2170 = vmatpush1.msra.mxu0 0.0
  %2171 = vmatprep.subr.mxu0 0.0
  %2172 = vmatpush1.msra.mxu0 0.0
  %2173 = vmatprep.subr.mxu0 0.0
  %2174 = vmatpush1.msra.mxu0 0.0
  %2175 = vmatprep.subr.mxu0 0.0
  %2176 = vmatpush1.msra.mxu0 0.0
  %2177 = vmatprep.subr.mxu0 0.0
  %2178 = vmatpush1.msra.mxu0 0.0
  %2179 = vmatprep.subr.mxu0 0.0
  %2180 = vmatpush1.msra.mxu0 0.0
  %2181 = vmatprep.subr.mxu0 0.0
  %2182 = vmatpush1.msra.mxu0 0.0
  %2183 = vmatprep.subr.mxu0 0.0
  %2184 = vmatpush1.msra.mxu0 0.0
  %2185 = vmatprep.subr.mxu0 0.0
  %2186 = vmatpush1.msra.mxu0 0.0
  %2187 = vmatprep.subr.mxu0 0.0
  %2188 = vmatpush1.msra.mxu0 0.0
  %2189 = vmatprep.subr.mxu0 0.0
  %2190 = vmatpush1.msra.mxu0 0.0
  %2191 = vmatprep.subr.mxu0 0.0
  %2192 = vmatpush1.msra.mxu0 0.0
  %2193 = vmatprep.subr.mxu0 0.0
  %2194 = vmatpush1.msra.mxu0 0.0
  %2195 = vmatprep.subr.mxu0 0.0
  %2196 = vmatpush1.msra.mxu0 0.0
  %2197 = vmatprep.subr.mxu0 0.0
  %2198 = vmatpush1.msra.mxu0 0.0
  %2199 = vmatprep.subr.mxu0 0.0
  %2200 = vmatpush1.msra.mxu0 0.0
  %2201 = vmatprep.mubr.f32.mxu0 0.0
  %2202 = vmatmul.mubr.f32.gmra.mrb[0].mxu0 %v2064
  %v2203 = vpop.f32.mrb[0].mxu0
  %v2204 = vadd.f32 0.0, %v2203
  %v2205 = vpop.f32.mrb[0].mxu0
  %v2206 = vadd.f32 0.0, %v2205
  %2207 = vdwg.mxu0
  %2208 = vmatprep.subr.mxu0 %v2050
  %2209 = vmatpush1.msra.mxu0 %v2056
  %2210 = vmatprep.subr.mxu0 0.0
  %2211 = vmatpush1.msra.mxu0 0.0
  %2212 = vmatprep.subr.mxu0 0.0
  %2213 = vmatpush1.msra.mxu0 0.0
  %2214 = vmatprep.subr.mxu0 0.0
  %2215 = vmatpush1.msra.mxu0 0.0
  %2216 = vmatprep.subr.mxu0 0.0
  %2217 = vmatpush1.msra.mxu0 0.0
  %2218 = vmatprep.subr.mxu0 0.0
  %2219 = vmatpush1.msra.mxu0 0.0
  %2220 = vmatprep.subr.mxu0 0.0
  %2221 = vmatpush1.msra.mxu0 0.0
  %2222 = vmatprep.subr.mxu0 0.0
  %2223 = vmatpush1.msra.mxu0 0.0
  %2224 = vmatprep.subr.mxu0 0.0
  %2225 = vmatpush1.msra.mxu0 0.0
  %2226 = vmatprep.subr.mxu0 0.0
  %2227 = vmatpush1.msra.mxu0 0.0
  %2228 = vmatprep.subr.mxu0 0.0
  %2229 = vmatpush1.msra.mxu0 0.0
  %2230 = vmatprep.subr.mxu0 0.0
  %2231 = vmatpush1.msra.mxu0 0.0
  %2232 = vmatprep.subr.mxu0 0.0
  %2233 = vmatpush1.msra.mxu0 0.0
  %2234 = vmatprep.subr.mxu0 0.0
  %2235 = vmatpush1.msra.mxu0 0.0
  %2236 = vmatprep.subr.mxu0 0.0
  %2237 = vmatpush1.msra.mxu0 0.0
  %2238 = vmatprep.subr.mxu0 0.0
  %2239 = vmatpush1.msra.mxu0 0.0
  %2240 = vmatprep.subr.mxu0 0.0
  %2241 = vmatpush1.msra.mxu0 0.0
  %2242 = vmatprep.subr.mxu0 0.0
  %2243 = vmatpush1.msra.mxu0 0.0
  %2244 = vmatprep.subr.mxu0 0.0
  %2245 = vmatpush1.msra.mxu0 0.0
  %2246 = vmatprep.subr.mxu0 0.0
  %2247 = vmatpush1.msra.mxu0 0.0
  %2248 = vmatprep.subr.mxu0 0.0
  %2249 = vmatpush1.msra.mxu0 0.0
  %2250 = vmatprep.subr.mxu0 0.0
  %2251 = vmatpush1.msra.mxu0 0.0
  %2252 = vmatprep.subr.mxu0 0.0
  %2253 = vmatpush1.msra.mxu0 0.0
  %2254 = vmatprep.subr.mxu0 0.0
  %2255 = vmatpush1.msra.mxu0 0.0
  %2256 = vmatprep.subr.mxu0 0.0
  %2257 = vmatpush1.msra.mxu0 0.0
  %2258 = vmatprep.subr.mxu0 0.0
  %2259 = vmatpush1.msra.mxu0 0.0
  %2260 = vmatprep.subr.mxu0 0.0
  %2261 = vmatpush1.msra.mxu0 0.0
  %2262 = vmatprep.subr.mxu0 0.0
  %2263 = vmatpush1.msra.mxu0 0.0
  %2264 = vmatprep.subr.mxu0 0.0
  %2265 = vmatpush1.msra.mxu0 0.0
  %2266 = vmatprep.subr.mxu0 0.0
  %2267 = vmatpush1.msra.mxu0 0.0
  %2268 = vmatprep.subr.mxu0 0.0
  %2269 = vmatpush1.msra.mxu0 0.0
  %2270 = vmatprep.subr.mxu0 0.0
  %2271 = vmatpush1.msra.mxu0 0.0
  %2272 = vmatprep.mubr.f32.mxu0 0.0
  %2273 = vmatmul.mubr.f32.gmra.mrb[0].mxu0 %v2064
  %v2274 = vpop.f32.mrb[0].mxu0
  %v2275 = vadd.f32 0.0, %v2274
  %v2276 = vpop.f32.mrb[0].mxu0
  %v2277 = vadd.f32 0.0, %v2276
  %2278 = vdwg.mxu0
  %v2279 = vadd.f32 %v2031, %v2133
  %v2280 = vadd.f32 %v2032, %v2135
  %v2281 = vadd.f32 %v2033, %v2204
  %v2282 = vadd.f32 %v2034, %v2206
  %v2283 = vadd.f32 %v2035, %v2275
  %v2284 = vadd.f32 %v2036, %v2277
  %v2285 = vld [vmem:[%s3] sm:$0xff]
  %2287 = vset.pattern.permute.xlu0 0
  %2288 = vperm.xlu0 %2287, %v2285
  %v2289 = vpop.permute.xlu0 %2288
  %v2291 = vadd.f32 %v2279, %v2289
  %v2292 = vadd.f32 %v2280, %v2289
  %v2293 = vadd.f32 %v2281, %v2289
  %v2294 = vadd.f32 %v2282, %v2289
  %v2295 = vadd.f32 %v2283, %v2289
  %v2296 = vadd.f32 %v2284, %v2289
  %v2297 = vmax.f32 %v2291, 0.0
  %v2298 = vmax.f32 %v2292, 0.0
  %v2299 = vmax.f32 %v2293, 0.0
  %v2300 = vmax.f32 %v2294, 0.0
  %v2301 = vmax.f32 %v2295, 0.0
  %v2302 = vmax.f32 %v2296, 0.0
  %v2304 = vlaneseq
  %v2305 = vshrl.u32 %v2304, 7
  %v2306 = vsub.s32 0, %v2305
  %v2307 = vrot.slane %v41, %v2306
  %v2308 = vlaneseq
  %v2309 = vshrl.u32 %v2308, 7
  %v2310 = vsub.s32 1, %v2309
  %v2311 = vrot.slane %v41, %v2310
  %v2312 = vlaneseq
  %v2313 = vshrl.u32 %v2312, 7
  %v2314 = vsub.s32 2, %v2313
  %v2315 = vrot.slane %v41, %v2314
  %v2316 = vlaneseq
  %v2317 = vshrl.u32 %v2316, 7
  %v2318 = vsub.s32 3, %v2317
  %v2319 = vrot.slane %v41, %v2318
  %v2320 = vlaneseq
  %v2321 = vshrl.u32 %v2320, 7
  %v2322 = vsub.s32 4, %v2321
  %v2323 = vrot.slane %v41, %v2322
  %v2324 = vlaneseq
  %v2325 = vshrl.u32 %v2324, 7
  %v2326 = vsub.s32 5, %v2325
  %v2327 = vrot.slane %v41, %v2326
  %v2334 = vmul.f32 %v2297, %v2307
  %v2335 = vmul.f32 %v2298, %v2311
  %v2336 = vmul.f32 %v2299, %v2315
  %v2337 = vmul.f32 %v2300, %v2319
  %v2338 = vmul.f32 %v2301, %v2323
  %v2339 = vmul.f32 %v2302, %v2327
  %2346 = vrot.lane.b32.xlu0 %v2334, 32
  %v2347 = vpop.permute.xlu0 %2346
  %2348 = vrot.lane.b32.xlu0 %v2335, 32
  %v2349 = vpop.permute.xlu0 %2348
  %2350 = vrot.lane.b32.xlu0 %v2336, 32
  %v2351 = vpop.permute.xlu0 %2350
  %2352 = vrot.lane.b32.xlu0 %v2337, 32
  %v2353 = vpop.permute.xlu0 %2352
  %2354 = vrot.lane.b32.xlu0 %v2338, 32
  %v2355 = vpop.permute.xlu0 %2354
  %2356 = vrot.lane.b32.xlu0 %v2339, 32
  %v2357 = vpop.permute.xlu0 %2356
  %vm2358 = vcmask 261120
  %v2359 = vsel %vm2358, %v2347, %v2349
  %v2360 = vsel %vm2358, %v2349, %v2351
  %v2361 = vsel %vm2358, %v2351, %v2353
  %v2362 = vsel %vm2358, %v2353, %v2355
  %v2363 = vsel %vm2358, %v2355, %v2357
  %vm2370 = vcmask 1047808
  %2371 = vst.msk [vmem:[#allocation2] sm:$0xff] %vm2370, %v2347
  %2372 = vst [vmem:[#allocation2 + $0x8] sm:$0xff] %v2359
  %2373 = vst [vmem:[#allocation2 + $0x10] sm:$0xff] %v2360
  %2374 = vst [vmem:[#allocation2 + $0x18] sm:$0xff] %v2361
  %2375 = vst [vmem:[#allocation2 + $0x20] sm:$0xff] %v2362
  %vm2376 = vcmask 326656
  %2377 = vst.msk [vmem:[#allocation2 + $0x28] sm:$0xff] %vm2376, %v2363
  %v2378 = vld [vmem:[#allocation2] sm:$0xff]
  %v2379 = vld [vmem:[#allocation2 + $0x8] sm:$0xff]
  %v2380 = vld [vmem:[#allocation2 + $0x10] sm:$0xff]
  %v2381 = vld [vmem:[#allocation2 + $0x18] sm:$0xff]
  %v2382 = vld [vmem:[#allocation2 + $0x20] sm:$0xff]
  %v2383 = vld [vmem:[#allocation2 + $0x28] sm:$0xff]
  %s2384 = scalar_lea.vmem %s1, 72
  %v2385 = vld [vmem:[%s2384] sm:$0xff]
  %s2386 = scalar_lea.vmem %s1, 80
  %v2387 = vld [vmem:[%s2386] sm:$0xff]
  %2394 = vrot.lane.b32.xlu0 %v2378, 114
  %v2395 = vpop.permute.xlu0 %2394
  %2396 = vrot.lane.b32.xlu0 %v2379, 114
  %v2397 = vpop.permute.xlu0 %2396
  %2398 = vrot.lane.b32.xlu0 %v2380, 114
  %v2399 = vpop.permute.xlu0 %2398
  %2400 = vrot.lane.b32.xlu0 %v2381, 114
  %v2401 = vpop.permute.xlu0 %2400
  %2402 = vrot.lane.b32.xlu0 %v2382, 114
  %v2403 = vpop.permute.xlu0 %2402
  %2404 = vrot.lane.b32.xlu0 %v2383, 114
  %v2405 = vpop.permute.xlu0 %2404
  %v2406 = vsel %vm81, %v2395, %v2397
  %v2407 = vsel %vm81, %v2397, %v2399
  %v2408 = vsel %vm81, %v2399, %v2401
  %v2409 = vsel %vm81, %v2401, %v2403
  %v2410 = vsel %vm81, %v2403, %v2405
  %v2418 = vsel %vm52, %v2387, 0
  %2420 = vmatprep.subr.mxu0 %v2407
  %2421 = vmatpush1.msra.mxu0 %v2406
  %2422 = vmatprep.subr.mxu0 0.0
  %2423 = vmatpush1.msra.mxu0 0.0
  %2424 = vmatprep.subr.mxu0 0.0
  %2425 = vmatpush1.msra.mxu0 0.0
  %2426 = vmatprep.subr.mxu0 0.0
  %2427 = vmatpush1.msra.mxu0 0.0
  %2428 = vmatprep.subr.mxu0 0.0
  %2429 = vmatpush1.msra.mxu0 0.0
  %2430 = vmatprep.subr.mxu0 0.0
  %2431 = vmatpush1.msra.mxu0 0.0
  %2432 = vmatprep.subr.mxu0 0.0
  %2433 = vmatpush1.msra.mxu0 0.0
  %2434 = vmatprep.subr.mxu0 0.0
  %2435 = vmatpush1.msra.mxu0 0.0
  %2436 = vmatprep.subr.mxu0 0.0
  %2437 = vmatpush1.msra.mxu0 0.0
  %2438 = vmatprep.subr.mxu0 0.0
  %2439 = vmatpush1.msra.mxu0 0.0
  %2440 = vmatprep.subr.mxu0 0.0
  %2441 = vmatpush1.msra.mxu0 0.0
  %2442 = vmatprep.subr.mxu0 0.0
  %2443 = vmatpush1.msra.mxu0 0.0
  %2444 = vmatprep.subr.mxu0 0.0
  %2445 = vmatpush1.msra.mxu0 0.0
  %2446 = vmatprep.subr.mxu0 0.0
  %2447 = vmatpush1.msra.mxu0 0.0
  %2448 = vmatprep.subr.mxu0 0.0
  %2449 = vmatpush1.msra.mxu0 0.0
  %2450 = vmatprep.subr.mxu0 0.0
  %2451 = vmatpush1.msra.mxu0 0.0
  %2452 = vmatprep.subr.mxu0 0.0
  %2453 = vmatpush1.msra.mxu0 0.0
  %2454 = vmatprep.subr.mxu0 0.0
  %2455 = vmatpush1.msra.mxu0 0.0
  %2456 = vmatprep.subr.mxu0 0.0
  %2457 = vmatpush1.msra.mxu0 0.0
  %2458 = vmatprep.subr.mxu0 0.0
  %2459 = vmatpush1.msra.mxu0 0.0
  %2460 = vmatprep.subr.mxu0 0.0
  %2461 = vmatpush1.msra.mxu0 0.0
  %2462 = vmatprep.subr.mxu0 0.0
  %2463 = vmatpush1.msra.mxu0 0.0
  %2464 = vmatprep.subr.mxu0 0.0
  %2465 = vmatpush1.msra.mxu0 0.0
  %2466 = vmatprep.subr.mxu0 0.0
  %2467 = vmatpush1.msra.mxu0 0.0
  %2468 = vmatprep.subr.mxu0 0.0
  %2469 = vmatpush1.msra.mxu0 0.0
  %2470 = vmatprep.subr.mxu0 0.0
  %2471 = vmatpush1.msra.mxu0 0.0
  %2472 = vmatprep.subr.mxu0 0.0
  %2473 = vmatpush1.msra.mxu0 0.0
  %2474 = vmatprep.subr.mxu0 0.0
  %2475 = vmatpush1.msra.mxu0 0.0
  %2476 = vmatprep.subr.mxu0 0.0
  %2477 = vmatpush1.msra.mxu0 0.0
  %2478 = vmatprep.subr.mxu0 0.0
  %2479 = vmatpush1.msra.mxu0 0.0
  %2480 = vmatprep.subr.mxu0 0.0
  %2481 = vmatpush1.msra.mxu0 0.0
  %2482 = vmatprep.subr.mxu0 0.0
  %2483 = vmatpush1.msra.mxu0 0.0
  %2484 = vmatprep.mubr.f32.mxu0 0.0
  %2485 = vmatmul.mubr.f32.gmra.mrb[0].mxu0 %v2418
  %v2486 = vpop.f32.mrb[0].mxu0
  %v2487 = vadd.f32 0.0, %v2486
  %v2488 = vpop.f32.mrb[0].mxu0
  %v2489 = vadd.f32 0.0, %v2488
  %2490 = vdwg.mxu0
  %2491 = vmatprep.subr.mxu0 %v2409
  %2492 = vmatpush1.msra.mxu0 %v2408
  %2493 = vmatprep.subr.mxu0 0.0
  %2494 = vmatpush1.msra.mxu0 0.0
  %2495 = vmatprep.subr.mxu0 0.0
  %2496 = vmatpush1.msra.mxu0 0.0
  %2497 = vmatprep.subr.mxu0 0.0
  %2498 = vmatpush1.msra.mxu0 0.0
  %2499 = vmatprep.subr.mxu0 0.0
  %2500 = vmatpush1.msra.mxu0 0.0
  %2501 = vmatprep.subr.mxu0 0.0
  %2502 = vmatpush1.msra.mxu0 0.0
  %2503 = vmatprep.subr.mxu0 0.0
  %2504 = vmatpush1.msra.mxu0 0.0
  %2505 = vmatprep.subr.mxu0 0.0
  %2506 = vmatpush1.msra.mxu0 0.0
  %2507 = vmatprep.subr.mxu0 0.0
  %2508 = vmatpush1.msra.mxu0 0.0
  %2509 = vmatprep.subr.mxu0 0.0
  %2510 = vmatpush1.msra.mxu0 0.0
  %2511 = vmatprep.subr.mxu0 0.0
  %2512 = vmatpush1.msra.mxu0 0.0
  %2513 = vmatprep.subr.mxu0 0.0
  %2514 = vmatpush1.msra.mxu0 0.0
  %2515 = vmatprep.subr.mxu0 0.0
  %2516 = vmatpush1.msra.mxu0 0.0
  %2517 = vmatprep.subr.mxu0 0.0
  %2518 = vmatpush1.msra.mxu0 0.0
  %2519 = vmatprep.subr.mxu0 0.0
  %2520 = vmatpush1.msra.mxu0 0.0
  %2521 = vmatprep.subr.mxu0 0.0
  %2522 = vmatpush1.msra.mxu0 0.0
  %2523 = vmatprep.subr.mxu0 0.0
  %2524 = vmatpush1.msra.mxu0 0.0
  %2525 = vmatprep.subr.mxu0 0.0
  %2526 = vmatpush1.msra.mxu0 0.0
  %2527 = vmatprep.subr.mxu0 0.0
  %2528 = vmatpush1.msra.mxu0 0.0
  %2529 = vmatprep.subr.mxu0 0.0
  %2530 = vmatpush1.msra.mxu0 0.0
  %2531 = vmatprep.subr.mxu0 0.0
  %2532 = vmatpush1.msra.mxu0 0.0
  %2533 = vmatprep.subr.mxu0 0.0
  %2534 = vmatpush1.msra.mxu0 0.0
  %2535 = vmatprep.subr.mxu0 0.0
  %2536 = vmatpush1.msra.mxu0 0.0
  %2537 = vmatprep.subr.mxu0 0.0
  %2538 = vmatpush1.msra.mxu0 0.0
  %2539 = vmatprep.subr.mxu0 0.0
  %2540 = vmatpush1.msra.mxu0 0.0
  %2541 = vmatprep.subr.mxu0 0.0
  %2542 = vmatpush1.msra.mxu0 0.0
  %2543 = vmatprep.subr.mxu0 0.0
  %2544 = vmatpush1.msra.mxu0 0.0
  %2545 = vmatprep.subr.mxu0 0.0
  %2546 = vmatpush1.msra.mxu0 0.0
  %2547 = vmatprep.subr.mxu0 0.0
  %2548 = vmatpush1.msra.mxu0 0.0
  %2549 = vmatprep.subr.mxu0 0.0
  %2550 = vmatpush1.msra.mxu0 0.0
  %2551 = vmatprep.subr.mxu0 0.0
  %2552 = vmatpush1.msra.mxu0 0.0
  %2553 = vmatprep.subr.mxu0 0.0
  %2554 = vmatpush1.msra.mxu0 0.0
  %2555 = vmatprep.mubr.f32.mxu0 0.0
  %2556 = vmatmul.mubr.f32.gmra.mrb[0].mxu0 %v2418
  %v2557 = vpop.f32.mrb[0].mxu0
  %v2558 = vadd.f32 0.0, %v2557
  %v2559 = vpop.f32.mrb[0].mxu0
  %v2560 = vadd.f32 0.0, %v2559
  %2561 = vdwg.mxu0
  %2562 = vmatprep.subr.mxu0 %v2405
  %2563 = vmatpush1.msra.mxu0 %v2410
  %2564 = vmatprep.subr.mxu0 0.0
  %2565 = vmatpush1.msra.mxu0 0.0
  %2566 = vmatprep.subr.mxu0 0.0
  %2567 = vmatpush1.msra.mxu0 0.0
  %2568 = vmatprep.subr.mxu0 0.0
  %2569 = vmatpush1.msra.mxu0 0.0
  %2570 = vmatprep.subr.mxu0 0.0
  %2571 = vmatpush1.msra.mxu0 0.0
  %2572 = vmatprep.subr.mxu0 0.0
  %2573 = vmatpush1.msra.mxu0 0.0
  %2574 = vmatprep.subr.mxu0 0.0
  %2575 = vmatpush1.msra.mxu0 0.0
  %2576 = vmatprep.subr.mxu0 0.0
  %2577 = vmatpush1.msra.mxu0 0.0
  %2578 = vmatprep.subr.mxu0 0.0
  %2579 = vmatpush1.msra.mxu0 0.0
  %2580 = vmatprep.subr.mxu0 0.0
  %2581 = vmatpush1.msra.mxu0 0.0
  %2582 = vmatprep.subr.mxu0 0.0
  %2583 = vmatpush1.msra.mxu0 0.0
  %2584 = vmatprep.subr.mxu0 0.0
  %2585 = vmatpush1.msra.mxu0 0.0
  %2586 = vmatprep.subr.mxu0 0.0
  %2587 = vmatpush1.msra.mxu0 0.0
  %2588 = vmatprep.subr.mxu0 0.0
  %2589 = vmatpush1.msra.mxu0 0.0
  %2590 = vmatprep.subr.mxu0 0.0
  %2591 = vmatpush1.msra.mxu0 0.0
  %2592 = vmatprep.subr.mxu0 0.0
  %2593 = vmatpush1.msra.mxu0 0.0
  %2594 = vmatprep.subr.mxu0 0.0
  %2595 = vmatpush1.msra.mxu0 0.0
  %2596 = vmatprep.subr.mxu0 0.0
  %2597 = vmatpush1.msra.mxu0 0.0
  %2598 = vmatprep.subr.mxu0 0.0
  %2599 = vmatpush1.msra.mxu0 0.0
  %2600 = vmatprep.subr.mxu0 0.0
  %2601 = vmatpush1.msra.mxu0 0.0
  %2602 = vmatprep.subr.mxu0 0.0
  %2603 = vmatpush1.msra.mxu0 0.0
  %2604 = vmatprep.subr.mxu0 0.0
  %2605 = vmatpush1.msra.mxu0 0.0
  %2606 = vmatprep.subr.mxu0 0.0
  %2607 = vmatpush1.msra.mxu0 0.0
  %2608 = vmatprep.subr.mxu0 0.0
  %2609 = vmatpush1.msra.mxu0 0.0
  %2610 = vmatprep.subr.mxu0 0.0
  %2611 = vmatpush1.msra.mxu0 0.0
  %2612 = vmatprep.subr.mxu0 0.0
  %2613 = vmatpush1.msra.mxu0 0.0
  %2614 = vmatprep.subr.mxu0 0.0
  %2615 = vmatpush1.msra.mxu0 0.0
  %2616 = vmatprep.subr.mxu0 0.0
  %2617 = vmatpush1.msra.mxu0 0.0
  %2618 = vmatprep.subr.mxu0 0.0
  %2619 = vmatpush1.msra.mxu0 0.0
  %2620 = vmatprep.subr.mxu0 0.0
  %2621 = vmatpush1.msra.mxu0 0.0
  %2622 = vmatprep.subr.mxu0 0.0
  %2623 = vmatpush1.msra.mxu0 0.0
  %2624 = vmatprep.subr.mxu0 0.0
  %2625 = vmatpush1.msra.mxu0 0.0
  %2626 = vmatprep.mubr.f32.mxu0 0.0
  %2627 = vmatmul.mubr.f32.gmra.mrb[0].mxu0 %v2418
  %v2628 = vpop.f32.mrb[0].mxu0
  %v2629 = vadd.f32 0.0, %v2628
  %v2630 = vpop.f32.mrb[0].mxu0
  %v2631 = vadd.f32 0.0, %v2630
  %2632 = vdwg.mxu0
  %2633 = vrot.lane.b32.xlu0 %v2378, 115
  %v2634 = vpop.permute.xlu0 %2633
  %2635 = vrot.lane.b32.xlu0 %v2379, 115
  %v2636 = vpop.permute.xlu0 %2635
  %2637 = vrot.lane.b32.xlu0 %v2380, 115
  %v2638 = vpop.permute.xlu0 %2637
  %2639 = vrot.lane.b32.xlu0 %v2381, 115
  %v2640 = vpop.permute.xlu0 %2639
  %2641 = vrot.lane.b32.xlu0 %v2382, 115
  %v2642 = vpop.permute.xlu0 %2641
  %2643 = vrot.lane.b32.xlu0 %v2383, 115
  %v2644 = vpop.permute.xlu0 %2643
  %v2645 = vsel %vm321, %v2634, %v2636
  %v2646 = vsel %vm321, %v2636, %v2638
  %v2647 = vsel %vm321, %v2638, %v2640
  %v2648 = vsel %vm321, %v2640, %v2642
  %v2649 = vsel %vm321, %v2642, %v2644
  %v2657 = vsel %vm52, %v2385, 0
  %2659 = vmatprep.subr.mxu0 %v2646
  %2660 = vmatpush1.msra.mxu0 %v2645
  %2661 = vmatprep.subr.mxu0 0.0
  %2662 = vmatpush1.msra.mxu0 0.0
  %2663 = vmatprep.subr.mxu0 0.0
  %2664 = vmatpush1.msra.mxu0 0.0
  %2665 = vmatprep.subr.mxu0 0.0
  %2666 = vmatpush1.msra.mxu0 0.0
  %2667 = vmatprep.subr.mxu0 0.0
  %2668 = vmatpush1.msra.mxu0 0.0
  %2669 = vmatprep.subr.mxu0 0.0
  %2670 = vmatpush1.msra.mxu0 0.0
  %2671 = vmatprep.subr.mxu0 0.0
  %2672 = vmatpush1.msra.mxu0 0.0
  %2673 = vmatprep.subr.mxu0 0.0
  %2674 = vmatpush1.msra.mxu0 0.0
  %2675 = vmatprep.subr.mxu0 0.0
  %2676 = vmatpush1.msra.mxu0 0.0
  %2677 = vmatprep.subr.mxu0 0.0
  %2678 = vmatpush1.msra.mxu0 0.0
  %2679 = vmatprep.subr.mxu0 0.0
  %2680 = vmatpush1.msra.mxu0 0.0
  %2681 = vmatprep.subr.mxu0 0.0
  %2682 = vmatpush1.msra.mxu0 0.0
  %2683 = vmatprep.subr.mxu0 0.0
  %2684 = vmatpush1.msra.mxu0 0.0
  %2685 = vmatprep.subr.mxu0 0.0
  %2686 = vmatpush1.msra.mxu0 0.0
  %2687 = vmatprep.subr.mxu0 0.0
  %2688 = vmatpush1.msra.mxu0 0.0
  %2689 = vmatprep.subr.mxu0 0.0
  %2690 = vmatpush1.msra.mxu0 0.0
  %2691 = vmatprep.subr.mxu0 0.0
  %2692 = vmatpush1.msra.mxu0 0.0
  %2693 = vmatprep.subr.mxu0 0.0
  %2694 = vmatpush1.msra.mxu0 0.0
  %2695 = vmatprep.subr.mxu0 0.0
  %2696 = vmatpush1.msra.mxu0 0.0
  %2697 = vmatprep.subr.mxu0 0.0
  %2698 = vmatpush1.msra.mxu0 0.0
  %2699 = vmatprep.subr.mxu0 0.0
  %2700 = vmatpush1.msra.mxu0 0.0
  %2701 = vmatprep.subr.mxu0 0.0
  %2702 = vmatpush1.msra.mxu0 0.0
  %2703 = vmatprep.subr.mxu0 0.0
  %2704 = vmatpush1.msra.mxu0 0.0
  %2705 = vmatprep.subr.mxu0 0.0
  %2706 = vmatpush1.msra.mxu0 0.0
  %2707 = vmatprep.subr.mxu0 0.0
  %2708 = vmatpush1.msra.mxu0 0.0
  %2709 = vmatprep.subr.mxu0 0.0
  %2710 = vmatpush1.msra.mxu0 0.0
  %2711 = vmatprep.subr.mxu0 0.0
  %2712 = vmatpush1.msra.mxu0 0.0
  %2713 = vmatprep.subr.mxu0 0.0
  %2714 = vmatpush1.msra.mxu0 0.0
  %2715 = vmatprep.subr.mxu0 0.0
  %2716 = vmatpush1.msra.mxu0 0.0
  %2717 = vmatprep.subr.mxu0 0.0
  %2718 = vmatpush1.msra.mxu0 0.0
  %2719 = vmatprep.subr.mxu0 0.0
  %2720 = vmatpush1.msra.mxu0 0.0
  %2721 = vmatprep.subr.mxu0 0.0
  %2722 = vmatpush1.msra.mxu0 0.0
  %2723 = vmatprep.mubr.f32.mxu0 0.0
  %2724 = vmatmul.mubr.f32.gmra.mrb[0].mxu0 %v2657
  %v2725 = vpop.f32.mrb[0].mxu0
  %v2726 = vadd.f32 %v2487, %v2725
  %v2727 = vpop.f32.mrb[0].mxu0
  %v2728 = vadd.f32 %v2489, %v2727
  %2729 = vdwg.mxu0
  %2730 = vmatprep.subr.mxu0 %v2648
  %2731 = vmatpush1.msra.mxu0 %v2647
  %2732 = vmatprep.subr.mxu0 0.0
  %2733 = vmatpush1.msra.mxu0 0.0
  %2734 = vmatprep.subr.mxu0 0.0
  %2735 = vmatpush1.msra.mxu0 0.0
  %2736 = vmatprep.subr.mxu0 0.0
  %2737 = vmatpush1.msra.mxu0 0.0
  %2738 = vmatprep.subr.mxu0 0.0
  %2739 = vmatpush1.msra.mxu0 0.0
  %2740 = vmatprep.subr.mxu0 0.0
  %2741 = vmatpush1.msra.mxu0 0.0
  %2742 = vmatprep.subr.mxu0 0.0
  %2743 = vmatpush1.msra.mxu0 0.0
  %2744 = vmatprep.subr.mxu0 0.0
  %2745 = vmatpush1.msra.mxu0 0.0
  %2746 = vmatprep.subr.mxu0 0.0
  %2747 = vmatpush1.msra.mxu0 0.0
  %2748 = vmatprep.subr.mxu0 0.0
  %2749 = vmatpush1.msra.mxu0 0.0
  %2750 = vmatprep.subr.mxu0 0.0
  %2751 = vmatpush1.msra.mxu0 0.0
  %2752 = vmatprep.subr.mxu0 0.0
  %2753 = vmatpush1.msra.mxu0 0.0
  %2754 = vmatprep.subr.mxu0 0.0
  %2755 = vmatpush1.msra.mxu0 0.0
  %2756 = vmatprep.subr.mxu0 0.0
  %2757 = vmatpush1.msra.mxu0 0.0
  %2758 = vmatprep.subr.mxu0 0.0
  %2759 = vmatpush1.msra.mxu0 0.0
  %2760 = vmatprep.subr.mxu0 0.0
  %2761 = vmatpush1.msra.mxu0 0.0
  %2762 = vmatprep.subr.mxu0 0.0
  %2763 = vmatpush1.msra.mxu0 0.0
  %2764 = vmatprep.subr.mxu0 0.0
  %2765 = vmatpush1.msra.mxu0 0.0
  %2766 = vmatprep.subr.mxu0 0.0
  %2767 = vmatpush1.msra.mxu0 0.0
  %2768 = vmatprep.subr.mxu0 0.0
  %2769 = vmatpush1.msra.mxu0 0.0
  %2770 = vmatprep.subr.mxu0 0.0
  %2771 = vmatpush1.msra.mxu0 0.0
  %2772 = vmatprep.subr.mxu0 0.0
  %2773 = vmatpush1.msra.mxu0 0.0
  %2774 = vmatprep.subr.mxu0 0.0
  %2775 = vmatpush1.msra.mxu0 0.0
  %2776 = vmatprep.subr.mxu0 0.0
  %2777 = vmatpush1.msra.mxu0 0.0
  %2778 = vmatprep.subr.mxu0 0.0
  %2779 = vmatpush1.msra.mxu0 0.0
  %2780 = vmatprep.subr.mxu0 0.0
  %2781 = vmatpush1.msra.mxu0 0.0
  %2782 = vmatprep.subr.mxu0 0.0
  %2783 = vmatpush1.msra.mxu0 0.0
  %2784 = vmatprep.subr.mxu0 0.0
  %2785 = vmatpush1.msra.mxu0 0.0
  %2786 = vmatprep.subr.mxu0 0.0
  %2787 = vmatpush1.msra.mxu0 0.0
  %2788 = vmatprep.subr.mxu0 0.0
  %2789 = vmatpush1.msra.mxu0 0.0
  %2790 = vmatprep.subr.mxu0 0.0
  %2791 = vmatpush1.msra.mxu0 0.0
  %2792 = vmatprep.subr.mxu0 0.0
  %2793 = vmatpush1.msra.mxu0 0.0
  %2794 = vmatprep.mubr.f32.mxu0 0.0
  %2795 = vmatmul.mubr.f32.gmra.mrb[0].mxu0 %v2657
  %v2796 = vpop.f32.mrb[0].mxu0
  %v2797 = vadd.f32 %v2558, %v2796
  %v2798 = vpop.f32.mrb[0].mxu0
  %v2799 = vadd.f32 %v2560, %v2798
  %2800 = vdwg.mxu0
  %2801 = vmatprep.subr.mxu0 %v2644
  %2802 = vmatpush1.msra.mxu0 %v2649
  %2803 = vmatprep.subr.mxu0 0.0
  %2804 = vmatpush1.msra.mxu0 0.0
  %2805 = vmatprep.subr.mxu0 0.0
  %2806 = vmatpush1.msra.mxu0 0.0
  %2807 = vmatprep.subr.mxu0 0.0
  %2808 = vmatpush1.msra.mxu0 0.0
  %2809 = vmatprep.subr.mxu0 0.0
  %2810 = vmatpush1.msra.mxu0 0.0
  %2811 = vmatprep.subr.mxu0 0.0
  %2812 = vmatpush1.msra.mxu0 0.0
  %2813 = vmatprep.subr.mxu0 0.0
  %2814 = vmatpush1.msra.mxu0 0.0
  %2815 = vmatprep.subr.mxu0 0.0
  %2816 = vmatpush1.msra.mxu0 0.0
  %2817 = vmatprep.subr.mxu0 0.0
  %2818 = vmatpush1.msra.mxu0 0.0
  %2819 = vmatprep.subr.mxu0 0.0
  %2820 = vmatpush1.msra.mxu0 0.0
  %2821 = vmatprep.subr.mxu0 0.0
  %2822 = vmatpush1.msra.mxu0 0.0
  %2823 = vmatprep.subr.mxu0 0.0
  %2824 = vmatpush1.msra.mxu0 0.0
  %2825 = vmatprep.subr.mxu0 0.0
  %2826 = vmatpush1.msra.mxu0 0.0
  %2827 = vmatprep.subr.mxu0 0.0
  %2828 = vmatpush1.msra.mxu0 0.0
  %2829 = vmatprep.subr.mxu0 0.0
  %2830 = vmatpush1.msra.mxu0 0.0
  %2831 = vmatprep.subr.mxu0 0.0
  %2832 = vmatpush1.msra.mxu0 0.0
  %2833 = vmatprep.subr.mxu0 0.0
  %2834 = vmatpush1.msra.mxu0 0.0
  %2835 = vmatprep.subr.mxu0 0.0
  %2836 = vmatpush1.msra.mxu0 0.0
  %2837 = vmatprep.subr.mxu0 0.0
  %2838 = vmatpush1.msra.mxu0 0.0
  %2839 = vmatprep.subr.mxu0 0.0
  %2840 = vmatpush1.msra.mxu0 0.0
  %2841 = vmatprep.subr.mxu0 0.0
  %2842 = vmatpush1.msra.mxu0 0.0
  %2843 = vmatprep.subr.mxu0 0.0
  %2844 = vmatpush1.msra.mxu0 0.0
  %2845 = vmatprep.subr.mxu0 0.0
  %2846 = vmatpush1.msra.mxu0 0.0
  %2847 = vmatprep.subr.mxu0 0.0
  %2848 = vmatpush1.msra.mxu0 0.0
  %2849 = vmatprep.subr.mxu0 0.0
  %2850 = vmatpush1.msra.mxu0 0.0
  %2851 = vmatprep.subr.mxu0 0.0
  %2852 = vmatpush1.msra.mxu0 0.0
  %2853 = vmatprep.subr.mxu0 0.0
  %2854 = vmatpush1.msra.mxu0 0.0
  %2855 = vmatprep.subr.mxu0 0.0
  %2856 = vmatpush1.msra.mxu0 0.0
  %2857 = vmatprep.subr.mxu0 0.0
  %2858 = vmatpush1.msra.mxu0 0.0
  %2859 = vmatprep.subr.mxu0 0.0
  %2860 = vmatpush1.msra.mxu0 0.0
  %2861 = vmatprep.subr.mxu0 0.0
  %2862 = vmatpush1.msra.mxu0 0.0
  %2863 = vmatprep.subr.mxu0 0.0
  %2864 = vmatpush1.msra.mxu0 0.0
  %2865 = vmatprep.mubr.f32.mxu0 0.0
  %2866 = vmatmul.mubr.f32.gmra.mrb[0].mxu0 %v2657
  %v2867 = vpop.f32.mrb[0].mxu0
  %v2868 = vadd.f32 %v2629, %v2867
  %v2869 = vpop.f32.mrb[0].mxu0
  %v2870 = vadd.f32 %v2631, %v2869
  %2871 = vdwg.mxu0
  %s2872 = scalar_lea.vmem %s1, 88
  %v2873 = vld [vmem:[%s2872] sm:$0xff]
  %2874 = vrot.lane.b32.xlu0 %v2378, 113
  %v2875 = vpop.permute.xlu0 %2874
  %2876 = vrot.lane.b32.xlu0 %v2379, 113
  %v2877 = vpop.permute.xlu0 %2876
  %2878 = vrot.lane.b32.xlu0 %v2380, 113
  %v2879 = vpop.permute.xlu0 %2878
  %2880 = vrot.lane.b32.xlu0 %v2381, 113
  %v2881 = vpop.permute.xlu0 %2880
  %2882 = vrot.lane.b32.xlu0 %v2382, 113
  %v2883 = vpop.permute.xlu0 %2882
  %2884 = vrot.lane.b32.xlu0 %v2383, 113
  %v2885 = vpop.permute.xlu0 %2884
  %v2886 = vsel %vm563, %v2875, %v2877
  %v2887 = vsel %vm563, %v2877, %v2879
  %v2888 = vsel %vm563, %v2879, %v2881
  %v2889 = vsel %vm563, %v2881, %v2883
  %v2890 = vsel %vm563, %v2883, %v2885
  %v2898 = vsel %vm52, %v2873, 0
  %2900 = vmatprep.subr.mxu0 %v2887
  %2901 = vmatpush1.msra.mxu0 %v2886
  %2902 = vmatprep.subr.mxu0 0.0
  %2903 = vmatpush1.msra.mxu0 0.0
  %2904 = vmatprep.subr.mxu0 0.0
  %2905 = vmatpush1.msra.mxu0 0.0
  %2906 = vmatprep.subr.mxu0 0.0
  %2907 = vmatpush1.msra.mxu0 0.0
  %2908 = vmatprep.subr.mxu0 0.0
  %2909 = vmatpush1.msra.mxu0 0.0
  %2910 = vmatprep.subr.mxu0 0.0
  %2911 = vmatpush1.msra.mxu0 0.0
  %2912 = vmatprep.subr.mxu0 0.0
  %2913 = vmatpush1.msra.mxu0 0.0
  %2914 = vmatprep.subr.mxu0 0.0
  %2915 = vmatpush1.msra.mxu0 0.0
  %2916 = vmatprep.subr.mxu0 0.0
  %2917 = vmatpush1.msra.mxu0 0.0
  %2918 = vmatprep.subr.mxu0 0.0
  %2919 = vmatpush1.msra.mxu0 0.0
  %2920 = vmatprep.subr.mxu0 0.0
  %2921 = vmatpush1.msra.mxu0 0.0
  %2922 = vmatprep.subr.mxu0 0.0
  %2923 = vmatpush1.msra.mxu0 0.0
  %2924 = vmatprep.subr.mxu0 0.0
  %2925 = vmatpush1.msra.mxu0 0.0
  %2926 = vmatprep.subr.mxu0 0.0
  %2927 = vmatpush1.msra.mxu0 0.0
  %2928 = vmatprep.subr.mxu0 0.0
  %2929 = vmatpush1.msra.mxu0 0.0
  %2930 = vmatprep.subr.mxu0 0.0
  %2931 = vmatpush1.msra.mxu0 0.0
  %2932 = vmatprep.subr.mxu0 0.0
  %2933 = vmatpush1.msra.mxu0 0.0
  %2934 = vmatprep.subr.mxu0 0.0
  %2935 = vmatpush1.msra.mxu0 0.0
  %2936 = vmatprep.subr.mxu0 0.0
  %2937 = vmatpush1.msra.mxu0 0.0
  %2938 = vmatprep.subr.mxu0 0.0
  %2939 = vmatpush1.msra.mxu0 0.0
  %2940 = vmatprep.subr.mxu0 0.0
  %2941 = vmatpush1.msra.mxu0 0.0
  %2942 = vmatprep.subr.mxu0 0.0
  %2943 = vmatpush1.msra.mxu0 0.0
  %2944 = vmatprep.subr.mxu0 0.0
  %2945 = vmatpush1.msra.mxu0 0.0
  %2946 = vmatprep.subr.mxu0 0.0
  %2947 = vmatpush1.msra.mxu0 0.0
  %2948 = vmatprep.subr.mxu0 0.0
  %2949 = vmatpush1.msra.mxu0 0.0
  %2950 = vmatprep.subr.mxu0 0.0
  %2951 = vmatpush1.msra.mxu0 0.0
  %2952 = vmatprep.subr.mxu0 0.0
  %2953 = vmatpush1.msra.mxu0 0.0
  %2954 = vmatprep.subr.mxu0 0.0
  %2955 = vmatpush1.msra.mxu0 0.0
  %2956 = vmatprep.subr.mxu0 0.0
  %2957 = vmatpush1.msra.mxu0 0.0
  %2958 = vmatprep.subr.mxu0 0.0
  %2959 = vmatpush1.msra.mxu0 0.0
  %2960 = vmatprep.subr.mxu0 0.0
  %2961 = vmatpush1.msra.mxu0 0.0
  %2962 = vmatprep.subr.mxu0 0.0
  %2963 = vmatpush1.msra.mxu0 0.0
  %2964 = vmatprep.mubr.f32.mxu0 0.0
  %2965 = vmatmul.mubr.f32.gmra.mrb[0].mxu0 %v2898
  %v2966 = vpop.f32.mrb[0].mxu0
  %v2967 = vadd.f32 0.0, %v2966
  %v2968 = vpop.f32.mrb[0].mxu0
  %v2969 = vadd.f32 0.0, %v2968
  %2970 = vdwg.mxu0
  %2971 = vmatprep.subr.mxu0 %v2889
  %2972 = vmatpush1.msra.mxu0 %v2888
  %2973 = vmatprep.subr.mxu0 0.0
  %2974 = vmatpush1.msra.mxu0 0.0
  %2975 = vmatprep.subr.mxu0 0.0
  %2976 = vmatpush1.msra.mxu0 0.0
  %2977 = vmatprep.subr.mxu0 0.0
  %2978 = vmatpush1.msra.mxu0 0.0
  %2979 = vmatprep.subr.mxu0 0.0
  %2980 = vmatpush1.msra.mxu0 0.0
  %2981 = vmatprep.subr.mxu0 0.0
  %2982 = vmatpush1.msra.mxu0 0.0
  %2983 = vmatprep.subr.mxu0 0.0
  %2984 = vmatpush1.msra.mxu0 0.0
  %2985 = vmatprep.subr.mxu0 0.0
  %2986 = vmatpush1.msra.mxu0 0.0
  %2987 = vmatprep.subr.mxu0 0.0
  %2988 = vmatpush1.msra.mxu0 0.0
  %2989 = vmatprep.subr.mxu0 0.0
  %2990 = vmatpush1.msra.mxu0 0.0
  %2991 = vmatprep.subr.mxu0 0.0
  %2992 = vmatpush1.msra.mxu0 0.0
  %2993 = vmatprep.subr.mxu0 0.0
  %2994 = vmatpush1.msra.mxu0 0.0
  %2995 = vmatprep.subr.mxu0 0.0
  %2996 = vmatpush1.msra.mxu0 0.0
  %2997 = vmatprep.subr.mxu0 0.0
  %2998 = vmatpush1.msra.mxu0 0.0
  %2999 = vmatprep.subr.mxu0 0.0
  %3000 = vmatpush1.msra.mxu0 0.0
  %3001 = vmatprep.subr.mxu0 0.0
  %3002 = vmatpush1.msra.mxu0 0.0
  %3003 = vmatprep.subr.mxu0 0.0
  %3004 = vmatpush1.msra.mxu0 0.0
  %3005 = vmatprep.subr.mxu0 0.0
  %3006 = vmatpush1.msra.mxu0 0.0
  %3007 = vmatprep.subr.mxu0 0.0
  %3008 = vmatpush1.msra.mxu0 0.0
  %3009 = vmatprep.subr.mxu0 0.0
  %3010 = vmatpush1.msra.mxu0 0.0
  %3011 = vmatprep.subr.mxu0 0.0
  %3012 = vmatpush1.msra.mxu0 0.0
  %3013 = vmatprep.subr.mxu0 0.0
  %3014 = vmatpush1.msra.mxu0 0.0
  %3015 = vmatprep.subr.mxu0 0.0
  %3016 = vmatpush1.msra.mxu0 0.0
  %3017 = vmatprep.subr.mxu0 0.0
  %3018 = vmatpush1.msra.mxu0 0.0
  %3019 = vmatprep.subr.mxu0 0.0
  %3020 = vmatpush1.msra.mxu0 0.0
  %3021 = vmatprep.subr.mxu0 0.0
  %3022 = vmatpush1.msra.mxu0 0.0
  %3023 = vmatprep.subr.mxu0 0.0
  %3024 = vmatpush1.msra.mxu0 0.0
  %3025 = vmatprep.subr.mxu0 0.0
  %3026 = vmatpush1.msra.mxu0 0.0
  %3027 = vmatprep.subr.mxu0 0.0
  %3028 = vmatpush1.msra.mxu0 0.0
  %3029 = vmatprep.subr.mxu0 0.0
  %3030 = vmatpush1.msra.mxu0 0.0
  %3031 = vmatprep.subr.mxu0 0.0
  %3032 = vmatpush1.msra.mxu0 0.0
  %3033 = vmatprep.subr.mxu0 0.0
  %3034 = vmatpush1.msra.mxu0 0.0
  %3035 = vmatprep.mubr.f32.mxu0 0.0
  %3036 = vmatmul.mubr.f32.gmra.mrb[0].mxu0 %v2898
  %v3037 = vpop.f32.mrb[0].mxu0
  %v3038 = vadd.f32 0.0, %v3037
  %v3039 = vpop.f32.mrb[0].mxu0
  %v3040 = vadd.f32 0.0, %v3039
  %3041 = vdwg.mxu0
  %3042 = vmatprep.subr.mxu0 %v2885
  %3043 = vmatpush1.msra.mxu0 %v2890
  %3044 = vmatprep.subr.mxu0 0.0
  %3045 = vmatpush1.msra.mxu0 0.0
  %3046 = vmatprep.subr.mxu0 0.0
  %3047 = vmatpush1.msra.mxu0 0.0
  %3048 = vmatprep.subr.mxu0 0.0
  %3049 = vmatpush1.msra.mxu0 0.0
  %3050 = vmatprep.subr.mxu0 0.0
  %3051 = vmatpush1.msra.mxu0 0.0
  %3052 = vmatprep.subr.mxu0 0.0
  %3053 = vmatpush1.msra.mxu0 0.0
  %3054 = vmatprep.subr.mxu0 0.0
  %3055 = vmatpush1.msra.mxu0 0.0
  %3056 = vmatprep.subr.mxu0 0.0
  %3057 = vmatpush1.msra.mxu0 0.0
  %3058 = vmatprep.subr.mxu0 0.0
  %3059 = vmatpush1.msra.mxu0 0.0
  %3060 = vmatprep.subr.mxu0 0.0
  %3061 = vmatpush1.msra.mxu0 0.0
  %3062 = vmatprep.subr.mxu0 0.0
  %3063 = vmatpush1.msra.mxu0 0.0
  %3064 = vmatprep.subr.mxu0 0.0
  %3065 = vmatpush1.msra.mxu0 0.0
  %3066 = vmatprep.subr.mxu0 0.0
  %3067 = vmatpush1.msra.mxu0 0.0
  %3068 = vmatprep.subr.mxu0 0.0
  %3069 = vmatpush1.msra.mxu0 0.0
  %3070 = vmatprep.subr.mxu0 0.0
  %3071 = vmatpush1.msra.mxu0 0.0
  %3072 = vmatprep.subr.mxu0 0.0
  %3073 = vmatpush1.msra.mxu0 0.0
  %3074 = vmatprep.subr.mxu0 0.0
  %3075 = vmatpush1.msra.mxu0 0.0
  %3076 = vmatprep.subr.mxu0 0.0
  %3077 = vmatpush1.msra.mxu0 0.0
  %3078 = vmatprep.subr.mxu0 0.0
  %3079 = vmatpush1.msra.mxu0 0.0
  %3080 = vmatprep.subr.mxu0 0.0
  %3081 = vmatpush1.msra.mxu0 0.0
  %3082 = vmatprep.subr.mxu0 0.0
  %3083 = vmatpush1.msra.mxu0 0.0
  %3084 = vmatprep.subr.mxu0 0.0
  %3085 = vmatpush1.msra.mxu0 0.0
  %3086 = vmatprep.subr.mxu0 0.0
  %3087 = vmatpush1.msra.mxu0 0.0
  %3088 = vmatprep.subr.mxu0 0.0
  %3089 = vmatpush1.msra.mxu0 0.0
  %3090 = vmatprep.subr.mxu0 0.0
  %3091 = vmatpush1.msra.mxu0 0.0
  %3092 = vmatprep.subr.mxu0 0.0
  %3093 = vmatpush1.msra.mxu0 0.0
  %3094 = vmatprep.subr.mxu0 0.0
  %3095 = vmatpush1.msra.mxu0 0.0
  %3096 = vmatprep.subr.mxu0 0.0
  %3097 = vmatpush1.msra.mxu0 0.0
  %3098 = vmatprep.subr.mxu0 0.0
  %3099 = vmatpush1.msra.mxu0 0.0
  %3100 = vmatprep.subr.mxu0 0.0
  %3101 = vmatpush1.msra.mxu0 0.0
  %3102 = vmatprep.subr.mxu0 0.0
  %3103 = vmatpush1.msra.mxu0 0.0
  %3104 = vmatprep.subr.mxu0 0.0
  %3105 = vmatpush1.msra.mxu0 0.0
  %3106 = vmatprep.mubr.f32.mxu0 0.0
  %3107 = vmatmul.mubr.f32.gmra.mrb[0].mxu0 %v2898
  %v3108 = vpop.f32.mrb[0].mxu0
  %v3109 = vadd.f32 0.0, %v3108
  %v3110 = vpop.f32.mrb[0].mxu0
  %v3111 = vadd.f32 0.0, %v3110
  %3112 = vdwg.mxu0
  %v3113 = vadd.f32 %v2726, %v2967
  %v3114 = vadd.f32 %v2728, %v2969
  %v3115 = vadd.f32 %v2797, %v3038
  %v3116 = vadd.f32 %v2799, %v3040
  %v3117 = vadd.f32 %v2868, %v3109
  %v3118 = vadd.f32 %v2870, %v3111
  %s3119 = scalar_lea.vmem %s1, 96
  %v3120 = vld [vmem:[%s3119] sm:$0xff]
  %3121 = vrot.lane.b32.xlu0 %v2378, 97
  %v3122 = vpop.permute.xlu0 %3121
  %3123 = vrot.lane.b32.xlu0 %v2379, 97
  %v3124 = vpop.permute.xlu0 %3123
  %3125 = vrot.lane.b32.xlu0 %v2380, 97
  %v3126 = vpop.permute.xlu0 %3125
  %3127 = vrot.lane.b32.xlu0 %v2381, 97
  %v3128 = vpop.permute.xlu0 %3127
  %3129 = vrot.lane.b32.xlu0 %v2382, 97
  %v3130 = vpop.permute.xlu0 %3129
  %3131 = vrot.lane.b32.xlu0 %v2383, 97
  %v3132 = vpop.permute.xlu0 %3131
  %v3133 = vsel %vm811, %v3122, %v3124
  %v3134 = vsel %vm811, %v3124, %v3126
  %v3135 = vsel %vm811, %v3126, %v3128
  %v3136 = vsel %vm811, %v3128, %v3130
  %v3137 = vsel %vm811, %v3130, %v3132
  %v3145 = vsel %vm52, %v3120, 0
  %3147 = vmatprep.subr.mxu0 %v3134
  %3148 = vmatpush1.msra.mxu0 %v3133
  %3149 = vmatprep.subr.mxu0 0.0
  %3150 = vmatpush1.msra.mxu0 0.0
  %3151 = vmatprep.subr.mxu0 0.0
  %3152 = vmatpush1.msra.mxu0 0.0
  %3153 = vmatprep.subr.mxu0 0.0
  %3154 = vmatpush1.msra.mxu0 0.0
  %3155 = vmatprep.subr.mxu0 0.0
  %3156 = vmatpush1.msra.mxu0 0.0
  %3157 = vmatprep.subr.mxu0 0.0
  %3158 = vmatpush1.msra.mxu0 0.0
  %3159 = vmatprep.subr.mxu0 0.0
  %3160 = vmatpush1.msra.mxu0 0.0
  %3161 = vmatprep.subr.mxu0 0.0
  %3162 = vmatpush1.msra.mxu0 0.0
  %3163 = vmatprep.subr.mxu0 0.0
  %3164 = vmatpush1.msra.mxu0 0.0
  %3165 = vmatprep.subr.mxu0 0.0
  %3166 = vmatpush1.msra.mxu0 0.0
  %3167 = vmatprep.subr.mxu0 0.0
  %3168 = vmatpush1.msra.mxu0 0.0
  %3169 = vmatprep.subr.mxu0 0.0
  %3170 = vmatpush1.msra.mxu0 0.0
  %3171 = vmatprep.subr.mxu0 0.0
  %3172 = vmatpush1.msra.mxu0 0.0
  %3173 = vmatprep.subr.mxu0 0.0
  %3174 = vmatpush1.msra.mxu0 0.0
  %3175 = vmatprep.subr.mxu0 0.0
  %3176 = vmatpush1.msra.mxu0 0.0
  %3177 = vmatprep.subr.mxu0 0.0
  %3178 = vmatpush1.msra.mxu0 0.0
  %3179 = vmatprep.subr.mxu0 0.0
  %3180 = vmatpush1.msra.mxu0 0.0
  %3181 = vmatprep.subr.mxu0 0.0
  %3182 = vmatpush1.msra.mxu0 0.0
  %3183 = vmatprep.subr.mxu0 0.0
  %3184 = vmatpush1.msra.mxu0 0.0
  %3185 = vmatprep.subr.mxu0 0.0
  %3186 = vmatpush1.msra.mxu0 0.0
  %3187 = vmatprep.subr.mxu0 0.0
  %3188 = vmatpush1.msra.mxu0 0.0
  %3189 = vmatprep.subr.mxu0 0.0
  %3190 = vmatpush1.msra.mxu0 0.0
  %3191 = vmatprep.subr.mxu0 0.0
  %3192 = vmatpush1.msra.mxu0 0.0
  %3193 = vmatprep.subr.mxu0 0.0
  %3194 = vmatpush1.msra.mxu0 0.0
  %3195 = vmatprep.subr.mxu0 0.0
  %3196 = vmatpush1.msra.mxu0 0.0
  %3197 = vmatprep.subr.mxu0 0.0
  %3198 = vmatpush1.msra.mxu0 0.0
  %3199 = vmatprep.subr.mxu0 0.0
  %3200 = vmatpush1.msra.mxu0 0.0
  %3201 = vmatprep.subr.mxu0 0.0
  %3202 = vmatpush1.msra.mxu0 0.0
  %3203 = vmatprep.subr.mxu0 0.0
  %3204 = vmatpush1.msra.mxu0 0.0
  %3205 = vmatprep.subr.mxu0 0.0
  %3206 = vmatpush1.msra.mxu0 0.0
  %3207 = vmatprep.subr.mxu0 0.0
  %3208 = vmatpush1.msra.mxu0 0.0
  %3209 = vmatprep.subr.mxu0 0.0
  %3210 = vmatpush1.msra.mxu0 0.0
  %3211 = vmatprep.mubr.f32.mxu0 0.0
  %3212 = vmatmul.mubr.f32.gmra.mrb[0].mxu0 %v3145
  %v3213 = vpop.f32.mrb[0].mxu0
  %v3214 = vadd.f32 0.0, %v3213
  %v3215 = vpop.f32.mrb[0].mxu0
  %v3216 = vadd.f32 0.0, %v3215
  %3217 = vdwg.mxu0
  %3218 = vmatprep.subr.mxu0 %v3136
  %3219 = vmatpush1.msra.mxu0 %v3135
  %3220 = vmatprep.subr.mxu0 0.0
  %3221 = vmatpush1.msra.mxu0 0.0
  %3222 = vmatprep.subr.mxu0 0.0
  %3223 = vmatpush1.msra.mxu0 0.0
  %3224 = vmatprep.subr.mxu0 0.0
  %3225 = vmatpush1.msra.mxu0 0.0
  %3226 = vmatprep.subr.mxu0 0.0
  %3227 = vmatpush1.msra.mxu0 0.0
  %3228 = vmatprep.subr.mxu0 0.0
  %3229 = vmatpush1.msra.mxu0 0.0
  %3230 = vmatprep.subr.mxu0 0.0
  %3231 = vmatpush1.msra.mxu0 0.0
  %3232 = vmatprep.subr.mxu0 0.0
  %3233 = vmatpush1.msra.mxu0 0.0
  %3234 = vmatprep.subr.mxu0 0.0
  %3235 = vmatpush1.msra.mxu0 0.0
  %3236 = vmatprep.subr.mxu0 0.0
  %3237 = vmatpush1.msra.mxu0 0.0
  %3238 = vmatprep.subr.mxu0 0.0
  %3239 = vmatpush1.msra.mxu0 0.0
  %3240 = vmatprep.subr.mxu0 0.0
  %3241 = vmatpush1.msra.mxu0 0.0
  %3242 = vmatprep.subr.mxu0 0.0
  %3243 = vmatpush1.msra.mxu0 0.0
  %3244 = vmatprep.subr.mxu0 0.0
  %3245 = vmatpush1.msra.mxu0 0.0
  %3246 = vmatprep.subr.mxu0 0.0
  %3247 = vmatpush1.msra.mxu0 0.0
  %3248 = vmatprep.subr.mxu0 0.0
  %3249 = vmatpush1.msra.mxu0 0.0
  %3250 = vmatprep.subr.mxu0 0.0
  %3251 = vmatpush1.msra.mxu0 0.0
  %3252 = vmatprep.subr.mxu0 0.0
  %3253 = vmatpush1.msra.mxu0 0.0
  %3254 = vmatprep.subr.mxu0 0.0
  %3255 = vmatpush1.msra.mxu0 0.0
  %3256 = vmatprep.subr.mxu0 0.0
  %3257 = vmatpush1.msra.mxu0 0.0
  %3258 = vmatprep.subr.mxu0 0.0
  %3259 = vmatpush1.msra.mxu0 0.0
  %3260 = vmatprep.subr.mxu0 0.0
  %3261 = vmatpush1.msra.mxu0 0.0
  %3262 = vmatprep.subr.mxu0 0.0
  %3263 = vmatpush1.msra.mxu0 0.0
  %3264 = vmatprep.subr.mxu0 0.0
  %3265 = vmatpush1.msra.mxu0 0.0
  %3266 = vmatprep.subr.mxu0 0.0
  %3267 = vmatpush1.msra.mxu0 0.0
  %3268 = vmatprep.subr.mxu0 0.0
  %3269 = vmatpush1.msra.mxu0 0.0
  %3270 = vmatprep.subr.mxu0 0.0
  %3271 = vmatpush1.msra.mxu0 0.0
  %3272 = vmatprep.subr.mxu0 0.0
  %3273 = vmatpush1.msra.mxu0 0.0
  %3274 = vmatprep.subr.mxu0 0.0
  %3275 = vmatpush1.msra.mxu0 0.0
  %3276 = vmatprep.subr.mxu0 0.0
  %3277 = vmatpush1.msra.mxu0 0.0
  %3278 = vmatprep.subr.mxu0 0.0
  %3279 = vmatpush1.msra.mxu0 0.0
  %3280 = vmatprep.subr.mxu0 0.0
  %3281 = vmatpush1.msra.mxu0 0.0
  %3282 = vmatprep.mubr.f32.mxu0 0.0
  %3283 = vmatmul.mubr.f32.gmra.mrb[0].mxu0 %v3145
  %v3284 = vpop.f32.mrb[0].mxu0
  %v3285 = vadd.f32 0.0, %v3284
  %v3286 = vpop.f32.mrb[0].mxu0
  %v3287 = vadd.f32 0.0, %v3286
  %3288 = vdwg.mxu0
  %3289 = vmatprep.subr.mxu0 %v3132
  %3290 = vmatpush1.msra.mxu0 %v3137
  %3291 = vmatprep.subr.mxu0 0.0
  %3292 = vmatpush1.msra.mxu0 0.0
  %3293 = vmatprep.subr.mxu0 0.0
  %3294 = vmatpush1.msra.mxu0 0.0
  %3295 = vmatprep.subr.mxu0 0.0
  %3296 = vmatpush1.msra.mxu0 0.0
  %3297 = vmatprep.subr.mxu0 0.0
  %3298 = vmatpush1.msra.mxu0 0.0
  %3299 = vmatprep.subr.mxu0 0.0
  %3300 = vmatpush1.msra.mxu0 0.0
  %3301 = vmatprep.subr.mxu0 0.0
  %3302 = vmatpush1.msra.mxu0 0.0
  %3303 = vmatprep.subr.mxu0 0.0
  %3304 = vmatpush1.msra.mxu0 0.0
  %3305 = vmatprep.subr.mxu0 0.0
  %3306 = vmatpush1.msra.mxu0 0.0
  %3307 = vmatprep.subr.mxu0 0.0
  %3308 = vmatpush1.msra.mxu0 0.0
  %3309 = vmatprep.subr.mxu0 0.0
  %3310 = vmatpush1.msra.mxu0 0.0
  %3311 = vmatprep.subr.mxu0 0.0
  %3312 = vmatpush1.msra.mxu0 0.0
  %3313 = vmatprep.subr.mxu0 0.0
  %3314 = vmatpush1.msra.mxu0 0.0
  %3315 = vmatprep.subr.mxu0 0.0
  %3316 = vmatpush1.msra.mxu0 0.0
  %3317 = vmatprep.subr.mxu0 0.0
  %3318 = vmatpush1.msra.mxu0 0.0
  %3319 = vmatprep.subr.mxu0 0.0
  %3320 = vmatpush1.msra.mxu0 0.0
  %3321 = vmatprep.subr.mxu0 0.0
  %3322 = vmatpush1.msra.mxu0 0.0
  %3323 = vmatprep.subr.mxu0 0.0
  %3324 = vmatpush1.msra.mxu0 0.0
  %3325 = vmatprep.subr.mxu0 0.0
  %3326 = vmatpush1.msra.mxu0 0.0
  %3327 = vmatprep.subr.mxu0 0.0
  %3328 = vmatpush1.msra.mxu0 0.0
  %3329 = vmatprep.subr.mxu0 0.0
  %3330 = vmatpush1.msra.mxu0 0.0
  %3331 = vmatprep.subr.mxu0 0.0
  %3332 = vmatpush1.msra.mxu0 0.0
  %3333 = vmatprep.subr.mxu0 0.0
  %3334 = vmatpush1.msra.mxu0 0.0
  %3335 = vmatprep.subr.mxu0 0.0
  %3336 = vmatpush1.msra.mxu0 0.0
  %3337 = vmatprep.subr.mxu0 0.0
  %3338 = vmatpush1.msra.mxu0 0.0
  %3339 = vmatprep.subr.mxu0 0.0
  %3340 = vmatpush1.msra.mxu0 0.0
  %3341 = vmatprep.subr.mxu0 0.0
  %3342 = vmatpush1.msra.mxu0 0.0
  %3343 = vmatprep.subr.mxu0 0.0
  %3344 = vmatpush1.msra.mxu0 0.0
  %3345 = vmatprep.subr.mxu0 0.0
  %3346 = vmatpush1.msra.mxu0 0.0
  %3347 = vmatprep.subr.mxu0 0.0
  %3348 = vmatpush1.msra.mxu0 0.0
  %3349 = vmatprep.subr.mxu0 0.0
  %3350 = vmatpush1.msra.mxu0 0.0
  %3351 = vmatprep.subr.mxu0 0.0
  %3352 = vmatpush1.msra.mxu0 0.0
  %3353 = vmatprep.mubr.f32.mxu0 0.0
  %3354 = vmatmul.mubr.f32.gmra.mrb[0].mxu0 %v3145
  %v3355 = vpop.f32.mrb[0].mxu0
  %v3356 = vadd.f32 0.0, %v3355
  %v3357 = vpop.f32.mrb[0].mxu0
  %v3358 = vadd.f32 0.0, %v3357
  %3359 = vdwg.mxu0
  %v3360 = vadd.f32 %v3113, %v3214
  %v3361 = vadd.f32 %v3114, %v3216
  %v3362 = vadd.f32 %v3115, %v3285
  %v3363 = vadd.f32 %v3116, %v3287
  %v3364 = vadd.f32 %v3117, %v3356
  %v3365 = vadd.f32 %v3118, %v3358
  %s3366 = scalar_lea.vmem %s1, 104
  %v3367 = vld [vmem:[%s3366] sm:$0xff]
  %3368 = vrot.lane.b32.xlu0 %v2378, 96
  %v3369 = vpop.permute.xlu0 %3368
  %3370 = vrot.lane.b32.xlu0 %v2379, 96
  %v3371 = vpop.permute.xlu0 %3370
  %3372 = vrot.lane.b32.xlu0 %v2380, 96
  %v3373 = vpop.permute.xlu0 %3372
  %3374 = vrot.lane.b32.xlu0 %v2381, 96
  %v3375 = vpop.permute.xlu0 %3374
  %3376 = vrot.lane.b32.xlu0 %v2382, 96
  %v3377 = vpop.permute.xlu0 %3376
  %3378 = vrot.lane.b32.xlu0 %v2383, 96
  %v3379 = vpop.permute.xlu0 %3378
  %v3380 = vsel %vm1059, %v3369, %v3371
  %v3381 = vsel %vm1059, %v3371, %v3373
  %v3382 = vsel %vm1059, %v3373, %v3375
  %v3383 = vsel %vm1059, %v3375, %v3377
  %v3384 = vsel %vm1059, %v3377, %v3379
  %v3392 = vsel %vm52, %v3367, 0
  %3394 = vmatprep.subr.mxu0 %v3381
  %3395 = vmatpush1.msra.mxu0 %v3380
  %3396 = vmatprep.subr.mxu0 0.0
  %3397 = vmatpush1.msra.mxu0 0.0
  %3398 = vmatprep.subr.mxu0 0.0
  %3399 = vmatpush1.msra.mxu0 0.0
  %3400 = vmatprep.subr.mxu0 0.0
  %3401 = vmatpush1.msra.mxu0 0.0
  %3402 = vmatprep.subr.mxu0 0.0
  %3403 = vmatpush1.msra.mxu0 0.0
  %3404 = vmatprep.subr.mxu0 0.0
  %3405 = vmatpush1.msra.mxu0 0.0
  %3406 = vmatprep.subr.mxu0 0.0
  %3407 = vmatpush1.msra.mxu0 0.0
  %3408 = vmatprep.subr.mxu0 0.0
  %3409 = vmatpush1.msra.mxu0 0.0
  %3410 = vmatprep.subr.mxu0 0.0
  %3411 = vmatpush1.msra.mxu0 0.0
  %3412 = vmatprep.subr.mxu0 0.0
  %3413 = vmatpush1.msra.mxu0 0.0
  %3414 = vmatprep.subr.mxu0 0.0
  %3415 = vmatpush1.msra.mxu0 0.0
  %3416 = vmatprep.subr.mxu0 0.0
  %3417 = vmatpush1.msra.mxu0 0.0
  %3418 = vmatprep.subr.mxu0 0.0
  %3419 = vmatpush1.msra.mxu0 0.0
  %3420 = vmatprep.subr.mxu0 0.0
  %3421 = vmatpush1.msra.mxu0 0.0
  %3422 = vmatprep.subr.mxu0 0.0
  %3423 = vmatpush1.msra.mxu0 0.0
  %3424 = vmatprep.subr.mxu0 0.0
  %3425 = vmatpush1.msra.mxu0 0.0
  %3426 = vmatprep.subr.mxu0 0.0
  %3427 = vmatpush1.msra.mxu0 0.0
  %3428 = vmatprep.subr.mxu0 0.0
  %3429 = vmatpush1.msra.mxu0 0.0
  %3430 = vmatprep.subr.mxu0 0.0
  %3431 = vmatpush1.msra.mxu0 0.0
  %3432 = vmatprep.subr.mxu0 0.0
  %3433 = vmatpush1.msra.mxu0 0.0
  %3434 = vmatprep.subr.mxu0 0.0
  %3435 = vmatpush1.msra.mxu0 0.0
  %3436 = vmatprep.subr.mxu0 0.0
  %3437 = vmatpush1.msra.mxu0 0.0
  %3438 = vmatprep.subr.mxu0 0.0
  %3439 = vmatpush1.msra.mxu0 0.0
  %3440 = vmatprep.subr.mxu0 0.0
  %3441 = vmatpush1.msra.mxu0 0.0
  %3442 = vmatprep.subr.mxu0 0.0
  %3443 = vmatpush1.msra.mxu0 0.0
  %3444 = vmatprep.subr.mxu0 0.0
  %3445 = vmatpush1.msra.mxu0 0.0
  %3446 = vmatprep.subr.mxu0 0.0
  %3447 = vmatpush1.msra.mxu0 0.0
  %3448 = vmatprep.subr.mxu0 0.0
  %3449 = vmatpush1.msra.mxu0 0.0
  %3450 = vmatprep.subr.mxu0 0.0
  %3451 = vmatpush1.msra.mxu0 0.0
  %3452 = vmatprep.subr.mxu0 0.0
  %3453 = vmatpush1.msra.mxu0 0.0
  %3454 = vmatprep.subr.mxu0 0.0
  %3455 = vmatpush1.msra.mxu0 0.0
  %3456 = vmatprep.subr.mxu0 0.0
  %3457 = vmatpush1.msra.mxu0 0.0
  %3458 = vmatprep.mubr.f32.mxu0 0.0
  %3459 = vmatmul.mubr.f32.gmra.mrb[0].mxu0 %v3392
  %v3460 = vpop.f32.mrb[0].mxu0
  %v3461 = vadd.f32 0.0, %v3460
  %v3462 = vpop.f32.mrb[0].mxu0
  %v3463 = vadd.f32 0.0, %v3462
  %3464 = vdwg.mxu0
  %3465 = vmatprep.subr.mxu0 %v3383
  %3466 = vmatpush1.msra.mxu0 %v3382
  %3467 = vmatprep.subr.mxu0 0.0
  %3468 = vmatpush1.msra.mxu0 0.0
  %3469 = vmatprep.subr.mxu0 0.0
  %3470 = vmatpush1.msra.mxu0 0.0
  %3471 = vmatprep.subr.mxu0 0.0
  %3472 = vmatpush1.msra.mxu0 0.0
  %3473 = vmatprep.subr.mxu0 0.0
  %3474 = vmatpush1.msra.mxu0 0.0
  %3475 = vmatprep.subr.mxu0 0.0
  %3476 = vmatpush1.msra.mxu0 0.0
  %3477 = vmatprep.subr.mxu0 0.0
  %3478 = vmatpush1.msra.mxu0 0.0
  %3479 = vmatprep.subr.mxu0 0.0
  %3480 = vmatpush1.msra.mxu0 0.0
  %3481 = vmatprep.subr.mxu0 0.0
  %3482 = vmatpush1.msra.mxu0 0.0
  %3483 = vmatprep.subr.mxu0 0.0
  %3484 = vmatpush1.msra.mxu0 0.0
  %3485 = vmatprep.subr.mxu0 0.0
  %3486 = vmatpush1.msra.mxu0 0.0
  %3487 = vmatprep.subr.mxu0 0.0
  %3488 = vmatpush1.msra.mxu0 0.0
  %3489 = vmatprep.subr.mxu0 0.0
  %3490 = vmatpush1.msra.mxu0 0.0
  %3491 = vmatprep.subr.mxu0 0.0
  %3492 = vmatpush1.msra.mxu0 0.0
  %3493 = vmatprep.subr.mxu0 0.0
  %3494 = vmatpush1.msra.mxu0 0.0
  %3495 = vmatprep.subr.mxu0 0.0
  %3496 = vmatpush1.msra.mxu0 0.0
  %3497 = vmatprep.subr.mxu0 0.0
  %3498 = vmatpush1.msra.mxu0 0.0
  %3499 = vmatprep.subr.mxu0 0.0
  %3500 = vmatpush1.msra.mxu0 0.0
  %3501 = vmatprep.subr.mxu0 0.0
  %3502 = vmatpush1.msra.mxu0 0.0
  %3503 = vmatprep.subr.mxu0 0.0
  %3504 = vmatpush1.msra.mxu0 0.0
  %3505 = vmatprep.subr.mxu0 0.0
  %3506 = vmatpush1.msra.mxu0 0.0
  %3507 = vmatprep.subr.mxu0 0.0
  %3508 = vmatpush1.msra.mxu0 0.0
  %3509 = vmatprep.subr.mxu0 0.0
  %3510 = vmatpush1.msra.mxu0 0.0
  %3511 = vmatprep.subr.mxu0 0.0
  %3512 = vmatpush1.msra.mxu0 0.0
  %3513 = vmatprep.subr.mxu0 0.0
  %3514 = vmatpush1.msra.mxu0 0.0
  %3515 = vmatprep.subr.mxu0 0.0
  %3516 = vmatpush1.msra.mxu0 0.0
  %3517 = vmatprep.subr.mxu0 0.0
  %3518 = vmatpush1.msra.mxu0 0.0
  %3519 = vmatprep.subr.mxu0 0.0
  %3520 = vmatpush1.msra.mxu0 0.0
  %3521 = vmatprep.subr.mxu0 0.0
  %3522 = vmatpush1.msra.mxu0 0.0
  %3523 = vmatprep.subr.mxu0 0.0
  %3524 = vmatpush1.msra.mxu0 0.0
  %3525 = vmatprep.subr.mxu0 0.0
  %3526 = vmatpush1.msra.mxu0 0.0
  %3527 = vmatprep.subr.mxu0 0.0
  %3528 = vmatpush1.msra.mxu0 0.0
  %3529 = vmatprep.mubr.f32.mxu0 0.0
  %3530 = vmatmul.mubr.f32.gmra.mrb[0].mxu0 %v3392
  %v3531 = vpop.f32.mrb[0].mxu0
  %v3532 = vadd.f32 0.0, %v3531
  %v3533 = vpop.f32.mrb[0].mxu0
  %v3534 = vadd.f32 0.0, %v3533
  %3535 = vdwg.mxu0
  %3536 = vmatprep.subr.mxu0 %v3379
  %3537 = vmatpush1.msra.mxu0 %v3384
  %3538 = vmatprep.subr.mxu0 0.0
  %3539 = vmatpush1.msra.mxu0 0.0
  %3540 = vmatprep.subr.mxu0 0.0
  %3541 = vmatpush1.msra.mxu0 0.0
  %3542 = vmatprep.subr.mxu0 0.0
  %3543 = vmatpush1.msra.mxu0 0.0
  %3544 = vmatprep.subr.mxu0 0.0
  %3545 = vmatpush1.msra.mxu0 0.0
  %3546 = vmatprep.subr.mxu0 0.0
  %3547 = vmatpush1.msra.mxu0 0.0
  %3548 = vmatprep.subr.mxu0 0.0
  %3549 = vmatpush1.msra.mxu0 0.0
  %3550 = vmatprep.subr.mxu0 0.0
  %3551 = vmatpush1.msra.mxu0 0.0
  %3552 = vmatprep.subr.mxu0 0.0
  %3553 = vmatpush1.msra.mxu0 0.0
  %3554 = vmatprep.subr.mxu0 0.0
  %3555 = vmatpush1.msra.mxu0 0.0
  %3556 = vmatprep.subr.mxu0 0.0
  %3557 = vmatpush1.msra.mxu0 0.0
  %3558 = vmatprep.subr.mxu0 0.0
  %3559 = vmatpush1.msra.mxu0 0.0
  %3560 = vmatprep.subr.mxu0 0.0
  %3561 = vmatpush1.msra.mxu0 0.0
  %3562 = vmatprep.subr.mxu0 0.0
  %3563 = vmatpush1.msra.mxu0 0.0
  %3564 = vmatprep.subr.mxu0 0.0
  %3565 = vmatpush1.msra.mxu0 0.0
  %3566 = vmatprep.subr.mxu0 0.0
  %3567 = vmatpush1.msra.mxu0 0.0
  %3568 = vmatprep.subr.mxu0 0.0
  %3569 = vmatpush1.msra.mxu0 0.0
  %3570 = vmatprep.subr.mxu0 0.0
  %3571 = vmatpush1.msra.mxu0 0.0
  %3572 = vmatprep.subr.mxu0 0.0
  %3573 = vmatpush1.msra.mxu0 0.0
  %3574 = vmatprep.subr.mxu0 0.0
  %3575 = vmatpush1.msra.mxu0 0.0
  %3576 = vmatprep.subr.mxu0 0.0
  %3577 = vmatpush1.msra.mxu0 0.0
  %3578 = vmatprep.subr.mxu0 0.0
  %3579 = vmatpush1.msra.mxu0 0.0
  %3580 = vmatprep.subr.mxu0 0.0
  %3581 = vmatpush1.msra.mxu0 0.0
  %3582 = vmatprep.subr.mxu0 0.0
  %3583 = vmatpush1.msra.mxu0 0.0
  %3584 = vmatprep.subr.mxu0 0.0
  %3585 = vmatpush1.msra.mxu0 0.0
  %3586 = vmatprep.subr.mxu0 0.0
  %3587 = vmatpush1.msra.mxu0 0.0
  %3588 = vmatprep.subr.mxu0 0.0
  %3589 = vmatpush1.msra.mxu0 0.0
  %3590 = vmatprep.subr.mxu0 0.0
  %3591 = vmatpush1.msra.mxu0 0.0
  %3592 = vmatprep.subr.mxu0 0.0
  %3593 = vmatpush1.msra.mxu0 0.0
  %3594 = vmatprep.subr.mxu0 0.0
  %3595 = vmatpush1.msra.mxu0 0.0
  %3596 = vmatprep.subr.mxu0 0.0
  %3597 = vmatpush1.msra.mxu0 0.0
  %3598 = vmatprep.subr.mxu0 0.0
  %3599 = vmatpush1.msra.mxu0 0.0
  %3600 = vmatprep.mubr.f32.mxu0 0.0
  %3601 = vmatmul.mubr.f32.gmra.mrb[0].mxu0 %v3392
  %v3602 = vpop.f32.mrb[0].mxu0
  %v3603 = vadd.f32 0.0, %v3602
  %v3604 = vpop.f32.mrb[0].mxu0
  %v3605 = vadd.f32 0.0, %v3604
  %3606 = vdwg.mxu0
  %v3607 = vadd.f32 %v3360, %v3461
  %v3608 = vadd.f32 %v3361, %v3463
  %v3609 = vadd.f32 %v3362, %v3532
  %v3610 = vadd.f32 %v3363, %v3534
  %v3611 = vadd.f32 %v3364, %v3603
  %v3612 = vadd.f32 %v3365, %v3605
  %s3613 = scalar_lea.vmem %s1, 112
  %v3614 = vld [vmem:[%s3613] sm:$0xff]
  %3615 = vrot.lane.b32.xlu0 %v2378, 95
  %v3616 = vpop.permute.xlu0 %3615
  %3617 = vrot.lane.b32.xlu0 %v2379, 95
  %v3618 = vpop.permute.xlu0 %3617
  %3619 = vrot.lane.b32.xlu0 %v2380, 95
  %v3620 = vpop.permute.xlu0 %3619
  %3621 = vrot.lane.b32.xlu0 %v2381, 95
  %v3622 = vpop.permute.xlu0 %3621
  %3623 = vrot.lane.b32.xlu0 %v2382, 95
  %v3624 = vpop.permute.xlu0 %3623
  %3625 = vrot.lane.b32.xlu0 %v2383, 95
  %v3626 = vpop.permute.xlu0 %3625
  %v3627 = vsel %vm1307, %v3616, %v3618
  %v3628 = vsel %vm1307, %v3618, %v3620
  %v3629 = vsel %vm1307, %v3620, %v3622
  %v3630 = vsel %vm1307, %v3622, %v3624
  %v3631 = vsel %vm1307, %v3624, %v3626
  %v3639 = vsel %vm52, %v3614, 0
  %3641 = vmatprep.subr.mxu0 %v3628
  %3642 = vmatpush1.msra.mxu0 %v3627
  %3643 = vmatprep.subr.mxu0 0.0
  %3644 = vmatpush1.msra.mxu0 0.0
  %3645 = vmatprep.subr.mxu0 0.0
  %3646 = vmatpush1.msra.mxu0 0.0
  %3647 = vmatprep.subr.mxu0 0.0
  %3648 = vmatpush1.msra.mxu0 0.0
  %3649 = vmatprep.subr.mxu0 0.0
  %3650 = vmatpush1.msra.mxu0 0.0
  %3651 = vmatprep.subr.mxu0 0.0
  %3652 = vmatpush1.msra.mxu0 0.0
  %3653 = vmatprep.subr.mxu0 0.0
  %3654 = vmatpush1.msra.mxu0 0.0
  %3655 = vmatprep.subr.mxu0 0.0
  %3656 = vmatpush1.msra.mxu0 0.0
  %3657 = vmatprep.subr.mxu0 0.0
  %3658 = vmatpush1.msra.mxu0 0.0
  %3659 = vmatprep.subr.mxu0 0.0
  %3660 = vmatpush1.msra.mxu0 0.0
  %3661 = vmatprep.subr.mxu0 0.0
  %3662 = vmatpush1.msra.mxu0 0.0
  %3663 = vmatprep.subr.mxu0 0.0
  %3664 = vmatpush1.msra.mxu0 0.0
  %3665 = vmatprep.subr.mxu0 0.0
  %3666 = vmatpush1.msra.mxu0 0.0
  %3667 = vmatprep.subr.mxu0 0.0
  %3668 = vmatpush1.msra.mxu0 0.0
  %3669 = vmatprep.subr.mxu0 0.0
  %3670 = vmatpush1.msra.mxu0 0.0
  %3671 = vmatprep.subr.mxu0 0.0
  %3672 = vmatpush1.msra.mxu0 0.0
  %3673 = vmatprep.subr.mxu0 0.0
  %3674 = vmatpush1.msra.mxu0 0.0
  %3675 = vmatprep.subr.mxu0 0.0
  %3676 = vmatpush1.msra.mxu0 0.0
  %3677 = vmatprep.subr.mxu0 0.0
  %3678 = vmatpush1.msra.mxu0 0.0
  %3679 = vmatprep.subr.mxu0 0.0
  %3680 = vmatpush1.msra.mxu0 0.0
  %3681 = vmatprep.subr.mxu0 0.0
  %3682 = vmatpush1.msra.mxu0 0.0
  %3683 = vmatprep.subr.mxu0 0.0
  %3684 = vmatpush1.msra.mxu0 0.0
  %3685 = vmatprep.subr.mxu0 0.0
  %3686 = vmatpush1.msra.mxu0 0.0
  %3687 = vmatprep.subr.mxu0 0.0
  %3688 = vmatpush1.msra.mxu0 0.0
  %3689 = vmatprep.subr.mxu0 0.0
  %3690 = vmatpush1.msra.mxu0 0.0
  %3691 = vmatprep.subr.mxu0 0.0
  %3692 = vmatpush1.msra.mxu0 0.0
  %3693 = vmatprep.subr.mxu0 0.0
  %3694 = vmatpush1.msra.mxu0 0.0
  %3695 = vmatprep.subr.mxu0 0.0
  %3696 = vmatpush1.msra.mxu0 0.0
  %3697 = vmatprep.subr.mxu0 0.0
  %3698 = vmatpush1.msra.mxu0 0.0
  %3699 = vmatprep.subr.mxu0 0.0
  %3700 = vmatpush1.msra.mxu0 0.0
  %3701 = vmatprep.subr.mxu0 0.0
  %3702 = vmatpush1.msra.mxu0 0.0
  %3703 = vmatprep.subr.mxu0 0.0
  %3704 = vmatpush1.msra.mxu0 0.0
  %3705 = vmatprep.mubr.f32.mxu0 0.0
  %3706 = vmatmul.mubr.f32.gmra.mrb[0].mxu0 %v3639
  %v3707 = vpop.f32.mrb[0].mxu0
  %v3708 = vadd.f32 0.0, %v3707
  %v3709 = vpop.f32.mrb[0].mxu0
  %v3710 = vadd.f32 0.0, %v3709
  %3711 = vdwg.mxu0
  %3712 = vmatprep.subr.mxu0 %v3630
  %3713 = vmatpush1.msra.mxu0 %v3629
  %3714 = vmatprep.subr.mxu0 0.0
  %3715 = vmatpush1.msra.mxu0 0.0
  %3716 = vmatprep.subr.mxu0 0.0
  %3717 = vmatpush1.msra.mxu0 0.0
  %3718 = vmatprep.subr.mxu0 0.0
  %3719 = vmatpush1.msra.mxu0 0.0
  %3720 = vmatprep.subr.mxu0 0.0
  %3721 = vmatpush1.msra.mxu0 0.0
  %3722 = vmatprep.subr.mxu0 0.0
  %3723 = vmatpush1.msra.mxu0 0.0
  %3724 = vmatprep.subr.mxu0 0.0
  %3725 = vmatpush1.msra.mxu0 0.0
  %3726 = vmatprep.subr.mxu0 0.0
  %3727 = vmatpush1.msra.mxu0 0.0
  %3728 = vmatprep.subr.mxu0 0.0
  %3729 = vmatpush1.msra.mxu0 0.0
  %3730 = vmatprep.subr.mxu0 0.0
  %3731 = vmatpush1.msra.mxu0 0.0
  %3732 = vmatprep.subr.mxu0 0.0
  %3733 = vmatpush1.msra.mxu0 0.0
  %3734 = vmatprep.subr.mxu0 0.0
  %3735 = vmatpush1.msra.mxu0 0.0
  %3736 = vmatprep.subr.mxu0 0.0
  %3737 = vmatpush1.msra.mxu0 0.0
  %3738 = vmatprep.subr.mxu0 0.0
  %3739 = vmatpush1.msra.mxu0 0.0
  %3740 = vmatprep.subr.mxu0 0.0
  %3741 = vmatpush1.msra.mxu0 0.0
  %3742 = vmatprep.subr.mxu0 0.0
  %3743 = vmatpush1.msra.mxu0 0.0
  %3744 = vmatprep.subr.mxu0 0.0
  %3745 = vmatpush1.msra.mxu0 0.0
  %3746 = vmatprep.subr.mxu0 0.0
  %3747 = vmatpush1.msra.mxu0 0.0
  %3748 = vmatprep.subr.mxu0 0.0
  %3749 = vmatpush1.msra.mxu0 0.0
  %3750 = vmatprep.subr.mxu0 0.0
  %3751 = vmatpush1.msra.mxu0 0.0
  %3752 = vmatprep.subr.mxu0 0.0
  %3753 = vmatpush1.msra.mxu0 0.0
  %3754 = vmatprep.subr.mxu0 0.0
  %3755 = vmatpush1.msra.mxu0 0.0
  %3756 = vmatprep.subr.mxu0 0.0
  %3757 = vmatpush1.msra.mxu0 0.0
  %3758 = vmatprep.subr.mxu0 0.0
  %3759 = vmatpush1.msra.mxu0 0.0
  %3760 = vmatprep.subr.mxu0 0.0
  %3761 = vmatpush1.msra.mxu0 0.0
  %3762 = vmatprep.subr.mxu0 0.0
  %3763 = vmatpush1.msra.mxu0 0.0
  %3764 = vmatprep.subr.mxu0 0.0
  %3765 = vmatpush1.msra.mxu0 0.0
  %3766 = vmatprep.subr.mxu0 0.0
  %3767 = vmatpush1.msra.mxu0 0.0
  %3768 = vmatprep.subr.mxu0 0.0
  %3769 = vmatpush1.msra.mxu0 0.0
  %3770 = vmatprep.subr.mxu0 0.0
  %3771 = vmatpush1.msra.mxu0 0.0
  %3772 = vmatprep.subr.mxu0 0.0
  %3773 = vmatpush1.msra.mxu0 0.0
  %3774 = vmatprep.subr.mxu0 0.0
  %3775 = vmatpush1.msra.mxu0 0.0
  %3776 = vmatprep.mubr.f32.mxu0 0.0
  %3777 = vmatmul.mubr.f32.gmra.mrb[0].mxu0 %v3639
  %v3778 = vpop.f32.mrb[0].mxu0
  %v3779 = vadd.f32 0.0, %v3778
  %v3780 = vpop.f32.mrb[0].mxu0
  %v3781 = vadd.f32 0.0, %v3780
  %3782 = vdwg.mxu0
  %3783 = vmatprep.subr.mxu0 %v3626
  %3784 = vmatpush1.msra.mxu0 %v3631
  %3785 = vmatprep.subr.mxu0 0.0
  %3786 = vmatpush1.msra.mxu0 0.0
  %3787 = vmatprep.subr.mxu0 0.0
  %3788 = vmatpush1.msra.mxu0 0.0
  %3789 = vmatprep.subr.mxu0 0.0
  %3790 = vmatpush1.msra.mxu0 0.0
  %3791 = vmatprep.subr.mxu0 0.0
  %3792 = vmatpush1.msra.mxu0 0.0
  %3793 = vmatprep.subr.mxu0 0.0
  %3794 = vmatpush1.msra.mxu0 0.0
  %3795 = vmatprep.subr.mxu0 0.0
  %3796 = vmatpush1.msra.mxu0 0.0
  %3797 = vmatprep.subr.mxu0 0.0
  %3798 = vmatpush1.msra.mxu0 0.0
  %3799 = vmatprep.subr.mxu0 0.0
  %3800 = vmatpush1.msra.mxu0 0.0
  %3801 = vmatprep.subr.mxu0 0.0
  %3802 = vmatpush1.msra.mxu0 0.0
  %3803 = vmatprep.subr.mxu0 0.0
  %3804 = vmatpush1.msra.mxu0 0.0
  %3805 = vmatprep.subr.mxu0 0.0
  %3806 = vmatpush1.msra.mxu0 0.0
  %3807 = vmatprep.subr.mxu0 0.0
  %3808 = vmatpush1.msra.mxu0 0.0
  %3809 = vmatprep.subr.mxu0 0.0
  %3810 = vmatpush1.msra.mxu0 0.0
  %3811 = vmatprep.subr.mxu0 0.0
  %3812 = vmatpush1.msra.mxu0 0.0
  %3813 = vmatprep.subr.mxu0 0.0
  %3814 = vmatpush1.msra.mxu0 0.0
  %3815 = vmatprep.subr.mxu0 0.0
  %3816 = vmatpush1.msra.mxu0 0.0
  %3817 = vmatprep.subr.mxu0 0.0
  %3818 = vmatpush1.msra.mxu0 0.0
  %3819 = vmatprep.subr.mxu0 0.0
  %3820 = vmatpush1.msra.mxu0 0.0
  %3821 = vmatprep.subr.mxu0 0.0
  %3822 = vmatpush1.msra.mxu0 0.0
  %3823 = vmatprep.subr.mxu0 0.0
  %3824 = vmatpush1.msra.mxu0 0.0
  %3825 = vmatprep.subr.mxu0 0.0
  %3826 = vmatpush1.msra.mxu0 0.0
  %3827 = vmatprep.subr.mxu0 0.0
  %3828 = vmatpush1.msra.mxu0 0.0
  %3829 = vmatprep.subr.mxu0 0.0
  %3830 = vmatpush1.msra.mxu0 0.0
  %3831 = vmatprep.subr.mxu0 0.0
  %3832 = vmatpush1.msra.mxu0 0.0
  %3833 = vmatprep.subr.mxu0 0.0
  %3834 = vmatpush1.msra.mxu0 0.0
  %3835 = vmatprep.subr.mxu0 0.0
  %3836 = vmatpush1.msra.mxu0 0.0
  %3837 = vmatprep.subr.mxu0 0.0
  %3838 = vmatpush1.msra.mxu0 0.0
  %3839 = vmatprep.subr.mxu0 0.0
  %3840 = vmatpush1.msra.mxu0 0.0
  %3841 = vmatprep.subr.mxu0 0.0
  %3842 = vmatpush1.msra.mxu0 0.0
  %3843 = vmatprep.subr.mxu0 0.0
  %3844 = vmatpush1.msra.mxu0 0.0
  %3845 = vmatprep.subr.mxu0 0.0
  %3846 = vmatpush1.msra.mxu0 0.0
  %3847 = vmatprep.mubr.f32.mxu0 0.0
  %3848 = vmatmul.mubr.f32.gmra.mrb[0].mxu0 %v3639
  %v3849 = vpop.f32.mrb[0].mxu0
  %v3850 = vadd.f32 0.0, %v3849
  %v3851 = vpop.f32.mrb[0].mxu0
  %v3852 = vadd.f32 0.0, %v3851
  %3853 = vdwg.mxu0
  %v3854 = vadd.f32 %v3607, %v3708
  %v3855 = vadd.f32 %v3608, %v3710
  %v3856 = vadd.f32 %v3609, %v3779
  %v3857 = vadd.f32 %v3610, %v3781
  %v3858 = vadd.f32 %v3611, %v3850
  %v3859 = vadd.f32 %v3612, %v3852
  %s3860 = scalar_lea.vmem %s1, 120
  %v3861 = vld [vmem:[%s3860] sm:$0xff]
  %3862 = vrot.lane.b32.xlu0 %v2378, 79
  %v3863 = vpop.permute.xlu0 %3862
  %3864 = vrot.lane.b32.xlu0 %v2379, 79
  %v3865 = vpop.permute.xlu0 %3864
  %3866 = vrot.lane.b32.xlu0 %v2380, 79
  %v3867 = vpop.permute.xlu0 %3866
  %3868 = vrot.lane.b32.xlu0 %v2381, 79
  %v3869 = vpop.permute.xlu0 %3868
  %3870 = vrot.lane.b32.xlu0 %v2382, 79
  %v3871 = vpop.permute.xlu0 %3870
  %3872 = vrot.lane.b32.xlu0 %v2383, 79
  %v3873 = vpop.permute.xlu0 %3872
  %v3874 = vsel %vm1555, %v3863, %v3865
  %v3875 = vsel %vm1555, %v3865, %v3867
  %v3876 = vsel %vm1555, %v3867, %v3869
  %v3877 = vsel %vm1555, %v3869, %v3871
  %v3878 = vsel %vm1555, %v3871, %v3873
  %v3886 = vsel %vm52, %v3861, 0
  %3888 = vmatprep.subr.mxu0 %v3875
  %3889 = vmatpush1.msra.mxu0 %v3874
  %3890 = vmatprep.subr.mxu0 0.0
  %3891 = vmatpush1.msra.mxu0 0.0
  %3892 = vmatprep.subr.mxu0 0.0
  %3893 = vmatpush1.msra.mxu0 0.0
  %3894 = vmatprep.subr.mxu0 0.0
  %3895 = vmatpush1.msra.mxu0 0.0
  %3896 = vmatprep.subr.mxu0 0.0
  %3897 = vmatpush1.msra.mxu0 0.0
  %3898 = vmatprep.subr.mxu0 0.0
  %3899 = vmatpush1.msra.mxu0 0.0
  %3900 = vmatprep.subr.mxu0 0.0
  %3901 = vmatpush1.msra.mxu0 0.0
  %3902 = vmatprep.subr.mxu0 0.0
  %3903 = vmatpush1.msra.mxu0 0.0
  %3904 = vmatprep.subr.mxu0 0.0
  %3905 = vmatpush1.msra.mxu0 0.0
  %3906 = vmatprep.subr.mxu0 0.0
  %3907 = vmatpush1.msra.mxu0 0.0
  %3908 = vmatprep.subr.mxu0 0.0
  %3909 = vmatpush1.msra.mxu0 0.0
  %3910 = vmatprep.subr.mxu0 0.0
  %3911 = vmatpush1.msra.mxu0 0.0
  %3912 = vmatprep.subr.mxu0 0.0
  %3913 = vmatpush1.msra.mxu0 0.0
  %3914 = vmatprep.subr.mxu0 0.0
  %3915 = vmatpush1.msra.mxu0 0.0
  %3916 = vmatprep.subr.mxu0 0.0
  %3917 = vmatpush1.msra.mxu0 0.0
  %3918 = vmatprep.subr.mxu0 0.0
  %3919 = vmatpush1.msra.mxu0 0.0
  %3920 = vmatprep.subr.mxu0 0.0
  %3921 = vmatpush1.msra.mxu0 0.0
  %3922 = vmatprep.subr.mxu0 0.0
  %3923 = vmatpush1.msra.mxu0 0.0
  %3924 = vmatprep.subr.mxu0 0.0
  %3925 = vmatpush1.msra.mxu0 0.0
  %3926 = vmatprep.subr.mxu0 0.0
  %3927 = vmatpush1.msra.mxu0 0.0
  %3928 = vmatprep.subr.mxu0 0.0
  %3929 = vmatpush1.msra.mxu0 0.0
  %3930 = vmatprep.subr.mxu0 0.0
  %3931 = vmatpush1.msra.mxu0 0.0
  %3932 = vmatprep.subr.mxu0 0.0
  %3933 = vmatpush1.msra.mxu0 0.0
  %3934 = vmatprep.subr.mxu0 0.0
  %3935 = vmatpush1.msra.mxu0 0.0
  %3936 = vmatprep.subr.mxu0 0.0
  %3937 = vmatpush1.msra.mxu0 0.0
  %3938 = vmatprep.subr.mxu0 0.0
  %3939 = vmatpush1.msra.mxu0 0.0
  %3940 = vmatprep.subr.mxu0 0.0
  %3941 = vmatpush1.msra.mxu0 0.0
  %3942 = vmatprep.subr.mxu0 0.0
  %3943 = vmatpush1.msra.mxu0 0.0
  %3944 = vmatprep.subr.mxu0 0.0
  %3945 = vmatpush1.msra.mxu0 0.0
  %3946 = vmatprep.subr.mxu0 0.0
  %3947 = vmatpush1.msra.mxu0 0.0
  %3948 = vmatprep.subr.mxu0 0.0
  %3949 = vmatpush1.msra.mxu0 0.0
  %3950 = vmatprep.subr.mxu0 0.0
  %3951 = vmatpush1.msra.mxu0 0.0
  %3952 = vmatprep.mubr.f32.mxu0 0.0
  %3953 = vmatmul.mubr.f32.gmra.mrb[0].mxu0 %v3886
  %v3954 = vpop.f32.mrb[0].mxu0
  %v3955 = vadd.f32 0.0, %v3954
  %v3956 = vpop.f32.mrb[0].mxu0
  %v3957 = vadd.f32 0.0, %v3956
  %3958 = vdwg.mxu0
  %3959 = vmatprep.subr.mxu0 %v3877
  %3960 = vmatpush1.msra.mxu0 %v3876
  %3961 = vmatprep.subr.mxu0 0.0
  %3962 = vmatpush1.msra.mxu0 0.0
  %3963 = vmatprep.subr.mxu0 0.0
  %3964 = vmatpush1.msra.mxu0 0.0
  %3965 = vmatprep.subr.mxu0 0.0
  %3966 = vmatpush1.msra.mxu0 0.0
  %3967 = vmatprep.subr.mxu0 0.0
  %3968 = vmatpush1.msra.mxu0 0.0
  %3969 = vmatprep.subr.mxu0 0.0
  %3970 = vmatpush1.msra.mxu0 0.0
  %3971 = vmatprep.subr.mxu0 0.0
  %3972 = vmatpush1.msra.mxu0 0.0
  %3973 = vmatprep.subr.mxu0 0.0
  %3974 = vmatpush1.msra.mxu0 0.0
  %3975 = vmatprep.subr.mxu0 0.0
  %3976 = vmatpush1.msra.mxu0 0.0
  %3977 = vmatprep.subr.mxu0 0.0
  %3978 = vmatpush1.msra.mxu0 0.0
  %3979 = vmatprep.subr.mxu0 0.0
  %3980 = vmatpush1.msra.mxu0 0.0
  %3981 = vmatprep.subr.mxu0 0.0
  %3982 = vmatpush1.msra.mxu0 0.0
  %3983 = vmatprep.subr.mxu0 0.0
  %3984 = vmatpush1.msra.mxu0 0.0
  %3985 = vmatprep.subr.mxu0 0.0
  %3986 = vmatpush1.msra.mxu0 0.0
  %3987 = vmatprep.subr.mxu0 0.0
  %3988 = vmatpush1.msra.mxu0 0.0
  %3989 = vmatprep.subr.mxu0 0.0
  %3990 = vmatpush1.msra.mxu0 0.0
  %3991 = vmatprep.subr.mxu0 0.0
  %3992 = vmatpush1.msra.mxu0 0.0
  %3993 = vmatprep.subr.mxu0 0.0
  %3994 = vmatpush1.msra.mxu0 0.0
  %3995 = vmatprep.subr.mxu0 0.0
  %3996 = vmatpush1.msra.mxu0 0.0
  %3997 = vmatprep.subr.mxu0 0.0
  %3998 = vmatpush1.msra.mxu0 0.0
  %3999 = vmatprep.subr.mxu0 0.0
  %4000 = vmatpush1.msra.mxu0 0.0
  %4001 = vmatprep.subr.mxu0 0.0
  %4002 = vmatpush1.msra.mxu0 0.0
  %4003 = vmatprep.subr.mxu0 0.0
  %4004 = vmatpush1.msra.mxu0 0.0
  %4005 = vmatprep.subr.mxu0 0.0
  %4006 = vmatpush1.msra.mxu0 0.0
  %4007 = vmatprep.subr.mxu0 0.0
  %4008 = vmatpush1.msra.mxu0 0.0
  %4009 = vmatprep.subr.mxu0 0.0
  %4010 = vmatpush1.msra.mxu0 0.0
  %4011 = vmatprep.subr.mxu0 0.0
  %4012 = vmatpush1.msra.mxu0 0.0
  %4013 = vmatprep.subr.mxu0 0.0
  %4014 = vmatpush1.msra.mxu0 0.0
  %4015 = vmatprep.subr.mxu0 0.0
  %4016 = vmatpush1.msra.mxu0 0.0
  %4017 = vmatprep.subr.mxu0 0.0
  %4018 = vmatpush1.msra.mxu0 0.0
  %4019 = vmatprep.subr.mxu0 0.0
  %4020 = vmatpush1.msra.mxu0 0.0
  %4021 = vmatprep.subr.mxu0 0.0
  %4022 = vmatpush1.msra.mxu0 0.0
  %4023 = vmatprep.mubr.f32.mxu0 0.0
  %4024 = vmatmul.mubr.f32.gmra.mrb[0].mxu0 %v3886
  %v4025 = vpop.f32.mrb[0].mxu0
  %v4026 = vadd.f32 0.0, %v4025
  %v4027 = vpop.f32.mrb[0].mxu0
  %v4028 = vadd.f32 0.0, %v4027
  %4029 = vdwg.mxu0
  %4030 = vmatprep.subr.mxu0 %v3873
  %4031 = vmatpush1.msra.mxu0 %v3878
  %4032 = vmatprep.subr.mxu0 0.0
  %4033 = vmatpush1.msra.mxu0 0.0
  %4034 = vmatprep.subr.mxu0 0.0
  %4035 = vmatpush1.msra.mxu0 0.0
  %4036 = vmatprep.subr.mxu0 0.0
  %4037 = vmatpush1.msra.mxu0 0.0
  %4038 = vmatprep.subr.mxu0 0.0
  %4039 = vmatpush1.msra.mxu0 0.0
  %4040 = vmatprep.subr.mxu0 0.0
  %4041 = vmatpush1.msra.mxu0 0.0
  %4042 = vmatprep.subr.mxu0 0.0
  %4043 = vmatpush1.msra.mxu0 0.0
  %4044 = vmatprep.subr.mxu0 0.0
  %4045 = vmatpush1.msra.mxu0 0.0
  %4046 = vmatprep.subr.mxu0 0.0
  %4047 = vmatpush1.msra.mxu0 0.0
  %4048 = vmatprep.subr.mxu0 0.0
  %4049 = vmatpush1.msra.mxu0 0.0
  %4050 = vmatprep.subr.mxu0 0.0
  %4051 = vmatpush1.msra.mxu0 0.0
  %4052 = vmatprep.subr.mxu0 0.0
  %4053 = vmatpush1.msra.mxu0 0.0
  %4054 = vmatprep.subr.mxu0 0.0
  %4055 = vmatpush1.msra.mxu0 0.0
  %4056 = vmatprep.subr.mxu0 0.0
  %4057 = vmatpush1.msra.mxu0 0.0
  %4058 = vmatprep.subr.mxu0 0.0
  %4059 = vmatpush1.msra.mxu0 0.0
  %4060 = vmatprep.subr.mxu0 0.0
  %4061 = vmatpush1.msra.mxu0 0.0
  %4062 = vmatprep.subr.mxu0 0.0
  %4063 = vmatpush1.msra.mxu0 0.0
  %4064 = vmatprep.subr.mxu0 0.0
  %4065 = vmatpush1.msra.mxu0 0.0
  %4066 = vmatprep.subr.mxu0 0.0
  %4067 = vmatpush1.msra.mxu0 0.0
  %4068 = vmatprep.subr.mxu0 0.0
  %4069 = vmatpush1.msra.mxu0 0.0
  %4070 = vmatprep.subr.mxu0 0.0
  %4071 = vmatpush1.msra.mxu0 0.0
  %4072 = vmatprep.subr.mxu0 0.0
  %4073 = vmatpush1.msra.mxu0 0.0
  %4074 = vmatprep.subr.mxu0 0.0
  %4075 = vmatpush1.msra.mxu0 0.0
  %4076 = vmatprep.subr.mxu0 0.0
  %4077 = vmatpush1.msra.mxu0 0.0
  %4078 = vmatprep.subr.mxu0 0.0
  %4079 = vmatpush1.msra.mxu0 0.0
  %4080 = vmatprep.subr.mxu0 0.0
  %4081 = vmatpush1.msra.mxu0 0.0
  %4082 = vmatprep.subr.mxu0 0.0
  %4083 = vmatpush1.msra.mxu0 0.0
  %4084 = vmatprep.subr.mxu0 0.0
  %4085 = vmatpush1.msra.mxu0 0.0
  %4086 = vmatprep.subr.mxu0 0.0
  %4087 = vmatpush1.msra.mxu0 0.0
  %4088 = vmatprep.subr.mxu0 0.0
  %4089 = vmatpush1.msra.mxu0 0.0
  %4090 = vmatprep.subr.mxu0 0.0
  %4091 = vmatpush1.msra.mxu0 0.0
  %4092 = vmatprep.subr.mxu0 0.0
  %4093 = vmatpush1.msra.mxu0 0.0
  %4094 = vmatprep.mubr.f32.mxu0 0.0
  %4095 = vmatmul.mubr.f32.gmra.mrb[0].mxu0 %v3886
  %v4096 = vpop.f32.mrb[0].mxu0
  %v4097 = vadd.f32 0.0, %v4096
  %v4098 = vpop.f32.mrb[0].mxu0
  %v4099 = vadd.f32 0.0, %v4098
  %4100 = vdwg.mxu0
  %v4101 = vadd.f32 %v3854, %v3955
  %v4102 = vadd.f32 %v3855, %v3957
  %v4103 = vadd.f32 %v3856, %v4026
  %v4104 = vadd.f32 %v3857, %v4028
  %v4105 = vadd.f32 %v3858, %v4097
  %v4106 = vadd.f32 %v3859, %v4099
  %s4107 = scalar_lea.vmem %s1, 128
  %v4108 = vld [vmem:[%s4107] sm:$0xff]
  %4109 = vrot.lane.b32.xlu0 %v2378, 78
  %v4110 = vpop.permute.xlu0 %4109
  %4111 = vrot.lane.b32.xlu0 %v2379, 78
  %v4112 = vpop.permute.xlu0 %4111
  %4113 = vrot.lane.b32.xlu0 %v2380, 78
  %v4114 = vpop.permute.xlu0 %4113
  %4115 = vrot.lane.b32.xlu0 %v2381, 78
  %v4116 = vpop.permute.xlu0 %4115
  %4117 = vrot.lane.b32.xlu0 %v2382, 78
  %v4118 = vpop.permute.xlu0 %4117
  %4119 = vrot.lane.b32.xlu0 %v2383, 78
  %v4120 = vpop.permute.xlu0 %4119
  %v4121 = vsel %vm1803, %v4110, %v4112
  %v4122 = vsel %vm1803, %v4112, %v4114
  %v4123 = vsel %vm1803, %v4114, %v4116
  %v4124 = vsel %vm1803, %v4116, %v4118
  %v4125 = vsel %vm1803, %v4118, %v4120
  %v4133 = vsel %vm52, %v4108, 0
  %4135 = vmatprep.subr.mxu0 %v4122
  %4136 = vmatpush1.msra.mxu0 %v4121
  %4137 = vmatprep.subr.mxu0 0.0
  %4138 = vmatpush1.msra.mxu0 0.0
  %4139 = vmatprep.subr.mxu0 0.0
  %4140 = vmatpush1.msra.mxu0 0.0
  %4141 = vmatprep.subr.mxu0 0.0
  %4142 = vmatpush1.msra.mxu0 0.0
  %4143 = vmatprep.subr.mxu0 0.0
  %4144 = vmatpush1.msra.mxu0 0.0
  %4145 = vmatprep.subr.mxu0 0.0
  %4146 = vmatpush1.msra.mxu0 0.0
  %4147 = vmatprep.subr.mxu0 0.0
  %4148 = vmatpush1.msra.mxu0 0.0
  %4149 = vmatprep.subr.mxu0 0.0
  %4150 = vmatpush1.msra.mxu0 0.0
  %4151 = vmatprep.subr.mxu0 0.0
  %4152 = vmatpush1.msra.mxu0 0.0
  %4153 = vmatprep.subr.mxu0 0.0
  %4154 = vmatpush1.msra.mxu0 0.0
  %4155 = vmatprep.subr.mxu0 0.0
  %4156 = vmatpush1.msra.mxu0 0.0
  %4157 = vmatprep.subr.mxu0 0.0
  %4158 = vmatpush1.msra.mxu0 0.0
  %4159 = vmatprep.subr.mxu0 0.0
  %4160 = vmatpush1.msra.mxu0 0.0
  %4161 = vmatprep.subr.mxu0 0.0
  %4162 = vmatpush1.msra.mxu0 0.0
  %4163 = vmatprep.subr.mxu0 0.0
  %4164 = vmatpush1.msra.mxu0 0.0
  %4165 = vmatprep.subr.mxu0 0.0
  %4166 = vmatpush1.msra.mxu0 0.0
  %4167 = vmatprep.subr.mxu0 0.0
  %4168 = vmatpush1.msra.mxu0 0.0
  %4169 = vmatprep.subr.mxu0 0.0
  %4170 = vmatpush1.msra.mxu0 0.0
  %4171 = vmatprep.subr.mxu0 0.0
  %4172 = vmatpush1.msra.mxu0 0.0
  %4173 = vmatprep.subr.mxu0 0.0
  %4174 = vmatpush1.msra.mxu0 0.0
  %4175 = vmatprep.subr.mxu0 0.0
  %4176 = vmatpush1.msra.mxu0 0.0
  %4177 = vmatprep.subr.mxu0 0.0
  %4178 = vmatpush1.msra.mxu0 0.0
  %4179 = vmatprep.subr.mxu0 0.0
  %4180 = vmatpush1.msra.mxu0 0.0
  %4181 = vmatprep.subr.mxu0 0.0
  %4182 = vmatpush1.msra.mxu0 0.0
  %4183 = vmatprep.subr.mxu0 0.0
  %4184 = vmatpush1.msra.mxu0 0.0
  %4185 = vmatprep.subr.mxu0 0.0
  %4186 = vmatpush1.msra.mxu0 0.0
  %4187 = vmatprep.subr.mxu0 0.0
  %4188 = vmatpush1.msra.mxu0 0.0
  %4189 = vmatprep.subr.mxu0 0.0
  %4190 = vmatpush1.msra.mxu0 0.0
  %4191 = vmatprep.subr.mxu0 0.0
  %4192 = vmatpush1.msra.mxu0 0.0
  %4193 = vmatprep.subr.mxu0 0.0
  %4194 = vmatpush1.msra.mxu0 0.0
  %4195 = vmatprep.subr.mxu0 0.0
  %4196 = vmatpush1.msra.mxu0 0.0
  %4197 = vmatprep.subr.mxu0 0.0
  %4198 = vmatpush1.msra.mxu0 0.0
  %4199 = vmatprep.mubr.f32.mxu0 0.0
  %4200 = vmatmul.mubr.f32.gmra.mrb[0].mxu0 %v4133
  %v4201 = vpop.f32.mrb[0].mxu0
  %v4202 = vadd.f32 0.0, %v4201
  %v4203 = vpop.f32.mrb[0].mxu0
  %v4204 = vadd.f32 0.0, %v4203
  %4205 = vdwg.mxu0
  %4206 = vmatprep.subr.mxu0 %v4124
  %4207 = vmatpush1.msra.mxu0 %v4123
  %4208 = vmatprep.subr.mxu0 0.0
  %4209 = vmatpush1.msra.mxu0 0.0
  %4210 = vmatprep.subr.mxu0 0.0
  %4211 = vmatpush1.msra.mxu0 0.0
  %4212 = vmatprep.subr.mxu0 0.0
  %4213 = vmatpush1.msra.mxu0 0.0
  %4214 = vmatprep.subr.mxu0 0.0
  %4215 = vmatpush1.msra.mxu0 0.0
  %4216 = vmatprep.subr.mxu0 0.0
  %4217 = vmatpush1.msra.mxu0 0.0
  %4218 = vmatprep.subr.mxu0 0.0
  %4219 = vmatpush1.msra.mxu0 0.0
  %4220 = vmatprep.subr.mxu0 0.0
  %4221 = vmatpush1.msra.mxu0 0.0
  %4222 = vmatprep.subr.mxu0 0.0
  %4223 = vmatpush1.msra.mxu0 0.0
  %4224 = vmatprep.subr.mxu0 0.0
  %4225 = vmatpush1.msra.mxu0 0.0
  %4226 = vmatprep.subr.mxu0 0.0
  %4227 = vmatpush1.msra.mxu0 0.0
  %4228 = vmatprep.subr.mxu0 0.0
  %4229 = vmatpush1.msra.mxu0 0.0
  %4230 = vmatprep.subr.mxu0 0.0
  %4231 = vmatpush1.msra.mxu0 0.0
  %4232 = vmatprep.subr.mxu0 0.0
  %4233 = vmatpush1.msra.mxu0 0.0
  %4234 = vmatprep.subr.mxu0 0.0
  %4235 = vmatpush1.msra.mxu0 0.0
  %4236 = vmatprep.subr.mxu0 0.0
  %4237 = vmatpush1.msra.mxu0 0.0
  %4238 = vmatprep.subr.mxu0 0.0
  %4239 = vmatpush1.msra.mxu0 0.0
  %4240 = vmatprep.subr.mxu0 0.0
  %4241 = vmatpush1.msra.mxu0 0.0
  %4242 = vmatprep.subr.mxu0 0.0
  %4243 = vmatpush1.msra.mxu0 0.0
  %4244 = vmatprep.subr.mxu0 0.0
  %4245 = vmatpush1.msra.mxu0 0.0
  %4246 = vmatprep.subr.mxu0 0.0
  %4247 = vmatpush1.msra.mxu0 0.0
  %4248 = vmatprep.subr.mxu0 0.0
  %4249 = vmatpush1.msra.mxu0 0.0
  %4250 = vmatprep.subr.mxu0 0.0
  %4251 = vmatpush1.msra.mxu0 0.0
  %4252 = vmatprep.subr.mxu0 0.0
  %4253 = vmatpush1.msra.mxu0 0.0
  %4254 = vmatprep.subr.mxu0 0.0
  %4255 = vmatpush1.msra.mxu0 0.0
  %4256 = vmatprep.subr.mxu0 0.0
  %4257 = vmatpush1.msra.mxu0 0.0
  %4258 = vmatprep.subr.mxu0 0.0
  %4259 = vmatpush1.msra.mxu0 0.0
  %4260 = vmatprep.subr.mxu0 0.0
  %4261 = vmatpush1.msra.mxu0 0.0
  %4262 = vmatprep.subr.mxu0 0.0
  %4263 = vmatpush1.msra.mxu0 0.0
  %4264 = vmatprep.subr.mxu0 0.0
  %4265 = vmatpush1.msra.mxu0 0.0
  %4266 = vmatprep.subr.mxu0 0.0
  %4267 = vmatpush1.msra.mxu0 0.0
  %4268 = vmatprep.subr.mxu0 0.0
  %4269 = vmatpush1.msra.mxu0 0.0
  %4270 = vmatprep.mubr.f32.mxu0 0.0
  %4271 = vmatmul.mubr.f32.gmra.mrb[0].mxu0 %v4133
  %v4272 = vpop.f32.mrb[0].mxu0
  %v4273 = vadd.f32 0.0, %v4272
  %v4274 = vpop.f32.mrb[0].mxu0
  %v4275 = vadd.f32 0.0, %v4274
  %4276 = vdwg.mxu0
  %4277 = vmatprep.subr.mxu0 %v4120
  %4278 = vmatpush1.msra.mxu0 %v4125
  %4279 = vmatprep.subr.mxu0 0.0
  %4280 = vmatpush1.msra.mxu0 0.0
  %4281 = vmatprep.subr.mxu0 0.0
  %4282 = vmatpush1.msra.mxu0 0.0
  %4283 = vmatprep.subr.mxu0 0.0
  %4284 = vmatpush1.msra.mxu0 0.0
  %4285 = vmatprep.subr.mxu0 0.0
  %4286 = vmatpush1.msra.mxu0 0.0
  %4287 = vmatprep.subr.mxu0 0.0
  %4288 = vmatpush1.msra.mxu0 0.0
  %4289 = vmatprep.subr.mxu0 0.0
  %4290 = vmatpush1.msra.mxu0 0.0
  %4291 = vmatprep.subr.mxu0 0.0
  %4292 = vmatpush1.msra.mxu0 0.0
  %4293 = vmatprep.subr.mxu0 0.0
  %4294 = vmatpush1.msra.mxu0 0.0
  %4295 = vmatprep.subr.mxu0 0.0
  %4296 = vmatpush1.msra.mxu0 0.0
  %4297 = vmatprep.subr.mxu0 0.0
  %4298 = vmatpush1.msra.mxu0 0.0
  %4299 = vmatprep.subr.mxu0 0.0
  %4300 = vmatpush1.msra.mxu0 0.0
  %4301 = vmatprep.subr.mxu0 0.0
  %4302 = vmatpush1.msra.mxu0 0.0
  %4303 = vmatprep.subr.mxu0 0.0
  %4304 = vmatpush1.msra.mxu0 0.0
  %4305 = vmatprep.subr.mxu0 0.0
  %4306 = vmatpush1.msra.mxu0 0.0
  %4307 = vmatprep.subr.mxu0 0.0
  %4308 = vmatpush1.msra.mxu0 0.0
  %4309 = vmatprep.subr.mxu0 0.0
  %4310 = vmatpush1.msra.mxu0 0.0
  %4311 = vmatprep.subr.mxu0 0.0
  %4312 = vmatpush1.msra.mxu0 0.0
  %4313 = vmatprep.subr.mxu0 0.0
  %4314 = vmatpush1.msra.mxu0 0.0
  %4315 = vmatprep.subr.mxu0 0.0
  %4316 = vmatpush1.msra.mxu0 0.0
  %4317 = vmatprep.subr.mxu0 0.0
  %4318 = vmatpush1.msra.mxu0 0.0
  %4319 = vmatprep.subr.mxu0 0.0
  %4320 = vmatpush1.msra.mxu0 0.0
  %4321 = vmatprep.subr.mxu0 0.0
  %4322 = vmatpush1.msra.mxu0 0.0
  %4323 = vmatprep.subr.mxu0 0.0
  %4324 = vmatpush1.msra.mxu0 0.0
  %4325 = vmatprep.subr.mxu0 0.0
  %4326 = vmatpush1.msra.mxu0 0.0
  %4327 = vmatprep.subr.mxu0 0.0
  %4328 = vmatpush1.msra.mxu0 0.0
  %4329 = vmatprep.subr.mxu0 0.0
  %4330 = vmatpush1.msra.mxu0 0.0
  %4331 = vmatprep.subr.mxu0 0.0
  %4332 = vmatpush1.msra.mxu0 0.0
  %4333 = vmatprep.subr.mxu0 0.0
  %4334 = vmatpush1.msra.mxu0 0.0
  %4335 = vmatprep.subr.mxu0 0.0
  %4336 = vmatpush1.msra.mxu0 0.0
  %4337 = vmatprep.subr.mxu0 0.0
  %4338 = vmatpush1.msra.mxu0 0.0
  %4339 = vmatprep.subr.mxu0 0.0
  %4340 = vmatpush1.msra.mxu0 0.0
  %4341 = vmatprep.mubr.f32.mxu0 0.0
  %4342 = vmatmul.mubr.f32.gmra.mrb[0].mxu0 %v4133
  %v4343 = vpop.f32.mrb[0].mxu0
  %v4344 = vadd.f32 0.0, %v4343
  %v4345 = vpop.f32.mrb[0].mxu0
  %v4346 = vadd.f32 0.0, %v4345
  %4347 = vdwg.mxu0
  %v4348 = vadd.f32 %v4101, %v4202
  %v4349 = vadd.f32 %v4102, %v4204
  %v4350 = vadd.f32 %v4103, %v4273
  %v4351 = vadd.f32 %v4104, %v4275
  %v4352 = vadd.f32 %v4105, %v4344
  %v4353 = vadd.f32 %v4106, %v4346
  %s4354 = scalar_lea.vmem %s1, 136
  %v4355 = vld [vmem:[%s4354] sm:$0xff]
  %4356 = vrot.lane.b32.xlu0 %v2378, 77
  %v4357 = vpop.permute.xlu0 %4356
  %4358 = vrot.lane.b32.xlu0 %v2379, 77
  %v4359 = vpop.permute.xlu0 %4358
  %4360 = vrot.lane.b32.xlu0 %v2380, 77
  %v4361 = vpop.permute.xlu0 %4360
  %4362 = vrot.lane.b32.xlu0 %v2381, 77
  %v4363 = vpop.permute.xlu0 %4362
  %4364 = vrot.lane.b32.xlu0 %v2382, 77
  %v4365 = vpop.permute.xlu0 %4364
  %4366 = vrot.lane.b32.xlu0 %v2383, 77
  %v4367 = vpop.permute.xlu0 %4366
  %v4368 = vsel %vm2051, %v4357, %v4359
  %v4369 = vsel %vm2051, %v4359, %v4361
  %v4370 = vsel %vm2051, %v4361, %v4363
  %v4371 = vsel %vm2051, %v4363, %v4365
  %v4372 = vsel %vm2051, %v4365, %v4367
  %v4380 = vsel %vm52, %v4355, 0
  %4382 = vmatprep.subr.mxu0 %v4369
  %4383 = vmatpush1.msra.mxu0 %v4368
  %4384 = vmatprep.subr.mxu0 0.0
  %4385 = vmatpush1.msra.mxu0 0.0
  %4386 = vmatprep.subr.mxu0 0.0
  %4387 = vmatpush1.msra.mxu0 0.0
  %4388 = vmatprep.subr.mxu0 0.0
  %4389 = vmatpush1.msra.mxu0 0.0
  %4390 = vmatprep.subr.mxu0 0.0
  %4391 = vmatpush1.msra.mxu0 0.0
  %4392 = vmatprep.subr.mxu0 0.0
  %4393 = vmatpush1.msra.mxu0 0.0
  %4394 = vmatprep.subr.mxu0 0.0
  %4395 = vmatpush1.msra.mxu0 0.0
  %4396 = vmatprep.subr.mxu0 0.0
  %4397 = vmatpush1.msra.mxu0 0.0
  %4398 = vmatprep.subr.mxu0 0.0
  %4399 = vmatpush1.msra.mxu0 0.0
  %4400 = vmatprep.subr.mxu0 0.0
  %4401 = vmatpush1.msra.mxu0 0.0
  %4402 = vmatprep.subr.mxu0 0.0
  %4403 = vmatpush1.msra.mxu0 0.0
  %4404 = vmatprep.subr.mxu0 0.0
  %4405 = vmatpush1.msra.mxu0 0.0
  %4406 = vmatprep.subr.mxu0 0.0
  %4407 = vmatpush1.msra.mxu0 0.0
  %4408 = vmatprep.subr.mxu0 0.0
  %4409 = vmatpush1.msra.mxu0 0.0
  %4410 = vmatprep.subr.mxu0 0.0
  %4411 = vmatpush1.msra.mxu0 0.0
  %4412 = vmatprep.subr.mxu0 0.0
  %4413 = vmatpush1.msra.mxu0 0.0
  %4414 = vmatprep.subr.mxu0 0.0
  %4415 = vmatpush1.msra.mxu0 0.0
  %4416 = vmatprep.subr.mxu0 0.0
  %4417 = vmatpush1.msra.mxu0 0.0
  %4418 = vmatprep.subr.mxu0 0.0
  %4419 = vmatpush1.msra.mxu0 0.0
  %4420 = vmatprep.subr.mxu0 0.0
  %4421 = vmatpush1.msra.mxu0 0.0
  %4422 = vmatprep.subr.mxu0 0.0
  %4423 = vmatpush1.msra.mxu0 0.0
  %4424 = vmatprep.subr.mxu0 0.0
  %4425 = vmatpush1.msra.mxu0 0.0
  %4426 = vmatprep.subr.mxu0 0.0
  %4427 = vmatpush1.msra.mxu0 0.0
  %4428 = vmatprep.subr.mxu0 0.0
  %4429 = vmatpush1.msra.mxu0 0.0
  %4430 = vmatprep.subr.mxu0 0.0
  %4431 = vmatpush1.msra.mxu0 0.0
  %4432 = vmatprep.subr.mxu0 0.0
  %4433 = vmatpush1.msra.mxu0 0.0
  %4434 = vmatprep.subr.mxu0 0.0
  %4435 = vmatpush1.msra.mxu0 0.0
  %4436 = vmatprep.subr.mxu0 0.0
  %4437 = vmatpush1.msra.mxu0 0.0
  %4438 = vmatprep.subr.mxu0 0.0
  %4439 = vmatpush1.msra.mxu0 0.0
  %4440 = vmatprep.subr.mxu0 0.0
  %4441 = vmatpush1.msra.mxu0 0.0
  %4442 = vmatprep.subr.mxu0 0.0
  %4443 = vmatpush1.msra.mxu0 0.0
  %4444 = vmatprep.subr.mxu0 0.0
  %4445 = vmatpush1.msra.mxu0 0.0
  %4446 = vmatprep.mubr.f32.mxu0 0.0
  %4447 = vmatmul.mubr.f32.gmra.mrb[0].mxu0 %v4380
  %v4448 = vpop.f32.mrb[0].mxu0
  %v4449 = vadd.f32 0.0, %v4448
  %v4450 = vpop.f32.mrb[0].mxu0
  %v4451 = vadd.f32 0.0, %v4450
  %4452 = vdwg.mxu0
  %4453 = vmatprep.subr.mxu0 %v4371
  %4454 = vmatpush1.msra.mxu0 %v4370
  %4455 = vmatprep.subr.mxu0 0.0
  %4456 = vmatpush1.msra.mxu0 0.0
  %4457 = vmatprep.subr.mxu0 0.0
  %4458 = vmatpush1.msra.mxu0 0.0
  %4459 = vmatprep.subr.mxu0 0.0
  %4460 = vmatpush1.msra.mxu0 0.0
  %4461 = vmatprep.subr.mxu0 0.0
  %4462 = vmatpush1.msra.mxu0 0.0
  %4463 = vmatprep.subr.mxu0 0.0
  %4464 = vmatpush1.msra.mxu0 0.0
  %4465 = vmatprep.subr.mxu0 0.0
  %4466 = vmatpush1.msra.mxu0 0.0
  %4467 = vmatprep.subr.mxu0 0.0
  %4468 = vmatpush1.msra.mxu0 0.0
  %4469 = vmatprep.subr.mxu0 0.0
  %4470 = vmatpush1.msra.mxu0 0.0
  %4471 = vmatprep.subr.mxu0 0.0
  %4472 = vmatpush1.msra.mxu0 0.0
  %4473 = vmatprep.subr.mxu0 0.0
  %4474 = vmatpush1.msra.mxu0 0.0
  %4475 = vmatprep.subr.mxu0 0.0
  %4476 = vmatpush1.msra.mxu0 0.0
  %4477 = vmatprep.subr.mxu0 0.0
  %4478 = vmatpush1.msra.mxu0 0.0
  %4479 = vmatprep.subr.mxu0 0.0
  %4480 = vmatpush1.msra.mxu0 0.0
  %4481 = vmatprep.subr.mxu0 0.0
  %4482 = vmatpush1.msra.mxu0 0.0
  %4483 = vmatprep.subr.mxu0 0.0
  %4484 = vmatpush1.msra.mxu0 0.0
  %4485 = vmatprep.subr.mxu0 0.0
  %4486 = vmatpush1.msra.mxu0 0.0
  %4487 = vmatprep.subr.mxu0 0.0
  %4488 = vmatpush1.msra.mxu0 0.0
  %4489 = vmatprep.subr.mxu0 0.0
  %4490 = vmatpush1.msra.mxu0 0.0
  %4491 = vmatprep.subr.mxu0 0.0
  %4492 = vmatpush1.msra.mxu0 0.0
  %4493 = vmatprep.subr.mxu0 0.0
  %4494 = vmatpush1.msra.mxu0 0.0
  %4495 = vmatprep.subr.mxu0 0.0
  %4496 = vmatpush1.msra.mxu0 0.0
  %4497 = vmatprep.subr.mxu0 0.0
  %4498 = vmatpush1.msra.mxu0 0.0
  %4499 = vmatprep.subr.mxu0 0.0
  %4500 = vmatpush1.msra.mxu0 0.0
  %4501 = vmatprep.subr.mxu0 0.0
  %4502 = vmatpush1.msra.mxu0 0.0
  %4503 = vmatprep.subr.mxu0 0.0
  %4504 = vmatpush1.msra.mxu0 0.0
  %4505 = vmatprep.subr.mxu0 0.0
  %4506 = vmatpush1.msra.mxu0 0.0
  %4507 = vmatprep.subr.mxu0 0.0
  %4508 = vmatpush1.msra.mxu0 0.0
  %4509 = vmatprep.subr.mxu0 0.0
  %4510 = vmatpush1.msra.mxu0 0.0
  %4511 = vmatprep.subr.mxu0 0.0
  %4512 = vmatpush1.msra.mxu0 0.0
  %4513 = vmatprep.subr.mxu0 0.0
  %4514 = vmatpush1.msra.mxu0 0.0
  %4515 = vmatprep.subr.mxu0 0.0
  %4516 = vmatpush1.msra.mxu0 0.0
  %4517 = vmatprep.mubr.f32.mxu0 0.0
  %4518 = vmatmul.mubr.f32.gmra.mrb[0].mxu0 %v4380
  %v4519 = vpop.f32.mrb[0].mxu0
  %v4520 = vadd.f32 0.0, %v4519
  %v4521 = vpop.f32.mrb[0].mxu0
  %v4522 = vadd.f32 0.0, %v4521
  %4523 = vdwg.mxu0
  %4524 = vmatprep.subr.mxu0 %v4367
  %4525 = vmatpush1.msra.mxu0 %v4372
  %4526 = vmatprep.subr.mxu0 0.0
  %4527 = vmatpush1.msra.mxu0 0.0
  %4528 = vmatprep.subr.mxu0 0.0
  %4529 = vmatpush1.msra.mxu0 0.0
  %4530 = vmatprep.subr.mxu0 0.0
  %4531 = vmatpush1.msra.mxu0 0.0
  %4532 = vmatprep.subr.mxu0 0.0
  %4533 = vmatpush1.msra.mxu0 0.0
  %4534 = vmatprep.subr.mxu0 0.0
  %4535 = vmatpush1.msra.mxu0 0.0
  %4536 = vmatprep.subr.mxu0 0.0
  %4537 = vmatpush1.msra.mxu0 0.0
  %4538 = vmatprep.subr.mxu0 0.0
  %4539 = vmatpush1.msra.mxu0 0.0
  %4540 = vmatprep.subr.mxu0 0.0
  %4541 = vmatpush1.msra.mxu0 0.0
  %4542 = vmatprep.subr.mxu0 0.0
  %4543 = vmatpush1.msra.mxu0 0.0
  %4544 = vmatprep.subr.mxu0 0.0
  %4545 = vmatpush1.msra.mxu0 0.0
  %4546 = vmatprep.subr.mxu0 0.0
  %4547 = vmatpush1.msra.mxu0 0.0
  %4548 = vmatprep.subr.mxu0 0.0
  %4549 = vmatpush1.msra.mxu0 0.0
  %4550 = vmatprep.subr.mxu0 0.0
  %4551 = vmatpush1.msra.mxu0 0.0
  %4552 = vmatprep.subr.mxu0 0.0
  %4553 = vmatpush1.msra.mxu0 0.0
  %4554 = vmatprep.subr.mxu0 0.0
  %4555 = vmatpush1.msra.mxu0 0.0
  %4556 = vmatprep.subr.mxu0 0.0
  %4557 = vmatpush1.msra.mxu0 0.0
  %4558 = vmatprep.subr.mxu0 0.0
  %4559 = vmatpush1.msra.mxu0 0.0
  %4560 = vmatprep.subr.mxu0 0.0
  %4561 = vmatpush1.msra.mxu0 0.0
  %4562 = vmatprep.subr.mxu0 0.0
  %4563 = vmatpush1.msra.mxu0 0.0
  %4564 = vmatprep.subr.mxu0 0.0
  %4565 = vmatpush1.msra.mxu0 0.0
  %4566 = vmatprep.subr.mxu0 0.0
  %4567 = vmatpush1.msra.mxu0 0.0
  %4568 = vmatprep.subr.mxu0 0.0
  %4569 = vmatpush1.msra.mxu0 0.0
  %4570 = vmatprep.subr.mxu0 0.0
  %4571 = vmatpush1.msra.mxu0 0.0
  %4572 = vmatprep.subr.mxu0 0.0
  %4573 = vmatpush1.msra.mxu0 0.0
  %4574 = vmatprep.subr.mxu0 0.0
  %4575 = vmatpush1.msra.mxu0 0.0
  %4576 = vmatprep.subr.mxu0 0.0
  %4577 = vmatpush1.msra.mxu0 0.0
  %4578 = vmatprep.subr.mxu0 0.0
  %4579 = vmatpush1.msra.mxu0 0.0
  %4580 = vmatprep.subr.mxu0 0.0
  %4581 = vmatpush1.msra.mxu0 0.0
  %4582 = vmatprep.subr.mxu0 0.0
  %4583 = vmatpush1.msra.mxu0 0.0
  %4584 = vmatprep.subr.mxu0 0.0
  %4585 = vmatpush1.msra.mxu0 0.0
  %4586 = vmatprep.subr.mxu0 0.0
  %4587 = vmatpush1.msra.mxu0 0.0
  %4588 = vmatprep.mubr.f32.mxu0 0.0
  %4589 = vmatmul.mubr.f32.gmra.mrb[0].mxu0 %v4380
  %v4590 = vpop.f32.mrb[0].mxu0
  %v4591 = vadd.f32 0.0, %v4590
  %v4592 = vpop.f32.mrb[0].mxu0
  %v4593 = vadd.f32 0.0, %v4592
  %4594 = vdwg.mxu0
  %v4595 = vadd.f32 %v4348, %v4449
  %v4596 = vadd.f32 %v4349, %v4451
  %v4597 = vadd.f32 %v4350, %v4520
  %v4598 = vadd.f32 %v4351, %v4522
  %v4599 = vadd.f32 %v4352, %v4591
  %v4600 = vadd.f32 %v4353, %v4593
  %s4601 = scalar_lea.vmem %s3, 8
  %v4602 = vld [vmem:[%s4601] sm:$0xff]
  %4604 = vset.pattern.permute.xlu0 0
  %4605 = vperm.xlu0 %4604, %v4602
  %v4606 = vpop.permute.xlu0 %4605
  %v4608 = vadd.f32 %v4595, %v4606
  %v4609 = vadd.f32 %v4596, %v4606
  %v4610 = vadd.f32 %v4597, %v4606
  %v4611 = vadd.f32 %v4598, %v4606
  %v4612 = vadd.f32 %v4599, %v4606
  %v4613 = vadd.f32 %v4600, %v4606
  %s4614 = scalar_lea.vmem %s3, 24
  %v4615 = vld [vmem:[%s4614] sm:$0xff]
  %s4616 = scalar_lea.vmem %s3, 40
  %v4617 = vld [vmem:[%s4616] sm:$0xff]
  %v4618 = vmul.f32 %v4608, %v2307
  %v4619 = vmul.f32 %v4609, %v2311
  %v4620 = vmul.f32 %v4610, %v2315
  %v4621 = vmul.f32 %v4611, %v2319
  %v4622 = vmul.f32 %v4612, %v2323
  %v4623 = vmul.f32 %v4613, %v2327
  %v4624 = vadd.f32 %v4618, %v4619
  %v4625 = vadd.f32 %v4624, %v4620
  %v4626 = vadd.f32 %v4625, %v4621
  %v4627 = vadd.f32 %v4626, %v4622
  %v4628 = vsel %vm52, %v4623, 0.0
  %v4629 = vadd.f32 %v4627, %v4628
  %4630 = vadd.xlane.f32.xlu0 %v4629
  %v4631 = vpop.xlane.xlu0 %4630
  %v4632 = vmul.f32 %v4631, 0.001953125
  %v4633 = vmul.f32 %v4618, %v4618
  %v4634 = vmul.f32 %v4619, %v4619
  %v4635 = vmul.f32 %v4620, %v4620
  %v4636 = vmul.f32 %v4621, %v4621
  %v4637 = vmul.f32 %v4622, %v4622
  %v4638 = vmul.f32 %v4623, %v4623
  %v4639 = vadd.f32 %v4633, %v4634
  %v4640 = vadd.f32 %v4639, %v4635
  %v4641 = vadd.f32 %v4640, %v4636
  %v4642 = vadd.f32 %v4641, %v4637
  %v4643 = vsel %vm52, %v4638, 0.0
  %v4644 = vadd.f32 %v4642, %v4643
  %4645 = vadd.xlane.f32.xlu0 %v4644
  %v4646 = vpop.xlane.xlu0 %4645
  %v4647 = vmul.f32 %v4646, 0.001953125
  %v4648 = vmul.f32 %v4632, %v4632
  %v4649 = vsub.f32 %v4647, %v4648
  %v4650 = vadd.f32 %v4649, 1e-05
  %v4651 = vrsqrt.pop %v4650
  %v4652 = vmul.f32 %v4615, %v4651
  %v4653 = vmul.f32 %v4632, %v4652
  %v4654 = vsub.f32 %v4617, %v4653
  %4656 = vset.pattern.permute.xlu0 0
  %4657 = vperm.xlu0 %4656, %v4652
  %v4658 = vpop.permute.xlu0 %4657
  %v4660 = vmul.f32 %v4618, %v4658
  %v4661 = vmul.f32 %v4619, %v4658
  %v4662 = vmul.f32 %v4620, %v4658
  %v4663 = vmul.f32 %v4621, %v4658
  %v4664 = vmul.f32 %v4622, %v4658
  %v4665 = vmul.f32 %v4623, %v4658
  %4667 = vset.pattern.permute.xlu0 0
  %4668 = vperm.xlu0 %4667, %v4654
  %v4669 = vpop.permute.xlu0 %4668
  %v4671 = vadd.f32 %v4660, %v4669
  %v4672 = vadd.f32 %v4661, %v4669
  %v4673 = vadd.f32 %v4662, %v4669
  %v4674 = vadd.f32 %v4663, %v4669
  %v4675 = vadd.f32 %v4664, %v4669
  %v4676 = vadd.f32 %v4665, %v4669
  %v4677 = vmax.f32 %v4671, 0.0
  %v4678 = vmax.f32 %v4672, 0.0
  %v4679 = vmax.f32 %v4673, 0.0
  %v4680 = vmax.f32 %v4674, 0.0
  %v4681 = vmax.f32 %v4675, 0.0
  %v4682 = vmax.f32 %v4676, 0.0
  %v4683 = vmul.f32 %v4677, %v2307
  %v4684 = vmul.f32 %v4678, %v2311
  %v4685 = vmul.f32 %v4679, %v2315
  %v4686 = vmul.f32 %v4680, %v2319
  %v4687 = vmul.f32 %v4681, %v2323
  %v4688 = vmul.f32 %v4682, %v2327
  %4695 = vrot.lane.b32.xlu0 %v4683, 32
  %v4696 = vpop.permute.xlu0 %4695
  %4697 = vrot.lane.b32.xlu0 %v4684, 32
  %v4698 = vpop.permute.xlu0 %4697
  %4699 = vrot.lane.b32.xlu0 %v4685, 32
  %v4700 = vpop.permute.xlu0 %4699
  %4701 = vrot.lane.b32.xlu0 %v4686, 32
  %v4702 = vpop.permute.xlu0 %4701
  %4703 = vrot.lane.b32.xlu0 %v4687, 32
  %v4704 = vpop.permute.xlu0 %4703
  %4705 = vrot.lane.b32.xlu0 %v4688, 32
  %v4706 = vpop.permute.xlu0 %4705
  %v4707 = vsel %vm2358, %v4696, %v4698
  %v4708 = vsel %vm2358, %v4698, %v4700
  %v4709 = vsel %vm2358, %v4700, %v4702
  %v4710 = vsel %vm2358, %v4702, %v4704
  %v4711 = vsel %vm2358, %v4704, %v4706
  %4718 = vst.msk [vmem:[#allocation2] sm:$0xff] %vm2370, %v4696
  %4719 = vst [vmem:[#allocation2 + $0x8] sm:$0xff] %v4707
  %4720 = vst [vmem:[#allocation2 + $0x10] sm:$0xff] %v4708
  %4721 = vst [vmem:[#allocation2 + $0x18] sm:$0xff] %v4709
  %4722 = vst [vmem:[#allocation2 + $0x20] sm:$0xff] %v4710
  %4723 = vst.msk [vmem:[#allocation2 + $0x28] sm:$0xff] %vm2376, %v4711
  %s4724 = scalar_lea.vmem %s1, 144
  %v4725 = vld [vmem:[%s4724] sm:$0xff]
  %v4726 = vld [vmem:[#allocation2] sm:$0xff]
  %v4727 = vld [vmem:[#allocation2 + $0x8] sm:$0xff]
  %v4728 = vld [vmem:[#allocation2 + $0x10] sm:$0xff]
  %v4729 = vld [vmem:[#allocation2 + $0x18] sm:$0xff]
  %v4730 = vld [vmem:[#allocation2 + $0x20] sm:$0xff]
  %v4731 = vld [vmem:[#allocation2 + $0x28] sm:$0xff]
  %s4732 = scalar_lea.vmem %s1, 152
  %v4733 = vld [vmem:[%s4732] sm:$0xff]
  %4740 = vrot.lane.b32.xlu0 %v4726, 114
  %v4741 = vpop.permute.xlu0 %4740
  %4742 = vrot.lane.b32.xlu0 %v4727, 114
  %v4743 = vpop.permute.xlu0 %4742
  %4744 = vrot.lane.b32.xlu0 %v4728, 114
  %v4745 = vpop.permute.xlu0 %4744
  %4746 = vrot.lane.b32.xlu0 %v4729, 114
  %v4747 = vpop.permute.xlu0 %4746
  %4748 = vrot.lane.b32.xlu0 %v4730, 114
  %v4749 = vpop.permute.xlu0 %4748
  %4750 = vrot.lane.b32.xlu0 %v4731, 114
  %v4751 = vpop.permute.xlu0 %4750
  %v4752 = vsel %vm81, %v4741, %v4743
  %v4753 = vsel %vm81, %v4743, %v4745
  %v4754 = vsel %vm81, %v4745, %v4747
  %v4755 = vsel %vm81, %v4747, %v4749
  %v4756 = vsel %vm81, %v4749, %v4751
  %v4764 = vsel %vm52, %v4733, 0
  %4766 = vmatprep.subr.mxu0 %v4753
  %4767 = vmatpush1.msra.mxu0 %v4752
  %4768 = vmatprep.subr.mxu0 0.0
  %4769 = vmatpush1.msra.mxu0 0.0
  %4770 = vmatprep.subr.mxu0 0.0
  %4771 = vmatpush1.msra.mxu0 0.0
  %4772 = vmatprep.subr.mxu0 0.0
  %4773 = vmatpush1.msra.mxu0 0.0
  %4774 = vmatprep.subr.mxu0 0.0
  %4775 = vmatpush1.msra.mxu0 0.0
  %4776 = vmatprep.subr.mxu0 0.0
  %4777 = vmatpush1.msra.mxu0 0.0
  %4778 = vmatprep.subr.mxu0 0.0
  %4779 = vmatpush1.msra.mxu0 0.0
  %4780 = vmatprep.subr.mxu0 0.0
  %4781 = vmatpush1.msra.mxu0 0.0
  %4782 = vmatprep.subr.mxu0 0.0
  %4783 = vmatpush1.msra.mxu0 0.0
  %4784 = vmatprep.subr.mxu0 0.0
  %4785 = vmatpush1.msra.mxu0 0.0
  %4786 = vmatprep.subr.mxu0 0.0
  %4787 = vmatpush1.msra.mxu0 0.0
  %4788 = vmatprep.subr.mxu0 0.0
  %4789 = vmatpush1.msra.mxu0 0.0
  %4790 = vmatprep.subr.mxu0 0.0
  %4791 = vmatpush1.msra.mxu0 0.0
  %4792 = vmatprep.subr.mxu0 0.0
  %4793 = vmatpush1.msra.mxu0 0.0
  %4794 = vmatprep.subr.mxu0 0.0
  %4795 = vmatpush1.msra.mxu0 0.0
  %4796 = vmatprep.subr.mxu0 0.0
  %4797 = vmatpush1.msra.mxu0 0.0
  %4798 = vmatprep.subr.mxu0 0.0
  %4799 = vmatpush1.msra.mxu0 0.0
  %4800 = vmatprep.subr.mxu0 0.0
  %4801 = vmatpush1.msra.mxu0 0.0
  %4802 = vmatprep.subr.mxu0 0.0
  %4803 = vmatpush1.msra.mxu0 0.0
  %4804 = vmatprep.subr.mxu0 0.0
  %4805 = vmatpush1.msra.mxu0 0.0
  %4806 = vmatprep.subr.mxu0 0.0
  %4807 = vmatpush1.msra.mxu0 0.0
  %4808 = vmatprep.subr.mxu0 0.0
  %4809 = vmatpush1.msra.mxu0 0.0
  %4810 = vmatprep.subr.mxu0 0.0
  %4811 = vmatpush1.msra.mxu0 0.0
  %4812 = vmatprep.subr.mxu0 0.0
  %4813 = vmatpush1.msra.mxu0 0.0
  %4814 = vmatprep.subr.mxu0 0.0
  %4815 = vmatpush1.msra.mxu0 0.0
  %4816 = vmatprep.subr.mxu0 0.0
  %4817 = vmatpush1.msra.mxu0 0.0
  %4818 = vmatprep.subr.mxu0 0.0
  %4819 = vmatpush1.msra.mxu0 0.0
  %4820 = vmatprep.subr.mxu0 0.0
  %4821 = vmatpush1.msra.mxu0 0.0
  %4822 = vmatprep.subr.mxu0 0.0
  %4823 = vmatpush1.msra.mxu0 0.0
  %4824 = vmatprep.subr.mxu0 0.0
  %4825 = vmatpush1.msra.mxu0 0.0
  %4826 = vmatprep.subr.mxu0 0.0
  %4827 = vmatpush1.msra.mxu0 0.0
  %4828 = vmatprep.subr.mxu0 0.0
  %4829 = vmatpush1.msra.mxu0 0.0
  %4830 = vmatprep.mubr.f32.mxu0 0.0
  %4831 = vmatmul.mubr.f32.gmra.mrb[0].mxu0 %v4764
  %v4832 = vpop.f32.mrb[0].mxu0
  %v4833 = vadd.f32 0.0, %v4832
  %v4834 = vpop.f32.mrb[0].mxu0
  %v4835 = vadd.f32 0.0, %v4834
  %4836 = vdwg.mxu0
  %4837 = vmatprep.subr.mxu0 %v4755
  %4838 = vmatpush1.msra.mxu0 %v4754
  %4839 = vmatprep.subr.mxu0 0.0
  %4840 = vmatpush1.msra.mxu0 0.0
  %4841 = vmatprep.subr.mxu0 0.0
  %4842 = vmatpush1.msra.mxu0 0.0
  %4843 = vmatprep.subr.mxu0 0.0
  %4844 = vmatpush1.msra.mxu0 0.0
  %4845 = vmatprep.subr.mxu0 0.0
  %4846 = vmatpush1.msra.mxu0 0.0
  %4847 = vmatprep.subr.mxu0 0.0
  %4848 = vmatpush1.msra.mxu0 0.0
  %4849 = vmatprep.subr.mxu0 0.0
  %4850 = vmatpush1.msra.mxu0 0.0
  %4851 = vmatprep.subr.mxu0 0.0
  %4852 = vmatpush1.msra.mxu0 0.0
  %4853 = vmatprep.subr.mxu0 0.0
  %4854 = vmatpush1.msra.mxu0 0.0
  %4855 = vmatprep.subr.mxu0 0.0
  %4856 = vmatpush1.msra.mxu0 0.0
  %4857 = vmatprep.subr.mxu0 0.0
  %4858 = vmatpush1.msra.mxu0 0.0
  %4859 = vmatprep.subr.mxu0 0.0
  %4860 = vmatpush1.msra.mxu0 0.0
  %4861 = vmatprep.subr.mxu0 0.0
  %4862 = vmatpush1.msra.mxu0 0.0
  %4863 = vmatprep.subr.mxu0 0.0
  %4864 = vmatpush1.msra.mxu0 0.0
  %4865 = vmatprep.subr.mxu0 0.0
  %4866 = vmatpush1.msra.mxu0 0.0
  %4867 = vmatprep.subr.mxu0 0.0
  %4868 = vmatpush1.msra.mxu0 0.0
  %4869 = vmatprep.subr.mxu0 0.0
  %4870 = vmatpush1.msra.mxu0 0.0
  %4871 = vmatprep.subr.mxu0 0.0
  %4872 = vmatpush1.msra.mxu0 0.0
  %4873 = vmatprep.subr.mxu0 0.0
  %4874 = vmatpush1.msra.mxu0 0.0
  %4875 = vmatprep.subr.mxu0 0.0
  %4876 = vmatpush1.msra.mxu0 0.0
  %4877 = vmatprep.subr.mxu0 0.0
  %4878 = vmatpush1.msra.mxu0 0.0
  %4879 = vmatprep.subr.mxu0 0.0
  %4880 = vmatpush1.msra.mxu0 0.0
  %4881 = vmatprep.subr.mxu0 0.0
  %4882 = vmatpush1.msra.mxu0 0.0
  %4883 = vmatprep.subr.mxu0 0.0
  %4884 = vmatpush1.msra.mxu0 0.0
  %4885 = vmatprep.subr.mxu0 0.0
  %4886 = vmatpush1.msra.mxu0 0.0
  %4887 = vmatprep.subr.mxu0 0.0
  %4888 = vmatpush1.msra.mxu0 0.0
  %4889 = vmatprep.subr.mxu0 0.0
  %4890 = vmatpush1.msra.mxu0 0.0
  %4891 = vmatprep.subr.mxu0 0.0
  %4892 = vmatpush1.msra.mxu0 0.0
  %4893 = vmatprep.subr.mxu0 0.0
  %4894 = vmatpush1.msra.mxu0 0.0
  %4895 = vmatprep.subr.mxu0 0.0
  %4896 = vmatpush1.msra.mxu0 0.0
  %4897 = vmatprep.subr.mxu0 0.0
  %4898 = vmatpush1.msra.mxu0 0.0
  %4899 = vmatprep.subr.mxu0 0.0
  %4900 = vmatpush1.msra.mxu0 0.0
  %4901 = vmatprep.mubr.f32.mxu0 0.0
  %4902 = vmatmul.mubr.f32.gmra.mrb[0].mxu0 %v4764
  %v4903 = vpop.f32.mrb[0].mxu0
  %v4904 = vadd.f32 0.0, %v4903
  %v4905 = vpop.f32.mrb[0].mxu0
  %v4906 = vadd.f32 0.0, %v4905
  %4907 = vdwg.mxu0
  %4908 = vmatprep.subr.mxu0 %v4751
  %4909 = vmatpush1.msra.mxu0 %v4756
  %4910 = vmatprep.subr.mxu0 0.0
  %4911 = vmatpush1.msra.mxu0 0.0
  %4912 = vmatprep.subr.mxu0 0.0
  %4913 = vmatpush1.msra.mxu0 0.0
  %4914 = vmatprep.subr.mxu0 0.0
  %4915 = vmatpush1.msra.mxu0 0.0
  %4916 = vmatprep.subr.mxu0 0.0
  %4917 = vmatpush1.msra.mxu0 0.0
  %4918 = vmatprep.subr.mxu0 0.0
  %4919 = vmatpush1.msra.mxu0 0.0
  %4920 = vmatprep.subr.mxu0 0.0
  %4921 = vmatpush1.msra.mxu0 0.0
  %4922 = vmatprep.subr.mxu0 0.0
  %4923 = vmatpush1.msra.mxu0 0.0
  %4924 = vmatprep.subr.mxu0 0.0
  %4925 = vmatpush1.msra.mxu0 0.0
  %4926 = vmatprep.subr.mxu0 0.0
  %4927 = vmatpush1.msra.mxu0 0.0
  %4928 = vmatprep.subr.mxu0 0.0
  %4929 = vmatpush1.msra.mxu0 0.0
  %4930 = vmatprep.subr.mxu0 0.0
  %4931 = vmatpush1.msra.mxu0 0.0
  %4932 = vmatprep.subr.mxu0 0.0
  %4933 = vmatpush1.msra.mxu0 0.0
  %4934 = vmatprep.subr.mxu0 0.0
  %4935 = vmatpush1.msra.mxu0 0.0
  %4936 = vmatprep.subr.mxu0 0.0
  %4937 = vmatpush1.msra.mxu0 0.0
  %4938 = vmatprep.subr.mxu0 0.0
  %4939 = vmatpush1.msra.mxu0 0.0
  %4940 = vmatprep.subr.mxu0 0.0
  %4941 = vmatpush1.msra.mxu0 0.0
  %4942 = vmatprep.subr.mxu0 0.0
  %4943 = vmatpush1.msra.mxu0 0.0
  %4944 = vmatprep.subr.mxu0 0.0
  %4945 = vmatpush1.msra.mxu0 0.0
  %4946 = vmatprep.subr.mxu0 0.0
  %4947 = vmatpush1.msra.mxu0 0.0
  %4948 = vmatprep.subr.mxu0 0.0
  %4949 = vmatpush1.msra.mxu0 0.0
  %4950 = vmatprep.subr.mxu0 0.0
  %4951 = vmatpush1.msra.mxu0 0.0
  %4952 = vmatprep.subr.mxu0 0.0
  %4953 = vmatpush1.msra.mxu0 0.0
  %4954 = vmatprep.subr.mxu0 0.0
  %4955 = vmatpush1.msra.mxu0 0.0
  %4956 = vmatprep.subr.mxu0 0.0
  %4957 = vmatpush1.msra.mxu0 0.0
  %4958 = vmatprep.subr.mxu0 0.0
  %4959 = vmatpush1.msra.mxu0 0.0
  %4960 = vmatprep.subr.mxu0 0.0
  %4961 = vmatpush1.msra.mxu0 0.0
  %4962 = vmatprep.subr.mxu0 0.0
  %4963 = vmatpush1.msra.mxu0 0.0
  %4964 = vmatprep.subr.mxu0 0.0
  %4965 = vmatpush1.msra.mxu0 0.0
  %4966 = vmatprep.subr.mxu0 0.0
  %4967 = vmatpush1.msra.mxu0 0.0
  %4968 = vmatprep.subr.mxu0 0.0
  %4969 = vmatpush1.msra.mxu0 0.0
  %4970 = vmatprep.subr.mxu0 0.0
  %4971 = vmatpush1.msra.mxu0 0.0
  %4972 = vmatprep.mubr.f32.mxu0 0.0
  %4973 = vmatmul.mubr.f32.gmra.mrb[0].mxu0 %v4764
  %v4974 = vpop.f32.mrb[0].mxu0
  %v4975 = vadd.f32 0.0, %v4974
  %v4976 = vpop.f32.mrb[0].mxu0
  %v4977 = vadd.f32 0.0, %v4976
  %4978 = vdwg.mxu0
  %4979 = vrot.lane.b32.xlu0 %v4726, 115
  %v4980 = vpop.permute.xlu0 %4979
  %4981 = vrot.lane.b32.xlu0 %v4727, 115
  %v4982 = vpop.permute.xlu0 %4981
  %4983 = vrot.lane.b32.xlu0 %v4728, 115
  %v4984 = vpop.permute.xlu0 %4983
  %4985 = vrot.lane.b32.xlu0 %v4729, 115
  %v4986 = vpop.permute.xlu0 %4985
  %4987 = vrot.lane.b32.xlu0 %v4730, 115
  %v4988 = vpop.permute.xlu0 %4987
  %4989 = vrot.lane.b32.xlu0 %v4731, 115
  %v4990 = vpop.permute.xlu0 %4989
  %v4991 = vsel %vm321, %v4980, %v4982
  %v4992 = vsel %vm321, %v4982, %v4984
  %v4993 = vsel %vm321, %v4984, %v4986
  %v4994 = vsel %vm321, %v4986, %v4988
  %v4995 = vsel %vm321, %v4988, %v4990
  %v5003 = vsel %vm52, %v4725, 0
  %5005 = vmatprep.subr.mxu0 %v4992
  %5006 = vmatpush1.msra.mxu0 %v4991
  %5007 = vmatprep.subr.mxu0 0.0
  %5008 = vmatpush1.msra.mxu0 0.0
  %5009 = vmatprep.subr.mxu0 0.0
  %5010 = vmatpush1.msra.mxu0 0.0
  %5011 = vmatprep.subr.mxu0 0.0
  %5012 = vmatpush1.msra.mxu0 0.0
  %5013 = vmatprep.subr.mxu0 0.0
  %5014 = vmatpush1.msra.mxu0 0.0
  %5015 = vmatprep.subr.mxu0 0.0
  %5016 = vmatpush1.msra.mxu0 0.0
  %5017 = vmatprep.subr.mxu0 0.0
  %5018 = vmatpush1.msra.mxu0 0.0
  %5019 = vmatprep.subr.mxu0 0.0
  %5020 = vmatpush1.msra.mxu0 0.0
  %5021 = vmatprep.subr.mxu0 0.0
  %5022 = vmatpush1.msra.mxu0 0.0
  %5023 = vmatprep.subr.mxu0 0.0
  %5024 = vmatpush1.msra.mxu0 0.0
  %5025 = vmatprep.subr.mxu0 0.0
  %5026 = vmatpush1.msra.mxu0 0.0
  %5027 = vmatprep.subr.mxu0 0.0
  %5028 = vmatpush1.msra.mxu0 0.0
  %5029 = vmatprep.subr.mxu0 0.0
  %5030 = vmatpush1.msra.mxu0 0.0
  %5031 = vmatprep.subr.mxu0 0.0
  %5032 = vmatpush1.msra.mxu0 0.0
  %5033 = vmatprep.subr.mxu0 0.0
  %5034 = vmatpush1.msra.mxu0 0.0
  %5035 = vmatprep.subr.mxu0 0.0
  %5036 = vmatpush1.msra.mxu0 0.0
  %5037 = vmatprep.subr.mxu0 0.0
  %5038 = vmatpush1.msra.mxu0 0.0
  %5039 = vmatprep.subr.mxu0 0.0
  %5040 = vmatpush1.msra.mxu0 0.0
  %5041 = vmatprep.subr.mxu0 0.0
  %5042 = vmatpush1.msra.mxu0 0.0
  %5043 = vmatprep.subr.mxu0 0.0
  %5044 = vmatpush1.msra.mxu0 0.0
  %5045 = vmatprep.subr.mxu0 0.0
  %5046 = vmatpush1.msra.mxu0 0.0
  %5047 = vmatprep.subr.mxu0 0.0
  %5048 = vmatpush1.msra.mxu0 0.0
  %5049 = vmatprep.subr.mxu0 0.0
  %5050 = vmatpush1.msra.mxu0 0.0
  %5051 = vmatprep.subr.mxu0 0.0
  %5052 = vmatpush1.msra.mxu0 0.0
  %5053 = vmatprep.subr.mxu0 0.0
  %5054 = vmatpush1.msra.mxu0 0.0
  %5055 = vmatprep.subr.mxu0 0.0
  %5056 = vmatpush1.msra.mxu0 0.0
  %5057 = vmatprep.subr.mxu0 0.0
  %5058 = vmatpush1.msra.mxu0 0.0
  %5059 = vmatprep.subr.mxu0 0.0
  %5060 = vmatpush1.msra.mxu0 0.0
  %5061 = vmatprep.subr.mxu0 0.0
  %5062 = vmatpush1.msra.mxu0 0.0
  %5063 = vmatprep.subr.mxu0 0.0
  %5064 = vmatpush1.msra.mxu0 0.0
  %5065 = vmatprep.subr.mxu0 0.0
  %5066 = vmatpush1.msra.mxu0 0.0
  %5067 = vmatprep.subr.mxu0 0.0
  %5068 = vmatpush1.msra.mxu0 0.0
  %5069 = vmatprep.mubr.f32.mxu0 0.0
  %5070 = vmatmul.mubr.f32.gmra.mrb[0].mxu0 %v5003
  %v5071 = vpop.f32.mrb[0].mxu0
  %v5072 = vadd.f32 %v4833, %v5071
  %v5073 = vpop.f32.mrb[0].mxu0
  %v5074 = vadd.f32 %v4835, %v5073
  %5075 = vdwg.mxu0
  %5076 = vmatprep.subr.mxu0 %v4994
  %5077 = vmatpush1.msra.mxu0 %v4993
  %5078 = vmatprep.subr.mxu0 0.0
  %5079 = vmatpush1.msra.mxu0 0.0
  %5080 = vmatprep.subr.mxu0 0.0
  %5081 = vmatpush1.msra.mxu0 0.0
  %5082 = vmatprep.subr.mxu0 0.0
  %5083 = vmatpush1.msra.mxu0 0.0
  %5084 = vmatprep.subr.mxu0 0.0
  %5085 = vmatpush1.msra.mxu0 0.0
  %5086 = vmatprep.subr.mxu0 0.0
  %5087 = vmatpush1.msra.mxu0 0.0
  %5088 = vmatprep.subr.mxu0 0.0
  %5089 = vmatpush1.msra.mxu0 0.0
  %5090 = vmatprep.subr.mxu0 0.0
  %5091 = vmatpush1.msra.mxu0 0.0
  %5092 = vmatprep.subr.mxu0 0.0
  %5093 = vmatpush1.msra.mxu0 0.0
  %5094 = vmatprep.subr.mxu0 0.0
  %5095 = vmatpush1.msra.mxu0 0.0
  %5096 = vmatprep.subr.mxu0 0.0
  %5097 = vmatpush1.msra.mxu0 0.0
  %5098 = vmatprep.subr.mxu0 0.0
  %5099 = vmatpush1.msra.mxu0 0.0
  %5100 = vmatprep.subr.mxu0 0.0
  %5101 = vmatpush1.msra.mxu0 0.0
  %5102 = vmatprep.subr.mxu0 0.0
  %5103 = vmatpush1.msra.mxu0 0.0
  %5104 = vmatprep.subr.mxu0 0.0
  %5105 = vmatpush1.msra.mxu0 0.0
  %5106 = vmatprep.subr.mxu0 0.0
  %5107 = vmatpush1.msra.mxu0 0.0
  %5108 = vmatprep.subr.mxu0 0.0
  %5109 = vmatpush1.msra.mxu0 0.0
  %5110 = vmatprep.subr.mxu0 0.0
  %5111 = vmatpush1.msra.mxu0 0.0
  %5112 = vmatprep.subr.mxu0 0.0
  %5113 = vmatpush1.msra.mxu0 0.0
  %5114 = vmatprep.subr.mxu0 0.0
  %5115 = vmatpush1.msra.mxu0 0.0
  %5116 = vmatprep.subr.mxu0 0.0
  %5117 = vmatpush1.msra.mxu0 0.0
  %5118 = vmatprep.subr.mxu0 0.0
  %5119 = vmatpush1.msra.mxu0 0.0
  %5120 = vmatprep.subr.mxu0 0.0
  %5121 = vmatpush1.msra.mxu0 0.0
  %5122 = vmatprep.subr.mxu0 0.0
  %5123 = vmatpush1.msra.mxu0 0.0
  %5124 = vmatprep.subr.mxu0 0.0
  %5125 = vmatpush1.msra.mxu0 0.0
  %5126 = vmatprep.subr.mxu0 0.0
  %5127 = vmatpush1.msra.mxu0 0.0
  %5128 = vmatprep.subr.mxu0 0.0
  %5129 = vmatpush1.msra.mxu0 0.0
  %5130 = vmatprep.subr.mxu0 0.0
  %5131 = vmatpush1.msra.mxu0 0.0
  %5132 = vmatprep.subr.mxu0 0.0
  %5133 = vmatpush1.msra.mxu0 0.0
  %5134 = vmatprep.subr.mxu0 0.0
  %5135 = vmatpush1.msra.mxu0 0.0
  %5136 = vmatprep.subr.mxu0 0.0
  %5137 = vmatpush1.msra.mxu0 0.0
  %5138 = vmatprep.subr.mxu0 0.0
  %5139 = vmatpush1.msra.mxu0 0.0
  %5140 = vmatprep.mubr.f32.mxu0 0.0
  %5141 = vmatmul.mubr.f32.gmra.mrb[0].mxu0 %v5003
  %v5142 = vpop.f32.mrb[0].mxu0
  %v5143 = vadd.f32 %v4904, %v5142
  %v5144 = vpop.f32.mrb[0].mxu0
  %v5145 = vadd.f32 %v4906, %v5144
  %5146 = vdwg.mxu0
  %5147 = vmatprep.subr.mxu0 %v4990
  %5148 = vmatpush1.msra.mxu0 %v4995
  %5149 = vmatprep.subr.mxu0 0.0
  %5150 = vmatpush1.msra.mxu0 0.0
  %5151 = vmatprep.subr.mxu0 0.0
  %5152 = vmatpush1.msra.mxu0 0.0
  %5153 = vmatprep.subr.mxu0 0.0
  %5154 = vmatpush1.msra.mxu0 0.0
  %5155 = vmatprep.subr.mxu0 0.0
  %5156 = vmatpush1.msra.mxu0 0.0
  %5157 = vmatprep.subr.mxu0 0.0
  %5158 = vmatpush1.msra.mxu0 0.0
  %5159 = vmatprep.subr.mxu0 0.0
  %5160 = vmatpush1.msra.mxu0 0.0
  %5161 = vmatprep.subr.mxu0 0.0
  %5162 = vmatpush1.msra.mxu0 0.0
  %5163 = vmatprep.subr.mxu0 0.0
  %5164 = vmatpush1.msra.mxu0 0.0
  %5165 = vmatprep.subr.mxu0 0.0
  %5166 = vmatpush1.msra.mxu0 0.0
  %5167 = vmatprep.subr.mxu0 0.0
  %5168 = vmatpush1.msra.mxu0 0.0
  %5169 = vmatprep.subr.mxu0 0.0
  %5170 = vmatpush1.msra.mxu0 0.0
  %5171 = vmatprep.subr.mxu0 0.0
  %5172 = vmatpush1.msra.mxu0 0.0
  %5173 = vmatprep.subr.mxu0 0.0
  %5174 = vmatpush1.msra.mxu0 0.0
  %5175 = vmatprep.subr.mxu0 0.0
  %5176 = vmatpush1.msra.mxu0 0.0
  %5177 = vmatprep.subr.mxu0 0.0
  %5178 = vmatpush1.msra.mxu0 0.0
  %5179 = vmatprep.subr.mxu0 0.0
  %5180 = vmatpush1.msra.mxu0 0.0
  %5181 = vmatprep.subr.mxu0 0.0
  %5182 = vmatpush1.msra.mxu0 0.0
  %5183 = vmatprep.subr.mxu0 0.0
  %5184 = vmatpush1.msra.mxu0 0.0
  %5185 = vmatprep.subr.mxu0 0.0
  %5186 = vmatpush1.msra.mxu0 0.0
  %5187 = vmatprep.subr.mxu0 0.0
  %5188 = vmatpush1.msra.mxu0 0.0
  %5189 = vmatprep.subr.mxu0 0.0
  %5190 = vmatpush1.msra.mxu0 0.0
  %5191 = vmatprep.subr.mxu0 0.0
  %5192 = vmatpush1.msra.mxu0 0.0
  %5193 = vmatprep.subr.mxu0 0.0
  %5194 = vmatpush1.msra.mxu0 0.0
  %5195 = vmatprep.subr.mxu0 0.0
  %5196 = vmatpush1.msra.mxu0 0.0
  %5197 = vmatprep.subr.mxu0 0.0
  %5198 = vmatpush1.msra.mxu0 0.0
  %5199 = vmatprep.subr.mxu0 0.0
  %5200 = vmatpush1.msra.mxu0 0.0
  %5201 = vmatprep.subr.mxu0 0.0
  %5202 = vmatpush1.msra.mxu0 0.0
  %5203 = vmatprep.subr.mxu0 0.0
  %5204 = vmatpush1.msra.mxu0 0.0
  %5205 = vmatprep.subr.mxu0 0.0
  %5206 = vmatpush1.msra.mxu0 0.0
  %5207 = vmatprep.subr.mxu0 0.0
  %5208 = vmatpush1.msra.mxu0 0.0
  %5209 = vmatprep.subr.mxu0 0.0
  %5210 = vmatpush1.msra.mxu0 0.0
  %5211 = vmatprep.mubr.f32.mxu0 0.0
  %5212 = vmatmul.mubr.f32.gmra.mrb[0].mxu0 %v5003
  %v5213 = vpop.f32.mrb[0].mxu0
  %v5214 = vadd.f32 %v4975, %v5213
  %v5215 = vpop.f32.mrb[0].mxu0
  %v5216 = vadd.f32 %v4977, %v5215
  %5217 = vdwg.mxu0
  %s5218 = scalar_lea.vmem %s1, 160
  %v5219 = vld [vmem:[%s5218] sm:$0xff]
  %5220 = vrot.lane.b32.xlu0 %v4726, 113
  %v5221 = vpop.permute.xlu0 %5220
  %5222 = vrot.lane.b32.xlu0 %v4727, 113
  %v5223 = vpop.permute.xlu0 %5222
  %5224 = vrot.lane.b32.xlu0 %v4728, 113
  %v5225 = vpop.permute.xlu0 %5224
  %5226 = vrot.lane.b32.xlu0 %v4729, 113
  %v5227 = vpop.permute.xlu0 %5226
  %5228 = vrot.lane.b32.xlu0 %v4730, 113
  %v5229 = vpop.permute.xlu0 %5228
  %5230 = vrot.lane.b32.xlu0 %v4731, 113
  %v5231 = vpop.permute.xlu0 %5230
  %v5232 = vsel %vm563, %v5221, %v5223
  %v5233 = vsel %vm563, %v5223, %v5225
  %v5234 = vsel %vm563, %v5225, %v5227
  %v5235 = vsel %vm563, %v5227, %v5229
  %v5236 = vsel %vm563, %v5229, %v5231
  %v5244 = vsel %vm52, %v5219, 0
  %5246 = vmatprep.subr.mxu0 %v5233
  %5247 = vmatpush1.msra.mxu0 %v5232
  %5248 = vmatprep.subr.mxu0 0.0
  %5249 = vmatpush1.msra.mxu0 0.0
  %5250 = vmatprep.subr.mxu0 0.0
  %5251 = vmatpush1.msra.mxu0 0.0
  %5252 = vmatprep.subr.mxu0 0.0
  %5253 = vmatpush1.msra.mxu0 0.0
  %5254 = vmatprep.subr.mxu0 0.0
  %5255 = vmatpush1.msra.mxu0 0.0
  %5256 = vmatprep.subr.mxu0 0.0
  %5257 = vmatpush1.msra.mxu0 0.0
  %5258 = vmatprep.subr.mxu0 0.0
  %5259 = vmatpush1.msra.mxu0 0.0
  %5260 = vmatprep.subr.mxu0 0.0
  %5261 = vmatpush1.msra.mxu0 0.0
  %5262 = vmatprep.subr.mxu0 0.0
  %5263 = vmatpush1.msra.mxu0 0.0
  %5264 = vmatprep.subr.mxu0 0.0
  %5265 = vmatpush1.msra.mxu0 0.0
  %5266 = vmatprep.subr.mxu0 0.0
  %5267 = vmatpush1.msra.mxu0 0.0
  %5268 = vmatprep.subr.mxu0 0.0
  %5269 = vmatpush1.msra.mxu0 0.0
  %5270 = vmatprep.subr.mxu0 0.0
  %5271 = vmatpush1.msra.mxu0 0.0
  %5272 = vmatprep.subr.mxu0 0.0
  %5273 = vmatpush1.msra.mxu0 0.0
  %5274 = vmatprep.subr.mxu0 0.0
  %5275 = vmatpush1.msra.mxu0 0.0
  %5276 = vmatprep.subr.mxu0 0.0
  %5277 = vmatpush1.msra.mxu0 0.0
  %5278 = vmatprep.subr.mxu0 0.0
  %5279 = vmatpush1.msra.mxu0 0.0
  %5280 = vmatprep.subr.mxu0 0.0
  %5281 = vmatpush1.msra.mxu0 0.0
  %5282 = vmatprep.subr.mxu0 0.0
  %5283 = vmatpush1.msra.mxu0 0.0
  %5284 = vmatprep.subr.mxu0 0.0
  %5285 = vmatpush1.msra.mxu0 0.0
  %5286 = vmatprep.subr.mxu0 0.0
  %5287 = vmatpush1.msra.mxu0 0.0
  %5288 = vmatprep.subr.mxu0 0.0
  %5289 = vmatpush1.msra.mxu0 0.0
  %5290 = vmatprep.subr.mxu0 0.0
  %5291 = vmatpush1.msra.mxu0 0.0
  %5292 = vmatprep.subr.mxu0 0.0
  %5293 = vmatpush1.msra.mxu0 0.0
  %5294 = vmatprep.subr.mxu0 0.0
  %5295 = vmatpush1.msra.mxu0 0.0
  %5296 = vmatprep.subr.mxu0 0.0
  %5297 = vmatpush1.msra.mxu0 0.0
  %5298 = vmatprep.subr.mxu0 0.0
  %5299 = vmatpush1.msra.mxu0 0.0
  %5300 = vmatprep.subr.mxu0 0.0
  %5301 = vmatpush1.msra.mxu0 0.0
  %5302 = vmatprep.subr.mxu0 0.0
  %5303 = vmatpush1.msra.mxu0 0.0
  %5304 = vmatprep.subr.mxu0 0.0
  %5305 = vmatpush1.msra.mxu0 0.0
  %5306 = vmatprep.subr.mxu0 0.0
  %5307 = vmatpush1.msra.mxu0 0.0
  %5308 = vmatprep.subr.mxu0 0.0
  %5309 = vmatpush1.msra.mxu0 0.0
  %5310 = vmatprep.mubr.f32.mxu0 0.0
  %5311 = vmatmul.mubr.f32.gmra.mrb[0].mxu0 %v5244
  %v5312 = vpop.f32.mrb[0].mxu0
  %v5313 = vadd.f32 0.0, %v5312
  %v5314 = vpop.f32.mrb[0].mxu0
  %v5315 = vadd.f32 0.0, %v5314
  %5316 = vdwg.mxu0
  %5317 = vmatprep.subr.mxu0 %v5235
  %5318 = vmatpush1.msra.mxu0 %v5234
  %5319 = vmatprep.subr.mxu0 0.0
  %5320 = vmatpush1.msra.mxu0 0.0
  %5321 = vmatprep.subr.mxu0 0.0
  %5322 = vmatpush1.msra.mxu0 0.0
  %5323 = vmatprep.subr.mxu0 0.0
  %5324 = vmatpush1.msra.mxu0 0.0
  %5325 = vmatprep.subr.mxu0 0.0
  %5326 = vmatpush1.msra.mxu0 0.0
  %5327 = vmatprep.subr.mxu0 0.0
  %5328 = vmatpush1.msra.mxu0 0.0
  %5329 = vmatprep.subr.mxu0 0.0
  %5330 = vmatpush1.msra.mxu0 0.0
  %5331 = vmatprep.subr.mxu0 0.0
  %5332 = vmatpush1.msra.mxu0 0.0
  %5333 = vmatprep.subr.mxu0 0.0
  %5334 = vmatpush1.msra.mxu0 0.0
  %5335 = vmatprep.subr.mxu0 0.0
  %5336 = vmatpush1.msra.mxu0 0.0
  %5337 = vmatprep.subr.mxu0 0.0
  %5338 = vmatpush1.msra.mxu0 0.0
  %5339 = vmatprep.subr.mxu0 0.0
  %5340 = vmatpush1.msra.mxu0 0.0
  %5341 = vmatprep.subr.mxu0 0.0
  %5342 = vmatpush1.msra.mxu0 0.0
  %5343 = vmatprep.subr.mxu0 0.0
  %5344 = vmatpush1.msra.mxu0 0.0
  %5345 = vmatprep.subr.mxu0 0.0
  %5346 = vmatpush1.msra.mxu0 0.0
  %5347 = vmatprep.subr.mxu0 0.0
  %5348 = vmatpush1.msra.mxu0 0.0
  %5349 = vmatprep.subr.mxu0 0.0
  %5350 = vmatpush1.msra.mxu0 0.0
  %5351 = vmatprep.subr.mxu0 0.0
  %5352 = vmatpush1.msra.mxu0 0.0
  %5353 = vmatprep.subr.mxu0 0.0
  %5354 = vmatpush1.msra.mxu0 0.0
  %5355 = vmatprep.subr.mxu0 0.0
  %5356 = vmatpush1.msra.mxu0 0.0
  %5357 = vmatprep.subr.mxu0 0.0
  %5358 = vmatpush1.msra.mxu0 0.0
  %5359 = vmatprep.subr.mxu0 0.0
  %5360 = vmatpush1.msra.mxu0 0.0
  %5361 = vmatprep.subr.mxu0 0.0
  %5362 = vmatpush1.msra.mxu0 0.0
  %5363 = vmatprep.subr.mxu0 0.0
  %5364 = vmatpush1.msra.mxu0 0.0
  %5365 = vmatprep.subr.mxu0 0.0
  %5366 = vmatpush1.msra.mxu0 0.0
  %5367 = vmatprep.subr.mxu0 0.0
  %5368 = vmatpush1.msra.mxu0 0.0
  %5369 = vmatprep.subr.mxu0 0.0
  %5370 = vmatpush1.msra.mxu0 0.0
  %5371 = vmatprep.subr.mxu0 0.0
  %5372 = vmatpush1.msra.mxu0 0.0
  %5373 = vmatprep.subr.mxu0 0.0
  %5374 = vmatpush1.msra.mxu0 0.0
  %5375 = vmatprep.subr.mxu0 0.0
  %5376 = vmatpush1.msra.mxu0 0.0
  %5377 = vmatprep.subr.mxu0 0.0
  %5378 = vmatpush1.msra.mxu0 0.0
  %5379 = vmatprep.subr.mxu0 0.0
  %5380 = vmatpush1.msra.mxu0 0.0
  %5381 = vmatprep.mubr.f32.mxu0 0.0
  %5382 = vmatmul.mubr.f32.gmra.mrb[0].mxu0 %v5244
  %v5383 = vpop.f32.mrb[0].mxu0
  %v5384 = vadd.f32 0.0, %v5383
  %v5385 = vpop.f32.mrb[0].mxu0
  %v5386 = vadd.f32 0.0, %v5385
  %5387 = vdwg.mxu0
  %5388 = vmatprep.subr.mxu0 %v5231
  %5389 = vmatpush1.msra.mxu0 %v5236
  %5390 = vmatprep.subr.mxu0 0.0
  %5391 = vmatpush1.msra.mxu0 0.0
  %5392 = vmatprep.subr.mxu0 0.0
  %5393 = vmatpush1.msra.mxu0 0.0
  %5394 = vmatprep.subr.mxu0 0.0
  %5395 = vmatpush1.msra.mxu0 0.0
  %5396 = vmatprep.subr.mxu0 0.0
  %5397 = vmatpush1.msra.mxu0 0.0
  %5398 = vmatprep.subr.mxu0 0.0
  %5399 = vmatpush1.msra.mxu0 0.0
  %5400 = vmatprep.subr.mxu0 0.0
  %5401 = vmatpush1.msra.mxu0 0.0
  %5402 = vmatprep.subr.mxu0 0.0
  %5403 = vmatpush1.msra.mxu0 0.0
  %5404 = vmatprep.subr.mxu0 0.0
  %5405 = vmatpush1.msra.mxu0 0.0
  %5406 = vmatprep.subr.mxu0 0.0
  %5407 = vmatpush1.msra.mxu0 0.0
  %5408 = vmatprep.subr.mxu0 0.0
  %5409 = vmatpush1.msra.mxu0 0.0
  %5410 = vmatprep.subr.mxu0 0.0
  %5411 = vmatpush1.msra.mxu0 0.0
  %5412 = vmatprep.subr.mxu0 0.0
  %5413 = vmatpush1.msra.mxu0 0.0
  %5414 = vmatprep.subr.mxu0 0.0
  %5415 = vmatpush1.msra.mxu0 0.0
  %5416 = vmatprep.subr.mxu0 0.0
  %5417 = vmatpush1.msra.mxu0 0.0
  %5418 = vmatprep.subr.mxu0 0.0
  %5419 = vmatpush1.msra.mxu0 0.0
  %5420 = vmatprep.subr.mxu0 0.0
  %5421 = vmatpush1.msra.mxu0 0.0
  %5422 = vmatprep.subr.mxu0 0.0
  %5423 = vmatpush1.msra.mxu0 0.0
  %5424 = vmatprep.subr.mxu0 0.0
  %5425 = vmatpush1.msra.mxu0 0.0
  %5426 = vmatprep.subr.mxu0 0.0
  %5427 = vmatpush1.msra.mxu0 0.0
  %5428 = vmatprep.subr.mxu0 0.0
  %5429 = vmatpush1.msra.mxu0 0.0
  %5430 = vmatprep.subr.mxu0 0.0
  %5431 = vmatpush1.msra.mxu0 0.0
  %5432 = vmatprep.subr.mxu0 0.0
  %5433 = vmatpush1.msra.mxu0 0.0
  %5434 = vmatprep.subr.mxu0 0.0
  %5435 = vmatpush1.msra.mxu0 0.0
  %5436 = vmatprep.subr.mxu0 0.0
  %5437 = vmatpush1.msra.mxu0 0.0
  %5438 = vmatprep.subr.mxu0 0.0
  %5439 = vmatpush1.msra.mxu0 0.0
  %5440 = vmatprep.subr.mxu0 0.0
  %5441 = vmatpush1.msra.mxu0 0.0
  %5442 = vmatprep.subr.mxu0 0.0
  %5443 = vmatpush1.msra.mxu0 0.0
  %5444 = vmatprep.subr.mxu0 0.0
  %5445 = vmatpush1.msra.mxu0 0.0
  %5446 = vmatprep.subr.mxu0 0.0
  %5447 = vmatpush1.msra.mxu0 0.0
  %5448 = vmatprep.subr.mxu0 0.0
  %5449 = vmatpush1.msra.mxu0 0.0
  %5450 = vmatprep.subr.mxu0 0.0
  %5451 = vmatpush1.msra.mxu0 0.0
  %5452 = vmatprep.mubr.f32.mxu0 0.0
  %5453 = vmatmul.mubr.f32.gmra.mrb[0].mxu0 %v5244
  %v5454 = vpop.f32.mrb[0].mxu0
  %v5455 = vadd.f32 0.0, %v5454
  %v5456 = vpop.f32.mrb[0].mxu0
  %v5457 = vadd.f32 0.0, %v5456
  %5458 = vdwg.mxu0
  %v5459 = vadd.f32 %v5072, %v5313
  %v5460 = vadd.f32 %v5074, %v5315
  %v5461 = vadd.f32 %v5143, %v5384
  %v5462 = vadd.f32 %v5145, %v5386
  %v5463 = vadd.f32 %v5214, %v5455
  %v5464 = vadd.f32 %v5216, %v5457
  %s5465 = scalar_lea.vmem %s1, 168
  %v5466 = vld [vmem:[%s5465] sm:$0xff]
  %5467 = vrot.lane.b32.xlu0 %v4726, 97
  %v5468 = vpop.permute.xlu0 %5467
  %5469 = vrot.lane.b32.xlu0 %v4727, 97
  %v5470 = vpop.permute.xlu0 %5469
  %5471 = vrot.lane.b32.xlu0 %v4728, 97
  %v5472 = vpop.permute.xlu0 %5471
  %5473 = vrot.lane.b32.xlu0 %v4729, 97
  %v5474 = vpop.permute.xlu0 %5473
  %5475 = vrot.lane.b32.xlu0 %v4730, 97
  %v5476 = vpop.permute.xlu0 %5475
  %5477 = vrot.lane.b32.xlu0 %v4731, 97
  %v5478 = vpop.permute.xlu0 %5477
  %v5479 = vsel %vm811, %v5468, %v5470
  %v5480 = vsel %vm811, %v5470, %v5472
  %v5481 = vsel %vm811, %v5472, %v5474
  %v5482 = vsel %vm811, %v5474, %v5476
  %v5483 = vsel %vm811, %v5476, %v5478
  %v5491 = vsel %vm52, %v5466, 0
  %5493 = vmatprep.subr.mxu0 %v5480
  %5494 = vmatpush1.msra.mxu0 %v5479
  %5495 = vmatprep.subr.mxu0 0.0
  %5496 = vmatpush1.msra.mxu0 0.0
  %5497 = vmatprep.subr.mxu0 0.0
  %5498 = vmatpush1.msra.mxu0 0.0
  %5499 = vmatprep.subr.mxu0 0.0
  %5500 = vmatpush1.msra.mxu0 0.0
  %5501 = vmatprep.subr.mxu0 0.0
  %5502 = vmatpush1.msra.mxu0 0.0
  %5503 = vmatprep.subr.mxu0 0.0
  %5504 = vmatpush1.msra.mxu0 0.0
  %5505 = vmatprep.subr.mxu0 0.0
  %5506 = vmatpush1.msra.mxu0 0.0
  %5507 = vmatprep.subr.mxu0 0.0
  %5508 = vmatpush1.msra.mxu0 0.0
  %5509 = vmatprep.subr.mxu0 0.0
  %5510 = vmatpush1.msra.mxu0 0.0
  %5511 = vmatprep.subr.mxu0 0.0
  %5512 = vmatpush1.msra.mxu0 0.0
  %5513 = vmatprep.subr.mxu0 0.0
  %5514 = vmatpush1.msra.mxu0 0.0
  %5515 = vmatprep.subr.mxu0 0.0
  %5516 = vmatpush1.msra.mxu0 0.0
  %5517 = vmatprep.subr.mxu0 0.0
  %5518 = vmatpush1.msra.mxu0 0.0
  %5519 = vmatprep.subr.mxu0 0.0
  %5520 = vmatpush1.msra.mxu0 0.0
  %5521 = vmatprep.subr.mxu0 0.0
  %5522 = vmatpush1.msra.mxu0 0.0
  %5523 = vmatprep.subr.mxu0 0.0
  %5524 = vmatpush1.msra.mxu0 0.0
  %5525 = vmatprep.subr.mxu0 0.0
  %5526 = vmatpush1.msra.mxu0 0.0
  %5527 = vmatprep.subr.mxu0 0.0
  %5528 = vmatpush1.msra.mxu0 0.0
  %5529 = vmatprep.subr.mxu0 0.0
  %5530 = vmatpush1.msra.mxu0 0.0
  %5531 = vmatprep.subr.mxu0 0.0
  %5532 = vmatpush1.msra.mxu0 0.0
  %5533 = vmatprep.subr.mxu0 0.0
  %5534 = vmatpush1.msra.mxu0 0.0
  %5535 = vmatprep.subr.mxu0 0.0
  %5536 = vmatpush1.msra.mxu0 0.0
  %5537 = vmatprep.subr.mxu0 0.0
  %5538 = vmatpush1.msra.mxu0 0.0
  %5539 = vmatprep.subr.mxu0 0.0
  %5540 = vmatpush1.msra.mxu0 0.0
  %5541 = vmatprep.subr.mxu0 0.0
  %5542 = vmatpush1.msra.mxu0 0.0
  %5543 = vmatprep.subr.mxu0 0.0
  %5544 = vmatpush1.msra.mxu0 0.0
  %5545 = vmatprep.subr.mxu0 0.0
  %5546 = vmatpush1.msra.mxu0 0.0
  %5547 = vmatprep.subr.mxu0 0.0
  %5548 = vmatpush1.msra.mxu0 0.0
  %5549 = vmatprep.subr.mxu0 0.0
  %5550 = vmatpush1.msra.mxu0 0.0
  %5551 = vmatprep.subr.mxu0 0.0
  %5552 = vmatpush1.msra.mxu0 0.0
  %5553 = vmatprep.subr.mxu0 0.0
  %5554 = vmatpush1.msra.mxu0 0.0
  %5555 = vmatprep.subr.mxu0 0.0
  %5556 = vmatpush1.msra.mxu0 0.0
  %5557 = vmatprep.mubr.f32.mxu0 0.0
  %5558 = vmatmul.mubr.f32.gmra.mrb[0].mxu0 %v5491
  %v5559 = vpop.f32.mrb[0].mxu0
  %v5560 = vadd.f32 0.0, %v5559
  %v5561 = vpop.f32.mrb[0].mxu0
  %v5562 = vadd.f32 0.0, %v5561
  %5563 = vdwg.mxu0
  %5564 = vmatprep.subr.mxu0 %v5482
  %5565 = vmatpush1.msra.mxu0 %v5481
  %5566 = vmatprep.subr.mxu0 0.0
  %5567 = vmatpush1.msra.mxu0 0.0
  %5568 = vmatprep.subr.mxu0 0.0
  %5569 = vmatpush1.msra.mxu0 0.0
  %5570 = vmatprep.subr.mxu0 0.0
  %5571 = vmatpush1.msra.mxu0 0.0
  %5572 = vmatprep.subr.mxu0 0.0
  %5573 = vmatpush1.msra.mxu0 0.0
  %5574 = vmatprep.subr.mxu0 0.0
  %5575 = vmatpush1.msra.mxu0 0.0
  %5576 = vmatprep.subr.mxu0 0.0
  %5577 = vmatpush1.msra.mxu0 0.0
  %5578 = vmatprep.subr.mxu0 0.0
  %5579 = vmatpush1.msra.mxu0 0.0
  %5580 = vmatprep.subr.mxu0 0.0
  %5581 = vmatpush1.msra.mxu0 0.0
  %5582 = vmatprep.subr.mxu0 0.0
  %5583 = vmatpush1.msra.mxu0 0.0
  %5584 = vmatprep.subr.mxu0 0.0
  %5585 = vmatpush1.msra.mxu0 0.0
  %5586 = vmatprep.subr.mxu0 0.0
  %5587 = vmatpush1.msra.mxu0 0.0
  %5588 = vmatprep.subr.mxu0 0.0
  %5589 = vmatpush1.msra.mxu0 0.0
  %5590 = vmatprep.subr.mxu0 0.0
  %5591 = vmatpush1.msra.mxu0 0.0
  %5592 = vmatprep.subr.mxu0 0.0
  %5593 = vmatpush1.msra.mxu0 0.0
  %5594 = vmatprep.subr.mxu0 0.0
  %5595 = vmatpush1.msra.mxu0 0.0
  %5596 = vmatprep.subr.mxu0 0.0
  %5597 = vmatpush1.msra.mxu0 0.0
  %5598 = vmatprep.subr.mxu0 0.0
  %5599 = vmatpush1.msra.mxu0 0.0
  %5600 = vmatprep.subr.mxu0 0.0
  %5601 = vmatpush1.msra.mxu0 0.0
  %5602 = vmatprep.subr.mxu0 0.0
  %5603 = vmatpush1.msra.mxu0 0.0
  %5604 = vmatprep.subr.mxu0 0.0
  %5605 = vmatpush1.msra.mxu0 0.0
  %5606 = vmatprep.subr.mxu0 0.0
  %5607 = vmatpush1.msra.mxu0 0.0
  %5608 = vmatprep.subr.mxu0 0.0
  %5609 = vmatpush1.msra.mxu0 0.0
  %5610 = vmatprep.subr.mxu0 0.0
  %5611 = vmatpush1.msra.mxu0 0.0
  %5612 = vmatprep.subr.mxu0 0.0
  %5613 = vmatpush1.msra.mxu0 0.0
  %5614 = vmatprep.subr.mxu0 0.0
  %5615 = vmatpush1.msra.mxu0 0.0
  %5616 = vmatprep.subr.mxu0 0.0
  %5617 = vmatpush1.msra.mxu0 0.0
  %5618 = vmatprep.subr.mxu0 0.0
  %5619 = vmatpush1.msra.mxu0 0.0
  %5620 = vmatprep.subr.mxu0 0.0
  %5621 = vmatpush1.msra.mxu0 0.0
  %5622 = vmatprep.subr.mxu0 0.0
  %5623 = vmatpush1.msra.mxu0 0.0
  %5624 = vmatprep.subr.mxu0 0.0
  %5625 = vmatpush1.msra.mxu0 0.0
  %5626 = vmatprep.subr.mxu0 0.0
  %5627 = vmatpush1.msra.mxu0 0.0
  %5628 = vmatprep.mubr.f32.mxu0 0.0
  %5629 = vmatmul.mubr.f32.gmra.mrb[0].mxu0 %v5491
  %v5630 = vpop.f32.mrb[0].mxu0
  %v5631 = vadd.f32 0.0, %v5630
  %v5632 = vpop.f32.mrb[0].mxu0
  %v5633 = vadd.f32 0.0, %v5632
  %5634 = vdwg.mxu0
  %5635 = vmatprep.subr.mxu0 %v5478
  %5636 = vmatpush1.msra.mxu0 %v5483
  %5637 = vmatprep.subr.mxu0 0.0
  %5638 = vmatpush1.msra.mxu0 0.0
  %5639 = vmatprep.subr.mxu0 0.0
  %5640 = vmatpush1.msra.mxu0 0.0
  %5641 = vmatprep.subr.mxu0 0.0
  %5642 = vmatpush1.msra.mxu0 0.0
  %5643 = vmatprep.subr.mxu0 0.0
  %5644 = vmatpush1.msra.mxu0 0.0
  %5645 = vmatprep.subr.mxu0 0.0
  %5646 = vmatpush1.msra.mxu0 0.0
  %5647 = vmatprep.subr.mxu0 0.0
  %5648 = vmatpush1.msra.mxu0 0.0
  %5649 = vmatprep.subr.mxu0 0.0
  %5650 = vmatpush1.msra.mxu0 0.0
  %5651 = vmatprep.subr.mxu0 0.0
  %5652 = vmatpush1.msra.mxu0 0.0
  %5653 = vmatprep.subr.mxu0 0.0
  %5654 = vmatpush1.msra.mxu0 0.0
  %5655 = vmatprep.subr.mxu0 0.0
  %5656 = vmatpush1.msra.mxu0 0.0
  %5657 = vmatprep.subr.mxu0 0.0
  %5658 = vmatpush1.msra.mxu0 0.0
  %5659 = vmatprep.subr.mxu0 0.0
  %5660 = vmatpush1.msra.mxu0 0.0
  %5661 = vmatprep.subr.mxu0 0.0
  %5662 = vmatpush1.msra.mxu0 0.0
  %5663 = vmatprep.subr.mxu0 0.0
  %5664 = vmatpush1.msra.mxu0 0.0
  %5665 = vmatprep.subr.mxu0 0.0
  %5666 = vmatpush1.msra.mxu0 0.0
  %5667 = vmatprep.subr.mxu0 0.0
  %5668 = vmatpush1.msra.mxu0 0.0
  %5669 = vmatprep.subr.mxu0 0.0
  %5670 = vmatpush1.msra.mxu0 0.0
  %5671 = vmatprep.subr.mxu0 0.0
  %5672 = vmatpush1.msra.mxu0 0.0
  %5673 = vmatprep.subr.mxu0 0.0
  %5674 = vmatpush1.msra.mxu0 0.0
  %5675 = vmatprep.subr.mxu0 0.0
  %5676 = vmatpush1.msra.mxu0 0.0
  %5677 = vmatprep.subr.mxu0 0.0
  %5678 = vmatpush1.msra.mxu0 0.0
  %5679 = vmatprep.subr.mxu0 0.0
  %5680 = vmatpush1.msra.mxu0 0.0
  %5681 = vmatprep.subr.mxu0 0.0
  %5682 = vmatpush1.msra.mxu0 0.0
  %5683 = vmatprep.subr.mxu0 0.0
  %5684 = vmatpush1.msra.mxu0 0.0
  %5685 = vmatprep.subr.mxu0 0.0
  %5686 = vmatpush1.msra.mxu0 0.0
  %5687 = vmatprep.subr.mxu0 0.0
  %5688 = vmatpush1.msra.mxu0 0.0
  %5689 = vmatprep.subr.mxu0 0.0
  %5690 = vmatpush1.msra.mxu0 0.0
  %5691 = vmatprep.subr.mxu0 0.0
  %5692 = vmatpush1.msra.mxu0 0.0
  %5693 = vmatprep.subr.mxu0 0.0
  %5694 = vmatpush1.msra.mxu0 0.0
  %5695 = vmatprep.subr.mxu0 0.0
  %5696 = vmatpush1.msra.mxu0 0.0
  %5697 = vmatprep.subr.mxu0 0.0
  %5698 = vmatpush1.msra.mxu0 0.0
  %5699 = vmatprep.mubr.f32.mxu0 0.0
  %5700 = vmatmul.mubr.f32.gmra.mrb[0].mxu0 %v5491
  %v5701 = vpop.f32.mrb[0].mxu0
  %v5702 = vadd.f32 0.0, %v5701
  %v5703 = vpop.f32.mrb[0].mxu0
  %v5704 = vadd.f32 0.0, %v5703
  %5705 = vdwg.mxu0
  %v5706 = vadd.f32 %v5459, %v5560
  %v5707 = vadd.f32 %v5460, %v5562
  %v5708 = vadd.f32 %v5461, %v5631
  %v5709 = vadd.f32 %v5462, %v5633
  %v5710 = vadd.f32 %v5463, %v5702
  %v5711 = vadd.f32 %v5464, %v5704
  %s5712 = scalar_lea.vmem %s1, 176
  %v5713 = vld [vmem:[%s5712] sm:$0xff]
  %5714 = vrot.lane.b32.xlu0 %v4726, 96
  %v5715 = vpop.permute.xlu0 %5714
  %5716 = vrot.lane.b32.xlu0 %v4727, 96
  %v5717 = vpop.permute.xlu0 %5716
  %5718 = vrot.lane.b32.xlu0 %v4728, 96
  %v5719 = vpop.permute.xlu0 %5718
  %5720 = vrot.lane.b32.xlu0 %v4729, 96
  %v5721 = vpop.permute.xlu0 %5720
  %5722 = vrot.lane.b32.xlu0 %v4730, 96
  %v5723 = vpop.permute.xlu0 %5722
  %5724 = vrot.lane.b32.xlu0 %v4731, 96
  %v5725 = vpop.permute.xlu0 %5724
  %v5726 = vsel %vm1059, %v5715, %v5717
  %v5727 = vsel %vm1059, %v5717, %v5719
  %v5728 = vsel %vm1059, %v5719, %v5721
  %v5729 = vsel %vm1059, %v5721, %v5723
  %v5730 = vsel %vm1059, %v5723, %v5725
  %v5738 = vsel %vm52, %v5713, 0
  %5740 = vmatprep.subr.mxu0 %v5727
  %5741 = vmatpush1.msra.mxu0 %v5726
  %5742 = vmatprep.subr.mxu0 0.0
  %5743 = vmatpush1.msra.mxu0 0.0
  %5744 = vmatprep.subr.mxu0 0.0
  %5745 = vmatpush1.msra.mxu0 0.0
  %5746 = vmatprep.subr.mxu0 0.0
  %5747 = vmatpush1.msra.mxu0 0.0
  %5748 = vmatprep.subr.mxu0 0.0
  %5749 = vmatpush1.msra.mxu0 0.0
  %5750 = vmatprep.subr.mxu0 0.0
  %5751 = vmatpush1.msra.mxu0 0.0
  %5752 = vmatprep.subr.mxu0 0.0
  %5753 = vmatpush1.msra.mxu0 0.0
  %5754 = vmatprep.subr.mxu0 0.0
  %5755 = vmatpush1.msra.mxu0 0.0
  %5756 = vmatprep.subr.mxu0 0.0
  %5757 = vmatpush1.msra.mxu0 0.0
  %5758 = vmatprep.subr.mxu0 0.0
  %5759 = vmatpush1.msra.mxu0 0.0
  %5760 = vmatprep.subr.mxu0 0.0
  %5761 = vmatpush1.msra.mxu0 0.0
  %5762 = vmatprep.subr.mxu0 0.0
  %5763 = vmatpush1.msra.mxu0 0.0
  %5764 = vmatprep.subr.mxu0 0.0
  %5765 = vmatpush1.msra.mxu0 0.0
  %5766 = vmatprep.subr.mxu0 0.0
  %5767 = vmatpush1.msra.mxu0 0.0
  %5768 = vmatprep.subr.mxu0 0.0
  %5769 = vmatpush1.msra.mxu0 0.0
  %5770 = vmatprep.subr.mxu0 0.0
  %5771 = vmatpush1.msra.mxu0 0.0
  %5772 = vmatprep.subr.mxu0 0.0
  %5773 = vmatpush1.msra.mxu0 0.0
  %5774 = vmatprep.subr.mxu0 0.0
  %5775 = vmatpush1.msra.mxu0 0.0
  %5776 = vmatprep.subr.mxu0 0.0
  %5777 = vmatpush1.msra.mxu0 0.0
  %5778 = vmatprep.subr.mxu0 0.0
  %5779 = vmatpush1.msra.mxu0 0.0
  %5780 = vmatprep.subr.mxu0 0.0
  %5781 = vmatpush1.msra.mxu0 0.0
  %5782 = vmatprep.subr.mxu0 0.0
  %5783 = vmatpush1.msra.mxu0 0.0
  %5784 = vmatprep.subr.mxu0 0.0
  %5785 = vmatpush1.msra.mxu0 0.0
  %5786 = vmatprep.subr.mxu0 0.0
  %5787 = vmatpush1.msra.mxu0 0.0
  %5788 = vmatprep.subr.mxu0 0.0
  %5789 = vmatpush1.msra.mxu0 0.0
  %5790 = vmatprep.subr.mxu0 0.0
  %5791 = vmatpush1.msra.mxu0 0.0
  %5792 = vmatprep.subr.mxu0 0.0
  %5793 = vmatpush1.msra.mxu0 0.0
  %5794 = vmatprep.subr.mxu0 0.0
  %5795 = vmatpush1.msra.mxu0 0.0
  %5796 = vmatprep.subr.mxu0 0.0
  %5797 = vmatpush1.msra.mxu0 0.0
  %5798 = vmatprep.subr.mxu0 0.0
  %5799 = vmatpush1.msra.mxu0 0.0
  %5800 = vmatprep.subr.mxu0 0.0
  %5801 = vmatpush1.msra.mxu0 0.0
  %5802 = vmatprep.subr.mxu0 0.0
  %5803 = vmatpush1.msra.mxu0 0.0
  %5804 = vmatprep.mubr.f32.mxu0 0.0
  %5805 = vmatmul.mubr.f32.gmra.mrb[0].mxu0 %v5738
  %v5806 = vpop.f32.mrb[0].mxu0
  %v5807 = vadd.f32 0.0, %v5806
  %v5808 = vpop.f32.mrb[0].mxu0
  %v5809 = vadd.f32 0.0, %v5808
  %5810 = vdwg.mxu0
  %5811 = vmatprep.subr.mxu0 %v5729
  %5812 = vmatpush1.msra.mxu0 %v5728
  %5813 = vmatprep.subr.mxu0 0.0
  %5814 = vmatpush1.msra.mxu0 0.0
  %5815 = vmatprep.subr.mxu0 0.0
  %5816 = vmatpush1.msra.mxu0 0.0
  %5817 = vmatprep.subr.mxu0 0.0
  %5818 = vmatpush1.msra.mxu0 0.0
  %5819 = vmatprep.subr.mxu0 0.0
  %5820 = vmatpush1.msra.mxu0 0.0
  %5821 = vmatprep.subr.mxu0 0.0
  %5822 = vmatpush1.msra.mxu0 0.0
  %5823 = vmatprep.subr.mxu0 0.0
  %5824 = vmatpush1.msra.mxu0 0.0
  %5825 = vmatprep.subr.mxu0 0.0
  %5826 = vmatpush1.msra.mxu0 0.0
  %5827 = vmatprep.subr.mxu0 0.0
  %5828 = vmatpush1.msra.mxu0 0.0
  %5829 = vmatprep.subr.mxu0 0.0
  %5830 = vmatpush1.msra.mxu0 0.0
  %5831 = vmatprep.subr.mxu0 0.0
  %5832 = vmatpush1.msra.mxu0 0.0
  %5833 = vmatprep.subr.mxu0 0.0
  %5834 = vmatpush1.msra.mxu0 0.0
  %5835 = vmatprep.subr.mxu0 0.0
  %5836 = vmatpush1.msra.mxu0 0.0
  %5837 = vmatprep.subr.mxu0 0.0
  %5838 = vmatpush1.msra.mxu0 0.0
  %5839 = vmatprep.subr.mxu0 0.0
  %5840 = vmatpush1.msra.mxu0 0.0
  %5841 = vmatprep.subr.mxu0 0.0
  %5842 = vmatpush1.msra.mxu0 0.0
  %5843 = vmatprep.subr.mxu0 0.0
  %5844 = vmatpush1.msra.mxu0 0.0
  %5845 = vmatprep.subr.mxu0 0.0
  %5846 = vmatpush1.msra.mxu0 0.0
  %5847 = vmatprep.subr.mxu0 0.0
  %5848 = vmatpush1.msra.mxu0 0.0
  %5849 = vmatprep.subr.mxu0 0.0
  %5850 = vmatpush1.msra.mxu0 0.0
  %5851 = vmatprep.subr.mxu0 0.0
  %5852 = vmatpush1.msra.mxu0 0.0
  %5853 = vmatprep.subr.mxu0 0.0
  %5854 = vmatpush1.msra.mxu0 0.0
  %5855 = vmatprep.subr.mxu0 0.0
  %5856 = vmatpush1.msra.mxu0 0.0
  %5857 = vmatprep.subr.mxu0 0.0
  %5858 = vmatpush1.msra.mxu0 0.0
  %5859 = vmatprep.subr.mxu0 0.0
  %5860 = vmatpush1.msra.mxu0 0.0
  %5861 = vmatprep.subr.mxu0 0.0
  %5862 = vmatpush1.msra.mxu0 0.0
  %5863 = vmatprep.subr.mxu0 0.0
  %5864 = vmatpush1.msra.mxu0 0.0
  %5865 = vmatprep.subr.mxu0 0.0
  %5866 = vmatpush1.msra.mxu0 0.0
  %5867 = vmatprep.subr.mxu0 0.0
  %5868 = vmatpush1.msra.mxu0 0.0
  %5869 = vmatprep.subr.mxu0 0.0
  %5870 = vmatpush1.msra.mxu0 0.0
  %5871 = vmatprep.subr.mxu0 0.0
  %5872 = vmatpush1.msra.mxu0 0.0
  %5873 = vmatprep.subr.mxu0 0.0
  %5874 = vmatpush1.msra.mxu0 0.0
  %5875 = vmatprep.mubr.f32.mxu0 0.0
  %5876 = vmatmul.mubr.f32.gmra.mrb[0].mxu0 %v5738
  %v5877 = vpop.f32.mrb[0].mxu0
  %v5878 = vadd.f32 0.0, %v5877
  %v5879 = vpop.f32.mrb[0].mxu0
  %v5880 = vadd.f32 0.0, %v5879
  %5881 = vdwg.mxu0
  %5882 = vmatprep.subr.mxu0 %v5725
  %5883 = vmatpush1.msra.mxu0 %v5730
  %5884 = vmatprep.subr.mxu0 0.0
  %5885 = vmatpush1.msra.mxu0 0.0
  %5886 = vmatprep.subr.mxu0 0.0
  %5887 = vmatpush1.msra.mxu0 0.0
  %5888 = vmatprep.subr.mxu0 0.0
  %5889 = vmatpush1.msra.mxu0 0.0
  %5890 = vmatprep.subr.mxu0 0.0
  %5891 = vmatpush1.msra.mxu0 0.0
  %5892 = vmatprep.subr.mxu0 0.0
  %5893 = vmatpush1.msra.mxu0 0.0
  %5894 = vmatprep.subr.mxu0 0.0
  %5895 = vmatpush1.msra.mxu0 0.0
  %5896 = vmatprep.subr.mxu0 0.0
  %5897 = vmatpush1.msra.mxu0 0.0
  %5898 = vmatprep.subr.mxu0 0.0
  %5899 = vmatpush1.msra.mxu0 0.0
  %5900 = vmatprep.subr.mxu0 0.0
  %5901 = vmatpush1.msra.mxu0 0.0
  %5902 = vmatprep.subr.mxu0 0.0
  %5903 = vmatpush1.msra.mxu0 0.0
  %5904 = vmatprep.subr.mxu0 0.0
  %5905 = vmatpush1.msra.mxu0 0.0
  %5906 = vmatprep.subr.mxu0 0.0
  %5907 = vmatpush1.msra.mxu0 0.0
  %5908 = vmatprep.subr.mxu0 0.0
  %5909 = vmatpush1.msra.mxu0 0.0
  %5910 = vmatprep.subr.mxu0 0.0
  %5911 = vmatpush1.msra.mxu0 0.0
  %5912 = vmatprep.subr.mxu0 0.0
  %5913 = vmatpush1.msra.mxu0 0.0
  %5914 = vmatprep.subr.mxu0 0.0
  %5915 = vmatpush1.msra.mxu0 0.0
  %5916 = vmatprep.subr.mxu0 0.0
  %5917 = vmatpush1.msra.mxu0 0.0
  %5918 = vmatprep.subr.mxu0 0.0
  %5919 = vmatpush1.msra.mxu0 0.0
  %5920 = vmatprep.subr.mxu0 0.0
  %5921 = vmatpush1.msra.mxu0 0.0
  %5922 = vmatprep.subr.mxu0 0.0
  %5923 = vmatpush1.msra.mxu0 0.0
  %5924 = vmatprep.subr.mxu0 0.0
  %5925 = vmatpush1.msra.mxu0 0.0
  %5926 = vmatprep.subr.mxu0 0.0
  %5927 = vmatpush1.msra.mxu0 0.0
  %5928 = vmatprep.subr.mxu0 0.0
  %5929 = vmatpush1.msra.mxu0 0.0
  %5930 = vmatprep.subr.mxu0 0.0
  %5931 = vmatpush1.msra.mxu0 0.0
  %5932 = vmatprep.subr.mxu0 0.0
  %5933 = vmatpush1.msra.mxu0 0.0
  %5934 = vmatprep.subr.mxu0 0.0
  %5935 = vmatpush1.msra.mxu0 0.0
  %5936 = vmatprep.subr.mxu0 0.0
  %5937 = vmatpush1.msra.mxu0 0.0
  %5938 = vmatprep.subr.mxu0 0.0
  %5939 = vmatpush1.msra.mxu0 0.0
  %5940 = vmatprep.subr.mxu0 0.0
  %5941 = vmatpush1.msra.mxu0 0.0
  %5942 = vmatprep.subr.mxu0 0.0
  %5943 = vmatpush1.msra.mxu0 0.0
  %5944 = vmatprep.subr.mxu0 0.0
  %5945 = vmatpush1.msra.mxu0 0.0
  %5946 = vmatprep.mubr.f32.mxu0 0.0
  %5947 = vmatmul.mubr.f32.gmra.mrb[0].mxu0 %v5738
  %v5948 = vpop.f32.mrb[0].mxu0
  %v5949 = vadd.f32 0.0, %v5948
  %v5950 = vpop.f32.mrb[0].mxu0
  %v5951 = vadd.f32 0.0, %v5950
  %5952 = vdwg.mxu0
  %v5953 = vadd.f32 %v5706, %v5807
  %v5954 = vadd.f32 %v5707, %v5809
  %v5955 = vadd.f32 %v5708, %v5878
  %v5956 = vadd.f32 %v5709, %v5880
  %v5957 = vadd.f32 %v5710, %v5949
  %v5958 = vadd.f32 %v5711, %v5951
  %s5959 = scalar_lea.vmem %s1, 184
  %v5960 = vld [vmem:[%s5959] sm:$0xff]
  %5961 = vrot.lane.b32.xlu0 %v4726, 95
  %v5962 = vpop.permute.xlu0 %5961
  %5963 = vrot.lane.b32.xlu0 %v4727, 95
  %v5964 = vpop.permute.xlu0 %5963
  %5965 = vrot.lane.b32.xlu0 %v4728, 95
  %v5966 = vpop.permute.xlu0 %5965
  %5967 = vrot.lane.b32.xlu0 %v4729, 95
  %v5968 = vpop.permute.xlu0 %5967
  %5969 = vrot.lane.b32.xlu0 %v4730, 95
  %v5970 = vpop.permute.xlu0 %5969
  %5971 = vrot.lane.b32.xlu0 %v4731, 95
  %v5972 = vpop.permute.xlu0 %5971
  %v5973 = vsel %vm1307, %v5962, %v5964
  %v5974 = vsel %vm1307, %v5964, %v5966
  %v5975 = vsel %vm1307, %v5966, %v5968
  %v5976 = vsel %vm1307, %v5968, %v5970
  %v5977 = vsel %vm1307, %v5970, %v5972
  %v5985 = vsel %vm52, %v5960, 0
  %5987 = vmatprep.subr.mxu0 %v5974
  %5988 = vmatpush1.msra.mxu0 %v5973
  %5989 = vmatprep.subr.mxu0 0.0
  %5990 = vmatpush1.msra.mxu0 0.0
  %5991 = vmatprep.subr.mxu0 0.0
  %5992 = vmatpush1.msra.mxu0 0.0
  %5993 = vmatprep.subr.mxu0 0.0
  %5994 = vmatpush1.msra.mxu0 0.0
  %5995 = vmatprep.subr.mxu0 0.0
  %5996 = vmatpush1.msra.mxu0 0.0
  %5997 = vmatprep.subr.mxu0 0.0
  %5998 = vmatpush1.msra.mxu0 0.0
  %5999 = vmatprep.subr.mxu0 0.0
  %6000 = vmatpush1.msra.mxu0 0.0
  %6001 = vmatprep.subr.mxu0 0.0
  %6002 = vmatpush1.msra.mxu0 0.0
  %6003 = vmatprep.subr.mxu0 0.0
  %6004 = vmatpush1.msra.mxu0 0.0
  %6005 = vmatprep.subr.mxu0 0.0
  %6006 = vmatpush1.msra.mxu0 0.0
  %6007 = vmatprep.subr.mxu0 0.0
  %6008 = vmatpush1.msra.mxu0 0.0
  %6009 = vmatprep.subr.mxu0 0.0
  %6010 = vmatpush1.msra.mxu0 0.0
  %6011 = vmatprep.subr.mxu0 0.0
  %6012 = vmatpush1.msra.mxu0 0.0
  %6013 = vmatprep.subr.mxu0 0.0
  %6014 = vmatpush1.msra.mxu0 0.0
  %6015 = vmatprep.subr.mxu0 0.0
  %6016 = vmatpush1.msra.mxu0 0.0
  %6017 = vmatprep.subr.mxu0 0.0
  %6018 = vmatpush1.msra.mxu0 0.0
  %6019 = vmatprep.subr.mxu0 0.0
  %6020 = vmatpush1.msra.mxu0 0.0
  %6021 = vmatprep.subr.mxu0 0.0
  %6022 = vmatpush1.msra.mxu0 0.0
  %6023 = vmatprep.subr.mxu0 0.0
  %6024 = vmatpush1.msra.mxu0 0.0
  %6025 = vmatprep.subr.mxu0 0.0
  %6026 = vmatpush1.msra.mxu0 0.0
  %6027 = vmatprep.subr.mxu0 0.0
  %6028 = vmatpush1.msra.mxu0 0.0
  %6029 = vmatprep.subr.mxu0 0.0
  %6030 = vmatpush1.msra.mxu0 0.0
  %6031 = vmatprep.subr.mxu0 0.0
  %6032 = vmatpush1.msra.mxu0 0.0
  %6033 = vmatprep.subr.mxu0 0.0
  %6034 = vmatpush1.msra.mxu0 0.0
  %6035 = vmatprep.subr.mxu0 0.0
  %6036 = vmatpush1.msra.mxu0 0.0
  %6037 = vmatprep.subr.mxu0 0.0
  %6038 = vmatpush1.msra.mxu0 0.0
  %6039 = vmatprep.subr.mxu0 0.0
  %6040 = vmatpush1.msra.mxu0 0.0
  %6041 = vmatprep.subr.mxu0 0.0
  %6042 = vmatpush1.msra.mxu0 0.0
  %6043 = vmatprep.subr.mxu0 0.0
  %6044 = vmatpush1.msra.mxu0 0.0
  %6045 = vmatprep.subr.mxu0 0.0
  %6046 = vmatpush1.msra.mxu0 0.0
  %6047 = vmatprep.subr.mxu0 0.0
  %6048 = vmatpush1.msra.mxu0 0.0
  %6049 = vmatprep.subr.mxu0 0.0
  %6050 = vmatpush1.msra.mxu0 0.0
  %6051 = vmatprep.mubr.f32.mxu0 0.0
  %6052 = vmatmul.mubr.f32.gmra.mrb[0].mxu0 %v5985
  %v6053 = vpop.f32.mrb[0].mxu0
  %v6054 = vadd.f32 0.0, %v6053
  %v6055 = vpop.f32.mrb[0].mxu0
  %v6056 = vadd.f32 0.0, %v6055
  %6057 = vdwg.mxu0
  %6058 = vmatprep.subr.mxu0 %v5976
  %6059 = vmatpush1.msra.mxu0 %v5975
  %6060 = vmatprep.subr.mxu0 0.0
  %6061 = vmatpush1.msra.mxu0 0.0
  %6062 = vmatprep.subr.mxu0 0.0
  %6063 = vmatpush1.msra.mxu0 0.0
  %6064 = vmatprep.subr.mxu0 0.0
  %6065 = vmatpush1.msra.mxu0 0.0
  %6066 = vmatprep.subr.mxu0 0.0
  %6067 = vmatpush1.msra.mxu0 0.0
  %6068 = vmatprep.subr.mxu0 0.0
  %6069 = vmatpush1.msra.mxu0 0.0
  %6070 = vmatprep.subr.mxu0 0.0
  %6071 = vmatpush1.msra.mxu0 0.0
  %6072 = vmatprep.subr.mxu0 0.0
  %6073 = vmatpush1.msra.mxu0 0.0
  %6074 = vmatprep.subr.mxu0 0.0
  %6075 = vmatpush1.msra.mxu0 0.0
  %6076 = vmatprep.subr.mxu0 0.0
  %6077 = vmatpush1.msra.mxu0 0.0
  %6078 = vmatprep.subr.mxu0 0.0
  %6079 = vmatpush1.msra.mxu0 0.0
  %6080 = vmatprep.subr.mxu0 0.0
  %6081 = vmatpush1.msra.mxu0 0.0
  %6082 = vmatprep.subr.mxu0 0.0
  %6083 = vmatpush1.msra.mxu0 0.0
  %6084 = vmatprep.subr.mxu0 0.0
  %6085 = vmatpush1.msra.mxu0 0.0
  %6086 = vmatprep.subr.mxu0 0.0
  %6087 = vmatpush1.msra.mxu0 0.0
  %6088 = vmatprep.subr.mxu0 0.0
  %6089 = vmatpush1.msra.mxu0 0.0
  %6090 = vmatprep.subr.mxu0 0.0
  %6091 = vmatpush1.msra.mxu0 0.0
  %6092 = vmatprep.subr.mxu0 0.0
  %6093 = vmatpush1.msra.mxu0 0.0
  %6094 = vmatprep.subr.mxu0 0.0
  %6095 = vmatpush1.msra.mxu0 0.0
  %6096 = vmatprep.subr.mxu0 0.0
  %6097 = vmatpush1.msra.mxu0 0.0
  %6098 = vmatprep.subr.mxu0 0.0
  %6099 = vmatpush1.msra.mxu0 0.0
  %6100 = vmatprep.subr.mxu0 0.0
  %6101 = vmatpush1.msra.mxu0 0.0
  %6102 = vmatprep.subr.mxu0 0.0
  %6103 = vmatpush1.msra.mxu0 0.0
  %6104 = vmatprep.subr.mxu0 0.0
  %6105 = vmatpush1.msra.mxu0 0.0
  %6106 = vmatprep.subr.mxu0 0.0
  %6107 = vmatpush1.msra.mxu0 0.0
  %6108 = vmatprep.subr.mxu0 0.0
  %6109 = vmatpush1.msra.mxu0 0.0
  %6110 = vmatprep.subr.mxu0 0.0
  %6111 = vmatpush1.msra.mxu0 0.0
  %6112 = vmatprep.subr.mxu0 0.0
  %6113 = vmatpush1.msra.mxu0 0.0
  %6114 = vmatprep.subr.mxu0 0.0
  %6115 = vmatpush1.msra.mxu0 0.0
  %6116 = vmatprep.subr.mxu0 0.0
  %6117 = vmatpush1.msra.mxu0 0.0
  %6118 = vmatprep.subr.mxu0 0.0
  %6119 = vmatpush1.msra.mxu0 0.0
  %6120 = vmatprep.subr.mxu0 0.0
  %6121 = vmatpush1.msra.mxu0 0.0
  %6122 = vmatprep.mubr.f32.mxu0 0.0
  %6123 = vmatmul.mubr.f32.gmra.mrb[0].mxu0 %v5985
  %v6124 = vpop.f32.mrb[0].mxu0
  %v6125 = vadd.f32 0.0, %v6124
  %v6126 = vpop.f32.mrb[0].mxu0
  %v6127 = vadd.f32 0.0, %v6126
  %6128 = vdwg.mxu0
  %6129 = vmatprep.subr.mxu0 %v5972
  %6130 = vmatpush1.msra.mxu0 %v5977
  %6131 = vmatprep.subr.mxu0 0.0
  %6132 = vmatpush1.msra.mxu0 0.0
  %6133 = vmatprep.subr.mxu0 0.0
  %6134 = vmatpush1.msra.mxu0 0.0
  %6135 = vmatprep.subr.mxu0 0.0
  %6136 = vmatpush1.msra.mxu0 0.0
  %6137 = vmatprep.subr.mxu0 0.0
  %6138 = vmatpush1.msra.mxu0 0.0
  %6139 = vmatprep.subr.mxu0 0.0
  %6140 = vmatpush1.msra.mxu0 0.0
  %6141 = vmatprep.subr.mxu0 0.0
  %6142 = vmatpush1.msra.mxu0 0.0
  %6143 = vmatprep.subr.mxu0 0.0
  %6144 = vmatpush1.msra.mxu0 0.0
  %6145 = vmatprep.subr.mxu0 0.0
  %6146 = vmatpush1.msra.mxu0 0.0
  %6147 = vmatprep.subr.mxu0 0.0
  %6148 = vmatpush1.msra.mxu0 0.0
  %6149 = vmatprep.subr.mxu0 0.0
  %6150 = vmatpush1.msra.mxu0 0.0
  %6151 = vmatprep.subr.mxu0 0.0
  %6152 = vmatpush1.msra.mxu0 0.0
  %6153 = vmatprep.subr.mxu0 0.0
  %6154 = vmatpush1.msra.mxu0 0.0
  %6155 = vmatprep.subr.mxu0 0.0
  %6156 = vmatpush1.msra.mxu0 0.0
  %6157 = vmatprep.subr.mxu0 0.0
  %6158 = vmatpush1.msra.mxu0 0.0
  %6159 = vmatprep.subr.mxu0 0.0
  %6160 = vmatpush1.msra.mxu0 0.0
  %6161 = vmatprep.subr.mxu0 0.0
  %6162 = vmatpush1.msra.mxu0 0.0
  %6163 = vmatprep.subr.mxu0 0.0
  %6164 = vmatpush1.msra.mxu0 0.0
  %6165 = vmatprep.subr.mxu0 0.0
  %6166 = vmatpush1.msra.mxu0 0.0
  %6167 = vmatprep.subr.mxu0 0.0
  %6168 = vmatpush1.msra.mxu0 0.0
  %6169 = vmatprep.subr.mxu0 0.0
  %6170 = vmatpush1.msra.mxu0 0.0
  %6171 = vmatprep.subr.mxu0 0.0
  %6172 = vmatpush1.msra.mxu0 0.0
  %6173 = vmatprep.subr.mxu0 0.0
  %6174 = vmatpush1.msra.mxu0 0.0
  %6175 = vmatprep.subr.mxu0 0.0
  %6176 = vmatpush1.msra.mxu0 0.0
  %6177 = vmatprep.subr.mxu0 0.0
  %6178 = vmatpush1.msra.mxu0 0.0
  %6179 = vmatprep.subr.mxu0 0.0
  %6180 = vmatpush1.msra.mxu0 0.0
  %6181 = vmatprep.subr.mxu0 0.0
  %6182 = vmatpush1.msra.mxu0 0.0
  %6183 = vmatprep.subr.mxu0 0.0
  %6184 = vmatpush1.msra.mxu0 0.0
  %6185 = vmatprep.subr.mxu0 0.0
  %6186 = vmatpush1.msra.mxu0 0.0
  %6187 = vmatprep.subr.mxu0 0.0
  %6188 = vmatpush1.msra.mxu0 0.0
  %6189 = vmatprep.subr.mxu0 0.0
  %6190 = vmatpush1.msra.mxu0 0.0
  %6191 = vmatprep.subr.mxu0 0.0
  %6192 = vmatpush1.msra.mxu0 0.0
  %6193 = vmatprep.mubr.f32.mxu0 0.0
  %6194 = vmatmul.mubr.f32.gmra.mrb[0].mxu0 %v5985
  %v6195 = vpop.f32.mrb[0].mxu0
  %v6196 = vadd.f32 0.0, %v6195
  %v6197 = vpop.f32.mrb[0].mxu0
  %v6198 = vadd.f32 0.0, %v6197
  %6199 = vdwg.mxu0
  %v6200 = vadd.f32 %v5953, %v6054
  %v6201 = vadd.f32 %v5954, %v6056
  %v6202 = vadd.f32 %v5955, %v6125
  %v6203 = vadd.f32 %v5956, %v6127
  %v6204 = vadd.f32 %v5957, %v6196
  %v6205 = vadd.f32 %v5958, %v6198
  %s6206 = scalar_lea.vmem %s1, 192
  %v6207 = vld [vmem:[%s6206] sm:$0xff]
  %6208 = vrot.lane.b32.xlu0 %v4726, 79
  %v6209 = vpop.permute.xlu0 %6208
  %6210 = vrot.lane.b32.xlu0 %v4727, 79
  %v6211 = vpop.permute.xlu0 %6210
  %6212 = vrot.lane.b32.xlu0 %v4728, 79
  %v6213 = vpop.permute.xlu0 %6212
  %6214 = vrot.lane.b32.xlu0 %v4729, 79
  %v6215 = vpop.permute.xlu0 %6214
  %6216 = vrot.lane.b32.xlu0 %v4730, 79
  %v6217 = vpop.permute.xlu0 %6216
  %6218 = vrot.lane.b32.xlu0 %v4731, 79
  %v6219 = vpop.permute.xlu0 %6218
  %v6220 = vsel %vm1555, %v6209, %v6211
  %v6221 = vsel %vm1555, %v6211, %v6213
  %v6222 = vsel %vm1555, %v6213, %v6215
  %v6223 = vsel %vm1555, %v6215, %v6217
  %v6224 = vsel %vm1555, %v6217, %v6219
  %v6232 = vsel %vm52, %v6207, 0
  %6234 = vmatprep.subr.mxu0 %v6221
  %6235 = vmatpush1.msra.mxu0 %v6220
  %6236 = vmatprep.subr.mxu0 0.0
  %6237 = vmatpush1.msra.mxu0 0.0
  %6238 = vmatprep.subr.mxu0 0.0
  %6239 = vmatpush1.msra.mxu0 0.0
  %6240 = vmatprep.subr.mxu0 0.0
  %6241 = vmatpush1.msra.mxu0 0.0
  %6242 = vmatprep.subr.mxu0 0.0
  %6243 = vmatpush1.msra.mxu0 0.0
  %6244 = vmatprep.subr.mxu0 0.0
  %6245 = vmatpush1.msra.mxu0 0.0
  %6246 = vmatprep.subr.mxu0 0.0
  %6247 = vmatpush1.msra.mxu0 0.0
  %6248 = vmatprep.subr.mxu0 0.0
  %6249 = vmatpush1.msra.mxu0 0.0
  %6250 = vmatprep.subr.mxu0 0.0
  %6251 = vmatpush1.msra.mxu0 0.0
  %6252 = vmatprep.subr.mxu0 0.0
  %6253 = vmatpush1.msra.mxu0 0.0
  %6254 = vmatprep.subr.mxu0 0.0
  %6255 = vmatpush1.msra.mxu0 0.0
  %6256 = vmatprep.subr.mxu0 0.0
  %6257 = vmatpush1.msra.mxu0 0.0
  %6258 = vmatprep.subr.mxu0 0.0
  %6259 = vmatpush1.msra.mxu0 0.0
  %6260 = vmatprep.subr.mxu0 0.0
  %6261 = vmatpush1.msra.mxu0 0.0
  %6262 = vmatprep.subr.mxu0 0.0
  %6263 = vmatpush1.msra.mxu0 0.0
  %6264 = vmatprep.subr.mxu0 0.0
  %6265 = vmatpush1.msra.mxu0 0.0
  %6266 = vmatprep.subr.mxu0 0.0
  %6267 = vmatpush1.msra.mxu0 0.0
  %6268 = vmatprep.subr.mxu0 0.0
  %6269 = vmatpush1.msra.mxu0 0.0
  %6270 = vmatprep.subr.mxu0 0.0
  %6271 = vmatpush1.msra.mxu0 0.0
  %6272 = vmatprep.subr.mxu0 0.0
  %6273 = vmatpush1.msra.mxu0 0.0
  %6274 = vmatprep.subr.mxu0 0.0
  %6275 = vmatpush1.msra.mxu0 0.0
  %6276 = vmatprep.subr.mxu0 0.0
  %6277 = vmatpush1.msra.mxu0 0.0
  %6278 = vmatprep.subr.mxu0 0.0
  %6279 = vmatpush1.msra.mxu0 0.0
  %6280 = vmatprep.subr.mxu0 0.0
  %6281 = vmatpush1.msra.mxu0 0.0
  %6282 = vmatprep.subr.mxu0 0.0
  %6283 = vmatpush1.msra.mxu0 0.0
  %6284 = vmatprep.subr.mxu0 0.0
  %6285 = vmatpush1.msra.mxu0 0.0
  %6286 = vmatprep.subr.mxu0 0.0
  %6287 = vmatpush1.msra.mxu0 0.0
  %6288 = vmatprep.subr.mxu0 0.0
  %6289 = vmatpush1.msra.mxu0 0.0
  %6290 = vmatprep.subr.mxu0 0.0
  %6291 = vmatpush1.msra.mxu0 0.0
  %6292 = vmatprep.subr.mxu0 0.0
  %6293 = vmatpush1.msra.mxu0 0.0
  %6294 = vmatprep.subr.mxu0 0.0
  %6295 = vmatpush1.msra.mxu0 0.0
  %6296 = vmatprep.subr.mxu0 0.0
  %6297 = vmatpush1.msra.mxu0 0.0
  %6298 = vmatprep.mubr.f32.mxu0 0.0
  %6299 = vmatmul.mubr.f32.gmra.mrb[0].mxu0 %v6232
  %v6300 = vpop.f32.mrb[0].mxu0
  %v6301 = vadd.f32 0.0, %v6300
  %v6302 = vpop.f32.mrb[0].mxu0
  %v6303 = vadd.f32 0.0, %v6302
  %6304 = vdwg.mxu0
  %6305 = vmatprep.subr.mxu0 %v6223
  %6306 = vmatpush1.msra.mxu0 %v6222
  %6307 = vmatprep.subr.mxu0 0.0
  %6308 = vmatpush1.msra.mxu0 0.0
  %6309 = vmatprep.subr.mxu0 0.0
  %6310 = vmatpush1.msra.mxu0 0.0
  %6311 = vmatprep.subr.mxu0 0.0
  %6312 = vmatpush1.msra.mxu0 0.0
  %6313 = vmatprep.subr.mxu0 0.0
  %6314 = vmatpush1.msra.mxu0 0.0
  %6315 = vmatprep.subr.mxu0 0.0
  %6316 = vmatpush1.msra.mxu0 0.0
  %6317 = vmatprep.subr.mxu0 0.0
  %6318 = vmatpush1.msra.mxu0 0.0
  %6319 = vmatprep.subr.mxu0 0.0
  %6320 = vmatpush1.msra.mxu0 0.0
  %6321 = vmatprep.subr.mxu0 0.0
  %6322 = vmatpush1.msra.mxu0 0.0
  %6323 = vmatprep.subr.mxu0 0.0
  %6324 = vmatpush1.msra.mxu0 0.0
  %6325 = vmatprep.subr.mxu0 0.0
  %6326 = vmatpush1.msra.mxu0 0.0
  %6327 = vmatprep.subr.mxu0 0.0
  %6328 = vmatpush1.msra.mxu0 0.0
  %6329 = vmatprep.subr.mxu0 0.0
  %6330 = vmatpush1.msra.mxu0 0.0
  %6331 = vmatprep.subr.mxu0 0.0
  %6332 = vmatpush1.msra.mxu0 0.0
  %6333 = vmatprep.subr.mxu0 0.0
  %6334 = vmatpush1.msra.mxu0 0.0
  %6335 = vmatprep.subr.mxu0 0.0
  %6336 = vmatpush1.msra.mxu0 0.0
  %6337 = vmatprep.subr.mxu0 0.0
  %6338 = vmatpush1.msra.mxu0 0.0
  %6339 = vmatprep.subr.mxu0 0.0
  %6340 = vmatpush1.msra.mxu0 0.0
  %6341 = vmatprep.subr.mxu0 0.0
  %6342 = vmatpush1.msra.mxu0 0.0
  %6343 = vmatprep.subr.mxu0 0.0
  %6344 = vmatpush1.msra.mxu0 0.0
  %6345 = vmatprep.subr.mxu0 0.0
  %6346 = vmatpush1.msra.mxu0 0.0
  %6347 = vmatprep.subr.mxu0 0.0
  %6348 = vmatpush1.msra.mxu0 0.0
  %6349 = vmatprep.subr.mxu0 0.0
  %6350 = vmatpush1.msra.mxu0 0.0
  %6351 = vmatprep.subr.mxu0 0.0
  %6352 = vmatpush1.msra.mxu0 0.0
  %6353 = vmatprep.subr.mxu0 0.0
  %6354 = vmatpush1.msra.mxu0 0.0
  %6355 = vmatprep.subr.mxu0 0.0
  %6356 = vmatpush1.msra.mxu0 0.0
  %6357 = vmatprep.subr.mxu0 0.0
  %6358 = vmatpush1.msra.mxu0 0.0
  %6359 = vmatprep.subr.mxu0 0.0
  %6360 = vmatpush1.msra.mxu0 0.0
  %6361 = vmatprep.subr.mxu0 0.0
  %6362 = vmatpush1.msra.mxu0 0.0
  %6363 = vmatprep.subr.mxu0 0.0
  %6364 = vmatpush1.msra.mxu0 0.0
  %6365 = vmatprep.subr.mxu0 0.0
  %6366 = vmatpush1.msra.mxu0 0.0
  %6367 = vmatprep.subr.mxu0 0.0
  %6368 = vmatpush1.msra.mxu0 0.0
  %6369 = vmatprep.mubr.f32.mxu0 0.0
  %6370 = vmatmul.mubr.f32.gmra.mrb[0].mxu0 %v6232
  %v6371 = vpop.f32.mrb[0].mxu0
  %v6372 = vadd.f32 0.0, %v6371
  %v6373 = vpop.f32.mrb[0].mxu0
  %v6374 = vadd.f32 0.0, %v6373
  %6375 = vdwg.mxu0
  %6376 = vmatprep.subr.mxu0 %v6219
  %6377 = vmatpush1.msra.mxu0 %v6224
  %6378 = vmatprep.subr.mxu0 0.0
  %6379 = vmatpush1.msra.mxu0 0.0
  %6380 = vmatprep.subr.mxu0 0.0
  %6381 = vmatpush1.msra.mxu0 0.0
  %6382 = vmatprep.subr.mxu0 0.0
  %6383 = vmatpush1.msra.mxu0 0.0
  %6384 = vmatprep.subr.mxu0 0.0
  %6385 = vmatpush1.msra.mxu0 0.0
  %6386 = vmatprep.subr.mxu0 0.0
  %6387 = vmatpush1.msra.mxu0 0.0
  %6388 = vmatprep.subr.mxu0 0.0
  %6389 = vmatpush1.msra.mxu0 0.0
  %6390 = vmatprep.subr.mxu0 0.0
  %6391 = vmatpush1.msra.mxu0 0.0
  %6392 = vmatprep.subr.mxu0 0.0
  %6393 = vmatpush1.msra.mxu0 0.0
  %6394 = vmatprep.subr.mxu0 0.0
  %6395 = vmatpush1.msra.mxu0 0.0
  %6396 = vmatprep.subr.mxu0 0.0
  %6397 = vmatpush1.msra.mxu0 0.0
  %6398 = vmatprep.subr.mxu0 0.0
  %6399 = vmatpush1.msra.mxu0 0.0
  %6400 = vmatprep.subr.mxu0 0.0
  %6401 = vmatpush1.msra.mxu0 0.0
  %6402 = vmatprep.subr.mxu0 0.0
  %6403 = vmatpush1.msra.mxu0 0.0
  %6404 = vmatprep.subr.mxu0 0.0
  %6405 = vmatpush1.msra.mxu0 0.0
  %6406 = vmatprep.subr.mxu0 0.0
  %6407 = vmatpush1.msra.mxu0 0.0
  %6408 = vmatprep.subr.mxu0 0.0
  %6409 = vmatpush1.msra.mxu0 0.0
  %6410 = vmatprep.subr.mxu0 0.0
  %6411 = vmatpush1.msra.mxu0 0.0
  %6412 = vmatprep.subr.mxu0 0.0
  %6413 = vmatpush1.msra.mxu0 0.0
  %6414 = vmatprep.subr.mxu0 0.0
  %6415 = vmatpush1.msra.mxu0 0.0
  %6416 = vmatprep.subr.mxu0 0.0
  %6417 = vmatpush1.msra.mxu0 0.0
  %6418 = vmatprep.subr.mxu0 0.0
  %6419 = vmatpush1.msra.mxu0 0.0
  %6420 = vmatprep.subr.mxu0 0.0
  %6421 = vmatpush1.msra.mxu0 0.0
  %6422 = vmatprep.subr.mxu0 0.0
  %6423 = vmatpush1.msra.mxu0 0.0
  %6424 = vmatprep.subr.mxu0 0.0
  %6425 = vmatpush1.msra.mxu0 0.0
  %6426 = vmatprep.subr.mxu0 0.0
  %6427 = vmatpush1.msra.mxu0 0.0
  %6428 = vmatprep.subr.mxu0 0.0
  %6429 = vmatpush1.msra.mxu0 0.0
  %6430 = vmatprep.subr.mxu0 0.0
  %6431 = vmatpush1.msra.mxu0 0.0
  %6432 = vmatprep.subr.mxu0 0.0
  %6433 = vmatpush1.msra.mxu0 0.0
  %6434 = vmatprep.subr.mxu0 0.0
  %6435 = vmatpush1.msra.mxu0 0.0
  %6436 = vmatprep.subr.mxu0 0.0
  %6437 = vmatpush1.msra.mxu0 0.0
  %6438 = vmatprep.subr.mxu0 0.0
  %6439 = vmatpush1.msra.mxu0 0.0
  %6440 = vmatprep.mubr.f32.mxu0 0.0
  %6441 = vmatmul.mubr.f32.gmra.mrb[0].mxu0 %v6232
  %v6442 = vpop.f32.mrb[0].mxu0
  %v6443 = vadd.f32 0.0, %v6442
  %v6444 = vpop.f32.mrb[0].mxu0
  %v6445 = vadd.f32 0.0, %v6444
  %6446 = vdwg.mxu0
  %v6447 = vadd.f32 %v6200, %v6301
  %v6448 = vadd.f32 %v6201, %v6303
  %v6449 = vadd.f32 %v6202, %v6372
  %v6450 = vadd.f32 %v6203, %v6374
  %v6451 = vadd.f32 %v6204, %v6443
  %v6452 = vadd.f32 %v6205, %v6445
  %s6453 = scalar_lea.vmem %s1, 200
  %v6454 = vld [vmem:[%s6453] sm:$0xff]
  %6455 = vrot.lane.b32.xlu0 %v4726, 78
  %v6456 = vpop.permute.xlu0 %6455
  %6457 = vrot.lane.b32.xlu0 %v4727, 78
  %v6458 = vpop.permute.xlu0 %6457
  %6459 = vrot.lane.b32.xlu0 %v4728, 78
  %v6460 = vpop.permute.xlu0 %6459
  %6461 = vrot.lane.b32.xlu0 %v4729, 78
  %v6462 = vpop.permute.xlu0 %6461
  %6463 = vrot.lane.b32.xlu0 %v4730, 78
  %v6464 = vpop.permute.xlu0 %6463
  %6465 = vrot.lane.b32.xlu0 %v4731, 78
  %v6466 = vpop.permute.xlu0 %6465
  %v6467 = vsel %vm1803, %v6456, %v6458
  %v6468 = vsel %vm1803, %v6458, %v6460
  %v6469 = vsel %vm1803, %v6460, %v6462
  %v6470 = vsel %vm1803, %v6462, %v6464
  %v6471 = vsel %vm1803, %v6464, %v6466
  %v6479 = vsel %vm52, %v6454, 0
  %6481 = vmatprep.subr.mxu0 %v6468
  %6482 = vmatpush1.msra.mxu0 %v6467
  %6483 = vmatprep.subr.mxu0 0.0
  %6484 = vmatpush1.msra.mxu0 0.0
  %6485 = vmatprep.subr.mxu0 0.0
  %6486 = vmatpush1.msra.mxu0 0.0
  %6487 = vmatprep.subr.mxu0 0.0
  %6488 = vmatpush1.msra.mxu0 0.0
  %6489 = vmatprep.subr.mxu0 0.0
  %6490 = vmatpush1.msra.mxu0 0.0
  %6491 = vmatprep.subr.mxu0 0.0
  %6492 = vmatpush1.msra.mxu0 0.0
  %6493 = vmatprep.subr.mxu0 0.0
  %6494 = vmatpush1.msra.mxu0 0.0
  %6495 = vmatprep.subr.mxu0 0.0
  %6496 = vmatpush1.msra.mxu0 0.0
  %6497 = vmatprep.subr.mxu0 0.0
  %6498 = vmatpush1.msra.mxu0 0.0
  %6499 = vmatprep.subr.mxu0 0.0
  %6500 = vmatpush1.msra.mxu0 0.0
  %6501 = vmatprep.subr.mxu0 0.0
  %6502 = vmatpush1.msra.mxu0 0.0
  %6503 = vmatprep.subr.mxu0 0.0
  %6504 = vmatpush1.msra.mxu0 0.0
  %6505 = vmatprep.subr.mxu0 0.0
  %6506 = vmatpush1.msra.mxu0 0.0
  %6507 = vmatprep.subr.mxu0 0.0
  %6508 = vmatpush1.msra.mxu0 0.0
  %6509 = vmatprep.subr.mxu0 0.0
  %6510 = vmatpush1.msra.mxu0 0.0
  %6511 = vmatprep.subr.mxu0 0.0
  %6512 = vmatpush1.msra.mxu0 0.0
  %6513 = vmatprep.subr.mxu0 0.0
  %6514 = vmatpush1.msra.mxu0 0.0
  %6515 = vmatprep.subr.mxu0 0.0
  %6516 = vmatpush1.msra.mxu0 0.0
  %6517 = vmatprep.subr.mxu0 0.0
  %6518 = vmatpush1.msra.mxu0 0.0
  %6519 = vmatprep.subr.mxu0 0.0
  %6520 = vmatpush1.msra.mxu0 0.0
  %6521 = vmatprep.subr.mxu0 0.0
  %6522 = vmatpush1.msra.mxu0 0.0
  %6523 = vmatprep.subr.mxu0 0.0
  %6524 = vmatpush1.msra.mxu0 0.0
  %6525 = vmatprep.subr.mxu0 0.0
  %6526 = vmatpush1.msra.mxu0 0.0
  %6527 = vmatprep.subr.mxu0 0.0
  %6528 = vmatpush1.msra.mxu0 0.0
  %6529 = vmatprep.subr.mxu0 0.0
  %6530 = vmatpush1.msra.mxu0 0.0
  %6531 = vmatprep.subr.mxu0 0.0
  %6532 = vmatpush1.msra.mxu0 0.0
  %6533 = vmatprep.subr.mxu0 0.0
  %6534 = vmatpush1.msra.mxu0 0.0
  %6535 = vmatprep.subr.mxu0 0.0
  %6536 = vmatpush1.msra.mxu0 0.0
  %6537 = vmatprep.subr.mxu0 0.0
  %6538 = vmatpush1.msra.mxu0 0.0
  %6539 = vmatprep.subr.mxu0 0.0
  %6540 = vmatpush1.msra.mxu0 0.0
  %6541 = vmatprep.subr.mxu0 0.0
  %6542 = vmatpush1.msra.mxu0 0.0
  %6543 = vmatprep.subr.mxu0 0.0
  %6544 = vmatpush1.msra.mxu0 0.0
  %6545 = vmatprep.mubr.f32.mxu0 0.0
  %6546 = vmatmul.mubr.f32.gmra.mrb[0].mxu0 %v6479
  %v6547 = vpop.f32.mrb[0].mxu0
  %v6548 = vadd.f32 0.0, %v6547
  %v6549 = vpop.f32.mrb[0].mxu0
  %v6550 = vadd.f32 0.0, %v6549
  %6551 = vdwg.mxu0
  %6552 = vmatprep.subr.mxu0 %v6470
  %6553 = vmatpush1.msra.mxu0 %v6469
  %6554 = vmatprep.subr.mxu0 0.0
  %6555 = vmatpush1.msra.mxu0 0.0
  %6556 = vmatprep.subr.mxu0 0.0
  %6557 = vmatpush1.msra.mxu0 0.0
  %6558 = vmatprep.subr.mxu0 0.0
  %6559 = vmatpush1.msra.mxu0 0.0
  %6560 = vmatprep.subr.mxu0 0.0
  %6561 = vmatpush1.msra.mxu0 0.0
  %6562 = vmatprep.subr.mxu0 0.0
  %6563 = vmatpush1.msra.mxu0 0.0
  %6564 = vmatprep.subr.mxu0 0.0
  %6565 = vmatpush1.msra.mxu0 0.0
  %6566 = vmatprep.subr.mxu0 0.0
  %6567 = vmatpush1.msra.mxu0 0.0
  %6568 = vmatprep.subr.mxu0 0.0
  %6569 = vmatpush1.msra.mxu0 0.0
  %6570 = vmatprep.subr.mxu0 0.0
  %6571 = vmatpush1.msra.mxu0 0.0
  %6572 = vmatprep.subr.mxu0 0.0
  %6573 = vmatpush1.msra.mxu0 0.0
  %6574 = vmatprep.subr.mxu0 0.0
  %6575 = vmatpush1.msra.mxu0 0.0
  %6576 = vmatprep.subr.mxu0 0.0
  %6577 = vmatpush1.msra.mxu0 0.0
  %6578 = vmatprep.subr.mxu0 0.0
  %6579 = vmatpush1.msra.mxu0 0.0
  %6580 = vmatprep.subr.mxu0 0.0
  %6581 = vmatpush1.msra.mxu0 0.0
  %6582 = vmatprep.subr.mxu0 0.0
  %6583 = vmatpush1.msra.mxu0 0.0
  %6584 = vmatprep.subr.mxu0 0.0
  %6585 = vmatpush1.msra.mxu0 0.0
  %6586 = vmatprep.subr.mxu0 0.0
  %6587 = vmatpush1.msra.mxu0 0.0
  %6588 = vmatprep.subr.mxu0 0.0
  %6589 = vmatpush1.msra.mxu0 0.0
  %6590 = vmatprep.subr.mxu0 0.0
  %6591 = vmatpush1.msra.mxu0 0.0
  %6592 = vmatprep.subr.mxu0 0.0
  %6593 = vmatpush1.msra.mxu0 0.0
  %6594 = vmatprep.subr.mxu0 0.0
  %6595 = vmatpush1.msra.mxu0 0.0
  %6596 = vmatprep.subr.mxu0 0.0
  %6597 = vmatpush1.msra.mxu0 0.0
  %6598 = vmatprep.subr.mxu0 0.0
  %6599 = vmatpush1.msra.mxu0 0.0
  %6600 = vmatprep.subr.mxu0 0.0
  %6601 = vmatpush1.msra.mxu0 0.0
  %6602 = vmatprep.subr.mxu0 0.0
  %6603 = vmatpush1.msra.mxu0 0.0
  %6604 = vmatprep.subr.mxu0 0.0
  %6605 = vmatpush1.msra.mxu0 0.0
  %6606 = vmatprep.subr.mxu0 0.0
  %6607 = vmatpush1.msra.mxu0 0.0
  %6608 = vmatprep.subr.mxu0 0.0
  %6609 = vmatpush1.msra.mxu0 0.0
  %6610 = vmatprep.subr.mxu0 0.0
  %6611 = vmatpush1.msra.mxu0 0.0
  %6612 = vmatprep.subr.mxu0 0.0
  %6613 = vmatpush1.msra.mxu0 0.0
  %6614 = vmatprep.subr.mxu0 0.0
  %6615 = vmatpush1.msra.mxu0 0.0
  %6616 = vmatprep.mubr.f32.mxu0 0.0
  %6617 = vmatmul.mubr.f32.gmra.mrb[0].mxu0 %v6479
  %v6618 = vpop.f32.mrb[0].mxu0
  %v6619 = vadd.f32 0.0, %v6618
  %v6620 = vpop.f32.mrb[0].mxu0
  %v6621 = vadd.f32 0.0, %v6620
  %6622 = vdwg.mxu0
  %6623 = vmatprep.subr.mxu0 %v6466
  %6624 = vmatpush1.msra.mxu0 %v6471
  %6625 = vmatprep.subr.mxu0 0.0
  %6626 = vmatpush1.msra.mxu0 0.0
  %6627 = vmatprep.subr.mxu0 0.0
  %6628 = vmatpush1.msra.mxu0 0.0
  %6629 = vmatprep.subr.mxu0 0.0
  %6630 = vmatpush1.msra.mxu0 0.0
  %6631 = vmatprep.subr.mxu0 0.0
  %6632 = vmatpush1.msra.mxu0 0.0
  %6633 = vmatprep.subr.mxu0 0.0
  %6634 = vmatpush1.msra.mxu0 0.0
  %6635 = vmatprep.subr.mxu0 0.0
  %6636 = vmatpush1.msra.mxu0 0.0
  %6637 = vmatprep.subr.mxu0 0.0
  %6638 = vmatpush1.msra.mxu0 0.0
  %6639 = vmatprep.subr.mxu0 0.0
  %6640 = vmatpush1.msra.mxu0 0.0
  %6641 = vmatprep.subr.mxu0 0.0
  %6642 = vmatpush1.msra.mxu0 0.0
  %6643 = vmatprep.subr.mxu0 0.0
  %6644 = vmatpush1.msra.mxu0 0.0
  %6645 = vmatprep.subr.mxu0 0.0
  %6646 = vmatpush1.msra.mxu0 0.0
  %6647 = vmatprep.subr.mxu0 0.0
  %6648 = vmatpush1.msra.mxu0 0.0
  %6649 = vmatprep.subr.mxu0 0.0
  %6650 = vmatpush1.msra.mxu0 0.0
  %6651 = vmatprep.subr.mxu0 0.0
  %6652 = vmatpush1.msra.mxu0 0.0
  %6653 = vmatprep.subr.mxu0 0.0
  %6654 = vmatpush1.msra.mxu0 0.0
  %6655 = vmatprep.subr.mxu0 0.0
  %6656 = vmatpush1.msra.mxu0 0.0
  %6657 = vmatprep.subr.mxu0 0.0
  %6658 = vmatpush1.msra.mxu0 0.0
  %6659 = vmatprep.subr.mxu0 0.0
  %6660 = vmatpush1.msra.mxu0 0.0
  %6661 = vmatprep.subr.mxu0 0.0
  %6662 = vmatpush1.msra.mxu0 0.0
  %6663 = vmatprep.subr.mxu0 0.0
  %6664 = vmatpush1.msra.mxu0 0.0
  %6665 = vmatprep.subr.mxu0 0.0
  %6666 = vmatpush1.msra.mxu0 0.0
  %6667 = vmatprep.subr.mxu0 0.0
  %6668 = vmatpush1.msra.mxu0 0.0
  %6669 = vmatprep.subr.mxu0 0.0
  %6670 = vmatpush1.msra.mxu0 0.0
  %6671 = vmatprep.subr.mxu0 0.0
  %6672 = vmatpush1.msra.mxu0 0.0
  %6673 = vmatprep.subr.mxu0 0.0
  %6674 = vmatpush1.msra.mxu0 0.0
  %6675 = vmatprep.subr.mxu0 0.0
  %6676 = vmatpush1.msra.mxu0 0.0
  %6677 = vmatprep.subr.mxu0 0.0
  %6678 = vmatpush1.msra.mxu0 0.0
  %6679 = vmatprep.subr.mxu0 0.0
  %6680 = vmatpush1.msra.mxu0 0.0
  %6681 = vmatprep.subr.mxu0 0.0
  %6682 = vmatpush1.msra.mxu0 0.0
  %6683 = vmatprep.subr.mxu0 0.0
  %6684 = vmatpush1.msra.mxu0 0.0
  %6685 = vmatprep.subr.mxu0 0.0
  %6686 = vmatpush1.msra.mxu0 0.0
  %6687 = vmatprep.mubr.f32.mxu0 0.0
  %6688 = vmatmul.mubr.f32.gmra.mrb[0].mxu0 %v6479
  %v6689 = vpop.f32.mrb[0].mxu0
  %v6690 = vadd.f32 0.0, %v6689
  %v6691 = vpop.f32.mrb[0].mxu0
  %v6692 = vadd.f32 0.0, %v6691
  %6693 = vdwg.mxu0
  %v6694 = vadd.f32 %v6447, %v6548
  %v6695 = vadd.f32 %v6448, %v6550
  %v6696 = vadd.f32 %v6449, %v6619
  %v6697 = vadd.f32 %v6450, %v6621
  %v6698 = vadd.f32 %v6451, %v6690
  %v6699 = vadd.f32 %v6452, %v6692
  %s6700 = scalar_lea.vmem %s1, 208
  %v6701 = vld [vmem:[%s6700] sm:$0xff]
  %6702 = vrot.lane.b32.xlu0 %v4726, 77
  %v6703 = vpop.permute.xlu0 %6702
  %6704 = vrot.lane.b32.xlu0 %v4727, 77
  %v6705 = vpop.permute.xlu0 %6704
  %6706 = vrot.lane.b32.xlu0 %v4728, 77
  %v6707 = vpop.permute.xlu0 %6706
  %6708 = vrot.lane.b32.xlu0 %v4729, 77
  %v6709 = vpop.permute.xlu0 %6708
  %6710 = vrot.lane.b32.xlu0 %v4730, 77
  %v6711 = vpop.permute.xlu0 %6710
  %6712 = vrot.lane.b32.xlu0 %v4731, 77
  %v6713 = vpop.permute.xlu0 %6712
  %v6714 = vsel %vm2051, %v6703, %v6705
  %v6715 = vsel %vm2051, %v6705, %v6707
  %v6716 = vsel %vm2051, %v6707, %v6709
  %v6717 = vsel %vm2051, %v6709, %v6711
  %v6718 = vsel %vm2051, %v6711, %v6713
  %v6726 = vsel %vm52, %v6701, 0
  %6728 = vmatprep.subr.mxu0 %v6715
  %6729 = vmatpush1.msra.mxu0 %v6714
  %6730 = vmatprep.subr.mxu0 0.0
  %6731 = vmatpush1.msra.mxu0 0.0
  %6732 = vmatprep.subr.mxu0 0.0
  %6733 = vmatpush1.msra.mxu0 0.0
  %6734 = vmatprep.subr.mxu0 0.0
  %6735 = vmatpush1.msra.mxu0 0.0
  %6736 = vmatprep.subr.mxu0 0.0
  %6737 = vmatpush1.msra.mxu0 0.0
  %6738 = vmatprep.subr.mxu0 0.0
  %6739 = vmatpush1.msra.mxu0 0.0
  %6740 = vmatprep.subr.mxu0 0.0
  %6741 = vmatpush1.msra.mxu0 0.0
  %6742 = vmatprep.subr.mxu0 0.0
  %6743 = vmatpush1.msra.mxu0 0.0
  %6744 = vmatprep.subr.mxu0 0.0
  %6745 = vmatpush1.msra.mxu0 0.0
  %6746 = vmatprep.subr.mxu0 0.0
  %6747 = vmatpush1.msra.mxu0 0.0
  %6748 = vmatprep.subr.mxu0 0.0
  %6749 = vmatpush1.msra.mxu0 0.0
  %6750 = vmatprep.subr.mxu0 0.0
  %6751 = vmatpush1.msra.mxu0 0.0
  %6752 = vmatprep.subr.mxu0 0.0
  %6753 = vmatpush1.msra.mxu0 0.0
  %6754 = vmatprep.subr.mxu0 0.0
  %6755 = vmatpush1.msra.mxu0 0.0
  %6756 = vmatprep.subr.mxu0 0.0
  %6757 = vmatpush1.msra.mxu0 0.0
  %6758 = vmatprep.subr.mxu0 0.0
  %6759 = vmatpush1.msra.mxu0 0.0
  %6760 = vmatprep.subr.mxu0 0.0
  %6761 = vmatpush1.msra.mxu0 0.0
  %6762 = vmatprep.subr.mxu0 0.0
  %6763 = vmatpush1.msra.mxu0 0.0
  %6764 = vmatprep.subr.mxu0 0.0
  %6765 = vmatpush1.msra.mxu0 0.0
  %6766 = vmatprep.subr.mxu0 0.0
  %6767 = vmatpush1.msra.mxu0 0.0
  %6768 = vmatprep.subr.mxu0 0.0
  %6769 = vmatpush1.msra.mxu0 0.0
  %6770 = vmatprep.subr.mxu0 0.0
  %6771 = vmatpush1.msra.mxu0 0.0
  %6772 = vmatprep.subr.mxu0 0.0
  %6773 = vmatpush1.msra.mxu0 0.0
  %6774 = vmatprep.subr.mxu0 0.0
  %6775 = vmatpush1.msra.mxu0 0.0
  %6776 = vmatprep.subr.mxu0 0.0
  %6777 = vmatpush1.msra.mxu0 0.0
  %6778 = vmatprep.subr.mxu0 0.0
  %6779 = vmatpush1.msra.mxu0 0.0
  %6780 = vmatprep.subr.mxu0 0.0
  %6781 = vmatpush1.msra.mxu0 0.0
  %6782 = vmatprep.subr.mxu0 0.0
  %6783 = vmatpush1.msra.mxu0 0.0
  %6784 = vmatprep.subr.mxu0 0.0
  %6785 = vmatpush1.msra.mxu0 0.0
  %6786 = vmatprep.subr.mxu0 0.0
  %6787 = vmatpush1.msra.mxu0 0.0
  %6788 = vmatprep.subr.mxu0 0.0
  %6789 = vmatpush1.msra.mxu0 0.0
  %6790 = vmatprep.subr.mxu0 0.0
  %6791 = vmatpush1.msra.mxu0 0.0
  %6792 = vmatprep.mubr.f32.mxu0 0.0
  %6793 = vmatmul.mubr.f32.gmra.mrb[0].mxu0 %v6726
  %v6794 = vpop.f32.mrb[0].mxu0
  %v6795 = vadd.f32 0.0, %v6794
  %v6796 = vpop.f32.mrb[0].mxu0
  %v6797 = vadd.f32 0.0, %v6796
  %6798 = vdwg.mxu0
  %6799 = vmatprep.subr.mxu0 %v6717
  %6800 = vmatpush1.msra.mxu0 %v6716
  %6801 = vmatprep.subr.mxu0 0.0
  %6802 = vmatpush1.msra.mxu0 0.0
  %6803 = vmatprep.subr.mxu0 0.0
  %6804 = vmatpush1.msra.mxu0 0.0
  %6805 = vmatprep.subr.mxu0 0.0
  %6806 = vmatpush1.msra.mxu0 0.0
  %6807 = vmatprep.subr.mxu0 0.0
  %6808 = vmatpush1.msra.mxu0 0.0
  %6809 = vmatprep.subr.mxu0 0.0
  %6810 = vmatpush1.msra.mxu0 0.0
  %6811 = vmatprep.subr.mxu0 0.0
  %6812 = vmatpush1.msra.mxu0 0.0
  %6813 = vmatprep.subr.mxu0 0.0
  %6814 = vmatpush1.msra.mxu0 0.0
  %6815 = vmatprep.subr.mxu0 0.0
  %6816 = vmatpush1.msra.mxu0 0.0
  %6817 = vmatprep.subr.mxu0 0.0
  %6818 = vmatpush1.msra.mxu0 0.0
  %6819 = vmatprep.subr.mxu0 0.0
  %6820 = vmatpush1.msra.mxu0 0.0
  %6821 = vmatprep.subr.mxu0 0.0
  %6822 = vmatpush1.msra.mxu0 0.0
  %6823 = vmatprep.subr.mxu0 0.0
  %6824 = vmatpush1.msra.mxu0 0.0
  %6825 = vmatprep.subr.mxu0 0.0
  %6826 = vmatpush1.msra.mxu0 0.0
  %6827 = vmatprep.subr.mxu0 0.0
  %6828 = vmatpush1.msra.mxu0 0.0
  %6829 = vmatprep.subr.mxu0 0.0
  %6830 = vmatpush1.msra.mxu0 0.0
  %6831 = vmatprep.subr.mxu0 0.0
  %6832 = vmatpush1.msra.mxu0 0.0
  %6833 = vmatprep.subr.mxu0 0.0
  %6834 = vmatpush1.msra.mxu0 0.0
  %6835 = vmatprep.subr.mxu0 0.0
  %6836 = vmatpush1.msra.mxu0 0.0
  %6837 = vmatprep.subr.mxu0 0.0
  %6838 = vmatpush1.msra.mxu0 0.0
  %6839 = vmatprep.subr.mxu0 0.0
  %6840 = vmatpush1.msra.mxu0 0.0
  %6841 = vmatprep.subr.mxu0 0.0
  %6842 = vmatpush1.msra.mxu0 0.0
  %6843 = vmatprep.subr.mxu0 0.0
  %6844 = vmatpush1.msra.mxu0 0.0
  %6845 = vmatprep.subr.mxu0 0.0
  %6846 = vmatpush1.msra.mxu0 0.0
  %6847 = vmatprep.subr.mxu0 0.0
  %6848 = vmatpush1.msra.mxu0 0.0
  %6849 = vmatprep.subr.mxu0 0.0
  %6850 = vmatpush1.msra.mxu0 0.0
  %6851 = vmatprep.subr.mxu0 0.0
  %6852 = vmatpush1.msra.mxu0 0.0
  %6853 = vmatprep.subr.mxu0 0.0
  %6854 = vmatpush1.msra.mxu0 0.0
  %6855 = vmatprep.subr.mxu0 0.0
  %6856 = vmatpush1.msra.mxu0 0.0
  %6857 = vmatprep.subr.mxu0 0.0
  %6858 = vmatpush1.msra.mxu0 0.0
  %6859 = vmatprep.subr.mxu0 0.0
  %6860 = vmatpush1.msra.mxu0 0.0
  %6861 = vmatprep.subr.mxu0 0.0
  %6862 = vmatpush1.msra.mxu0 0.0
  %6863 = vmatprep.mubr.f32.mxu0 0.0
  %6864 = vmatmul.mubr.f32.gmra.mrb[0].mxu0 %v6726
  %v6865 = vpop.f32.mrb[0].mxu0
  %v6866 = vadd.f32 0.0, %v6865
  %v6867 = vpop.f32.mrb[0].mxu0
  %v6868 = vadd.f32 0.0, %v6867
  %6869 = vdwg.mxu0
  %6870 = vmatprep.subr.mxu0 %v6713
  %6871 = vmatpush1.msra.mxu0 %v6718
  %6872 = vmatprep.subr.mxu0 0.0
  %6873 = vmatpush1.msra.mxu0 0.0
  %6874 = vmatprep.subr.mxu0 0.0
  %6875 = vmatpush1.msra.mxu0 0.0
  %6876 = vmatprep.subr.mxu0 0.0
  %6877 = vmatpush1.msra.mxu0 0.0
  %6878 = vmatprep.subr.mxu0 0.0
  %6879 = vmatpush1.msra.mxu0 0.0
  %6880 = vmatprep.subr.mxu0 0.0
  %6881 = vmatpush1.msra.mxu0 0.0
  %6882 = vmatprep.subr.mxu0 0.0
  %6883 = vmatpush1.msra.mxu0 0.0
  %6884 = vmatprep.subr.mxu0 0.0
  %6885 = vmatpush1.msra.mxu0 0.0
  %6886 = vmatprep.subr.mxu0 0.0
  %6887 = vmatpush1.msra.mxu0 0.0
  %6888 = vmatprep.subr.mxu0 0.0
  %6889 = vmatpush1.msra.mxu0 0.0
  %6890 = vmatprep.subr.mxu0 0.0
  %6891 = vmatpush1.msra.mxu0 0.0
  %6892 = vmatprep.subr.mxu0 0.0
  %6893 = vmatpush1.msra.mxu0 0.0
  %6894 = vmatprep.subr.mxu0 0.0
  %6895 = vmatpush1.msra.mxu0 0.0
  %6896 = vmatprep.subr.mxu0 0.0
  %6897 = vmatpush1.msra.mxu0 0.0
  %6898 = vmatprep.subr.mxu0 0.0
  %6899 = vmatpush1.msra.mxu0 0.0
  %6900 = vmatprep.subr.mxu0 0.0
  %6901 = vmatpush1.msra.mxu0 0.0
  %6902 = vmatprep.subr.mxu0 0.0
  %6903 = vmatpush1.msra.mxu0 0.0
  %6904 = vmatprep.subr.mxu0 0.0
  %6905 = vmatpush1.msra.mxu0 0.0
  %6906 = vmatprep.subr.mxu0 0.0
  %6907 = vmatpush1.msra.mxu0 0.0
  %6908 = vmatprep.subr.mxu0 0.0
  %6909 = vmatpush1.msra.mxu0 0.0
  %6910 = vmatprep.subr.mxu0 0.0
  %6911 = vmatpush1.msra.mxu0 0.0
  %6912 = vmatprep.subr.mxu0 0.0
  %6913 = vmatpush1.msra.mxu0 0.0
  %6914 = vmatprep.subr.mxu0 0.0
  %6915 = vmatpush1.msra.mxu0 0.0
  %6916 = vmatprep.subr.mxu0 0.0
  %6917 = vmatpush1.msra.mxu0 0.0
  %6918 = vmatprep.subr.mxu0 0.0
  %6919 = vmatpush1.msra.mxu0 0.0
  %6920 = vmatprep.subr.mxu0 0.0
  %6921 = vmatpush1.msra.mxu0 0.0
  %6922 = vmatprep.subr.mxu0 0.0
  %6923 = vmatpush1.msra.mxu0 0.0
  %6924 = vmatprep.subr.mxu0 0.0
  %6925 = vmatpush1.msra.mxu0 0.0
  %6926 = vmatprep.subr.mxu0 0.0
  %6927 = vmatpush1.msra.mxu0 0.0
  %6928 = vmatprep.subr.mxu0 0.0
  %6929 = vmatpush1.msra.mxu0 0.0
  %6930 = vmatprep.subr.mxu0 0.0
  %6931 = vmatpush1.msra.mxu0 0.0
  %6932 = vmatprep.subr.mxu0 0.0
  %6933 = vmatpush1.msra.mxu0 0.0
  %6934 = vmatprep.mubr.f32.mxu0 0.0
  %6935 = vmatmul.mubr.f32.gmra.mrb[0].mxu0 %v6726
  %v6936 = vpop.f32.mrb[0].mxu0
  %v6937 = vadd.f32 0.0, %v6936
  %v6938 = vpop.f32.mrb[0].mxu0
  %v6939 = vadd.f32 0.0, %v6938
  %6940 = vdwg.mxu0
  %v6941 = vadd.f32 %v6694, %v6795
  %v6942 = vadd.f32 %v6695, %v6797
  %v6943 = vadd.f32 %v6696, %v6866
  %v6944 = vadd.f32 %v6697, %v6868
  %v6945 = vadd.f32 %v6698, %v6937
  %v6946 = vadd.f32 %v6699, %v6939
  %s6947 = scalar_lea.vmem %s3, 16
  %v6948 = vld [vmem:[%s6947] sm:$0xff]
  %6950 = vset.pattern.permute.xlu0 0
  %6951 = vperm.xlu0 %6950, %v6948
  %v6952 = vpop.permute.xlu0 %6951
  %v6954 = vadd.f32 %v6941, %v6952
  %v6955 = vadd.f32 %v6942, %v6952
  %v6956 = vadd.f32 %v6943, %v6952
  %v6957 = vadd.f32 %v6944, %v6952
  %v6958 = vadd.f32 %v6945, %v6952
  %v6959 = vadd.f32 %v6946, %v6952
  %s6960 = scalar_lea.vmem %s3, 32
  %v6961 = vld [vmem:[%s6960] sm:$0xff]
  %s6962 = scalar_lea.vmem %s3, 48
  %v6963 = vld [vmem:[%s6962] sm:$0xff]
  %v6964 = vmul.f32 %v6954, %v2307
  %v6965 = vmul.f32 %v6955, %v2311
  %v6966 = vmul.f32 %v6956, %v2315
  %v6967 = vmul.f32 %v6957, %v2319
  %v6968 = vmul.f32 %v6958, %v2323
  %v6969 = vmul.f32 %v6959, %v2327
  %v6970 = vadd.f32 %v6964, %v6965
  %v6971 = vadd.f32 %v6970, %v6966
  %v6972 = vadd.f32 %v6971, %v6967
  %v6973 = vadd.f32 %v6972, %v6968
  %v6974 = vsel %vm52, %v6969, 0.0
  %v6975 = vadd.f32 %v6973, %v6974
  %6976 = vadd.xlane.f32.xlu0 %v6975
  %v6977 = vpop.xlane.xlu0 %6976
  %v6978 = vmul.f32 %v6977, 0.001953125
  %v6979 = vmul.f32 %v6964, %v6964
  %v6980 = vmul.f32 %v6965, %v6965
  %v6981 = vmul.f32 %v6966, %v6966
  %v6982 = vmul.f32 %v6967, %v6967
  %v6983 = vmul.f32 %v6968, %v6968
  %v6984 = vmul.f32 %v6969, %v6969
  %v6985 = vadd.f32 %v6979, %v6980
  %v6986 = vadd.f32 %v6985, %v6981
  %v6987 = vadd.f32 %v6986, %v6982
  %v6988 = vadd.f32 %v6987, %v6983
  %v6989 = vsel %vm52, %v6984, 0.0
  %v6990 = vadd.f32 %v6988, %v6989
  %6991 = vadd.xlane.f32.xlu0 %v6990
  %v6992 = vpop.xlane.xlu0 %6991
  %v6993 = vmul.f32 %v6992, 0.001953125
  %v6994 = vmul.f32 %v6978, %v6978
  %v6995 = vsub.f32 %v6993, %v6994
  %v6996 = vadd.f32 %v6995, 1e-05
  %v6997 = vrsqrt.pop %v6996
  %v6998 = vmul.f32 %v6961, %v6997
  %v6999 = vmul.f32 %v6978, %v6998
  %v7000 = vsub.f32 %v6963, %v6999
  %7002 = vset.pattern.permute.xlu0 0
  %7003 = vperm.xlu0 %7002, %v6998
  %v7004 = vpop.permute.xlu0 %7003
  %v7006 = vmul.f32 %v6964, %v7004
  %v7007 = vmul.f32 %v6965, %v7004
  %v7008 = vmul.f32 %v6966, %v7004
  %v7009 = vmul.f32 %v6967, %v7004
  %v7010 = vmul.f32 %v6968, %v7004
  %v7011 = vmul.f32 %v6969, %v7004
  %7013 = vset.pattern.permute.xlu0 0
  %7014 = vperm.xlu0 %7013, %v7000
  %v7015 = vpop.permute.xlu0 %7014
  %v7017 = vadd.f32 %v7006, %v7015
  %v7018 = vadd.f32 %v7007, %v7015
  %v7019 = vadd.f32 %v7008, %v7015
  %v7020 = vadd.f32 %v7009, %v7015
  %v7021 = vadd.f32 %v7010, %v7015
  %v7022 = vadd.f32 %v7011, %v7015
  %v7023 = vmax.f32 %v7017, 0.0
  %v7024 = vmax.f32 %v7018, 0.0
  %v7025 = vmax.f32 %v7019, 0.0
  %v7026 = vmax.f32 %v7020, 0.0
  %v7027 = vmax.f32 %v7021, 0.0
  %v7028 = vmax.f32 %v7022, 0.0
  %v7029 = vmul.f32 %v7023, %v2307
  %v7030 = vmul.f32 %v7024, %v2311
  %v7031 = vmul.f32 %v7025, %v2315
  %v7032 = vmul.f32 %v7026, %v2319
  %v7033 = vmul.f32 %v7027, %v2323
  %v7034 = vmul.f32 %v7028, %v2327
  %v7035 = vadd.f32 %v7029, %v3380
  %v7036 = vadd.f32 %v7030, %v3381
  %v7037 = vadd.f32 %v7031, %v3382
  %v7038 = vadd.f32 %v7032, %v3383
  %v7039 = vadd.f32 %v7033, %v3384
  %v7040 = vadd.f32 %v7034, %v3379
  %7047 = vrot.lane.b32.xlu0 %v7035, 32
  %v7048 = vpop.permute.xlu0 %7047
  %7049 = vrot.lane.b32.xlu0 %v7036, 32
  %v7050 = vpop.permute.xlu0 %7049
  %7051 = vrot.lane.b32.xlu0 %v7037, 32
  %v7052 = vpop.permute.xlu0 %7051
  %7053 = vrot.lane.b32.xlu0 %v7038, 32
  %v7054 = vpop.permute.xlu0 %7053
  %7055 = vrot.lane.b32.xlu0 %v7039, 32
  %v7056 = vpop.permute.xlu0 %7055
  %7057 = vrot.lane.b32.xlu0 %v7040, 32
  %v7058 = vpop.permute.xlu0 %7057
  %v7059 = vsel %vm2358, %v7048, %v7050
  %v7060 = vsel %vm2358, %v7050, %v7052
  %v7061 = vsel %vm2358, %v7052, %v7054
  %v7062 = vsel %vm2358, %v7054, %v7056
  %v7063 = vsel %vm2358, %v7056, %v7058
  %7070 = vst.msk [vmem:[#allocation2] sm:$0xff] %vm2370, %v7048
  %7071 = vst [vmem:[#allocation2 + $0x8] sm:$0xff] %v7059
  %7072 = vst [vmem:[#allocation2 + $0x10] sm:$0xff] %v7060
  %7073 = vst [vmem:[#allocation2 + $0x18] sm:$0xff] %v7061
  %7074 = vst [vmem:[#allocation2 + $0x20] sm:$0xff] %v7062
  %7075 = vst.msk [vmem:[#allocation2 + $0x28] sm:$0xff] %vm2376, %v7063
  %v7076 = vld [vmem:[%s2] sm:$0xff]
  %v7077 = vld [vmem:[#allocation2] sm:$0xff]
  %v7078 = vld [vmem:[#allocation2 + $0x8] sm:$0xff]
  %v7079 = vld [vmem:[#allocation2 + $0x10] sm:$0xff]
  %v7080 = vld [vmem:[#allocation2 + $0x18] sm:$0xff]
  %v7081 = vld [vmem:[#allocation2 + $0x20] sm:$0xff]
  %v7082 = vld [vmem:[#allocation2 + $0x28] sm:$0xff]
  %s7083 = scalar_lea.vmem %s2, 8
  %v7084 = vld [vmem:[%s7083] sm:$0xff]
  %7091 = vrot.lane.b32.xlu0 %v7077, 95
  %v7092 = vpop.permute.xlu0 %7091
  %7093 = vrot.lane.b32.xlu0 %v7078, 95
  %v7094 = vpop.permute.xlu0 %7093
  %7095 = vrot.lane.b32.xlu0 %v7079, 95
  %v7096 = vpop.permute.xlu0 %7095
  %7097 = vrot.lane.b32.xlu0 %v7080, 95
  %v7098 = vpop.permute.xlu0 %7097
  %7099 = vrot.lane.b32.xlu0 %v7081, 95
  %v7100 = vpop.permute.xlu0 %7099
  %7101 = vrot.lane.b32.xlu0 %v7082, 95
  %v7102 = vpop.permute.xlu0 %7101
  %v7103 = vsel %vm1307, %v7092, %v7094
  %v7104 = vsel %vm1307, %v7094, %v7096
  %v7105 = vsel %vm1307, %v7096, %v7098
  %v7106 = vsel %vm1307, %v7098, %v7100
  %v7107 = vsel %vm1307, %v7100, %v7102
  %v7115 = vsel %vm52, %v7084, 0
  %7117 = vmatprep.subr.mxu0 %v7104
  %7118 = vmatpush1.msra.mxu0 %v7103
  %7119 = vmatprep.subr.mxu0 0.0
  %7120 = vmatpush1.msra.mxu0 0.0
  %7121 = vmatprep.subr.mxu0 0.0
  %7122 = vmatpush1.msra.mxu0 0.0
  %7123 = vmatprep.subr.mxu0 0.0
  %7124 = vmatpush1.msra.mxu0 0.0
  %7125 = vmatprep.subr.mxu0 0.0
  %7126 = vmatpush1.msra.mxu0 0.0
  %7127 = vmatprep.subr.mxu0 0.0
  %7128 = vmatpush1.msra.mxu0 0.0
  %7129 = vmatprep.subr.mxu0 0.0
  %7130 = vmatpush1.msra.mxu0 0.0
  %7131 = vmatprep.subr.mxu0 0.0
  %7132 = vmatpush1.msra.mxu0 0.0
  %7133 = vmatprep.subr.mxu0 0.0
  %7134 = vmatpush1.msra.mxu0 0.0
  %7135 = vmatprep.subr.mxu0 0.0
  %7136 = vmatpush1.msra.mxu0 0.0
  %7137 = vmatprep.subr.mxu0 0.0
  %7138 = vmatpush1.msra.mxu0 0.0
  %7139 = vmatprep.subr.mxu0 0.0
  %7140 = vmatpush1.msra.mxu0 0.0
  %7141 = vmatprep.subr.mxu0 0.0
  %7142 = vmatpush1.msra.mxu0 0.0
  %7143 = vmatprep.subr.mxu0 0.0
  %7144 = vmatpush1.msra.mxu0 0.0
  %7145 = vmatprep.subr.mxu0 0.0
  %7146 = vmatpush1.msra.mxu0 0.0
  %7147 = vmatprep.subr.mxu0 0.0
  %7148 = vmatpush1.msra.mxu0 0.0
  %7149 = vmatprep.subr.mxu0 0.0
  %7150 = vmatpush1.msra.mxu0 0.0
  %7151 = vmatprep.subr.mxu0 0.0
  %7152 = vmatpush1.msra.mxu0 0.0
  %7153 = vmatprep.subr.mxu0 0.0
  %7154 = vmatpush1.msra.mxu0 0.0
  %7155 = vmatprep.subr.mxu0 0.0
  %7156 = vmatpush1.msra.mxu0 0.0
  %7157 = vmatprep.subr.mxu0 0.0
  %7158 = vmatpush1.msra.mxu0 0.0
  %7159 = vmatprep.subr.mxu0 0.0
  %7160 = vmatpush1.msra.mxu0 0.0
  %7161 = vmatprep.subr.mxu0 0.0
  %7162 = vmatpush1.msra.mxu0 0.0
  %7163 = vmatprep.subr.mxu0 0.0
  %7164 = vmatpush1.msra.mxu0 0.0
  %7165 = vmatprep.subr.mxu0 0.0
  %7166 = vmatpush1.msra.mxu0 0.0
  %7167 = vmatprep.subr.mxu0 0.0
  %7168 = vmatpush1.msra.mxu0 0.0
  %7169 = vmatprep.subr.mxu0 0.0
  %7170 = vmatpush1.msra.mxu0 0.0
  %7171 = vmatprep.subr.mxu0 0.0
  %7172 = vmatpush1.msra.mxu0 0.0
  %7173 = vmatprep.subr.mxu0 0.0
  %7174 = vmatpush1.msra.mxu0 0.0
  %7175 = vmatprep.subr.mxu0 0.0
  %7176 = vmatpush1.msra.mxu0 0.0
  %7177 = vmatprep.subr.mxu0 0.0
  %7178 = vmatpush1.msra.mxu0 0.0
  %7179 = vmatprep.subr.mxu0 0.0
  %7180 = vmatpush1.msra.mxu0 0.0
  %7181 = vmatprep.mubr.f32.mxu0 0.0
  %7182 = vmatmul.mubr.f32.gmra.mrb[0].mxu0 %v7115
  %v7183 = vpop.f32.mrb[0].mxu0
  %v7184 = vadd.f32 0.0, %v7183
  %v7185 = vpop.f32.mrb[0].mxu0
  %v7186 = vadd.f32 0.0, %v7185
  %7187 = vdwg.mxu0
  %7188 = vmatprep.subr.mxu0 %v7106
  %7189 = vmatpush1.msra.mxu0 %v7105
  %7190 = vmatprep.subr.mxu0 0.0
  %7191 = vmatpush1.msra.mxu0 0.0
  %7192 = vmatprep.subr.mxu0 0.0
  %7193 = vmatpush1.msra.mxu0 0.0
  %7194 = vmatprep.subr.mxu0 0.0
  %7195 = vmatpush1.msra.mxu0 0.0
  %7196 = vmatprep.subr.mxu0 0.0
  %7197 = vmatpush1.msra.mxu0 0.0
  %7198 = vmatprep.subr.mxu0 0.0
  %7199 = vmatpush1.msra.mxu0 0.0
  %7200 = vmatprep.subr.mxu0 0.0
  %7201 = vmatpush1.msra.mxu0 0.0
  %7202 = vmatprep.subr.mxu0 0.0
  %7203 = vmatpush1.msra.mxu0 0.0
  %7204 = vmatprep.subr.mxu0 0.0
  %7205 = vmatpush1.msra.mxu0 0.0
  %7206 = vmatprep.subr.mxu0 0.0
  %7207 = vmatpush1.msra.mxu0 0.0
  %7208 = vmatprep.subr.mxu0 0.0
  %7209 = vmatpush1.msra.mxu0 0.0
  %7210 = vmatprep.subr.mxu0 0.0
  %7211 = vmatpush1.msra.mxu0 0.0
  %7212 = vmatprep.subr.mxu0 0.0
  %7213 = vmatpush1.msra.mxu0 0.0
  %7214 = vmatprep.subr.mxu0 0.0
  %7215 = vmatpush1.msra.mxu0 0.0
  %7216 = vmatprep.subr.mxu0 0.0
  %7217 = vmatpush1.msra.mxu0 0.0
  %7218 = vmatprep.subr.mxu0 0.0
  %7219 = vmatpush1.msra.mxu0 0.0
  %7220 = vmatprep.subr.mxu0 0.0
  %7221 = vmatpush1.msra.mxu0 0.0
  %7222 = vmatprep.subr.mxu0 0.0
  %7223 = vmatpush1.msra.mxu0 0.0
  %7224 = vmatprep.subr.mxu0 0.0
  %7225 = vmatpush1.msra.mxu0 0.0
  %7226 = vmatprep.subr.mxu0 0.0
  %7227 = vmatpush1.msra.mxu0 0.0
  %7228 = vmatprep.subr.mxu0 0.0
  %7229 = vmatpush1.msra.mxu0 0.0
  %7230 = vmatprep.subr.mxu0 0.0
  %7231 = vmatpush1.msra.mxu0 0.0
  %7232 = vmatprep.subr.mxu0 0.0
  %7233 = vmatpush1.msra.mxu0 0.0
  %7234 = vmatprep.subr.mxu0 0.0
  %7235 = vmatpush1.msra.mxu0 0.0
  %7236 = vmatprep.subr.mxu0 0.0
  %7237 = vmatpush1.msra.mxu0 0.0
  %7238 = vmatprep.subr.mxu0 0.0
  %7239 = vmatpush1.msra.mxu0 0.0
  %7240 = vmatprep.subr.mxu0 0.0
  %7241 = vmatpush1.msra.mxu0 0.0
  %7242 = vmatprep.subr.mxu0 0.0
  %7243 = vmatpush1.msra.mxu0 0.0
  %7244 = vmatprep.subr.mxu0 0.0
  %7245 = vmatpush1.msra.mxu0 0.0
  %7246 = vmatprep.subr.mxu0 0.0
  %7247 = vmatpush1.msra.mxu0 0.0
  %7248 = vmatprep.subr.mxu0 0.0
  %7249 = vmatpush1.msra.mxu0 0.0
  %7250 = vmatprep.subr.mxu0 0.0
  %7251 = vmatpush1.msra.mxu0 0.0
  %7252 = vmatprep.mubr.f32.mxu0 0.0
  %7253 = vmatmul.mubr.f32.gmra.mrb[0].mxu0 %v7115
  %v7254 = vpop.f32.mrb[0].mxu0
  %v7255 = vadd.f32 0.0, %v7254
  %v7256 = vpop.f32.mrb[0].mxu0
  %v7257 = vadd.f32 0.0, %v7256
  %7258 = vdwg.mxu0
  %7259 = vmatprep.subr.mxu0 %v7102
  %7260 = vmatpush1.msra.mxu0 %v7107
  %7261 = vmatprep.subr.mxu0 0.0
  %7262 = vmatpush1.msra.mxu0 0.0
  %7263 = vmatprep.subr.mxu0 0.0
  %7264 = vmatpush1.msra.mxu0 0.0
  %7265 = vmatprep.subr.mxu0 0.0
  %7266 = vmatpush1.msra.mxu0 0.0
  %7267 = vmatprep.subr.mxu0 0.0
  %7268 = vmatpush1.msra.mxu0 0.0
  %7269 = vmatprep.subr.mxu0 0.0
  %7270 = vmatpush1.msra.mxu0 0.0
  %7271 = vmatprep.subr.mxu0 0.0
  %7272 = vmatpush1.msra.mxu0 0.0
  %7273 = vmatprep.subr.mxu0 0.0
  %7274 = vmatpush1.msra.mxu0 0.0
  %7275 = vmatprep.subr.mxu0 0.0
  %7276 = vmatpush1.msra.mxu0 0.0
  %7277 = vmatprep.subr.mxu0 0.0
  %7278 = vmatpush1.msra.mxu0 0.0
  %7279 = vmatprep.subr.mxu0 0.0
  %7280 = vmatpush1.msra.mxu0 0.0
  %7281 = vmatprep.subr.mxu0 0.0
  %7282 = vmatpush1.msra.mxu0 0.0
  %7283 = vmatprep.subr.mxu0 0.0
  %7284 = vmatpush1.msra.mxu0 0.0
  %7285 = vmatprep.subr.mxu0 0.0
  %7286 = vmatpush1.msra.mxu0 0.0
  %7287 = vmatprep.subr.mxu0 0.0
  %7288 = vmatpush1.msra.mxu0 0.0
  %7289 = vmatprep.subr.mxu0 0.0
  %7290 = vmatpush1.msra.mxu0 0.0
  %7291 = vmatprep.subr.mxu0 0.0
  %7292 = vmatpush1.msra.mxu0 0.0
  %7293 = vmatprep.subr.mxu0 0.0
  %7294 = vmatpush1.msra.mxu0 0.0
  %7295 = vmatprep.subr.mxu0 0.0
  %7296 = vmatpush1.msra.mxu0 0.0
  %7297 = vmatprep.subr.mxu0 0.0
  %7298 = vmatpush1.msra.mxu0 0.0
  %7299 = vmatprep.subr.mxu0 0.0
  %7300 = vmatpush1.msra.mxu0 0.0
  %7301 = vmatprep.subr.mxu0 0.0
  %7302 = vmatpush1.msra.mxu0 0.0
  %7303 = vmatprep.subr.mxu0 0.0
  %7304 = vmatpush1.msra.mxu0 0.0
  %7305 = vmatprep.subr.mxu0 0.0
  %7306 = vmatpush1.msra.mxu0 0.0
  %7307 = vmatprep.subr.mxu0 0.0
  %7308 = vmatpush1.msra.mxu0 0.0
  %7309 = vmatprep.subr.mxu0 0.0
  %7310 = vmatpush1.msra.mxu0 0.0
  %7311 = vmatprep.subr.mxu0 0.0
  %7312 = vmatpush1.msra.mxu0 0.0
  %7313 = vmatprep.subr.mxu0 0.0
  %7314 = vmatpush1.msra.mxu0 0.0
  %7315 = vmatprep.subr.mxu0 0.0
  %7316 = vmatpush1.msra.mxu0 0.0
  %7317 = vmatprep.subr.mxu0 0.0
  %7318 = vmatpush1.msra.mxu0 0.0
  %7319 = vmatprep.subr.mxu0 0.0
  %7320 = vmatpush1.msra.mxu0 0.0
  %7321 = vmatprep.subr.mxu0 0.0
  %7322 = vmatpush1.msra.mxu0 0.0
  %7323 = vmatprep.mubr.f32.mxu0 0.0
  %7324 = vmatmul.mubr.f32.gmra.mrb[0].mxu0 %v7115
  %v7325 = vpop.f32.mrb[0].mxu0
  %v7326 = vadd.f32 0.0, %v7325
  %v7327 = vpop.f32.mrb[0].mxu0
  %v7328 = vadd.f32 0.0, %v7327
  %7329 = vdwg.mxu0
  %7330 = vrot.lane.b32.xlu0 %v7077, 96
  %v7331 = vpop.permute.xlu0 %7330
  %7332 = vrot.lane.b32.xlu0 %v7078, 96
  %v7333 = vpop.permute.xlu0 %7332
  %7334 = vrot.lane.b32.xlu0 %v7079, 96
  %v7335 = vpop.permute.xlu0 %7334
  %7336 = vrot.lane.b32.xlu0 %v7080, 96
  %v7337 = vpop.permute.xlu0 %7336
  %7338 = vrot.lane.b32.xlu0 %v7081, 96
  %v7339 = vpop.permute.xlu0 %7338
  %7340 = vrot.lane.b32.xlu0 %v7082, 96
  %v7341 = vpop.permute.xlu0 %7340
  %v7342 = vsel %vm1059, %v7331, %v7333
  %v7343 = vsel %vm1059, %v7333, %v7335
  %v7344 = vsel %vm1059, %v7335, %v7337
  %v7345 = vsel %vm1059, %v7337, %v7339
  %v7346 = vsel %vm1059, %v7339, %v7341
  %v7354 = vsel %vm52, %v7076, 0
  %7356 = vmatprep.subr.mxu0 %v7343
  %7357 = vmatpush1.msra.mxu0 %v7342
  %7358 = vmatprep.subr.mxu0 0.0
  %7359 = vmatpush1.msra.mxu0 0.0
  %7360 = vmatprep.subr.mxu0 0.0
  %7361 = vmatpush1.msra.mxu0 0.0
  %7362 = vmatprep.subr.mxu0 0.0
  %7363 = vmatpush1.msra.mxu0 0.0
  %7364 = vmatprep.subr.mxu0 0.0
  %7365 = vmatpush1.msra.mxu0 0.0
  %7366 = vmatprep.subr.mxu0 0.0
  %7367 = vmatpush1.msra.mxu0 0.0
  %7368 = vmatprep.subr.mxu0 0.0
  %7369 = vmatpush1.msra.mxu0 0.0
  %7370 = vmatprep.subr.mxu0 0.0
  %7371 = vmatpush1.msra.mxu0 0.0
  %7372 = vmatprep.subr.mxu0 0.0
  %7373 = vmatpush1.msra.mxu0 0.0
  %7374 = vmatprep.subr.mxu0 0.0
  %7375 = vmatpush1.msra.mxu0 0.0
  %7376 = vmatprep.subr.mxu0 0.0
  %7377 = vmatpush1.msra.mxu0 0.0
  %7378 = vmatprep.subr.mxu0 0.0
  %7379 = vmatpush1.msra.mxu0 0.0
  %7380 = vmatprep.subr.mxu0 0.0
  %7381 = vmatpush1.msra.mxu0 0.0
  %7382 = vmatprep.subr.mxu0 0.0
  %7383 = vmatpush1.msra.mxu0 0.0
  %7384 = vmatprep.subr.mxu0 0.0
  %7385 = vmatpush1.msra.mxu0 0.0
  %7386 = vmatprep.subr.mxu0 0.0
  %7387 = vmatpush1.msra.mxu0 0.0
  %7388 = vmatprep.subr.mxu0 0.0
  %7389 = vmatpush1.msra.mxu0 0.0
  %7390 = vmatprep.subr.mxu0 0.0
  %7391 = vmatpush1.msra.mxu0 0.0
  %7392 = vmatprep.subr.mxu0 0.0
  %7393 = vmatpush1.msra.mxu0 0.0
  %7394 = vmatprep.subr.mxu0 0.0
  %7395 = vmatpush1.msra.mxu0 0.0
  %7396 = vmatprep.subr.mxu0 0.0
  %7397 = vmatpush1.msra.mxu0 0.0
  %7398 = vmatprep.subr.mxu0 0.0
  %7399 = vmatpush1.msra.mxu0 0.0
  %7400 = vmatprep.subr.mxu0 0.0
  %7401 = vmatpush1.msra.mxu0 0.0
  %7402 = vmatprep.subr.mxu0 0.0
  %7403 = vmatpush1.msra.mxu0 0.0
  %7404 = vmatprep.subr.mxu0 0.0
  %7405 = vmatpush1.msra.mxu0 0.0
  %7406 = vmatprep.subr.mxu0 0.0
  %7407 = vmatpush1.msra.mxu0 0.0
  %7408 = vmatprep.subr.mxu0 0.0
  %7409 = vmatpush1.msra.mxu0 0.0
  %7410 = vmatprep.subr.mxu0 0.0
  %7411 = vmatpush1.msra.mxu0 0.0
  %7412 = vmatprep.subr.mxu0 0.0
  %7413 = vmatpush1.msra.mxu0 0.0
  %7414 = vmatprep.subr.mxu0 0.0
  %7415 = vmatpush1.msra.mxu0 0.0
  %7416 = vmatprep.subr.mxu0 0.0
  %7417 = vmatpush1.msra.mxu0 0.0
  %7418 = vmatprep.subr.mxu0 0.0
  %7419 = vmatpush1.msra.mxu0 0.0
  %7420 = vmatprep.mubr.f32.mxu0 0.0
  %7421 = vmatmul.mubr.f32.gmra.mrb[0].mxu0 %v7354
  %v7422 = vpop.f32.mrb[0].mxu0
  %v7423 = vadd.f32 %v7184, %v7422
  %v7424 = vpop.f32.mrb[0].mxu0
  %v7425 = vadd.f32 %v7186, %v7424
  %7426 = vdwg.mxu0
  %7427 = vmatprep.subr.mxu0 %v7345
  %7428 = vmatpush1.msra.mxu0 %v7344
  %7429 = vmatprep.subr.mxu0 0.0
  %7430 = vmatpush1.msra.mxu0 0.0
  %7431 = vmatprep.subr.mxu0 0.0
  %7432 = vmatpush1.msra.mxu0 0.0
  %7433 = vmatprep.subr.mxu0 0.0
  %7434 = vmatpush1.msra.mxu0 0.0
  %7435 = vmatprep.subr.mxu0 0.0
  %7436 = vmatpush1.msra.mxu0 0.0
  %7437 = vmatprep.subr.mxu0 0.0
  %7438 = vmatpush1.msra.mxu0 0.0
  %7439 = vmatprep.subr.mxu0 0.0
  %7440 = vmatpush1.msra.mxu0 0.0
  %7441 = vmatprep.subr.mxu0 0.0
  %7442 = vmatpush1.msra.mxu0 0.0
  %7443 = vmatprep.subr.mxu0 0.0
  %7444 = vmatpush1.msra.mxu0 0.0
  %7445 = vmatprep.subr.mxu0 0.0
  %7446 = vmatpush1.msra.mxu0 0.0
  %7447 = vmatprep.subr.mxu0 0.0
  %7448 = vmatpush1.msra.mxu0 0.0
  %7449 = vmatprep.subr.mxu0 0.0
  %7450 = vmatpush1.msra.mxu0 0.0
  %7451 = vmatprep.subr.mxu0 0.0
  %7452 = vmatpush1.msra.mxu0 0.0
  %7453 = vmatprep.subr.mxu0 0.0
  %7454 = vmatpush1.msra.mxu0 0.0
  %7455 = vmatprep.subr.mxu0 0.0
  %7456 = vmatpush1.msra.mxu0 0.0
  %7457 = vmatprep.subr.mxu0 0.0
  %7458 = vmatpush1.msra.mxu0 0.0
  %7459 = vmatprep.subr.mxu0 0.0
  %7460 = vmatpush1.msra.mxu0 0.0
  %7461 = vmatprep.subr.mxu0 0.0
  %7462 = vmatpush1.msra.mxu0 0.0
  %7463 = vmatprep.subr.mxu0 0.0
  %7464 = vmatpush1.msra.mxu0 0.0
  %7465 = vmatprep.subr.mxu0 0.0
  %7466 = vmatpush1.msra.mxu0 0.0
  %7467 = vmatprep.subr.mxu0 0.0
  %7468 = vmatpush1.msra.mxu0 0.0
  %7469 = vmatprep.subr.mxu0 0.0
  %7470 = vmatpush1.msra.mxu0 0.0
  %7471 = vmatprep.subr.mxu0 0.0
  %7472 = vmatpush1.msra.mxu0 0.0
  %7473 = vmatprep.subr.mxu0 0.0
  %7474 = vmatpush1.msra.mxu0 0.0
  %7475 = vmatprep.subr.mxu0 0.0
  %7476 = vmatpush1.msra.mxu0 0.0
  %7477 = vmatprep.subr.mxu0 0.0
  %7478 = vmatpush1.msra.mxu0 0.0
  %7479 = vmatprep.subr.mxu0 0.0
  %7480 = vmatpush1.msra.mxu0 0.0
  %7481 = vmatprep.subr.mxu0 0.0
  %7482 = vmatpush1.msra.mxu0 0.0
  %7483 = vmatprep.subr.mxu0 0.0
  %7484 = vmatpush1.msra.mxu0 0.0
  %7485 = vmatprep.subr.mxu0 0.0
  %7486 = vmatpush1.msra.mxu0 0.0
  %7487 = vmatprep.subr.mxu0 0.0
  %7488 = vmatpush1.msra.mxu0 0.0
  %7489 = vmatprep.subr.mxu0 0.0
  %7490 = vmatpush1.msra.mxu0 0.0
  %7491 = vmatprep.mubr.f32.mxu0 0.0
  %7492 = vmatmul.mubr.f32.gmra.mrb[0].mxu0 %v7354
  %v7493 = vpop.f32.mrb[0].mxu0
  %v7494 = vadd.f32 %v7255, %v7493
  %v7495 = vpop.f32.mrb[0].mxu0
  %v7496 = vadd.f32 %v7257, %v7495
  %7497 = vdwg.mxu0
  %7498 = vmatprep.subr.mxu0 %v7341
  %7499 = vmatpush1.msra.mxu0 %v7346
  %7500 = vmatprep.subr.mxu0 0.0
  %7501 = vmatpush1.msra.mxu0 0.0
  %7502 = vmatprep.subr.mxu0 0.0
  %7503 = vmatpush1.msra.mxu0 0.0
  %7504 = vmatprep.subr.mxu0 0.0
  %7505 = vmatpush1.msra.mxu0 0.0
  %7506 = vmatprep.subr.mxu0 0.0
  %7507 = vmatpush1.msra.mxu0 0.0
  %7508 = vmatprep.subr.mxu0 0.0
  %7509 = vmatpush1.msra.mxu0 0.0
  %7510 = vmatprep.subr.mxu0 0.0
  %7511 = vmatpush1.msra.mxu0 0.0
  %7512 = vmatprep.subr.mxu0 0.0
  %7513 = vmatpush1.msra.mxu0 0.0
  %7514 = vmatprep.subr.mxu0 0.0
  %7515 = vmatpush1.msra.mxu0 0.0
  %7516 = vmatprep.subr.mxu0 0.0
  %7517 = vmatpush1.msra.mxu0 0.0
  %7518 = vmatprep.subr.mxu0 0.0
  %7519 = vmatpush1.msra.mxu0 0.0
  %7520 = vmatprep.subr.mxu0 0.0
  %7521 = vmatpush1.msra.mxu0 0.0
  %7522 = vmatprep.subr.mxu0 0.0
  %7523 = vmatpush1.msra.mxu0 0.0
  %7524 = vmatprep.subr.mxu0 0.0
  %7525 = vmatpush1.msra.mxu0 0.0
  %7526 = vmatprep.subr.mxu0 0.0
  %7527 = vmatpush1.msra.mxu0 0.0
  %7528 = vmatprep.subr.mxu0 0.0
  %7529 = vmatpush1.msra.mxu0 0.0
  %7530 = vmatprep.subr.mxu0 0.0
  %7531 = vmatpush1.msra.mxu0 0.0
  %7532 = vmatprep.subr.mxu0 0.0
  %7533 = vmatpush1.msra.mxu0 0.0
  %7534 = vmatprep.subr.mxu0 0.0
  %7535 = vmatpush1.msra.mxu0 0.0
  %7536 = vmatprep.subr.mxu0 0.0
  %7537 = vmatpush1.msra.mxu0 0.0
  %7538 = vmatprep.subr.mxu0 0.0
  %7539 = vmatpush1.msra.mxu0 0.0
  %7540 = vmatprep.subr.mxu0 0.0
  %7541 = vmatpush1.msra.mxu0 0.0
  %7542 = vmatprep.subr.mxu0 0.0
  %7543 = vmatpush1.msra.mxu0 0.0
  %7544 = vmatprep.subr.mxu0 0.0
  %7545 = vmatpush1.msra.mxu0 0.0
  %7546 = vmatprep.subr.mxu0 0.0
  %7547 = vmatpush1.msra.mxu0 0.0
  %7548 = vmatprep.subr.mxu0 0.0
  %7549 = vmatpush1.msra.mxu0 0.0
  %7550 = vmatprep.subr.mxu0 0.0
  %7551 = vmatpush1.msra.mxu0 0.0
  %7552 = vmatprep.subr.mxu0 0.0
  %7553 = vmatpush1.msra.mxu0 0.0
  %7554 = vmatprep.subr.mxu0 0.0
  %7555 = vmatpush1.msra.mxu0 0.0
  %7556 = vmatprep.subr.mxu0 0.0
  %7557 = vmatpush1.msra.mxu0 0.0
  %7558 = vmatprep.subr.mxu0 0.0
  %7559 = vmatpush1.msra.mxu0 0.0
  %7560 = vmatprep.subr.mxu0 0.0
  %7561 = vmatpush1.msra.mxu0 0.0
  %7562 = vmatprep.mubr.f32.mxu0 0.0
  %7563 = vmatmul.mubr.f32.gmra.mrb[0].mxu0 %v7354
  %v7564 = vpop.f32.mrb[0].mxu0
  %v7565 = vadd.f32 %v7326, %v7564
  %v7566 = vpop.f32.mrb[0].mxu0
  %v7567 = vadd.f32 %v7328, %v7566
  %7568 = vdwg.mxu0
  %s7569 = scalar_lea.vmem %s2, 16
  %v7570 = vld [vmem:[%s7569] sm:$0xff]
  %7571 = vrot.lane.b32.xlu0 %v7077, 78
  %v7572 = vpop.permute.xlu0 %7571
  %7573 = vrot.lane.b32.xlu0 %v7078, 78
  %v7574 = vpop.permute.xlu0 %7573
  %7575 = vrot.lane.b32.xlu0 %v7079, 78
  %v7576 = vpop.permute.xlu0 %7575
  %7577 = vrot.lane.b32.xlu0 %v7080, 78
  %v7578 = vpop.permute.xlu0 %7577
  %7579 = vrot.lane.b32.xlu0 %v7081, 78
  %v7580 = vpop.permute.xlu0 %7579
  %7581 = vrot.lane.b32.xlu0 %v7082, 78
  %v7582 = vpop.permute.xlu0 %7581
  %v7583 = vsel %vm1803, %v7572, %v7574
  %v7584 = vsel %vm1803, %v7574, %v7576
  %v7585 = vsel %vm1803, %v7576, %v7578
  %v7586 = vsel %vm1803, %v7578, %v7580
  %v7587 = vsel %vm1803, %v7580, %v7582
  %v7595 = vsel %vm52, %v7570, 0
  %7597 = vmatprep.subr.mxu0 %v7584
  %7598 = vmatpush1.msra.mxu0 %v7583
  %7599 = vmatprep.subr.mxu0 0.0
  %7600 = vmatpush1.msra.mxu0 0.0
  %7601 = vmatprep.subr.mxu0 0.0
  %7602 = vmatpush1.msra.mxu0 0.0
  %7603 = vmatprep.subr.mxu0 0.0
  %7604 = vmatpush1.msra.mxu0 0.0
  %7605 = vmatprep.subr.mxu0 0.0
  %7606 = vmatpush1.msra.mxu0 0.0
  %7607 = vmatprep.subr.mxu0 0.0
  %7608 = vmatpush1.msra.mxu0 0.0
  %7609 = vmatprep.subr.mxu0 0.0
  %7610 = vmatpush1.msra.mxu0 0.0
  %7611 = vmatprep.subr.mxu0 0.0
  %7612 = vmatpush1.msra.mxu0 0.0
  %7613 = vmatprep.subr.mxu0 0.0
  %7614 = vmatpush1.msra.mxu0 0.0
  %7615 = vmatprep.subr.mxu0 0.0
  %7616 = vmatpush1.msra.mxu0 0.0
  %7617 = vmatprep.subr.mxu0 0.0
  %7618 = vmatpush1.msra.mxu0 0.0
  %7619 = vmatprep.subr.mxu0 0.0
  %7620 = vmatpush1.msra.mxu0 0.0
  %7621 = vmatprep.subr.mxu0 0.0
  %7622 = vmatpush1.msra.mxu0 0.0
  %7623 = vmatprep.subr.mxu0 0.0
  %7624 = vmatpush1.msra.mxu0 0.0
  %7625 = vmatprep.subr.mxu0 0.0
  %7626 = vmatpush1.msra.mxu0 0.0
  %7627 = vmatprep.subr.mxu0 0.0
  %7628 = vmatpush1.msra.mxu0 0.0
  %7629 = vmatprep.subr.mxu0 0.0
  %7630 = vmatpush1.msra.mxu0 0.0
  %7631 = vmatprep.subr.mxu0 0.0
  %7632 = vmatpush1.msra.mxu0 0.0
  %7633 = vmatprep.subr.mxu0 0.0
  %7634 = vmatpush1.msra.mxu0 0.0
  %7635 = vmatprep.subr.mxu0 0.0
  %7636 = vmatpush1.msra.mxu0 0.0
  %7637 = vmatprep.subr.mxu0 0.0
  %7638 = vmatpush1.msra.mxu0 0.0
  %7639 = vmatprep.subr.mxu0 0.0
  %7640 = vmatpush1.msra.mxu0 0.0
  %7641 = vmatprep.subr.mxu0 0.0
  %7642 = vmatpush1.msra.mxu0 0.0
  %7643 = vmatprep.subr.mxu0 0.0
  %7644 = vmatpush1.msra.mxu0 0.0
  %7645 = vmatprep.subr.mxu0 0.0
  %7646 = vmatpush1.msra.mxu0 0.0
  %7647 = vmatprep.subr.mxu0 0.0
  %7648 = vmatpush1.msra.mxu0 0.0
  %7649 = vmatprep.subr.mxu0 0.0
  %7650 = vmatpush1.msra.mxu0 0.0
  %7651 = vmatprep.subr.mxu0 0.0
  %7652 = vmatpush1.msra.mxu0 0.0
  %7653 = vmatprep.subr.mxu0 0.0
  %7654 = vmatpush1.msra.mxu0 0.0
  %7655 = vmatprep.subr.mxu0 0.0
  %7656 = vmatpush1.msra.mxu0 0.0
  %7657 = vmatprep.subr.mxu0 0.0
  %7658 = vmatpush1.msra.mxu0 0.0
  %7659 = vmatprep.subr.mxu0 0.0
  %7660 = vmatpush1.msra.mxu0 0.0
  %7661 = vmatprep.mubr.f32.mxu0 0.0
  %7662 = vmatmul.mubr.f32.gmra.mrb[0].mxu0 %v7595
  %v7663 = vpop.f32.mrb[0].mxu0
  %v7664 = vadd.f32 0.0, %v7663
  %v7665 = vpop.f32.mrb[0].mxu0
  %v7666 = vadd.f32 0.0, %v7665
  %7667 = vdwg.mxu0
  %7668 = vmatprep.subr.mxu0 %v7586
  %7669 = vmatpush1.msra.mxu0 %v7585
  %7670 = vmatprep.subr.mxu0 0.0
  %7671 = vmatpush1.msra.mxu0 0.0
  %7672 = vmatprep.subr.mxu0 0.0
  %7673 = vmatpush1.msra.mxu0 0.0
  %7674 = vmatprep.subr.mxu0 0.0
  %7675 = vmatpush1.msra.mxu0 0.0
  %7676 = vmatprep.subr.mxu0 0.0
  %7677 = vmatpush1.msra.mxu0 0.0
  %7678 = vmatprep.subr.mxu0 0.0
  %7679 = vmatpush1.msra.mxu0 0.0
  %7680 = vmatprep.subr.mxu0 0.0
  %7681 = vmatpush1.msra.mxu0 0.0
  %7682 = vmatprep.subr.mxu0 0.0
  %7683 = vmatpush1.msra.mxu0 0.0
  %7684 = vmatprep.subr.mxu0 0.0
  %7685 = vmatpush1.msra.mxu0 0.0
  %7686 = vmatprep.subr.mxu0 0.0
  %7687 = vmatpush1.msra.mxu0 0.0
  %7688 = vmatprep.subr.mxu0 0.0
  %7689 = vmatpush1.msra.mxu0 0.0
  %7690 = vmatprep.subr.mxu0 0.0
  %7691 = vmatpush1.msra.mxu0 0.0
  %7692 = vmatprep.subr.mxu0 0.0
  %7693 = vmatpush1.msra.mxu0 0.0
  %7694 = vmatprep.subr.mxu0 0.0
  %7695 = vmatpush1.msra.mxu0 0.0
  %7696 = vmatprep.subr.mxu0 0.0
  %7697 = vmatpush1.msra.mxu0 0.0
  %7698 = vmatprep.subr.mxu0 0.0
  %7699 = vmatpush1.msra.mxu0 0.0
  %7700 = vmatprep.subr.mxu0 0.0
  %7701 = vmatpush1.msra.mxu0 0.0
  %7702 = vmatprep.subr.mxu0 0.0
  %7703 = vmatpush1.msra.mxu0 0.0
  %7704 = vmatprep.subr.mxu0 0.0
  %7705 = vmatpush1.msra.mxu0 0.0
  %7706 = vmatprep.subr.mxu0 0.0
  %7707 = vmatpush1.msra.mxu0 0.0
  %7708 = vmatprep.subr.mxu0 0.0
  %7709 = vmatpush1.msra.mxu0 0.0
  %7710 = vmatprep.subr.mxu0 0.0
  %7711 = vmatpush1.msra.mxu0 0.0
  %7712 = vmatprep.subr.mxu0 0.0
  %7713 = vmatpush1.msra.mxu0 0.0
  %7714 = vmatprep.subr.mxu0 0.0
  %7715 = vmatpush1.msra.mxu0 0.0
  %7716 = vmatprep.subr.mxu0 0.0
  %7717 = vmatpush1.msra.mxu0 0.0
  %7718 = vmatprep.subr.mxu0 0.0
  %7719 = vmatpush1.msra.mxu0 0.0
  %7720 = vmatprep.subr.mxu0 0.0
  %7721 = vmatpush1.msra.mxu0 0.0
  %7722 = vmatprep.subr.mxu0 0.0
  %7723 = vmatpush1.msra.mxu0 0.0
  %7724 = vmatprep.subr.mxu0 0.0
  %7725 = vmatpush1.msra.mxu0 0.0
  %7726 = vmatprep.subr.mxu0 0.0
  %7727 = vmatpush1.msra.mxu0 0.0
  %7728 = vmatprep.subr.mxu0 0.0
  %7729 = vmatpush1.msra.mxu0 0.0
  %7730 = vmatprep.subr.mxu0 0.0
  %7731 = vmatpush1.msra.mxu0 0.0
  %7732 = vmatprep.mubr.f32.mxu0 0.0
  %7733 = vmatmul.mubr.f32.gmra.mrb[0].mxu0 %v7595
  %v7734 = vpop.f32.mrb[0].mxu0
  %v7735 = vadd.f32 0.0, %v7734
  %v7736 = vpop.f32.mrb[0].mxu0
  %v7737 = vadd.f32 0.0, %v7736
  %7738 = vdwg.mxu0
  %7739 = vmatprep.subr.mxu0 %v7582
  %7740 = vmatpush1.msra.mxu0 %v7587
  %7741 = vmatprep.subr.mxu0 0.0
  %7742 = vmatpush1.msra.mxu0 0.0
  %7743 = vmatprep.subr.mxu0 0.0
  %7744 = vmatpush1.msra.mxu0 0.0
  %7745 = vmatprep.subr.mxu0 0.0
  %7746 = vmatpush1.msra.mxu0 0.0
  %7747 = vmatprep.subr.mxu0 0.0
  %7748 = vmatpush1.msra.mxu0 0.0
  %7749 = vmatprep.subr.mxu0 0.0
  %7750 = vmatpush1.msra.mxu0 0.0
  %7751 = vmatprep.subr.mxu0 0.0
  %7752 = vmatpush1.msra.mxu0 0.0
  %7753 = vmatprep.subr.mxu0 0.0
  %7754 = vmatpush1.msra.mxu0 0.0
  %7755 = vmatprep.subr.mxu0 0.0
  %7756 = vmatpush1.msra.mxu0 0.0
  %7757 = vmatprep.subr.mxu0 0.0
  %7758 = vmatpush1.msra.mxu0 0.0
  %7759 = vmatprep.subr.mxu0 0.0
  %7760 = vmatpush1.msra.mxu0 0.0
  %7761 = vmatprep.subr.mxu0 0.0
  %7762 = vmatpush1.msra.mxu0 0.0
  %7763 = vmatprep.subr.mxu0 0.0
  %7764 = vmatpush1.msra.mxu0 0.0
  %7765 = vmatprep.subr.mxu0 0.0
  %7766 = vmatpush1.msra.mxu0 0.0
  %7767 = vmatprep.subr.mxu0 0.0
  %7768 = vmatpush1.msra.mxu0 0.0
  %7769 = vmatprep.subr.mxu0 0.0
  %7770 = vmatpush1.msra.mxu0 0.0
  %7771 = vmatprep.subr.mxu0 0.0
  %7772 = vmatpush1.msra.mxu0 0.0
  %7773 = vmatprep.subr.mxu0 0.0
  %7774 = vmatpush1.msra.mxu0 0.0
  %7775 = vmatprep.subr.mxu0 0.0
  %7776 = vmatpush1.msra.mxu0 0.0
  %7777 = vmatprep.subr.mxu0 0.0
  %7778 = vmatpush1.msra.mxu0 0.0
  %7779 = vmatprep.subr.mxu0 0.0
  %7780 = vmatpush1.msra.mxu0 0.0
  %7781 = vmatprep.subr.mxu0 0.0
  %7782 = vmatpush1.msra.mxu0 0.0
  %7783 = vmatprep.subr.mxu0 0.0
  %7784 = vmatpush1.msra.mxu0 0.0
  %7785 = vmatprep.subr.mxu0 0.0
  %7786 = vmatpush1.msra.mxu0 0.0
  %7787 = vmatprep.subr.mxu0 0.0
  %7788 = vmatpush1.msra.mxu0 0.0
  %7789 = vmatprep.subr.mxu0 0.0
  %7790 = vmatpush1.msra.mxu0 0.0
  %7791 = vmatprep.subr.mxu0 0.0
  %7792 = vmatpush1.msra.mxu0 0.0
  %7793 = vmatprep.subr.mxu0 0.0
  %7794 = vmatpush1.msra.mxu0 0.0
  %7795 = vmatprep.subr.mxu0 0.0
  %7796 = vmatpush1.msra.mxu0 0.0
  %7797 = vmatprep.subr.mxu0 0.0
  %7798 = vmatpush1.msra.mxu0 0.0
  %7799 = vmatprep.subr.mxu0 0.0
  %7800 = vmatpush1.msra.mxu0 0.0
  %7801 = vmatprep.subr.mxu0 0.0
  %7802 = vmatpush1.msra.mxu0 0.0
  %7803 = vmatprep.mubr.f32.mxu0 0.0
  %7804 = vmatmul.mubr.f32.gmra.mrb[0].mxu0 %v7595
  %v7805 = vpop.f32.mrb[0].mxu0
  %v7806 = vadd.f32 0.0, %v7805
  %v7807 = vpop.f32.mrb[0].mxu0
  %v7808 = vadd.f32 0.0, %v7807
  %7809 = vdwg.mxu0
  %v7810 = vadd.f32 %v7423, %v7664
  %v7811 = vadd.f32 %v7425, %v7666
  %v7812 = vadd.f32 %v7494, %v7735
  %v7813 = vadd.f32 %v7496, %v7737
  %v7814 = vadd.f32 %v7565, %v7806
  %v7815 = vadd.f32 %v7567, %v7808
  %s7816 = scalar_lea.vmem %s2, 24
  %v7817 = vld [vmem:[%s7816] sm:$0xff]
  %7818 = vrot.lane.b32.xlu0 %v7077, 77
  %v7819 = vpop.permute.xlu0 %7818
  %7820 = vrot.lane.b32.xlu0 %v7078, 77
  %v7821 = vpop.permute.xlu0 %7820
  %7822 = vrot.lane.b32.xlu0 %v7079, 77
  %v7823 = vpop.permute.xlu0 %7822
  %7824 = vrot.lane.b32.xlu0 %v7080, 77
  %v7825 = vpop.permute.xlu0 %7824
  %7826 = vrot.lane.b32.xlu0 %v7081, 77
  %v7827 = vpop.permute.xlu0 %7826
  %7828 = vrot.lane.b32.xlu0 %v7082, 77
  %v7829 = vpop.permute.xlu0 %7828
  %v7830 = vsel %vm2051, %v7819, %v7821
  %v7831 = vsel %vm2051, %v7821, %v7823
  %v7832 = vsel %vm2051, %v7823, %v7825
  %v7833 = vsel %vm2051, %v7825, %v7827
  %v7834 = vsel %vm2051, %v7827, %v7829
  %v7842 = vsel %vm52, %v7817, 0
  %7844 = vmatprep.subr.mxu0 %v7831
  %7845 = vmatpush1.msra.mxu0 %v7830
  %7846 = vmatprep.subr.mxu0 0.0
  %7847 = vmatpush1.msra.mxu0 0.0
  %7848 = vmatprep.subr.mxu0 0.0
  %7849 = vmatpush1.msra.mxu0 0.0
  %7850 = vmatprep.subr.mxu0 0.0
  %7851 = vmatpush1.msra.mxu0 0.0
  %7852 = vmatprep.subr.mxu0 0.0
  %7853 = vmatpush1.msra.mxu0 0.0
  %7854 = vmatprep.subr.mxu0 0.0
  %7855 = vmatpush1.msra.mxu0 0.0
  %7856 = vmatprep.subr.mxu0 0.0
  %7857 = vmatpush1.msra.mxu0 0.0
  %7858 = vmatprep.subr.mxu0 0.0
  %7859 = vmatpush1.msra.mxu0 0.0
  %7860 = vmatprep.subr.mxu0 0.0
  %7861 = vmatpush1.msra.mxu0 0.0
  %7862 = vmatprep.subr.mxu0 0.0
  %7863 = vmatpush1.msra.mxu0 0.0
  %7864 = vmatprep.subr.mxu0 0.0
  %7865 = vmatpush1.msra.mxu0 0.0
  %7866 = vmatprep.subr.mxu0 0.0
  %7867 = vmatpush1.msra.mxu0 0.0
  %7868 = vmatprep.subr.mxu0 0.0
  %7869 = vmatpush1.msra.mxu0 0.0
  %7870 = vmatprep.subr.mxu0 0.0
  %7871 = vmatpush1.msra.mxu0 0.0
  %7872 = vmatprep.subr.mxu0 0.0
  %7873 = vmatpush1.msra.mxu0 0.0
  %7874 = vmatprep.subr.mxu0 0.0
  %7875 = vmatpush1.msra.mxu0 0.0
  %7876 = vmatprep.subr.mxu0 0.0
  %7877 = vmatpush1.msra.mxu0 0.0
  %7878 = vmatprep.subr.mxu0 0.0
  %7879 = vmatpush1.msra.mxu0 0.0
  %7880 = vmatprep.subr.mxu0 0.0
  %7881 = vmatpush1.msra.mxu0 0.0
  %7882 = vmatprep.subr.mxu0 0.0
  %7883 = vmatpush1.msra.mxu0 0.0
  %7884 = vmatprep.subr.mxu0 0.0
  %7885 = vmatpush1.msra.mxu0 0.0
  %7886 = vmatprep.subr.mxu0 0.0
  %7887 = vmatpush1.msra.mxu0 0.0
  %7888 = vmatprep.subr.mxu0 0.0
  %7889 = vmatpush1.msra.mxu0 0.0
  %7890 = vmatprep.subr.mxu0 0.0
  %7891 = vmatpush1.msra.mxu0 0.0
  %7892 = vmatprep.subr.mxu0 0.0
  %7893 = vmatpush1.msra.mxu0 0.0
  %7894 = vmatprep.subr.mxu0 0.0
  %7895 = vmatpush1.msra.mxu0 0.0
  %7896 = vmatprep.subr.mxu0 0.0
  %7897 = vmatpush1.msra.mxu0 0.0
  %7898 = vmatprep.subr.mxu0 0.0
  %7899 = vmatpush1.msra.mxu0 0.0
  %7900 = vmatprep.subr.mxu0 0.0
  %7901 = vmatpush1.msra.mxu0 0.0
  %7902 = vmatprep.subr.mxu0 0.0
  %7903 = vmatpush1.msra.mxu0 0.0
  %7904 = vmatprep.subr.mxu0 0.0
  %7905 = vmatpush1.msra.mxu0 0.0
  %7906 = vmatprep.subr.mxu0 0.0
  %7907 = vmatpush1.msra.mxu0 0.0
  %7908 = vmatprep.mubr.f32.mxu0 0.0
  %7909 = vmatmul.mubr.f32.gmra.mrb[0].mxu0 %v7842
  %v7910 = vpop.f32.mrb[0].mxu0
  %v7911 = vadd.f32 0.0, %v7910
  %v7912 = vpop.f32.mrb[0].mxu0
  %v7913 = vadd.f32 0.0, %v7912
  %7914 = vdwg.mxu0
  %7915 = vmatprep.subr.mxu0 %v7833
  %7916 = vmatpush1.msra.mxu0 %v7832
  %7917 = vmatprep.subr.mxu0 0.0
  %7918 = vmatpush1.msra.mxu0 0.0
  %7919 = vmatprep.subr.mxu0 0.0
  %7920 = vmatpush1.msra.mxu0 0.0
  %7921 = vmatprep.subr.mxu0 0.0
  %7922 = vmatpush1.msra.mxu0 0.0
  %7923 = vmatprep.subr.mxu0 0.0
  %7924 = vmatpush1.msra.mxu0 0.0
  %7925 = vmatprep.subr.mxu0 0.0
  %7926 = vmatpush1.msra.mxu0 0.0
  %7927 = vmatprep.subr.mxu0 0.0
  %7928 = vmatpush1.msra.mxu0 0.0
  %7929 = vmatprep.subr.mxu0 0.0
  %7930 = vmatpush1.msra.mxu0 0.0
  %7931 = vmatprep.subr.mxu0 0.0
  %7932 = vmatpush1.msra.mxu0 0.0
  %7933 = vmatprep.subr.mxu0 0.0
  %7934 = vmatpush1.msra.mxu0 0.0
  %7935 = vmatprep.subr.mxu0 0.0
  %7936 = vmatpush1.msra.mxu0 0.0
  %7937 = vmatprep.subr.mxu0 0.0
  %7938 = vmatpush1.msra.mxu0 0.0
  %7939 = vmatprep.subr.mxu0 0.0
  %7940 = vmatpush1.msra.mxu0 0.0
  %7941 = vmatprep.subr.mxu0 0.0
  %7942 = vmatpush1.msra.mxu0 0.0
  %7943 = vmatprep.subr.mxu0 0.0
  %7944 = vmatpush1.msra.mxu0 0.0
  %7945 = vmatprep.subr.mxu0 0.0
  %7946 = vmatpush1.msra.mxu0 0.0
  %7947 = vmatprep.subr.mxu0 0.0
  %7948 = vmatpush1.msra.mxu0 0.0
  %7949 = vmatprep.subr.mxu0 0.0
  %7950 = vmatpush1.msra.mxu0 0.0
  %7951 = vmatprep.subr.mxu0 0.0
  %7952 = vmatpush1.msra.mxu0 0.0
  %7953 = vmatprep.subr.mxu0 0.0
  %7954 = vmatpush1.msra.mxu0 0.0
  %7955 = vmatprep.subr.mxu0 0.0
  %7956 = vmatpush1.msra.mxu0 0.0
  %7957 = vmatprep.subr.mxu0 0.0
  %7958 = vmatpush1.msra.mxu0 0.0
  %7959 = vmatprep.subr.mxu0 0.0
  %7960 = vmatpush1.msra.mxu0 0.0
  %7961 = vmatprep.subr.mxu0 0.0
  %7962 = vmatpush1.msra.mxu0 0.0
  %7963 = vmatprep.subr.mxu0 0.0
  %7964 = vmatpush1.msra.mxu0 0.0
  %7965 = vmatprep.subr.mxu0 0.0
  %7966 = vmatpush1.msra.mxu0 0.0
  %7967 = vmatprep.subr.mxu0 0.0
  %7968 = vmatpush1.msra.mxu0 0.0
  %7969 = vmatprep.subr.mxu0 0.0
  %7970 = vmatpush1.msra.mxu0 0.0
  %7971 = vmatprep.subr.mxu0 0.0
  %7972 = vmatpush1.msra.mxu0 0.0
  %7973 = vmatprep.subr.mxu0 0.0
  %7974 = vmatpush1.msra.mxu0 0.0
  %7975 = vmatprep.subr.mxu0 0.0
  %7976 = vmatpush1.msra.mxu0 0.0
  %7977 = vmatprep.subr.mxu0 0.0
  %7978 = vmatpush1.msra.mxu0 0.0
  %7979 = vmatprep.mubr.f32.mxu0 0.0
  %7980 = vmatmul.mubr.f32.gmra.mrb[0].mxu0 %v7842
  %v7981 = vpop.f32.mrb[0].mxu0
  %v7982 = vadd.f32 0.0, %v7981
  %v7983 = vpop.f32.mrb[0].mxu0
  %v7984 = vadd.f32 0.0, %v7983
  %7985 = vdwg.mxu0
  %7986 = vmatprep.subr.mxu0 %v7829
  %7987 = vmatpush1.msra.mxu0 %v7834
  %7988 = vmatprep.subr.mxu0 0.0
  %7989 = vmatpush1.msra.mxu0 0.0
  %7990 = vmatprep.subr.mxu0 0.0
  %7991 = vmatpush1.msra.mxu0 0.0
  %7992 = vmatprep.subr.mxu0 0.0
  %7993 = vmatpush1.msra.mxu0 0.0
  %7994 = vmatprep.subr.mxu0 0.0
  %7995 = vmatpush1.msra.mxu0 0.0
  %7996 = vmatprep.subr.mxu0 0.0
  %7997 = vmatpush1.msra.mxu0 0.0
  %7998 = vmatprep.subr.mxu0 0.0
  %7999 = vmatpush1.msra.mxu0 0.0
  %8000 = vmatprep.subr.mxu0 0.0
  %8001 = vmatpush1.msra.mxu0 0.0
  %8002 = vmatprep.subr.mxu0 0.0
  %8003 = vmatpush1.msra.mxu0 0.0
  %8004 = vmatprep.subr.mxu0 0.0
  %8005 = vmatpush1.msra.mxu0 0.0
  %8006 = vmatprep.subr.mxu0 0.0
  %8007 = vmatpush1.msra.mxu0 0.0
  %8008 = vmatprep.subr.mxu0 0.0
  %8009 = vmatpush1.msra.mxu0 0.0
  %8010 = vmatprep.subr.mxu0 0.0
  %8011 = vmatpush1.msra.mxu0 0.0
  %8012 = vmatprep.subr.mxu0 0.0
  %8013 = vmatpush1.msra.mxu0 0.0
  %8014 = vmatprep.subr.mxu0 0.0
  %8015 = vmatpush1.msra.mxu0 0.0
  %8016 = vmatprep.subr.mxu0 0.0
  %8017 = vmatpush1.msra.mxu0 0.0
  %8018 = vmatprep.subr.mxu0 0.0
  %8019 = vmatpush1.msra.mxu0 0.0
  %8020 = vmatprep.subr.mxu0 0.0
  %8021 = vmatpush1.msra.mxu0 0.0
  %8022 = vmatprep.subr.mxu0 0.0
  %8023 = vmatpush1.msra.mxu0 0.0
  %8024 = vmatprep.subr.mxu0 0.0
  %8025 = vmatpush1.msra.mxu0 0.0
  %8026 = vmatprep.subr.mxu0 0.0
  %8027 = vmatpush1.msra.mxu0 0.0
  %8028 = vmatprep.subr.mxu0 0.0
  %8029 = vmatpush1.msra.mxu0 0.0
  %8030 = vmatprep.subr.mxu0 0.0
  %8031 = vmatpush1.msra.mxu0 0.0
  %8032 = vmatprep.subr.mxu0 0.0
  %8033 = vmatpush1.msra.mxu0 0.0
  %8034 = vmatprep.subr.mxu0 0.0
  %8035 = vmatpush1.msra.mxu0 0.0
  %8036 = vmatprep.subr.mxu0 0.0
  %8037 = vmatpush1.msra.mxu0 0.0
  %8038 = vmatprep.subr.mxu0 0.0
  %8039 = vmatpush1.msra.mxu0 0.0
  %8040 = vmatprep.subr.mxu0 0.0
  %8041 = vmatpush1.msra.mxu0 0.0
  %8042 = vmatprep.subr.mxu0 0.0
  %8043 = vmatpush1.msra.mxu0 0.0
  %8044 = vmatprep.subr.mxu0 0.0
  %8045 = vmatpush1.msra.mxu0 0.0
  %8046 = vmatprep.subr.mxu0 0.0
  %8047 = vmatpush1.msra.mxu0 0.0
  %8048 = vmatprep.subr.mxu0 0.0
  %8049 = vmatpush1.msra.mxu0 0.0
  %8050 = vmatprep.mubr.f32.mxu0 0.0
  %8051 = vmatmul.mubr.f32.gmra.mrb[0].mxu0 %v7842
  %v8052 = vpop.f32.mrb[0].mxu0
  %v8053 = vadd.f32 0.0, %v8052
  %v8054 = vpop.f32.mrb[0].mxu0
  %v8055 = vadd.f32 0.0, %v8054
  %8056 = vdwg.mxu0
  %v8057 = vadd.f32 %v7810, %v7911
  %v8058 = vadd.f32 %v7811, %v7913
  %v8059 = vadd.f32 %v7812, %v7982
  %v8060 = vadd.f32 %v7813, %v7984
  %v8061 = vadd.f32 %v7814, %v8053
  %v8062 = vadd.f32 %v7815, %v8055
  %v8063 = vld [vmem:[%s6] sm:$0xff]
  %v8064 = vld [vmem:[%s6 + $0x8] sm:$0xff]
  %v8065 = vld [vmem:[%s6 + $0x10] sm:$0xff]
  %v8066 = vld [vmem:[%s6 + $0x18] sm:$0xff]
  %v8067 = vld [vmem:[%s6 + $0x20] sm:$0xff]
  %v8068 = vld [vmem:[%s6 + $0x28] sm:$0xff]
  %v8069 = vld [vmem:[%s6 + $0x30] sm:$0xff]
  %v8070 = vld [vmem:[%s6 + $0x38] sm:$0xff]
  %v8071 = vld [vmem:[%s6 + $0x40] sm:$0xff]
  %v8072 = vld [vmem:[%s6 + $0x48] sm:$0xff]
  %v8073 = vld [vmem:[%s6 + $0x50] sm:$0xff]
  %v8074 = vld [vmem:[%s6 + $0x58] sm:$0xff]
  %v8075 = vld [vmem:[%s6 + $0x60] sm:$0xff]
  %v8076 = vld [vmem:[%s6 + $0x68] sm:$0xff]
  %v8077 = vld [vmem:[%s6 + $0x70] sm:$0xff]
  %v8078 = vld [vmem:[%s6 + $0x78] sm:$0xff]
  %v8079 = vld [vmem:[%s6 + $0x80] sm:$0xff]
  %v8080 = vld [vmem:[%s6 + $0x88] sm:$0xff]
  %v8081 = vld [vmem:[%s6 + $0x90] sm:$0xff]
  %v8082 = vld [vmem:[%s6 + $0x98] sm:$0xff]
  %v8083 = vld [vmem:[%s6 + $0xa0] sm:$0xff]
  %v8084 = vld [vmem:[%s6 + $0xa8] sm:$0xff]
  %v8085 = vld [vmem:[%s6 + $0xb0] sm:$0xff]
  %v8086 = vld [vmem:[%s6 + $0xb8] sm:$0xff]
  %v8087 = vld [vmem:[%s6 + $0xc0] sm:$0xff]
  %v8088 = vld [vmem:[%s6 + $0xc8] sm:$0xff]
  %v8089 = vld [vmem:[%s6 + $0xd0] sm:$0xff]
  %v8090 = vld [vmem:[%s6 + $0xd8] sm:$0xff]
  %v8091 = vld [vmem:[%s6 + $0xe0] sm:$0xff]
  %v8092 = vld [vmem:[%s6 + $0xe8] sm:$0xff]
  %v8093 = vld [vmem:[%s6 + $0xf0] sm:$0xff]
  %v8094 = vld [vmem:[%s6 + $0xf8] sm:$0xff]
  %v8095 = vld [vmem:[%s6 + $0x100] sm:$0xff]
  %v8096 = vld [vmem:[%s6 + $0x108] sm:$0xff]
  %v8097 = vld [vmem:[%s6 + $0x110] sm:$0xff]
  %v8098 = vld [vmem:[%s6 + $0x118] sm:$0xff]
  %v8099 = vld [vmem:[%s6 + $0x120] sm:$0xff]
  %v8100 = vld [vmem:[%s6 + $0x128] sm:$0xff]
  %v8101 = vld [vmem:[%s6 + $0x130] sm:$0xff]
  %v8102 = vld [vmem:[%s6 + $0x138] sm:$0xff]
  %v8103 = vld [vmem:[%s6 + $0x140] sm:$0xf]
  %v8104 = vld [vmem:[%s4] sm:$0xff]
  %vm8105 = vcmask 556032
  %v8107 = vsel %vm8105, %v8059, 0
  %vm8109 = vcmask 1043456
  %v8111 = vsel %vm8109, %v8103, 0
  %8113 = vmatprep.subr.mxu0 0.0
  %8114 = vmatpush1.msra.mxu0 %v8063
  %8115 = vmatprep.subr.mxu0 0.0
  %8116 = vmatpush1.msra.mxu0 %v8064
  %8117 = vmatprep.subr.mxu0 0.0
  %8118 = vmatpush1.msra.mxu0 %v8065
  %8119 = vmatprep.subr.mxu0 0.0
  %8120 = vmatpush1.msra.mxu0 %v8066
  %8121 = vmatprep.subr.mxu0 0.0
  %8122 = vmatpush1.msra.mxu0 %v8067
  %8123 = vmatprep.subr.mxu0 0.0
  %8124 = vmatpush1.msra.mxu0 %v8068
  %8125 = vmatprep.subr.mxu0 0.0
  %8126 = vmatpush1.msra.mxu0 %v8069
  %8127 = vmatprep.subr.mxu0 0.0
  %8128 = vmatpush1.msra.mxu0 %v8070
  %8129 = vmatprep.subr.mxu0 0.0
  %8130 = vmatpush1.msra.mxu0 %v8071
  %8131 = vmatprep.subr.mxu0 0.0
  %8132 = vmatpush1.msra.mxu0 %v8072
  %8133 = vmatprep.subr.mxu0 0.0
  %8134 = vmatpush1.msra.mxu0 %v8073
  %8135 = vmatprep.subr.mxu0 0.0
  %8136 = vmatpush1.msra.mxu0 %v8074
  %8137 = vmatprep.subr.mxu0 0.0
  %8138 = vmatpush1.msra.mxu0 %v8075
  %8139 = vmatprep.subr.mxu0 0.0
  %8140 = vmatpush1.msra.mxu0 %v8076
  %8141 = vmatprep.subr.mxu0 0.0
  %8142 = vmatpush1.msra.mxu0 %v8077
  %8143 = vmatprep.subr.mxu0 0.0
  %8144 = vmatpush1.msra.mxu0 %v8078
  %8145 = vmatprep.subr.mxu0 0.0
  %8146 = vmatpush1.msra.mxu0 %v8079
  %8147 = vmatprep.subr.mxu0 0.0
  %8148 = vmatpush1.msra.mxu0 %v8080
  %8149 = vmatprep.subr.mxu0 0.0
  %8150 = vmatpush1.msra.mxu0 %v8081
  %8151 = vmatprep.subr.mxu0 0.0
  %8152 = vmatpush1.msra.mxu0 %v8082
  %8153 = vmatprep.subr.mxu0 0.0
  %8154 = vmatpush1.msra.mxu0 %v8083
  %8155 = vmatprep.subr.mxu0 0.0
  %8156 = vmatpush1.msra.mxu0 %v8084
  %8157 = vmatprep.subr.mxu0 0.0
  %8158 = vmatpush1.msra.mxu0 %v8085
  %8159 = vmatprep.subr.mxu0 0.0
  %8160 = vmatpush1.msra.mxu0 %v8086
  %8161 = vmatprep.subr.mxu0 0.0
  %8162 = vmatpush1.msra.mxu0 %v8087
  %8163 = vmatprep.subr.mxu0 0.0
  %8164 = vmatpush1.msra.mxu0 %v8088
  %8165 = vmatprep.subr.mxu0 0.0
  %8166 = vmatpush1.msra.mxu0 %v8089
  %8167 = vmatprep.subr.mxu0 0.0
  %8168 = vmatpush1.msra.mxu0 %v8090
  %8169 = vmatprep.subr.mxu0 0.0
  %8170 = vmatpush1.msra.mxu0 %v8091
  %8171 = vmatprep.subr.mxu0 0.0
  %8172 = vmatpush1.msra.mxu0 %v8092
  %8173 = vmatprep.subr.mxu0 0.0
  %8174 = vmatpush1.msra.mxu0 %v8093
  %8175 = vmatprep.subr.mxu0 0.0
  %8176 = vmatpush1.msra.mxu0 %v8094
  %8177 = vmatprep.mubr.f32.mxu0 %v8058
  %8178 = vmatmul.mubr.f32.gmra.mrb[0].mxu0 %v8057
  %v8179 = vpop.f32.mrb[0].mxu0
  %v8180 = vadd.f32 %v8104, %v8179
  %v8181 = vpop.f32.mrb[0].mxu0
  %8182 = vdwg.mxu0
  %8183 = vmatprep.subr.mxu0 0.0
  %8184 = vmatpush1.msra.mxu0 %v8095
  %8185 = vmatprep.subr.mxu0 0.0
  %8186 = vmatpush1.msra.mxu0 %v8096
  %8187 = vmatprep.subr.mxu0 0.0
  %8188 = vmatpush1.msra.mxu0 %v8097
  %8189 = vmatprep.subr.mxu0 0.0
  %8190 = vmatpush1.msra.mxu0 %v8098
  %8191 = vmatprep.subr.mxu0 0.0
  %8192 = vmatpush1.msra.mxu0 %v8099
  %8193 = vmatprep.subr.mxu0 0.0
  %8194 = vmatpush1.msra.mxu0 %v8100
  %8195 = vmatprep.subr.mxu0 0.0
  %8196 = vmatpush1.msra.mxu0 %v8101
  %8197 = vmatprep.subr.mxu0 0.0
  %8198 = vmatpush1.msra.mxu0 %v8102
  %8199 = vmatprep.subr.mxu0 0.0
  %8200 = vmatpush1.msra.mxu0 %v8111
  %8201 = vmatprep.subr.mxu0 0.0
  %8202 = vmatpush1.msra.mxu0 0.0
  %8203 = vmatprep.subr.mxu0 0.0
  %8204 = vmatpush1.msra.mxu0 0.0
  %8205 = vmatprep.subr.mxu0 0.0
  %8206 = vmatpush1.msra.mxu0 0.0
  %8207 = vmatprep.subr.mxu0 0.0
  %8208 = vmatpush1.msra.mxu0 0.0
  %8209 = vmatprep.subr.mxu0 0.0
  %8210 = vmatpush1.msra.mxu0 0.0
  %8211 = vmatprep.subr.mxu0 0.0
  %8212 = vmatpush1.msra.mxu0 0.0
  %8213 = vmatprep.subr.mxu0 0.0
  %8214 = vmatpush1.msra.mxu0 0.0
  %8215 = vmatprep.subr.mxu0 0.0
  %8216 = vmatpush1.msra.mxu0 0.0
  %8217 = vmatprep.subr.mxu0 0.0
  %8218 = vmatpush1.msra.mxu0 0.0
  %8219 = vmatprep.subr.mxu0 0.0
  %8220 = vmatpush1.msra.mxu0 0.0
  %8221 = vmatprep.subr.mxu0 0.0
  %8222 = vmatpush1.msra.mxu0 0.0
  %8223 = vmatprep.subr.mxu0 0.0
  %8224 = vmatpush1.msra.mxu0 0.0
  %8225 = vmatprep.subr.mxu0 0.0
  %8226 = vmatpush1.msra.mxu0 0.0
  %8227 = vmatprep.subr.mxu0 0.0
  %8228 = vmatpush1.msra.mxu0 0.0
  %8229 = vmatprep.subr.mxu0 0.0
  %8230 = vmatpush1.msra.mxu0 0.0
  %8231 = vmatprep.subr.mxu0 0.0
  %8232 = vmatpush1.msra.mxu0 0.0
  %8233 = vmatprep.subr.mxu0 0.0
  %8234 = vmatpush1.msra.mxu0 0.0
  %8235 = vmatprep.subr.mxu0 0.0
  %8236 = vmatpush1.msra.mxu0 0.0
  %8237 = vmatprep.subr.mxu0 0.0
  %8238 = vmatpush1.msra.mxu0 0.0
  %8239 = vmatprep.subr.mxu0 0.0
  %8240 = vmatpush1.msra.mxu0 0.0
  %8241 = vmatprep.subr.mxu0 0.0
  %8242 = vmatpush1.msra.mxu0 0.0
  %8243 = vmatprep.subr.mxu0 0.0
  %8244 = vmatpush1.msra.mxu0 0.0
  %8245 = vmatprep.subr.mxu0 0.0
  %8246 = vmatpush1.msra.mxu0 0.0
  %8247 = vmatprep.mubr.f32.mxu0 0.0
  %8248 = vmatmul.mubr.f32.gmra.mrb[0].mxu0 %v8107
  %v8249 = vpop.f32.mrb[0].mxu0
  %v8250 = vadd.f32 %v8180, %v8249
  %v8251 = vpop.f32.mrb[0].mxu0
  %8252 = vdwg.mxu0
  %v8253 = vmax.f32 %v8250, 0.0
  %8255 = vrot.lane.b32.xlu0 %v8253, 32
  %v8256 = vpop.permute.xlu0 %8255
  %8258 = vst.msk [vmem:[#allocation3] sm:$0xff] %vm2370, %v8256
  %vm8259 = vcmask 31744
  %8260 = vst.msk [vmem:[#allocation3 + $0x8] sm:$0xff] %vm8259, %v8256
  %v8261 = vld [vmem:[%s6] sm:$0xff]
  %v8262 = vld [vmem:[%s6 + $0x8] sm:$0xff]
  %v8263 = vld [vmem:[%s6 + $0x10] sm:$0xff]
  %v8264 = vld [vmem:[%s6 + $0x18] sm:$0xff]
  %v8265 = vld [vmem:[%s6 + $0x20] sm:$0xff]
  %v8266 = vld [vmem:[%s6 + $0x28] sm:$0xff]
  %v8267 = vld [vmem:[%s6 + $0x30] sm:$0xff]
  %v8268 = vld [vmem:[%s6 + $0x38] sm:$0xff]
  %v8269 = vld [vmem:[%s6 + $0x40] sm:$0xff]
  %v8270 = vld [vmem:[%s6 + $0x48] sm:$0xff]
  %v8271 = vld [vmem:[%s6 + $0x50] sm:$0xff]
  %v8272 = vld [vmem:[%s6 + $0x58] sm:$0xff]
  %v8273 = vld [vmem:[%s6 + $0x60] sm:$0xff]
  %v8274 = vld [vmem:[%s6 + $0x68] sm:$0xff]
  %v8275 = vld [vmem:[%s6 + $0x70] sm:$0xff]
  %v8276 = vld [vmem:[%s6 + $0x78] sm:$0xff]
  %v8277 = vld [vmem:[%s6 + $0x80] sm:$0xff]
  %v8278 = vld [vmem:[%s6 + $0x88] sm:$0xff]
  %v8279 = vld [vmem:[%s6 + $0x90] sm:$0xff]
  %v8280 = vld [vmem:[%s6 + $0x98] sm:$0xff]
  %v8281 = vld [vmem:[%s6 + $0xa0] sm:$0xff]
  %v8282 = vld [vmem:[%s6 + $0xa8] sm:$0xff]
  %v8283 = vld [vmem:[%s6 + $0xb0] sm:$0xff]
  %v8284 = vld [vmem:[%s6 + $0xb8] sm:$0xff]
  %v8285 = vld [vmem:[%s6 + $0xc0] sm:$0xff]
  %v8286 = vld [vmem:[%s6 + $0xc8] sm:$0xff]
  %v8287 = vld [vmem:[%s6 + $0xd0] sm:$0xff]
  %v8288 = vld [vmem:[%s6 + $0xd8] sm:$0xff]
  %v8289 = vld [vmem:[%s6 + $0xe0] sm:$0xff]
  %v8290 = vld [vmem:[%s6 + $0xe8] sm:$0xff]
  %v8291 = vld [vmem:[%s6 + $0xf0] sm:$0xff]
  %v8292 = vld [vmem:[%s6 + $0xf8] sm:$0xff]
  %v8293 = vld [vmem:[%s6 + $0x100] sm:$0xff]
  %v8294 = vld [vmem:[%s6 + $0x108] sm:$0xff]
  %v8295 = vld [vmem:[%s6 + $0x110] sm:$0xff]
  %v8296 = vld [vmem:[%s6 + $0x118] sm:$0xff]
  %v8297 = vld [vmem:[%s6 + $0x120] sm:$0xff]
  %v8298 = vld [vmem:[%s6 + $0x128] sm:$0xff]
  %v8299 = vld [vmem:[%s6 + $0x130] sm:$0xff]
  %v8300 = vld [vmem:[%s6 + $0x138] sm:$0xff]
  %v8301 = vld [vmem:[%s6 + $0x140] sm:$0xf]
  %v8302 = vld [vmem:[%s4] sm:$0xff]
  %8306 = vrot.lane.b32.xlu0 %v8059, 60
  %v8307 = vpop.permute.xlu0 %8306
  %8308 = vrot.lane.b32.xlu0 %v8060, 60
  %v8309 = vpop.permute.xlu0 %8308
  %8310 = vrot.lane.b32.xlu0 %v8061, 60
  %v8311 = vpop.permute.xlu0 %8310
  %8312 = vrot.lane.b32.xlu0 %v8062, 60
  %v8313 = vpop.permute.xlu0 %8312
  %vm8314 = vcmask 490496
  %v8315 = vsel %vm8314, %v8307, %v8309
  %v8316 = vsel %vm8314, %v8309, %v8311
  %v8317 = vsel %vm8314, %v8311, %v8313
  %v8320 = vsel %vm8105, %v8317, 0
  %v8323 = vsel %vm8109, %v8301, 0
  %8325 = vmatprep.subr.mxu0 0.0
  %8326 = vmatpush1.msra.mxu0 %v8261
  %8327 = vmatprep.subr.mxu0 0.0
  %8328 = vmatpush1.msra.mxu0 %v8262
  %8329 = vmatprep.subr.mxu0 0.0
  %8330 = vmatpush1.msra.mxu0 %v8263
  %8331 = vmatprep.subr.mxu0 0.0
  %8332 = vmatpush1.msra.mxu0 %v8264
  %8333 = vmatprep.subr.mxu0 0.0
  %8334 = vmatpush1.msra.mxu0 %v8265
  %8335 = vmatprep.subr.mxu0 0.0
  %8336 = vmatpush1.msra.mxu0 %v8266
  %8337 = vmatprep.subr.mxu0 0.0
  %8338 = vmatpush1.msra.mxu0 %v8267
  %8339 = vmatprep.subr.mxu0 0.0
  %8340 = vmatpush1.msra.mxu0 %v8268
  %8341 = vmatprep.subr.mxu0 0.0
  %8342 = vmatpush1.msra.mxu0 %v8269
  %8343 = vmatprep.subr.mxu0 0.0
  %8344 = vmatpush1.msra.mxu0 %v8270
  %8345 = vmatprep.subr.mxu0 0.0
  %8346 = vmatpush1.msra.mxu0 %v8271
  %8347 = vmatprep.subr.mxu0 0.0
  %8348 = vmatpush1.msra.mxu0 %v8272
  %8349 = vmatprep.subr.mxu0 0.0
  %8350 = vmatpush1.msra.mxu0 %v8273
  %8351 = vmatprep.subr.mxu0 0.0
  %8352 = vmatpush1.msra.mxu0 %v8274
  %8353 = vmatprep.subr.mxu0 0.0
  %8354 = vmatpush1.msra.mxu0 %v8275
  %8355 = vmatprep.subr.mxu0 0.0
  %8356 = vmatpush1.msra.mxu0 %v8276
  %8357 = vmatprep.subr.mxu0 0.0
  %8358 = vmatpush1.msra.mxu0 %v8277
  %8359 = vmatprep.subr.mxu0 0.0
  %8360 = vmatpush1.msra.mxu0 %v8278
  %8361 = vmatprep.subr.mxu0 0.0
  %8362 = vmatpush1.msra.mxu0 %v8279
  %8363 = vmatprep.subr.mxu0 0.0
  %8364 = vmatpush1.msra.mxu0 %v8280
  %8365 = vmatprep.subr.mxu0 0.0
  %8366 = vmatpush1.msra.mxu0 %v8281
  %8367 = vmatprep.subr.mxu0 0.0
  %8368 = vmatpush1.msra.mxu0 %v8282
  %8369 = vmatprep.subr.mxu0 0.0
  %8370 = vmatpush1.msra.mxu0 %v8283
  %8371 = vmatprep.subr.mxu0 0.0
  %8372 = vmatpush1.msra.mxu0 %v8284
  %8373 = vmatprep.subr.mxu0 0.0
  %8374 = vmatpush1.msra.mxu0 %v8285
  %8375 = vmatprep.subr.mxu0 0.0
  %8376 = vmatpush1.msra.mxu0 %v8286
  %8377 = vmatprep.subr.mxu0 0.0
  %8378 = vmatpush1.msra.mxu0 %v8287
  %8379 = vmatprep.subr.mxu0 0.0
  %8380 = vmatpush1.msra.mxu0 %v8288
  %8381 = vmatprep.subr.mxu0 0.0
  %8382 = vmatpush1.msra.mxu0 %v8289
  %8383 = vmatprep.subr.mxu0 0.0
  %8384 = vmatpush1.msra.mxu0 %v8290
  %8385 = vmatprep.subr.mxu0 0.0
  %8386 = vmatpush1.msra.mxu0 %v8291
  %8387 = vmatprep.subr.mxu0 0.0
  %8388 = vmatpush1.msra.mxu0 %v8292
  %8389 = vmatprep.mubr.f32.mxu0 %v8316
  %8390 = vmatmul.mubr.f32.gmra.mrb[0].mxu0 %v8315
  %v8391 = vpop.f32.mrb[0].mxu0
  %v8392 = vadd.f32 %v8302, %v8391
  %v8393 = vpop.f32.mrb[0].mxu0
  %8394 = vdwg.mxu0
  %8395 = vmatprep.subr.mxu0 0.0
  %8396 = vmatpush1.msra.mxu0 %v8293
  %8397 = vmatprep.subr.mxu0 0.0
  %8398 = vmatpush1.msra.mxu0 %v8294
  %8399 = vmatprep.subr.mxu0 0.0
  %8400 = vmatpush1.msra.mxu0 %v8295
  %8401 = vmatprep.subr.mxu0 0.0
  %8402 = vmatpush1.msra.mxu0 %v8296
  %8403 = vmatprep.subr.mxu0 0.0
  %8404 = vmatpush1.msra.mxu0 %v8297
  %8405 = vmatprep.subr.mxu0 0.0
  %8406 = vmatpush1.msra.mxu0 %v8298
  %8407 = vmatprep.subr.mxu0 0.0
  %8408 = vmatpush1.msra.mxu0 %v8299
  %8409 = vmatprep.subr.mxu0 0.0
  %8410 = vmatpush1.msra.mxu0 %v8300
  %8411 = vmatprep.subr.mxu0 0.0
  %8412 = vmatpush1.msra.mxu0 %v8323
  %8413 = vmatprep.subr.mxu0 0.0
  %8414 = vmatpush1.msra.mxu0 0.0
  %8415 = vmatprep.subr.mxu0 0.0
  %8416 = vmatpush1.msra.mxu0 0.0
  %8417 = vmatprep.subr.mxu0 0.0
  %8418 = vmatpush1.msra.mxu0 0.0
  %8419 = vmatprep.subr.mxu0 0.0
  %8420 = vmatpush1.msra.mxu0 0.0
  %8421 = vmatprep.subr.mxu0 0.0
  %8422 = vmatpush1.msra.mxu0 0.0
  %8423 = vmatprep.subr.mxu0 0.0
  %8424 = vmatpush1.msra.mxu0 0.0
  %8425 = vmatprep.subr.mxu0 0.0
  %8426 = vmatpush1.msra.mxu0 0.0
  %8427 = vmatprep.subr.mxu0 0.0
  %8428 = vmatpush1.msra.mxu0 0.0
  %8429 = vmatprep.subr.mxu0 0.0
  %8430 = vmatpush1.msra.mxu0 0.0
  %8431 = vmatprep.subr.mxu0 0.0
  %8432 = vmatpush1.msra.mxu0 0.0
  %8433 = vmatprep.subr.mxu0 0.0
  %8434 = vmatpush1.msra.mxu0 0.0
  %8435 = vmatprep.subr.mxu0 0.0
  %8436 = vmatpush1.msra.mxu0 0.0
  %8437 = vmatprep.subr.mxu0 0.0
  %8438 = vmatpush1.msra.mxu0 0.0
  %8439 = vmatprep.subr.mxu0 0.0
  %8440 = vmatpush1.msra.mxu0 0.0
  %8441 = vmatprep.subr.mxu0 0.0
  %8442 = vmatpush1.msra.mxu0 0.0
  %8443 = vmatprep.subr.mxu0 0.0
  %8444 = vmatpush1.msra.mxu0 0.0
  %8445 = vmatprep.subr.mxu0 0.0
  %8446 = vmatpush1.msra.mxu0 0.0
  %8447 = vmatprep.subr.mxu0 0.0
  %8448 = vmatpush1.msra.mxu0 0.0
  %8449 = vmatprep.subr.mxu0 0.0
  %8450 = vmatpush1.msra.mxu0 0.0
  %8451 = vmatprep.subr.mxu0 0.0
  %8452 = vmatpush1.msra.mxu0 0.0
  %8453 = vmatprep.subr.mxu0 0.0
  %8454 = vmatpush1.msra.mxu0 0.0
  %8455 = vmatprep.subr.mxu0 0.0
  %8456 = vmatpush1.msra.mxu0 0.0
  %8457 = vmatprep.subr.mxu0 0.0
  %8458 = vmatpush1.msra.mxu0 0.0
  %8459 = vmatprep.mubr.f32.mxu0 0.0
  %8460 = vmatmul.mubr.f32.gmra.mrb[0].mxu0 %v8320
  %v8461 = vpop.f32.mrb[0].mxu0
  %v8462 = vadd.f32 %v8392, %v8461
  %v8463 = vpop.f32.mrb[0].mxu0
  %8464 = vdwg.mxu0
  %v8465 = vmax.f32 %v8462, 0.0
  %8467 = vrot.lane.b32.xlu0 %v8465, 4
  %v8468 = vpop.permute.xlu0 %8467
  %vm8470 = vcmask 850976
  %8471 = vst.msk [vmem:[#allocation3 + $0x8] sm:$0xff] %vm8470, %v8468
  %v8472 = vld [vmem:[#allocation3] sm:$0xff]
  %v8473 = vld [vmem:[#allocation3 + $0x8] sm:$0xff]
  %s8474 = scalar_lea.vmem %s1, 216
  %v8475 = vld [vmem:[%s8474] sm:$0xff]
  %s8476 = scalar_lea.vmem %s1, 224
  %v8477 = vld [vmem:[%s8476] sm:$0xff]
  %8480 = vrot.lane.b32.xlu0 %v8472, 106
  %v8481 = vpop.permute.xlu0 %8480
  %8482 = vrot.lane.b32.xlu0 %v8473, 106
  %v8483 = vpop.permute.xlu0 %8482
  %vm8484 = vcmask 867328
  %v8485 = vsel %vm8484, %v8481, %v8483
  %v8489 = vsel %vm52, %v8477, 0
  %8491 = vmatprep.subr.mxu0 %v8483
  %8492 = vmatpush1.msra.mxu0 %v8485
  %8493 = vmatprep.subr.mxu0 0.0
  %8494 = vmatpush1.msra.mxu0 0.0
  %8495 = vmatprep.subr.mxu0 0.0
  %8496 = vmatpush1.msra.mxu0 0.0
  %8497 = vmatprep.subr.mxu0 0.0
  %8498 = vmatpush1.msra.mxu0 0.0
  %8499 = vmatprep.subr.mxu0 0.0
  %8500 = vmatpush1.msra.mxu0 0.0
  %8501 = vmatprep.subr.mxu0 0.0
  %8502 = vmatpush1.msra.mxu0 0.0
  %8503 = vmatprep.subr.mxu0 0.0
  %8504 = vmatpush1.msra.mxu0 0.0
  %8505 = vmatprep.subr.mxu0 0.0
  %8506 = vmatpush1.msra.mxu0 0.0
  %8507 = vmatprep.subr.mxu0 0.0
  %8508 = vmatpush1.msra.mxu0 0.0
  %8509 = vmatprep.subr.mxu0 0.0
  %8510 = vmatpush1.msra.mxu0 0.0
  %8511 = vmatprep.subr.mxu0 0.0
  %8512 = vmatpush1.msra.mxu0 0.0
  %8513 = vmatprep.subr.mxu0 0.0
  %8514 = vmatpush1.msra.mxu0 0.0
  %8515 = vmatprep.subr.mxu0 0.0
  %8516 = vmatpush1.msra.mxu0 0.0
  %8517 = vmatprep.subr.mxu0 0.0
  %8518 = vmatpush1.msra.mxu0 0.0
  %8519 = vmatprep.subr.mxu0 0.0
  %8520 = vmatpush1.msra.mxu0 0.0
  %8521 = vmatprep.subr.mxu0 0.0
  %8522 = vmatpush1.msra.mxu0 0.0
  %8523 = vmatprep.subr.mxu0 0.0
  %8524 = vmatpush1.msra.mxu0 0.0
  %8525 = vmatprep.subr.mxu0 0.0
  %8526 = vmatpush1.msra.mxu0 0.0
  %8527 = vmatprep.subr.mxu0 0.0
  %8528 = vmatpush1.msra.mxu0 0.0
  %8529 = vmatprep.subr.mxu0 0.0
  %8530 = vmatpush1.msra.mxu0 0.0
  %8531 = vmatprep.subr.mxu0 0.0
  %8532 = vmatpush1.msra.mxu0 0.0
  %8533 = vmatprep.subr.mxu0 0.0
  %8534 = vmatpush1.msra.mxu0 0.0
  %8535 = vmatprep.subr.mxu0 0.0
  %8536 = vmatpush1.msra.mxu0 0.0
  %8537 = vmatprep.subr.mxu0 0.0
  %8538 = vmatpush1.msra.mxu0 0.0
  %8539 = vmatprep.subr.mxu0 0.0
  %8540 = vmatpush1.msra.mxu0 0.0
  %8541 = vmatprep.subr.mxu0 0.0
  %8542 = vmatpush1.msra.mxu0 0.0
  %8543 = vmatprep.subr.mxu0 0.0
  %8544 = vmatpush1.msra.mxu0 0.0
  %8545 = vmatprep.subr.mxu0 0.0
  %8546 = vmatpush1.msra.mxu0 0.0
  %8547 = vmatprep.subr.mxu0 0.0
  %8548 = vmatpush1.msra.mxu0 0.0
  %8549 = vmatprep.subr.mxu0 0.0
  %8550 = vmatpush1.msra.mxu0 0.0
  %8551 = vmatprep.subr.mxu0 0.0
  %8552 = vmatpush1.msra.mxu0 0.0
  %8553 = vmatprep.subr.mxu0 0.0
  %8554 = vmatpush1.msra.mxu0 0.0
  %8555 = vmatprep.mubr.f32.mxu0 0.0
  %8556 = vmatmul.mubr.f32.gmra.mrb[0].mxu0 %v8489
  %v8557 = vpop.f32.mrb[0].mxu0
  %v8558 = vadd.f32 0.0, %v8557
  %v8559 = vpop.f32.mrb[0].mxu0
  %v8560 = vadd.f32 0.0, %v8559
  %8561 = vdwg.mxu0
  %8562 = vrot.lane.b32.xlu0 %v8472, 107
  %v8563 = vpop.permute.xlu0 %8562
  %8564 = vrot.lane.b32.xlu0 %v8473, 107
  %v8565 = vpop.permute.xlu0 %8564
  %vm8566 = vcmask 875520
  %v8567 = vsel %vm8566, %v8563, %v8565
  %v8571 = vsel %vm52, %v8475, 0
  %8573 = vmatprep.subr.mxu0 %v8565
  %8574 = vmatpush1.msra.mxu0 %v8567
  %8575 = vmatprep.subr.mxu0 0.0
  %8576 = vmatpush1.msra.mxu0 0.0
  %8577 = vmatprep.subr.mxu0 0.0
  %8578 = vmatpush1.msra.mxu0 0.0
  %8579 = vmatprep.subr.mxu0 0.0
  %8580 = vmatpush1.msra.mxu0 0.0
  %8581 = vmatprep.subr.mxu0 0.0
  %8582 = vmatpush1.msra.mxu0 0.0
  %8583 = vmatprep.subr.mxu0 0.0
  %8584 = vmatpush1.msra.mxu0 0.0
  %8585 = vmatprep.subr.mxu0 0.0
  %8586 = vmatpush1.msra.mxu0 0.0
  %8587 = vmatprep.subr.mxu0 0.0
  %8588 = vmatpush1.msra.mxu0 0.0
  %8589 = vmatprep.subr.mxu0 0.0
  %8590 = vmatpush1.msra.mxu0 0.0
  %8591 = vmatprep.subr.mxu0 0.0
  %8592 = vmatpush1.msra.mxu0 0.0
  %8593 = vmatprep.subr.mxu0 0.0
  %8594 = vmatpush1.msra.mxu0 0.0
  %8595 = vmatprep.subr.mxu0 0.0
  %8596 = vmatpush1.msra.mxu0 0.0
  %8597 = vmatprep.subr.mxu0 0.0
  %8598 = vmatpush1.msra.mxu0 0.0
  %8599 = vmatprep.subr.mxu0 0.0
  %8600 = vmatpush1.msra.mxu0 0.0
  %8601 = vmatprep.subr.mxu0 0.0
  %8602 = vmatpush1.msra.mxu0 0.0
  %8603 = vmatprep.subr.mxu0 0.0
  %8604 = vmatpush1.msra.mxu0 0.0
  %8605 = vmatprep.subr.mxu0 0.0
  %8606 = vmatpush1.msra.mxu0 0.0
  %8607 = vmatprep.subr.mxu0 0.0
  %8608 = vmatpush1.msra.mxu0 0.0
  %8609 = vmatprep.subr.mxu0 0.0
  %8610 = vmatpush1.msra.mxu0 0.0
  %8611 = vmatprep.subr.mxu0 0.0
  %8612 = vmatpush1.msra.mxu0 0.0
  %8613 = vmatprep.subr.mxu0 0.0
  %8614 = vmatpush1.msra.mxu0 0.0
  %8615 = vmatprep.subr.mxu0 0.0
  %8616 = vmatpush1.msra.mxu0 0.0
  %8617 = vmatprep.subr.mxu0 0.0
  %8618 = vmatpush1.msra.mxu0 0.0
  %8619 = vmatprep.subr.mxu0 0.0
  %8620 = vmatpush1.msra.mxu0 0.0
  %8621 = vmatprep.subr.mxu0 0.0
  %8622 = vmatpush1.msra.mxu0 0.0
  %8623 = vmatprep.subr.mxu0 0.0
  %8624 = vmatpush1.msra.mxu0 0.0
  %8625 = vmatprep.subr.mxu0 0.0
  %8626 = vmatpush1.msra.mxu0 0.0
  %8627 = vmatprep.subr.mxu0 0.0
  %8628 = vmatpush1.msra.mxu0 0.0
  %8629 = vmatprep.subr.mxu0 0.0
  %8630 = vmatpush1.msra.mxu0 0.0
  %8631 = vmatprep.subr.mxu0 0.0
  %8632 = vmatpush1.msra.mxu0 0.0
  %8633 = vmatprep.subr.mxu0 0.0
  %8634 = vmatpush1.msra.mxu0 0.0
  %8635 = vmatprep.subr.mxu0 0.0
  %8636 = vmatpush1.msra.mxu0 0.0
  %8637 = vmatprep.mubr.f32.mxu0 0.0
  %8638 = vmatmul.mubr.f32.gmra.mrb[0].mxu0 %v8571
  %v8639 = vpop.f32.mrb[0].mxu0
  %v8640 = vadd.f32 %v8558, %v8639
  %v8641 = vpop.f32.mrb[0].mxu0
  %v8642 = vadd.f32 %v8560, %v8641
  %8643 = vdwg.mxu0
  %s8644 = scalar_lea.vmem %s1, 232
  %v8645 = vld [vmem:[%s8644] sm:$0xff]
  %8646 = vrot.lane.b32.xlu0 %v8472, 105
  %v8647 = vpop.permute.xlu0 %8646
  %8648 = vrot.lane.b32.xlu0 %v8473, 105
  %v8649 = vpop.permute.xlu0 %8648
  %vm8650 = vcmask 859136
  %v8651 = vsel %vm8650, %v8647, %v8649
  %v8655 = vsel %vm52, %v8645, 0
  %8657 = vmatprep.subr.mxu0 %v8649
  %8658 = vmatpush1.msra.mxu0 %v8651
  %8659 = vmatprep.subr.mxu0 0.0
  %8660 = vmatpush1.msra.mxu0 0.0
  %8661 = vmatprep.subr.mxu0 0.0
  %8662 = vmatpush1.msra.mxu0 0.0
  %8663 = vmatprep.subr.mxu0 0.0
  %8664 = vmatpush1.msra.mxu0 0.0
  %8665 = vmatprep.subr.mxu0 0.0
  %8666 = vmatpush1.msra.mxu0 0.0
  %8667 = vmatprep.subr.mxu0 0.0
  %8668 = vmatpush1.msra.mxu0 0.0
  %8669 = vmatprep.subr.mxu0 0.0
  %8670 = vmatpush1.msra.mxu0 0.0
  %8671 = vmatprep.subr.mxu0 0.0
  %8672 = vmatpush1.msra.mxu0 0.0
  %8673 = vmatprep.subr.mxu0 0.0
  %8674 = vmatpush1.msra.mxu0 0.0
  %8675 = vmatprep.subr.mxu0 0.0
  %8676 = vmatpush1.msra.mxu0 0.0
  %8677 = vmatprep.subr.mxu0 0.0
  %8678 = vmatpush1.msra.mxu0 0.0
  %8679 = vmatprep.subr.mxu0 0.0
  %8680 = vmatpush1.msra.mxu0 0.0
  %8681 = vmatprep.subr.mxu0 0.0
  %8682 = vmatpush1.msra.mxu0 0.0
  %8683 = vmatprep.subr.mxu0 0.0
  %8684 = vmatpush1.msra.mxu0 0.0
  %8685 = vmatprep.subr.mxu0 0.0
  %8686 = vmatpush1.msra.mxu0 0.0
  %8687 = vmatprep.subr.mxu0 0.0
  %8688 = vmatpush1.msra.mxu0 0.0
  %8689 = vmatprep.subr.mxu0 0.0
  %8690 = vmatpush1.msra.mxu0 0.0
  %8691 = vmatprep.subr.mxu0 0.0
  %8692 = vmatpush1.msra.mxu0 0.0
  %8693 = vmatprep.subr.mxu0 0.0
  %8694 = vmatpush1.msra.mxu0 0.0
  %8695 = vmatprep.subr.mxu0 0.0
  %8696 = vmatpush1.msra.mxu0 0.0
  %8697 = vmatprep.subr.mxu0 0.0
  %8698 = vmatpush1.msra.mxu0 0.0
  %8699 = vmatprep.subr.mxu0 0.0
  %8700 = vmatpush1.msra.mxu0 0.0
  %8701 = vmatprep.subr.mxu0 0.0
  %8702 = vmatpush1.msra.mxu0 0.0
  %8703 = vmatprep.subr.mxu0 0.0
  %8704 = vmatpush1.msra.mxu0 0.0
  %8705 = vmatprep.subr.mxu0 0.0
  %8706 = vmatpush1.msra.mxu0 0.0
  %8707 = vmatprep.subr.mxu0 0.0
  %8708 = vmatpush1.msra.mxu0 0.0
  %8709 = vmatprep.subr.mxu0 0.0
  %8710 = vmatpush1.msra.mxu0 0.0
  %8711 = vmatprep.subr.mxu0 0.0
  %8712 = vmatpush1.msra.mxu0 0.0
  %8713 = vmatprep.subr.mxu0 0.0
  %8714 = vmatpush1.msra.mxu0 0.0
  %8715 = vmatprep.subr.mxu0 0.0
  %8716 = vmatpush1.msra.mxu0 0.0
  %8717 = vmatprep.subr.mxu0 0.0
  %8718 = vmatpush1.msra.mxu0 0.0
  %8719 = vmatprep.subr.mxu0 0.0
  %8720 = vmatpush1.msra.mxu0 0.0
  %8721 = vmatprep.mubr.f32.mxu0 0.0
  %8722 = vmatmul.mubr.f32.gmra.mrb[0].mxu0 %v8655
  %v8723 = vpop.f32.mrb[0].mxu0
  %v8724 = vadd.f32 0.0, %v8723
  %v8725 = vpop.f32.mrb[0].mxu0
  %v8726 = vadd.f32 0.0, %v8725
  %8727 = vdwg.mxu0
  %v8728 = vadd.f32 %v8640, %v8724
  %v8729 = vadd.f32 %v8642, %v8726
  %s8730 = scalar_lea.vmem %s1, 240
  %v8731 = vld [vmem:[%s8730] sm:$0xff]
  %8732 = vrot.lane.b32.xlu0 %v8472, 97
  %v8733 = vpop.permute.xlu0 %8732
  %8734 = vrot.lane.b32.xlu0 %v8473, 97
  %v8735 = vpop.permute.xlu0 %8734
  %v8736 = vsel %vm811, %v8733, %v8735
  %v8740 = vsel %vm52, %v8731, 0
  %8742 = vmatprep.subr.mxu0 %v8735
  %8743 = vmatpush1.msra.mxu0 %v8736
  %8744 = vmatprep.subr.mxu0 0.0
  %8745 = vmatpush1.msra.mxu0 0.0
  %8746 = vmatprep.subr.mxu0 0.0
  %8747 = vmatpush1.msra.mxu0 0.0
  %8748 = vmatprep.subr.mxu0 0.0
  %8749 = vmatpush1.msra.mxu0 0.0
  %8750 = vmatprep.subr.mxu0 0.0
  %8751 = vmatpush1.msra.mxu0 0.0
  %8752 = vmatprep.subr.mxu0 0.0
  %8753 = vmatpush1.msra.mxu0 0.0
  %8754 = vmatprep.subr.mxu0 0.0
  %8755 = vmatpush1.msra.mxu0 0.0
  %8756 = vmatprep.subr.mxu0 0.0
  %8757 = vmatpush1.msra.mxu0 0.0
  %8758 = vmatprep.subr.mxu0 0.0
  %8759 = vmatpush1.msra.mxu0 0.0
  %8760 = vmatprep.subr.mxu0 0.0
  %8761 = vmatpush1.msra.mxu0 0.0
  %8762 = vmatprep.subr.mxu0 0.0
  %8763 = vmatpush1.msra.mxu0 0.0
  %8764 = vmatprep.subr.mxu0 0.0
  %8765 = vmatpush1.msra.mxu0 0.0
  %8766 = vmatprep.subr.mxu0 0.0
  %8767 = vmatpush1.msra.mxu0 0.0
  %8768 = vmatprep.subr.mxu0 0.0
  %8769 = vmatpush1.msra.mxu0 0.0
  %8770 = vmatprep.subr.mxu0 0.0
  %8771 = vmatpush1.msra.mxu0 0.0
  %8772 = vmatprep.subr.mxu0 0.0
  %8773 = vmatpush1.msra.mxu0 0.0
  %8774 = vmatprep.subr.mxu0 0.0
  %8775 = vmatpush1.msra.mxu0 0.0
  %8776 = vmatprep.subr.mxu0 0.0
  %8777 = vmatpush1.msra.mxu0 0.0
  %8778 = vmatprep.subr.mxu0 0.0
  %8779 = vmatpush1.msra.mxu0 0.0
  %8780 = vmatprep.subr.mxu0 0.0
  %8781 = vmatpush1.msra.mxu0 0.0
  %8782 = vmatprep.subr.mxu0 0.0
  %8783 = vmatpush1.msra.mxu0 0.0
  %8784 = vmatprep.subr.mxu0 0.0
  %8785 = vmatpush1.msra.mxu0 0.0
  %8786 = vmatprep.subr.mxu0 0.0
  %8787 = vmatpush1.msra.mxu0 0.0
  %8788 = vmatprep.subr.mxu0 0.0
  %8789 = vmatpush1.msra.mxu0 0.0
  %8790 = vmatprep.subr.mxu0 0.0
  %8791 = vmatpush1.msra.mxu0 0.0
  %8792 = vmatprep.subr.mxu0 0.0
  %8793 = vmatpush1.msra.mxu0 0.0
  %8794 = vmatprep.subr.mxu0 0.0
  %8795 = vmatpush1.msra.mxu0 0.0
  %8796 = vmatprep.subr.mxu0 0.0
  %8797 = vmatpush1.msra.mxu0 0.0
  %8798 = vmatprep.subr.mxu0 0.0
  %8799 = vmatpush1.msra.mxu0 0.0
  %8800 = vmatprep.subr.mxu0 0.0
  %8801 = vmatpush1.msra.mxu0 0.0
  %8802 = vmatprep.subr.mxu0 0.0
  %8803 = vmatpush1.msra.mxu0 0.0
  %8804 = vmatprep.subr.mxu0 0.0
  %8805 = vmatpush1.msra.mxu0 0.0
  %8806 = vmatprep.mubr.f32.mxu0 0.0
  %8807 = vmatmul.mubr.f32.gmra.mrb[0].mxu0 %v8740
  %v8808 = vpop.f32.mrb[0].mxu0
  %v8809 = vadd.f32 0.0, %v8808
  %v8810 = vpop.f32.mrb[0].mxu0
  %v8811 = vadd.f32 0.0, %v8810
  %8812 = vdwg.mxu0
  %v8813 = vadd.f32 %v8728, %v8809
  %v8814 = vadd.f32 %v8729, %v8811
  %s8815 = scalar_lea.vmem %s1, 248
  %v8816 = vld [vmem:[%s8815] sm:$0xff]
  %8817 = vrot.lane.b32.xlu0 %v8472, 96
  %v8818 = vpop.permute.xlu0 %8817
  %8819 = vrot.lane.b32.xlu0 %v8473, 96
  %v8820 = vpop.permute.xlu0 %8819
  %v8821 = vsel %vm1059, %v8818, %v8820
  %v8825 = vsel %vm52, %v8816, 0
  %8827 = vmatprep.subr.mxu0 %v8820
  %8828 = vmatpush1.msra.mxu0 %v8821
  %8829 = vmatprep.subr.mxu0 0.0
  %8830 = vmatpush1.msra.mxu0 0.0
  %8831 = vmatprep.subr.mxu0 0.0
  %8832 = vmatpush1.msra.mxu0 0.0
  %8833 = vmatprep.subr.mxu0 0.0
  %8834 = vmatpush1.msra.mxu0 0.0
  %8835 = vmatprep.subr.mxu0 0.0
  %8836 = vmatpush1.msra.mxu0 0.0
  %8837 = vmatprep.subr.mxu0 0.0
  %8838 = vmatpush1.msra.mxu0 0.0
  %8839 = vmatprep.subr.mxu0 0.0
  %8840 = vmatpush1.msra.mxu0 0.0
  %8841 = vmatprep.subr.mxu0 0.0
  %8842 = vmatpush1.msra.mxu0 0.0
  %8843 = vmatprep.subr.mxu0 0.0
  %8844 = vmatpush1.msra.mxu0 0.0
  %8845 = vmatprep.subr.mxu0 0.0
  %8846 = vmatpush1.msra.mxu0 0.0
  %8847 = vmatprep.subr.mxu0 0.0
  %8848 = vmatpush1.msra.mxu0 0.0
  %8849 = vmatprep.subr.mxu0 0.0
  %8850 = vmatpush1.msra.mxu0 0.0
  %8851 = vmatprep.subr.mxu0 0.0
  %8852 = vmatpush1.msra.mxu0 0.0
  %8853 = vmatprep.subr.mxu0 0.0
  %8854 = vmatpush1.msra.mxu0 0.0
  %8855 = vmatprep.subr.mxu0 0.0
  %8856 = vmatpush1.msra.mxu0 0.0
  %8857 = vmatprep.subr.mxu0 0.0
  %8858 = vmatpush1.msra.mxu0 0.0
  %8859 = vmatprep.subr.mxu0 0.0
  %8860 = vmatpush1.msra.mxu0 0.0
  %8861 = vmatprep.subr.mxu0 0.0
  %8862 = vmatpush1.msra.mxu0 0.0
  %8863 = vmatprep.subr.mxu0 0.0
  %8864 = vmatpush1.msra.mxu0 0.0
  %8865 = vmatprep.subr.mxu0 0.0
  %8866 = vmatpush1.msra.mxu0 0.0
  %8867 = vmatprep.subr.mxu0 0.0
  %8868 = vmatpush1.msra.mxu0 0.0
  %8869 = vmatprep.subr.mxu0 0.0
  %8870 = vmatpush1.msra.mxu0 0.0
  %8871 = vmatprep.subr.mxu0 0.0
  %8872 = vmatpush1.msra.mxu0 0.0
  %8873 = vmatprep.subr.mxu0 0.0
  %8874 = vmatpush1.msra.mxu0 0.0
  %8875 = vmatprep.subr.mxu0 0.0
  %8876 = vmatpush1.msra.mxu0 0.0
  %8877 = vmatprep.subr.mxu0 0.0
  %8878 = vmatpush1.msra.mxu0 0.0
  %8879 = vmatprep.subr.mxu0 0.0
  %8880 = vmatpush1.msra.mxu0 0.0
  %8881 = vmatprep.subr.mxu0 0.0
  %8882 = vmatpush1.msra.mxu0 0.0
  %8883 = vmatprep.subr.mxu0 0.0
  %8884 = vmatpush1.msra.mxu0 0.0
  %8885 = vmatprep.subr.mxu0 0.0
  %8886 = vmatpush1.msra.mxu0 0.0
  %8887 = vmatprep.subr.mxu0 0.0
  %8888 = vmatpush1.msra.mxu0 0.0
  %8889 = vmatprep.subr.mxu0 0.0
  %8890 = vmatpush1.msra.mxu0 0.0
  %8891 = vmatprep.mubr.f32.mxu0 0.0
  %8892 = vmatmul.mubr.f32.gmra.mrb[0].mxu0 %v8825
  %v8893 = vpop.f32.mrb[0].mxu0
  %v8894 = vadd.f32 0.0, %v8893
  %v8895 = vpop.f32.mrb[0].mxu0
  %v8896 = vadd.f32 0.0, %v8895
  %8897 = vdwg.mxu0
  %v8898 = vadd.f32 %v8813, %v8894
  %v8899 = vadd.f32 %v8814, %v8896
  %s8900 = scalar_lea.vmem %s1, 256
  %v8901 = vld [vmem:[%s8900] sm:$0xff]
  %8902 = vrot.lane.b32.xlu0 %v8472, 95
  %v8903 = vpop.permute.xlu0 %8902
  %8904 = vrot.lane.b32.xlu0 %v8473, 95
  %v8905 = vpop.permute.xlu0 %8904
  %v8906 = vsel %vm1307, %v8903, %v8905
  %v8910 = vsel %vm52, %v8901, 0
  %8912 = vmatprep.subr.mxu0 %v8905
  %8913 = vmatpush1.msra.mxu0 %v8906
  %8914 = vmatprep.subr.mxu0 0.0
  %8915 = vmatpush1.msra.mxu0 0.0
  %8916 = vmatprep.subr.mxu0 0.0
  %8917 = vmatpush1.msra.mxu0 0.0
  %8918 = vmatprep.subr.mxu0 0.0
  %8919 = vmatpush1.msra.mxu0 0.0
  %8920 = vmatprep.subr.mxu0 0.0
  %8921 = vmatpush1.msra.mxu0 0.0
  %8922 = vmatprep.subr.mxu0 0.0
  %8923 = vmatpush1.msra.mxu0 0.0
  %8924 = vmatprep.subr.mxu0 0.0
  %8925 = vmatpush1.msra.mxu0 0.0
  %8926 = vmatprep.subr.mxu0 0.0
  %8927 = vmatpush1.msra.mxu0 0.0
  %8928 = vmatprep.subr.mxu0 0.0
  %8929 = vmatpush1.msra.mxu0 0.0
  %8930 = vmatprep.subr.mxu0 0.0
  %8931 = vmatpush1.msra.mxu0 0.0
  %8932 = vmatprep.subr.mxu0 0.0
  %8933 = vmatpush1.msra.mxu0 0.0
  %8934 = vmatprep.subr.mxu0 0.0
  %8935 = vmatpush1.msra.mxu0 0.0
  %8936 = vmatprep.subr.mxu0 0.0
  %8937 = vmatpush1.msra.mxu0 0.0
  %8938 = vmatprep.subr.mxu0 0.0
  %8939 = vmatpush1.msra.mxu0 0.0
  %8940 = vmatprep.subr.mxu0 0.0
  %8941 = vmatpush1.msra.mxu0 0.0
  %8942 = vmatprep.subr.mxu0 0.0
  %8943 = vmatpush1.msra.mxu0 0.0
  %8944 = vmatprep.subr.mxu0 0.0
  %8945 = vmatpush1.msra.mxu0 0.0
  %8946 = vmatprep.subr.mxu0 0.0
  %8947 = vmatpush1.msra.mxu0 0.0
  %8948 = vmatprep.subr.mxu0 0.0
  %8949 = vmatpush1.msra.mxu0 0.0
  %8950 = vmatprep.subr.mxu0 0.0
  %8951 = vmatpush1.msra.mxu0 0.0
  %8952 = vmatprep.subr.mxu0 0.0
  %8953 = vmatpush1.msra.mxu0 0.0
  %8954 = vmatprep.subr.mxu0 0.0
  %8955 = vmatpush1.msra.mxu0 0.0
  %8956 = vmatprep.subr.mxu0 0.0
  %8957 = vmatpush1.msra.mxu0 0.0
  %8958 = vmatprep.subr.mxu0 0.0
  %8959 = vmatpush1.msra.mxu0 0.0
  %8960 = vmatprep.subr.mxu0 0.0
  %8961 = vmatpush1.msra.mxu0 0.0
  %8962 = vmatprep.subr.mxu0 0.0
  %8963 = vmatpush1.msra.mxu0 0.0
  %8964 = vmatprep.subr.mxu0 0.0
  %8965 = vmatpush1.msra.mxu0 0.0
  %8966 = vmatprep.subr.mxu0 0.0
  %8967 = vmatpush1.msra.mxu0 0.0
  %8968 = vmatprep.subr.mxu0 0.0
  %8969 = vmatpush1.msra.mxu0 0.0
  %8970 = vmatprep.subr.mxu0 0.0
  %8971 = vmatpush1.msra.mxu0 0.0
  %8972 = vmatprep.subr.mxu0 0.0
  %8973 = vmatpush1.msra.mxu0 0.0
  %8974 = vmatprep.subr.mxu0 0.0
  %8975 = vmatpush1.msra.mxu0 0.0
  %8976 = vmatprep.mubr.f32.mxu0 0.0
  %8977 = vmatmul.mubr.f32.gmra.mrb[0].mxu0 %v8910
  %v8978 = vpop.f32.mrb[0].mxu0
  %v8979 = vadd.f32 0.0, %v8978
  %v8980 = vpop.f32.mrb[0].mxu0
  %v8981 = vadd.f32 0.0, %v8980
  %8982 = vdwg.mxu0
  %v8983 = vadd.f32 %v8898, %v8979
  %v8984 = vadd.f32 %v8899, %v8981
  %s8985 = scalar_lea.vmem %s1, 264
  %v8986 = vld [vmem:[%s8985] sm:$0xff]
  %8987 = vrot.lane.b32.xlu0 %v8472, 87
  %v8988 = vpop.permute.xlu0 %8987
  %8989 = vrot.lane.b32.xlu0 %v8473, 87
  %v8990 = vpop.permute.xlu0 %8989
  %vm8991 = vcmask 711680
  %v8992 = vsel %vm8991, %v8988, %v8990
  %v8996 = vsel %vm52, %v8986, 0
  %8998 = vmatprep.subr.mxu0 %v8990
  %8999 = vmatpush1.msra.mxu0 %v8992
  %9000 = vmatprep.subr.mxu0 0.0
  %9001 = vmatpush1.msra.mxu0 0.0
  %9002 = vmatprep.subr.mxu0 0.0
  %9003 = vmatpush1.msra.mxu0 0.0
  %9004 = vmatprep.subr.mxu0 0.0
  %9005 = vmatpush1.msra.mxu0 0.0
  %9006 = vmatprep.subr.mxu0 0.0
  %9007 = vmatpush1.msra.mxu0 0.0
  %9008 = vmatprep.subr.mxu0 0.0
  %9009 = vmatpush1.msra.mxu0 0.0
  %9010 = vmatprep.subr.mxu0 0.0
  %9011 = vmatpush1.msra.mxu0 0.0
  %9012 = vmatprep.subr.mxu0 0.0
  %9013 = vmatpush1.msra.mxu0 0.0
  %9014 = vmatprep.subr.mxu0 0.0
  %9015 = vmatpush1.msra.mxu0 0.0
  %9016 = vmatprep.subr.mxu0 0.0
  %9017 = vmatpush1.msra.mxu0 0.0
  %9018 = vmatprep.subr.mxu0 0.0
  %9019 = vmatpush1.msra.mxu0 0.0
  %9020 = vmatprep.subr.mxu0 0.0
  %9021 = vmatpush1.msra.mxu0 0.0
  %9022 = vmatprep.subr.mxu0 0.0
  %9023 = vmatpush1.msra.mxu0 0.0
  %9024 = vmatprep.subr.mxu0 0.0
  %9025 = vmatpush1.msra.mxu0 0.0
  %9026 = vmatprep.subr.mxu0 0.0
  %9027 = vmatpush1.msra.mxu0 0.0
  %9028 = vmatprep.subr.mxu0 0.0
  %9029 = vmatpush1.msra.mxu0 0.0
  %9030 = vmatprep.subr.mxu0 0.0
  %9031 = vmatpush1.msra.mxu0 0.0
  %9032 = vmatprep.subr.mxu0 0.0
  %9033 = vmatpush1.msra.mxu0 0.0
  %9034 = vmatprep.subr.mxu0 0.0
  %9035 = vmatpush1.msra.mxu0 0.0
  %9036 = vmatprep.subr.mxu0 0.0
  %9037 = vmatpush1.msra.mxu0 0.0
  %9038 = vmatprep.subr.mxu0 0.0
  %9039 = vmatpush1.msra.mxu0 0.0
  %9040 = vmatprep.subr.mxu0 0.0
  %9041 = vmatpush1.msra.mxu0 0.0
  %9042 = vmatprep.subr.mxu0 0.0
  %9043 = vmatpush1.msra.mxu0 0.0
  %9044 = vmatprep.subr.mxu0 0.0
  %9045 = vmatpush1.msra.mxu0 0.0
  %9046 = vmatprep.subr.mxu0 0.0
  %9047 = vmatpush1.msra.mxu0 0.0
  %9048 = vmatprep.subr.mxu0 0.0
  %9049 = vmatpush1.msra.mxu0 0.0
  %9050 = vmatprep.subr.mxu0 0.0
  %9051 = vmatpush1.msra.mxu0 0.0
  %9052 = vmatprep.subr.mxu0 0.0
  %9053 = vmatpush1.msra.mxu0 0.0
  %9054 = vmatprep.subr.mxu0 0.0
  %9055 = vmatpush1.msra.mxu0 0.0
  %9056 = vmatprep.subr.mxu0 0.0
  %9057 = vmatpush1.msra.mxu0 0.0
  %9058 = vmatprep.subr.mxu0 0.0
  %9059 = vmatpush1.msra.mxu0 0.0
  %9060 = vmatprep.subr.mxu0 0.0
  %9061 = vmatpush1.msra.mxu0 0.0
  %9062 = vmatprep.mubr.f32.mxu0 0.0
  %9063 = vmatmul.mubr.f32.gmra.mrb[0].mxu0 %v8996
  %v9064 = vpop.f32.mrb[0].mxu0
  %v9065 = vadd.f32 0.0, %v9064
  %v9066 = vpop.f32.mrb[0].mxu0
  %v9067 = vadd.f32 0.0, %v9066
  %9068 = vdwg.mxu0
  %v9069 = vadd.f32 %v8983, %v9065
  %v9070 = vadd.f32 %v8984, %v9067
  %s9071 = scalar_lea.vmem %s1, 272
  %v9072 = vld [vmem:[%s9071] sm:$0xff]
  %9073 = vrot.lane.b32.xlu0 %v8472, 86
  %v9074 = vpop.permute.xlu0 %9073
  %9075 = vrot.lane.b32.xlu0 %v8473, 86
  %v9076 = vpop.permute.xlu0 %9075
  %vm9077 = vcmask 703488
  %v9078 = vsel %vm9077, %v9074, %v9076
  %v9082 = vsel %vm52, %v9072, 0
  %9084 = vmatprep.subr.mxu0 %v9076
  %9085 = vmatpush1.msra.mxu0 %v9078
  %9086 = vmatprep.subr.mxu0 0.0
  %9087 = vmatpush1.msra.mxu0 0.0
  %9088 = vmatprep.subr.mxu0 0.0
  %9089 = vmatpush1.msra.mxu0 0.0
  %9090 = vmatprep.subr.mxu0 0.0
  %9091 = vmatpush1.msra.mxu0 0.0
  %9092 = vmatprep.subr.mxu0 0.0
  %9093 = vmatpush1.msra.mxu0 0.0
  %9094 = vmatprep.subr.mxu0 0.0
  %9095 = vmatpush1.msra.mxu0 0.0
  %9096 = vmatprep.subr.mxu0 0.0
  %9097 = vmatpush1.msra.mxu0 0.0
  %9098 = vmatprep.subr.mxu0 0.0
  %9099 = vmatpush1.msra.mxu0 0.0
  %9100 = vmatprep.subr.mxu0 0.0
  %9101 = vmatpush1.msra.mxu0 0.0
  %9102 = vmatprep.subr.mxu0 0.0
  %9103 = vmatpush1.msra.mxu0 0.0
  %9104 = vmatprep.subr.mxu0 0.0
  %9105 = vmatpush1.msra.mxu0 0.0
  %9106 = vmatprep.subr.mxu0 0.0
  %9107 = vmatpush1.msra.mxu0 0.0
  %9108 = vmatprep.subr.mxu0 0.0
  %9109 = vmatpush1.msra.mxu0 0.0
  %9110 = vmatprep.subr.mxu0 0.0
  %9111 = vmatpush1.msra.mxu0 0.0
  %9112 = vmatprep.subr.mxu0 0.0
  %9113 = vmatpush1.msra.mxu0 0.0
  %9114 = vmatprep.subr.mxu0 0.0
  %9115 = vmatpush1.msra.mxu0 0.0
  %9116 = vmatprep.subr.mxu0 0.0
  %9117 = vmatpush1.msra.mxu0 0.0
  %9118 = vmatprep.subr.mxu0 0.0
  %9119 = vmatpush1.msra.mxu0 0.0
  %9120 = vmatprep.subr.mxu0 0.0
  %9121 = vmatpush1.msra.mxu0 0.0
  %9122 = vmatprep.subr.mxu0 0.0
  %9123 = vmatpush1.msra.mxu0 0.0
  %9124 = vmatprep.subr.mxu0 0.0
  %9125 = vmatpush1.msra.mxu0 0.0
  %9126 = vmatprep.subr.mxu0 0.0
  %9127 = vmatpush1.msra.mxu0 0.0
  %9128 = vmatprep.subr.mxu0 0.0
  %9129 = vmatpush1.msra.mxu0 0.0
  %9130 = vmatprep.subr.mxu0 0.0
  %9131 = vmatpush1.msra.mxu0 0.0
  %9132 = vmatprep.subr.mxu0 0.0
  %9133 = vmatpush1.msra.mxu0 0.0
  %9134 = vmatprep.subr.mxu0 0.0
  %9135 = vmatpush1.msra.mxu0 0.0
  %9136 = vmatprep.subr.mxu0 0.0
  %9137 = vmatpush1.msra.mxu0 0.0
  %9138 = vmatprep.subr.mxu0 0.0
  %9139 = vmatpush1.msra.mxu0 0.0
  %9140 = vmatprep.subr.mxu0 0.0
  %9141 = vmatpush1.msra.mxu0 0.0
  %9142 = vmatprep.subr.mxu0 0.0
  %9143 = vmatpush1.msra.mxu0 0.0
  %9144 = vmatprep.subr.mxu0 0.0
  %9145 = vmatpush1.msra.mxu0 0.0
  %9146 = vmatprep.subr.mxu0 0.0
  %9147 = vmatpush1.msra.mxu0 0.0
  %9148 = vmatprep.mubr.f32.mxu0 0.0
  %9149 = vmatmul.mubr.f32.gmra.mrb[0].mxu0 %v9082
  %v9150 = vpop.f32.mrb[0].mxu0
  %v9151 = vadd.f32 0.0, %v9150
  %v9152 = vpop.f32.mrb[0].mxu0
  %v9153 = vadd.f32 0.0, %v9152
  %9154 = vdwg.mxu0
  %v9155 = vadd.f32 %v9069, %v9151
  %v9156 = vadd.f32 %v9070, %v9153
  %s9157 = scalar_lea.vmem %s1, 280
  %v9158 = vld [vmem:[%s9157] sm:$0xff]
  %9159 = vrot.lane.b32.xlu0 %v8472, 85
  %v9160 = vpop.permute.xlu0 %9159
  %9161 = vrot.lane.b32.xlu0 %v8473, 85
  %v9162 = vpop.permute.xlu0 %9161
  %vm9163 = vcmask 695296
  %v9164 = vsel %vm9163, %v9160, %v9162
  %v9168 = vsel %vm52, %v9158, 0
  %9170 = vmatprep.subr.mxu0 %v9162
  %9171 = vmatpush1.msra.mxu0 %v9164
  %9172 = vmatprep.subr.mxu0 0.0
  %9173 = vmatpush1.msra.mxu0 0.0
  %9174 = vmatprep.subr.mxu0 0.0
  %9175 = vmatpush1.msra.mxu0 0.0
  %9176 = vmatprep.subr.mxu0 0.0
  %9177 = vmatpush1.msra.mxu0 0.0
  %9178 = vmatprep.subr.mxu0 0.0
  %9179 = vmatpush1.msra.mxu0 0.0
  %9180 = vmatprep.subr.mxu0 0.0
  %9181 = vmatpush1.msra.mxu0 0.0
  %9182 = vmatprep.subr.mxu0 0.0
  %9183 = vmatpush1.msra.mxu0 0.0
  %9184 = vmatprep.subr.mxu0 0.0
  %9185 = vmatpush1.msra.mxu0 0.0
  %9186 = vmatprep.subr.mxu0 0.0
  %9187 = vmatpush1.msra.mxu0 0.0
  %9188 = vmatprep.subr.mxu0 0.0
  %9189 = vmatpush1.msra.mxu0 0.0
  %9190 = vmatprep.subr.mxu0 0.0
  %9191 = vmatpush1.msra.mxu0 0.0
  %9192 = vmatprep.subr.mxu0 0.0
  %9193 = vmatpush1.msra.mxu0 0.0
  %9194 = vmatprep.subr.mxu0 0.0
  %9195 = vmatpush1.msra.mxu0 0.0
  %9196 = vmatprep.subr.mxu0 0.0
  %9197 = vmatpush1.msra.mxu0 0.0
  %9198 = vmatprep.subr.mxu0 0.0
  %9199 = vmatpush1.msra.mxu0 0.0
  %9200 = vmatprep.subr.mxu0 0.0
  %9201 = vmatpush1.msra.mxu0 0.0
  %9202 = vmatprep.subr.mxu0 0.0
  %9203 = vmatpush1.msra.mxu0 0.0
  %9204 = vmatprep.subr.mxu0 0.0
  %9205 = vmatpush1.msra.mxu0 0.0
  %9206 = vmatprep.subr.mxu0 0.0
  %9207 = vmatpush1.msra.mxu0 0.0
  %9208 = vmatprep.subr.mxu0 0.0
  %9209 = vmatpush1.msra.mxu0 0.0
  %9210 = vmatprep.subr.mxu0 0.0
  %9211 = vmatpush1.msra.mxu0 0.0
  %9212 = vmatprep.subr.mxu0 0.0
  %9213 = vmatpush1.msra.mxu0 0.0
  %9214 = vmatprep.subr.mxu0 0.0
  %9215 = vmatpush1.msra.mxu0 0.0
  %9216 = vmatprep.subr.mxu0 0.0
  %9217 = vmatpush1.msra.mxu0 0.0
  %9218 = vmatprep.subr.mxu0 0.0
  %9219 = vmatpush1.msra.mxu0 0.0
  %9220 = vmatprep.subr.mxu0 0.0
  %9221 = vmatpush1.msra.mxu0 0.0
  %9222 = vmatprep.subr.mxu0 0.0
  %9223 = vmatpush1.msra.mxu0 0.0
  %9224 = vmatprep.subr.mxu0 0.0
  %9225 = vmatpush1.msra.mxu0 0.0
  %9226 = vmatprep.subr.mxu0 0.0
  %9227 = vmatpush1.msra.mxu0 0.0
  %9228 = vmatprep.subr.mxu0 0.0
  %9229 = vmatpush1.msra.mxu0 0.0
  %9230 = vmatprep.subr.mxu0 0.0
  %9231 = vmatpush1.msra.mxu0 0.0
  %9232 = vmatprep.subr.mxu0 0.0
  %9233 = vmatpush1.msra.mxu0 0.0
  %9234 = vmatprep.mubr.f32.mxu0 0.0
  %9235 = vmatmul.mubr.f32.gmra.mrb[0].mxu0 %v9168
  %v9236 = vpop.f32.mrb[0].mxu0
  %v9237 = vadd.f32 0.0, %v9236
  %v9238 = vpop.f32.mrb[0].mxu0
  %v9239 = vadd.f32 0.0, %v9238
  %9240 = vdwg.mxu0
  %v9241 = vadd.f32 %v9155, %v9237
  %v9242 = vadd.f32 %v9156, %v9239
  %s9243 = scalar_lea.vmem %s3, 56
  %v9244 = vld [vmem:[%s9243] sm:$0xff]
  %9246 = vset.pattern.permute.xlu0 0
  %9247 = vperm.xlu0 %9246, %v9244
  %v9248 = vpop.permute.xlu0 %9247
  %v9250 = vadd.f32 %v9241, %v9248
  %v9251 = vadd.f32 %v9242, %v9248
  %s9252 = scalar_lea.vmem %s3, 72
  %v9253 = vld [vmem:[%s9252] sm:$0xff]
  %s9254 = scalar_lea.vmem %s3, 88
  %v9255 = vld [vmem:[%s9254] sm:$0xff]
  %v9257 = vlaneseq
  %v9258 = vshrl.u32 %v9257, 7
  %v9259 = vsub.s32 0, %v9258
  %v9260 = vrot.slane %v42, %v9259
  %v9261 = vlaneseq
  %v9262 = vshrl.u32 %v9261, 7
  %v9263 = vsub.s32 1, %v9262
  %v9264 = vrot.slane %v42, %v9263
  %9265 = vrot.lane.b32.xlu0 %v9260, 120
  %v9266 = vpop.permute.xlu0 %9265
  %9267 = vrot.lane.b32.xlu0 %v9264, 120
  %v9268 = vpop.permute.xlu0 %9267
  %vm9269 = vcmask 982016
  %v9270 = vsel %vm9269, %v9266, %v9268
  %v9273 = vmul.f32 %v9250, %v9270
  %v9274 = vmul.f32 %v9251, %v9268
  %v9275 = vsel %vm48, %v9274, 0.0
  %v9276 = vadd.f32 %v9273, %v9275
  %9277 = vadd.xlane.f32.xlu0 %v9276
  %v9278 = vpop.xlane.xlu0 %9277
  %v9279 = vmul.f32 %v9278, 0.0078125
  %v9280 = vmul.f32 %v9273, %v9273
  %v9281 = vmul.f32 %v9274, %v9274
  %v9282 = vsel %vm48, %v9281, 0.0
  %v9283 = vadd.f32 %v9280, %v9282
  %9284 = vadd.xlane.f32.xlu0 %v9283
  %v9285 = vpop.xlane.xlu0 %9284
  %v9286 = vmul.f32 %v9285, 0.0078125
  %v9287 = vmul.f32 %v9279, %v9279
  %v9288 = vsub.f32 %v9286, %v9287
  %v9289 = vadd.f32 %v9288, 1e-05
  %v9290 = vrsqrt.pop %v9289
  %v9291 = vmul.f32 %v9253, %v9290
  %v9292 = vmul.f32 %v9279, %v9291
  %v9293 = vsub.f32 %v9255, %v9292
  %9295 = vset.pattern.permute.xlu0 0
  %9296 = vperm.xlu0 %9295, %v9291
  %v9297 = vpop.permute.xlu0 %9296
  %v9299 = vmul.f32 %v9273, %v9297
  %v9300 = vmul.f32 %v9274, %v9297
  %9302 = vset.pattern.permute.xlu0 0
  %9303 = vperm.xlu0 %9302, %v9293
  %v9304 = vpop.permute.xlu0 %9303
  %v9306 = vadd.f32 %v9299, %v9304
  %v9307 = vadd.f32 %v9300, %v9304
  %v9308 = vmax.f32 %v9306, 0.0
  %v9309 = vmax.f32 %v9307, 0.0
  %v9310 = vmul.f32 %v9308, %v9270
  %v9311 = vmul.f32 %v9309, %v9268
  %9314 = vrot.lane.b32.xlu0 %v9310, 32
  %v9315 = vpop.permute.xlu0 %9314
  %9316 = vrot.lane.b32.xlu0 %v9311, 32
  %v9317 = vpop.permute.xlu0 %9316
  %v9318 = vsel %vm2358, %v9315, %v9317
  %9321 = vst.msk [vmem:[#allocation3] sm:$0xff] %vm2370, %v9315
  %vm9322 = vcmask 850944
  %9323 = vst.msk [vmem:[#allocation3 + $0x8] sm:$0xff] %vm9322, %v9318
  %s9324 = scalar_lea.vmem %s1, 288
  %v9325 = vld [vmem:[%s9324] sm:$0xff]
  %v9326 = vld [vmem:[#allocation3] sm:$0xff]
  %v9327 = vld [vmem:[#allocation3 + $0x8] sm:$0xff]
  %s9328 = scalar_lea.vmem %s1, 296
  %v9329 = vld [vmem:[%s9328] sm:$0xff]
  %9332 = vrot.lane.b32.xlu0 %v9326, 106
  %v9333 = vpop.permute.xlu0 %9332
  %9334 = vrot.lane.b32.xlu0 %v9327, 106
  %v9335 = vpop.permute.xlu0 %9334
  %v9336 = vsel %vm8484, %v9333, %v9335
  %v9340 = vsel %vm52, %v9329, 0
  %9342 = vmatprep.subr.mxu0 %v9335
  %9343 = vmatpush1.msra.mxu0 %v9336
  %9344 = vmatprep.subr.mxu0 0.0
  %9345 = vmatpush1.msra.mxu0 0.0
  %9346 = vmatprep.subr.mxu0 0.0
  %9347 = vmatpush1.msra.mxu0 0.0
  %9348 = vmatprep.subr.mxu0 0.0
  %9349 = vmatpush1.msra.mxu0 0.0
  %9350 = vmatprep.subr.mxu0 0.0
  %9351 = vmatpush1.msra.mxu0 0.0
  %9352 = vmatprep.subr.mxu0 0.0
  %9353 = vmatpush1.msra.mxu0 0.0
  %9354 = vmatprep.subr.mxu0 0.0
  %9355 = vmatpush1.msra.mxu0 0.0
  %9356 = vmatprep.subr.mxu0 0.0
  %9357 = vmatpush1.msra.mxu0 0.0
  %9358 = vmatprep.subr.mxu0 0.0
  %9359 = vmatpush1.msra.mxu0 0.0
  %9360 = vmatprep.subr.mxu0 0.0
  %9361 = vmatpush1.msra.mxu0 0.0
  %9362 = vmatprep.subr.mxu0 0.0
  %9363 = vmatpush1.msra.mxu0 0.0
  %9364 = vmatprep.subr.mxu0 0.0
  %9365 = vmatpush1.msra.mxu0 0.0
  %9366 = vmatprep.subr.mxu0 0.0
  %9367 = vmatpush1.msra.mxu0 0.0
  %9368 = vmatprep.subr.mxu0 0.0
  %9369 = vmatpush1.msra.mxu0 0.0
  %9370 = vmatprep.subr.mxu0 0.0
  %9371 = vmatpush1.msra.mxu0 0.0
  %9372 = vmatprep.subr.mxu0 0.0
  %9373 = vmatpush1.msra.mxu0 0.0
  %9374 = vmatprep.subr.mxu0 0.0
  %9375 = vmatpush1.msra.mxu0 0.0
  %9376 = vmatprep.subr.mxu0 0.0
  %9377 = vmatpush1.msra.mxu0 0.0
  %9378 = vmatprep.subr.mxu0 0.0
  %9379 = vmatpush1.msra.mxu0 0.0
  %9380 = vmatprep.subr.mxu0 0.0
  %9381 = vmatpush1.msra.mxu0 0.0
  %9382 = vmatprep.subr.mxu0 0.0
  %9383 = vmatpush1.msra.mxu0 0.0
  %9384 = vmatprep.subr.mxu0 0.0
  %9385 = vmatpush1.msra.mxu0 0.0
  %9386 = vmatprep.subr.mxu0 0.0
  %9387 = vmatpush1.msra.mxu0 0.0
  %9388 = vmatprep.subr.mxu0 0.0
  %9389 = vmatpush1.msra.mxu0 0.0
  %9390 = vmatprep.subr.mxu0 0.0
  %9391 = vmatpush1.msra.mxu0 0.0
  %9392 = vmatprep.subr.mxu0 0.0
  %9393 = vmatpush1.msra.mxu0 0.0
  %9394 = vmatprep.subr.mxu0 0.0
  %9395 = vmatpush1.msra.mxu0 0.0
  %9396 = vmatprep.subr.mxu0 0.0
  %9397 = vmatpush1.msra.mxu0 0.0
  %9398 = vmatprep.subr.mxu0 0.0
  %9399 = vmatpush1.msra.mxu0 0.0
  %9400 = vmatprep.subr.mxu0 0.0
  %9401 = vmatpush1.msra.mxu0 0.0
  %9402 = vmatprep.subr.mxu0 0.0
  %9403 = vmatpush1.msra.mxu0 0.0
  %9404 = vmatprep.subr.mxu0 0.0
  %9405 = vmatpush1.msra.mxu0 0.0
  %9406 = vmatprep.mubr.f32.mxu0 0.0
  %9407 = vmatmul.mubr.f32.gmra.mrb[0].mxu0 %v9340
  %v9408 = vpop.f32.mrb[0].mxu0
  %v9409 = vadd.f32 0.0, %v9408
  %v9410 = vpop.f32.mrb[0].mxu0
  %v9411 = vadd.f32 0.0, %v9410
  %9412 = vdwg.mxu0
  %9413 = vrot.lane.b32.xlu0 %v9326, 107
  %v9414 = vpop.permute.xlu0 %9413
  %9415 = vrot.lane.b32.xlu0 %v9327, 107
  %v9416 = vpop.permute.xlu0 %9415
  %v9417 = vsel %vm8566, %v9414, %v9416
  %v9421 = vsel %vm52, %v9325, 0
  %9423 = vmatprep.subr.mxu0 %v9416
  %9424 = vmatpush1.msra.mxu0 %v9417
  %9425 = vmatprep.subr.mxu0 0.0
  %9426 = vmatpush1.msra.mxu0 0.0
  %9427 = vmatprep.subr.mxu0 0.0
  %9428 = vmatpush1.msra.mxu0 0.0
  %9429 = vmatprep.subr.mxu0 0.0
  %9430 = vmatpush1.msra.mxu0 0.0
  %9431 = vmatprep.subr.mxu0 0.0
  %9432 = vmatpush1.msra.mxu0 0.0
  %9433 = vmatprep.subr.mxu0 0.0
  %9434 = vmatpush1.msra.mxu0 0.0
  %9435 = vmatprep.subr.mxu0 0.0
  %9436 = vmatpush1.msra.mxu0 0.0
  %9437 = vmatprep.subr.mxu0 0.0
  %9438 = vmatpush1.msra.mxu0 0.0
  %9439 = vmatprep.subr.mxu0 0.0
  %9440 = vmatpush1.msra.mxu0 0.0
  %9441 = vmatprep.subr.mxu0 0.0
  %9442 = vmatpush1.msra.mxu0 0.0
  %9443 = vmatprep.subr.mxu0 0.0
  %9444 = vmatpush1.msra.mxu0 0.0
  %9445 = vmatprep.subr.mxu0 0.0
  %9446 = vmatpush1.msra.mxu0 0.0
  %9447 = vmatprep.subr.mxu0 0.0
  %9448 = vmatpush1.msra.mxu0 0.0
  %9449 = vmatprep.subr.mxu0 0.0
  %9450 = vmatpush1.msra.mxu0 0.0
  %9451 = vmatprep.subr.mxu0 0.0
  %9452 = vmatpush1.msra.mxu0 0.0
  %9453 = vmatprep.subr.mxu0 0.0
  %9454 = vmatpush1.msra.mxu0 0.0
  %9455 = vmatprep.subr.mxu0 0.0
  %9456 = vmatpush1.msra.mxu0 0.0
  %9457 = vmatprep.subr.mxu0 0.0
  %9458 = vmatpush1.msra.mxu0 0.0
  %9459 = vmatprep.subr.mxu0 0.0
  %9460 = vmatpush1.msra.mxu0 0.0
  %9461 = vmatprep.subr.mxu0 0.0
  %9462 = vmatpush1.msra.mxu0 0.0
  %9463 = vmatprep.subr.mxu0 0.0
  %9464 = vmatpush1.msra.mxu0 0.0
  %9465 = vmatprep.subr.mxu0 0.0
  %9466 = vmatpush1.msra.mxu0 0.0
  %9467 = vmatprep.subr.mxu0 0.0
  %9468 = vmatpush1.msra.mxu0 0.0
  %9469 = vmatprep.subr.mxu0 0.0
  %9470 = vmatpush1.msra.mxu0 0.0
  %9471 = vmatprep.subr.mxu0 0.0
  %9472 = vmatpush1.msra.mxu0 0.0
  %9473 = vmatprep.subr.mxu0 0.0
  %9474 = vmatpush1.msra.mxu0 0.0
  %9475 = vmatprep.subr.mxu0 0.0
  %9476 = vmatpush1.msra.mxu0 0.0
  %9477 = vmatprep.subr.mxu0 0.0
  %9478 = vmatpush1.msra.mxu0 0.0
  %9479 = vmatprep.subr.mxu0 0.0
  %9480 = vmatpush1.msra.mxu0 0.0
  %9481 = vmatprep.subr.mxu0 0.0
  %9482 = vmatpush1.msra.mxu0 0.0
  %9483 = vmatprep.subr.mxu0 0.0
  %9484 = vmatpush1.msra.mxu0 0.0
  %9485 = vmatprep.subr.mxu0 0.0
  %9486 = vmatpush1.msra.mxu0 0.0
  %9487 = vmatprep.mubr.f32.mxu0 0.0
  %9488 = vmatmul.mubr.f32.gmra.mrb[0].mxu0 %v9421
  %v9489 = vpop.f32.mrb[0].mxu0
  %v9490 = vadd.f32 %v9409, %v9489
  %v9491 = vpop.f32.mrb[0].mxu0
  %v9492 = vadd.f32 %v9411, %v9491
  %9493 = vdwg.mxu0
  %s9494 = scalar_lea.vmem %s1, 304
  %v9495 = vld [vmem:[%s9494] sm:$0xff]
  %9496 = vrot.lane.b32.xlu0 %v9326, 105
  %v9497 = vpop.permute.xlu0 %9496
  %9498 = vrot.lane.b32.xlu0 %v9327, 105
  %v9499 = vpop.permute.xlu0 %9498
  %v9500 = vsel %vm8650, %v9497, %v9499
  %v9504 = vsel %vm52, %v9495, 0
  %9506 = vmatprep.subr.mxu0 %v9499
  %9507 = vmatpush1.msra.mxu0 %v9500
  %9508 = vmatprep.subr.mxu0 0.0
  %9509 = vmatpush1.msra.mxu0 0.0
  %9510 = vmatprep.subr.mxu0 0.0
  %9511 = vmatpush1.msra.mxu0 0.0
  %9512 = vmatprep.subr.mxu0 0.0
  %9513 = vmatpush1.msra.mxu0 0.0
  %9514 = vmatprep.subr.mxu0 0.0
  %9515 = vmatpush1.msra.mxu0 0.0
  %9516 = vmatprep.subr.mxu0 0.0
  %9517 = vmatpush1.msra.mxu0 0.0
  %9518 = vmatprep.subr.mxu0 0.0
  %9519 = vmatpush1.msra.mxu0 0.0
  %9520 = vmatprep.subr.mxu0 0.0
  %9521 = vmatpush1.msra.mxu0 0.0
  %9522 = vmatprep.subr.mxu0 0.0
  %9523 = vmatpush1.msra.mxu0 0.0
  %9524 = vmatprep.subr.mxu0 0.0
  %9525 = vmatpush1.msra.mxu0 0.0
  %9526 = vmatprep.subr.mxu0 0.0
  %9527 = vmatpush1.msra.mxu0 0.0
  %9528 = vmatprep.subr.mxu0 0.0
  %9529 = vmatpush1.msra.mxu0 0.0
  %9530 = vmatprep.subr.mxu0 0.0
  %9531 = vmatpush1.msra.mxu0 0.0
  %9532 = vmatprep.subr.mxu0 0.0
  %9533 = vmatpush1.msra.mxu0 0.0
  %9534 = vmatprep.subr.mxu0 0.0
  %9535 = vmatpush1.msra.mxu0 0.0
  %9536 = vmatprep.subr.mxu0 0.0
  %9537 = vmatpush1.msra.mxu0 0.0
  %9538 = vmatprep.subr.mxu0 0.0
  %9539 = vmatpush1.msra.mxu0 0.0
  %9540 = vmatprep.subr.mxu0 0.0
  %9541 = vmatpush1.msra.mxu0 0.0
  %9542 = vmatprep.subr.mxu0 0.0
  %9543 = vmatpush1.msra.mxu0 0.0
  %9544 = vmatprep.subr.mxu0 0.0
  %9545 = vmatpush1.msra.mxu0 0.0
  %9546 = vmatprep.subr.mxu0 0.0
  %9547 = vmatpush1.msra.mxu0 0.0
  %9548 = vmatprep.subr.mxu0 0.0
  %9549 = vmatpush1.msra.mxu0 0.0
  %9550 = vmatprep.subr.mxu0 0.0
  %9551 = vmatpush1.msra.mxu0 0.0
  %9552 = vmatprep.subr.mxu0 0.0
  %9553 = vmatpush1.msra.mxu0 0.0
  %9554 = vmatprep.subr.mxu0 0.0
  %9555 = vmatpush1.msra.mxu0 0.0
  %9556 = vmatprep.subr.mxu0 0.0
  %9557 = vmatpush1.msra.mxu0 0.0
  %9558 = vmatprep.subr.mxu0 0.0
  %9559 = vmatpush1.msra.mxu0 0.0
  %9560 = vmatprep.subr.mxu0 0.0
  %9561 = vmatpush1.msra.mxu0 0.0
  %9562 = vmatprep.subr.mxu0 0.0
  %9563 = vmatpush1.msra.mxu0 0.0
  %9564 = vmatprep.subr.mxu0 0.0
  %9565 = vmatpush1.msra.mxu0 0.0
  %9566 = vmatprep.subr.mxu0 0.0
  %9567 = vmatpush1.msra.mxu0 0.0
  %9568 = vmatprep.subr.mxu0 0.0
  %9569 = vmatpush1.msra.mxu0 0.0
  %9570 = vmatprep.mubr.f32.mxu0 0.0
  %9571 = vmatmul.mubr.f32.gmra.mrb[0].mxu0 %v9504
  %v9572 = vpop.f32.mrb[0].mxu0
  %v9573 = vadd.f32 0.0, %v9572
  %v9574 = vpop.f32.mrb[0].mxu0
  %v9575 = vadd.f32 0.0, %v9574
  %9576 = vdwg.mxu0
  %v9577 = vadd.f32 %v9490, %v9573
  %v9578 = vadd.f32 %v9492, %v9575
  %s9579 = scalar_lea.vmem %s1, 312
  %v9580 = vld [vmem:[%s9579] sm:$0xff]
  %9581 = vrot.lane.b32.xlu0 %v9326, 97
  %v9582 = vpop.permute.xlu0 %9581
  %9583 = vrot.lane.b32.xlu0 %v9327, 97
  %v9584 = vpop.permute.xlu0 %9583
  %v9585 = vsel %vm811, %v9582, %v9584
  %v9589 = vsel %vm52, %v9580, 0
  %9591 = vmatprep.subr.mxu0 %v9584
  %9592 = vmatpush1.msra.mxu0 %v9585
  %9593 = vmatprep.subr.mxu0 0.0
  %9594 = vmatpush1.msra.mxu0 0.0
  %9595 = vmatprep.subr.mxu0 0.0
  %9596 = vmatpush1.msra.mxu0 0.0
  %9597 = vmatprep.subr.mxu0 0.0
  %9598 = vmatpush1.msra.mxu0 0.0
  %9599 = vmatprep.subr.mxu0 0.0
  %9600 = vmatpush1.msra.mxu0 0.0
  %9601 = vmatprep.subr.mxu0 0.0
  %9602 = vmatpush1.msra.mxu0 0.0
  %9603 = vmatprep.subr.mxu0 0.0
  %9604 = vmatpush1.msra.mxu0 0.0
  %9605 = vmatprep.subr.mxu0 0.0
  %9606 = vmatpush1.msra.mxu0 0.0
  %9607 = vmatprep.subr.mxu0 0.0
  %9608 = vmatpush1.msra.mxu0 0.0
  %9609 = vmatprep.subr.mxu0 0.0
  %9610 = vmatpush1.msra.mxu0 0.0
  %9611 = vmatprep.subr.mxu0 0.0
  %9612 = vmatpush1.msra.mxu0 0.0
  %9613 = vmatprep.subr.mxu0 0.0
  %9614 = vmatpush1.msra.mxu0 0.0
  %9615 = vmatprep.subr.mxu0 0.0
  %9616 = vmatpush1.msra.mxu0 0.0
  %9617 = vmatprep.subr.mxu0 0.0
  %9618 = vmatpush1.msra.mxu0 0.0
  %9619 = vmatprep.subr.mxu0 0.0
  %9620 = vmatpush1.msra.mxu0 0.0
  %9621 = vmatprep.subr.mxu0 0.0
  %9622 = vmatpush1.msra.mxu0 0.0
  %9623 = vmatprep.subr.mxu0 0.0
  %9624 = vmatpush1.msra.mxu0 0.0
  %9625 = vmatprep.subr.mxu0 0.0
  %9626 = vmatpush1.msra.mxu0 0.0
  %9627 = vmatprep.subr.mxu0 0.0
  %9628 = vmatpush1.msra.mxu0 0.0
  %9629 = vmatprep.subr.mxu0 0.0
  %9630 = vmatpush1.msra.mxu0 0.0
  %9631 = vmatprep.subr.mxu0 0.0
  %9632 = vmatpush1.msra.mxu0 0.0
  %9633 = vmatprep.subr.mxu0 0.0
  %9634 = vmatpush1.msra.mxu0 0.0
  %9635 = vmatprep.subr.mxu0 0.0
  %9636 = vmatpush1.msra.mxu0 0.0
  %9637 = vmatprep.subr.mxu0 0.0
  %9638 = vmatpush1.msra.mxu0 0.0
  %9639 = vmatprep.subr.mxu0 0.0
  %9640 = vmatpush1.msra.mxu0 0.0
  %9641 = vmatprep.subr.mxu0 0.0
  %9642 = vmatpush1.msra.mxu0 0.0
  %9643 = vmatprep.subr.mxu0 0.0
  %9644 = vmatpush1.msra.mxu0 0.0
  %9645 = vmatprep.subr.mxu0 0.0
  %9646 = vmatpush1.msra.mxu0 0.0
  %9647 = vmatprep.subr.mxu0 0.0
  %9648 = vmatpush1.msra.mxu0 0.0
  %9649 = vmatprep.subr.mxu0 0.0
  %9650 = vmatpush1.msra.mxu0 0.0
  %9651 = vmatprep.subr.mxu0 0.0
  %9652 = vmatpush1.msra.mxu0 0.0
  %9653 = vmatprep.subr.mxu0 0.0
  %9654 = vmatpush1.msra.mxu0 0.0
  %9655 = vmatprep.mubr.f32.mxu0 0.0
  %9656 = vmatmul.mubr.f32.gmra.mrb[0].mxu0 %v9589
  %v9657 = vpop.f32.mrb[0].mxu0
  %v9658 = vadd.f32 0.0, %v9657
  %v9659 = vpop.f32.mrb[0].mxu0
  %v9660 = vadd.f32 0.0, %v9659
  %9661 = vdwg.mxu0
  %v9662 = vadd.f32 %v9577, %v9658
  %v9663 = vadd.f32 %v9578, %v9660
  %s9664 = scalar_lea.vmem %s1, 320
  %v9665 = vld [vmem:[%s9664] sm:$0xff]
  %9666 = vrot.lane.b32.xlu0 %v9326, 96
  %v9667 = vpop.permute.xlu0 %9666
  %9668 = vrot.lane.b32.xlu0 %v9327, 96
  %v9669 = vpop.permute.xlu0 %9668
  %v9670 = vsel %vm1059, %v9667, %v9669
  %v9674 = vsel %vm52, %v9665, 0
  %9676 = vmatprep.subr.mxu0 %v9669
  %9677 = vmatpush1.msra.mxu0 %v9670
  %9678 = vmatprep.subr.mxu0 0.0
  %9679 = vmatpush1.msra.mxu0 0.0
  %9680 = vmatprep.subr.mxu0 0.0
  %9681 = vmatpush1.msra.mxu0 0.0
  %9682 = vmatprep.subr.mxu0 0.0
  %9683 = vmatpush1.msra.mxu0 0.0
  %9684 = vmatprep.subr.mxu0 0.0
  %9685 = vmatpush1.msra.mxu0 0.0
  %9686 = vmatprep.subr.mxu0 0.0
  %9687 = vmatpush1.msra.mxu0 0.0
  %9688 = vmatprep.subr.mxu0 0.0
  %9689 = vmatpush1.msra.mxu0 0.0
  %9690 = vmatprep.subr.mxu0 0.0
  %9691 = vmatpush1.msra.mxu0 0.0
  %9692 = vmatprep.subr.mxu0 0.0
  %9693 = vmatpush1.msra.mxu0 0.0
  %9694 = vmatprep.subr.mxu0 0.0
  %9695 = vmatpush1.msra.mxu0 0.0
  %9696 = vmatprep.subr.mxu0 0.0
  %9697 = vmatpush1.msra.mxu0 0.0
  %9698 = vmatprep.subr.mxu0 0.0
  %9699 = vmatpush1.msra.mxu0 0.0
  %9700 = vmatprep.subr.mxu0 0.0
  %9701 = vmatpush1.msra.mxu0 0.0
  %9702 = vmatprep.subr.mxu0 0.0
  %9703 = vmatpush1.msra.mxu0 0.0
  %9704 = vmatprep.subr.mxu0 0.0
  %9705 = vmatpush1.msra.mxu0 0.0
  %9706 = vmatprep.subr.mxu0 0.0
  %9707 = vmatpush1.msra.mxu0 0.0
  %9708 = vmatprep.subr.mxu0 0.0
  %9709 = vmatpush1.msra.mxu0 0.0
  %9710 = vmatprep.subr.mxu0 0.0
  %9711 = vmatpush1.msra.mxu0 0.0
  %9712 = vmatprep.subr.mxu0 0.0
  %9713 = vmatpush1.msra.mxu0 0.0
  %9714 = vmatprep.subr.mxu0 0.0
  %9715 = vmatpush1.msra.mxu0 0.0
  %9716 = vmatprep.subr.mxu0 0.0
  %9717 = vmatpush1.msra.mxu0 0.0
  %9718 = vmatprep.subr.mxu0 0.0
  %9719 = vmatpush1.msra.mxu0 0.0
  %9720 = vmatprep.subr.mxu0 0.0
  %9721 = vmatpush1.msra.mxu0 0.0
  %9722 = vmatprep.subr.mxu0 0.0
  %9723 = vmatpush1.msra.mxu0 0.0
  %9724 = vmatprep.subr.mxu0 0.0
  %9725 = vmatpush1.msra.mxu0 0.0
  %9726 = vmatprep.subr.mxu0 0.0
  %9727 = vmatpush1.msra.mxu0 0.0
  %9728 = vmatprep.subr.mxu0 0.0
  %9729 = vmatpush1.msra.mxu0 0.0
  %9730 = vmatprep.subr.mxu0 0.0
  %9731 = vmatpush1.msra.mxu0 0.0
  %9732 = vmatprep.subr.mxu0 0.0
  %9733 = vmatpush1.msra.mxu0 0.0
  %9734 = vmatprep.subr.mxu0 0.0
  %9735 = vmatpush1.msra.mxu0 0.0
  %9736 = vmatprep.subr.mxu0 0.0
  %9737 = vmatpush1.msra.mxu0 0.0
  %9738 = vmatprep.subr.mxu0 0.0
  %9739 = vmatpush1.msra.mxu0 0.0
  %9740 = vmatprep.mubr.f32.mxu0 0.0
  %9741 = vmatmul.mubr.f32.gmra.mrb[0].mxu0 %v9674
  %v9742 = vpop.f32.mrb[0].mxu0
  %v9743 = vadd.f32 0.0, %v9742
  %v9744 = vpop.f32.mrb[0].mxu0
  %v9745 = vadd.f32 0.0, %v9744
  %9746 = vdwg.mxu0
  %v9747 = vadd.f32 %v9662, %v9743
  %v9748 = vadd.f32 %v9663, %v9745
  %s9749 = scalar_lea.vmem %s1, 328
  %v9750 = vld [vmem:[%s9749] sm:$0xff]
  %9751 = vrot.lane.b32.xlu0 %v9326, 95
  %v9752 = vpop.permute.xlu0 %9751
  %9753 = vrot.lane.b32.xlu0 %v9327, 95
  %v9754 = vpop.permute.xlu0 %9753
  %v9755 = vsel %vm1307, %v9752, %v9754
  %v9759 = vsel %vm52, %v9750, 0
  %9761 = vmatprep.subr.mxu0 %v9754
  %9762 = vmatpush1.msra.mxu0 %v9755
  %9763 = vmatprep.subr.mxu0 0.0
  %9764 = vmatpush1.msra.mxu0 0.0
  %9765 = vmatprep.subr.mxu0 0.0
  %9766 = vmatpush1.msra.mxu0 0.0
  %9767 = vmatprep.subr.mxu0 0.0
  %9768 = vmatpush1.msra.mxu0 0.0
  %9769 = vmatprep.subr.mxu0 0.0
  %9770 = vmatpush1.msra.mxu0 0.0
  %9771 = vmatprep.subr.mxu0 0.0
  %9772 = vmatpush1.msra.mxu0 0.0
  %9773 = vmatprep.subr.mxu0 0.0
  %9774 = vmatpush1.msra.mxu0 0.0
  %9775 = vmatprep.subr.mxu0 0.0
  %9776 = vmatpush1.msra.mxu0 0.0
  %9777 = vmatprep.subr.mxu0 0.0
  %9778 = vmatpush1.msra.mxu0 0.0
  %9779 = vmatprep.subr.mxu0 0.0
  %9780 = vmatpush1.msra.mxu0 0.0
  %9781 = vmatprep.subr.mxu0 0.0
  %9782 = vmatpush1.msra.mxu0 0.0
  %9783 = vmatprep.subr.mxu0 0.0
  %9784 = vmatpush1.msra.mxu0 0.0
  %9785 = vmatprep.subr.mxu0 0.0
  %9786 = vmatpush1.msra.mxu0 0.0
  %9787 = vmatprep.subr.mxu0 0.0
  %9788 = vmatpush1.msra.mxu0 0.0
  %9789 = vmatprep.subr.mxu0 0.0
  %9790 = vmatpush1.msra.mxu0 0.0
  %9791 = vmatprep.subr.mxu0 0.0
  %9792 = vmatpush1.msra.mxu0 0.0
  %9793 = vmatprep.subr.mxu0 0.0
  %9794 = vmatpush1.msra.mxu0 0.0
  %9795 = vmatprep.subr.mxu0 0.0
  %9796 = vmatpush1.msra.mxu0 0.0
  %9797 = vmatprep.subr.mxu0 0.0
  %9798 = vmatpush1.msra.mxu0 0.0
  %9799 = vmatprep.subr.mxu0 0.0
  %9800 = vmatpush1.msra.mxu0 0.0
  %9801 = vmatprep.subr.mxu0 0.0
  %9802 = vmatpush1.msra.mxu0 0.0
  %9803 = vmatprep.subr.mxu0 0.0
  %9804 = vmatpush1.msra.mxu0 0.0
  %9805 = vmatprep.subr.mxu0 0.0
  %9806 = vmatpush1.msra.mxu0 0.0
  %9807 = vmatprep.subr.mxu0 0.0
  %9808 = vmatpush1.msra.mxu0 0.0
  %9809 = vmatprep.subr.mxu0 0.0
  %9810 = vmatpush1.msra.mxu0 0.0
  %9811 = vmatprep.subr.mxu0 0.0
  %9812 = vmatpush1.msra.mxu0 0.0
  %9813 = vmatprep.subr.mxu0 0.0
  %9814 = vmatpush1.msra.mxu0 0.0
  %9815 = vmatprep.subr.mxu0 0.0
  %9816 = vmatpush1.msra.mxu0 0.0
  %9817 = vmatprep.subr.mxu0 0.0
  %9818 = vmatpush1.msra.mxu0 0.0
  %9819 = vmatprep.subr.mxu0 0.0
  %9820 = vmatpush1.msra.mxu0 0.0
  %9821 = vmatprep.subr.mxu0 0.0
  %9822 = vmatpush1.msra.mxu0 0.0
  %9823 = vmatprep.subr.mxu0 0.0
  %9824 = vmatpush1.msra.mxu0 0.0
  %9825 = vmatprep.mubr.f32.mxu0 0.0
  %9826 = vmatmul.mubr.f32.gmra.mrb[0].mxu0 %v9759
  %v9827 = vpop.f32.mrb[0].mxu0
  %v9828 = vadd.f32 0.0, %v9827
  %v9829 = vpop.f32.mrb[0].mxu0
  %v9830 = vadd.f32 0.0, %v9829
  %9831 = vdwg.mxu0
  %v9832 = vadd.f32 %v9747, %v9828
  %v9833 = vadd.f32 %v9748, %v9830
  %s9834 = scalar_lea.vmem %s1, 336
  %v9835 = vld [vmem:[%s9834] sm:$0xff]
  %9836 = vrot.lane.b32.xlu0 %v9326, 87
  %v9837 = vpop.permute.xlu0 %9836
  %9838 = vrot.lane.b32.xlu0 %v9327, 87
  %v9839 = vpop.permute.xlu0 %9838
  %v9840 = vsel %vm8991, %v9837, %v9839
  %v9844 = vsel %vm52, %v9835, 0
  %9846 = vmatprep.subr.mxu0 %v9839
  %9847 = vmatpush1.msra.mxu0 %v9840
  %9848 = vmatprep.subr.mxu0 0.0
  %9849 = vmatpush1.msra.mxu0 0.0
  %9850 = vmatprep.subr.mxu0 0.0
  %9851 = vmatpush1.msra.mxu0 0.0
  %9852 = vmatprep.subr.mxu0 0.0
  %9853 = vmatpush1.msra.mxu0 0.0
  %9854 = vmatprep.subr.mxu0 0.0
  %9855 = vmatpush1.msra.mxu0 0.0
  %9856 = vmatprep.subr.mxu0 0.0
  %9857 = vmatpush1.msra.mxu0 0.0
  %9858 = vmatprep.subr.mxu0 0.0
  %9859 = vmatpush1.msra.mxu0 0.0
  %9860 = vmatprep.subr.mxu0 0.0
  %9861 = vmatpush1.msra.mxu0 0.0
  %9862 = vmatprep.subr.mxu0 0.0
  %9863 = vmatpush1.msra.mxu0 0.0
  %9864 = vmatprep.subr.mxu0 0.0
  %9865 = vmatpush1.msra.mxu0 0.0
  %9866 = vmatprep.subr.mxu0 0.0
  %9867 = vmatpush1.msra.mxu0 0.0
  %9868 = vmatprep.subr.mxu0 0.0
  %9869 = vmatpush1.msra.mxu0 0.0
  %9870 = vmatprep.subr.mxu0 0.0
  %9871 = vmatpush1.msra.mxu0 0.0
  %9872 = vmatprep.subr.mxu0 0.0
  %9873 = vmatpush1.msra.mxu0 0.0
  %9874 = vmatprep.subr.mxu0 0.0
  %9875 = vmatpush1.msra.mxu0 0.0
  %9876 = vmatprep.subr.mxu0 0.0
  %9877 = vmatpush1.msra.mxu0 0.0
  %9878 = vmatprep.subr.mxu0 0.0
  %9879 = vmatpush1.msra.mxu0 0.0
  %9880 = vmatprep.subr.mxu0 0.0
  %9881 = vmatpush1.msra.mxu0 0.0
  %9882 = vmatprep.subr.mxu0 0.0
  %9883 = vmatpush1.msra.mxu0 0.0
  %9884 = vmatprep.subr.mxu0 0.0
  %9885 = vmatpush1.msra.mxu0 0.0
  %9886 = vmatprep.subr.mxu0 0.0
  %9887 = vmatpush1.msra.mxu0 0.0
  %9888 = vmatprep.subr.mxu0 0.0
  %9889 = vmatpush1.msra.mxu0 0.0
  %9890 = vmatprep.subr.mxu0 0.0
  %9891 = vmatpush1.msra.mxu0 0.0
  %9892 = vmatprep.subr.mxu0 0.0
  %9893 = vmatpush1.msra.mxu0 0.0
  %9894 = vmatprep.subr.mxu0 0.0
  %9895 = vmatpush1.msra.mxu0 0.0
  %9896 = vmatprep.subr.mxu0 0.0
  %9897 = vmatpush1.msra.mxu0 0.0
  %9898 = vmatprep.subr.mxu0 0.0
  %9899 = vmatpush1.msra.mxu0 0.0
  %9900 = vmatprep.subr.mxu0 0.0
  %9901 = vmatpush1.msra.mxu0 0.0
  %9902 = vmatprep.subr.mxu0 0.0
  %9903 = vmatpush1.msra.mxu0 0.0
  %9904 = vmatprep.subr.mxu0 0.0
  %9905 = vmatpush1.msra.mxu0 0.0
  %9906 = vmatprep.subr.mxu0 0.0
  %9907 = vmatpush1.msra.mxu0 0.0
  %9908 = vmatprep.subr.mxu0 0.0
  %9909 = vmatpush1.msra.mxu0 0.0
  %9910 = vmatprep.mubr.f32.mxu0 0.0
  %9911 = vmatmul.mubr.f32.gmra.mrb[0].mxu0 %v9844
  %v9912 = vpop.f32.mrb[0].mxu0
  %v9913 = vadd.f32 0.0, %v9912
  %v9914 = vpop.f32.mrb[0].mxu0
  %v9915 = vadd.f32 0.0, %v9914
  %9916 = vdwg.mxu0
  %v9917 = vadd.f32 %v9832, %v9913
  %v9918 = vadd.f32 %v9833, %v9915
  %s9919 = scalar_lea.vmem %s1, 344
  %v9920 = vld [vmem:[%s9919] sm:$0xff]
  %9921 = vrot.lane.b32.xlu0 %v9326, 86
  %v9922 = vpop.permute.xlu0 %9921
  %9923 = vrot.lane.b32.xlu0 %v9327, 86
  %v9924 = vpop.permute.xlu0 %9923
  %v9925 = vsel %vm9077, %v9922, %v9924
  %v9929 = vsel %vm52, %v9920, 0
  %9931 = vmatprep.subr.mxu0 %v9924
  %9932 = vmatpush1.msra.mxu0 %v9925
  %9933 = vmatprep.subr.mxu0 0.0
  %9934 = vmatpush1.msra.mxu0 0.0
  %9935 = vmatprep.subr.mxu0 0.0
  %9936 = vmatpush1.msra.mxu0 0.0
  %9937 = vmatprep.subr.mxu0 0.0
  %9938 = vmatpush1.msra.mxu0 0.0
  %9939 = vmatprep.subr.mxu0 0.0
  %9940 = vmatpush1.msra.mxu0 0.0
  %9941 = vmatprep.subr.mxu0 0.0
  %9942 = vmatpush1.msra.mxu0 0.0
  %9943 = vmatprep.subr.mxu0 0.0
  %9944 = vmatpush1.msra.mxu0 0.0
  %9945 = vmatprep.subr.mxu0 0.0
  %9946 = vmatpush1.msra.mxu0 0.0
  %9947 = vmatprep.subr.mxu0 0.0
  %9948 = vmatpush1.msra.mxu0 0.0
  %9949 = vmatprep.subr.mxu0 0.0
  %9950 = vmatpush1.msra.mxu0 0.0
  %9951 = vmatprep.subr.mxu0 0.0
  %9952 = vmatpush1.msra.mxu0 0.0
  %9953 = vmatprep.subr.mxu0 0.0
  %9954 = vmatpush1.msra.mxu0 0.0
  %9955 = vmatprep.subr.mxu0 0.0
  %9956 = vmatpush1.msra.mxu0 0.0
  %9957 = vmatprep.subr.mxu0 0.0
  %9958 = vmatpush1.msra.mxu0 0.0
  %9959 = vmatprep.subr.mxu0 0.0
  %9960 = vmatpush1.msra.mxu0 0.0
  %9961 = vmatprep.subr.mxu0 0.0
  %9962 = vmatpush1.msra.mxu0 0.0
  %9963 = vmatprep.subr.mxu0 0.0
  %9964 = vmatpush1.msra.mxu0 0.0
  %9965 = vmatprep.subr.mxu0 0.0
  %9966 = vmatpush1.msra.mxu0 0.0
  %9967 = vmatprep.subr.mxu0 0.0
  %9968 = vmatpush1.msra.mxu0 0.0
  %9969 = vmatprep.subr.mxu0 0.0
  %9970 = vmatpush1.msra.mxu0 0.0
  %9971 = vmatprep.subr.mxu0 0.0
  %9972 = vmatpush1.msra.mxu0 0.0
  %9973 = vmatprep.subr.mxu0 0.0
  %9974 = vmatpush1.msra.mxu0 0.0
  %9975 = vmatprep.subr.mxu0 0.0
  %9976 = vmatpush1.msra.mxu0 0.0
  %9977 = vmatprep.subr.mxu0 0.0
  %9978 = vmatpush1.msra.mxu0 0.0
  %9979 = vmatprep.subr.mxu0 0.0
  %9980 = vmatpush1.msra.mxu0 0.0
  %9981 = vmatprep.subr.mxu0 0.0
  %9982 = vmatpush1.msra.mxu0 0.0
  %9983 = vmatprep.subr.mxu0 0.0
  %9984 = vmatpush1.msra.mxu0 0.0
  %9985 = vmatprep.subr.mxu0 0.0
  %9986 = vmatpush1.msra.mxu0 0.0
  %9987 = vmatprep.subr.mxu0 0.0
  %9988 = vmatpush1.msra.mxu0 0.0
  %9989 = vmatprep.subr.mxu0 0.0
  %9990 = vmatpush1.msra.mxu0 0.0
  %9991 = vmatprep.subr.mxu0 0.0
  %9992 = vmatpush1.msra.mxu0 0.0
  %9993 = vmatprep.subr.mxu0 0.0
  %9994 = vmatpush1.msra.mxu0 0.0
  %9995 = vmatprep.mubr.f32.mxu0 0.0
  %9996 = vmatmul.mubr.f32.gmra.mrb[0].mxu0 %v9929
  %v9997 = vpop.f32.mrb[0].mxu0
  %v9998 = vadd.f32 0.0, %v9997
  %v9999 = vpop.f32.mrb[0].mxu0
  %v10000 = vadd.f32 0.0, %v9999
  %10001 = vdwg.mxu0
  %v10002 = vadd.f32 %v9917, %v9998
  %v10003 = vadd.f32 %v9918, %v10000
  %s10004 = scalar_lea.vmem %s1, 352
  %v10005 = vld [vmem:[%s10004] sm:$0xff]
  %10006 = vrot.lane.b32.xlu0 %v9326, 85
  %v10007 = vpop.permute.xlu0 %10006
  %10008 = vrot.lane.b32.xlu0 %v9327, 85
  %v10009 = vpop.permute.xlu0 %10008
  %v10010 = vsel %vm9163, %v10007, %v10009
  %v10014 = vsel %vm52, %v10005, 0
  %10016 = vmatprep.subr.mxu0 %v10009
  %10017 = vmatpush1.msra.mxu0 %v10010
  %10018 = vmatprep.subr.mxu0 0.0
  %10019 = vmatpush1.msra.mxu0 0.0
  %10020 = vmatprep.subr.mxu0 0.0
  %10021 = vmatpush1.msra.mxu0 0.0
  %10022 = vmatprep.subr.mxu0 0.0
  %10023 = vmatpush1.msra.mxu0 0.0
  %10024 = vmatprep.subr.mxu0 0.0
  %10025 = vmatpush1.msra.mxu0 0.0
  %10026 = vmatprep.subr.mxu0 0.0
  %10027 = vmatpush1.msra.mxu0 0.0
  %10028 = vmatprep.subr.mxu0 0.0
  %10029 = vmatpush1.msra.mxu0 0.0
  %10030 = vmatprep.subr.mxu0 0.0
  %10031 = vmatpush1.msra.mxu0 0.0
  %10032 = vmatprep.subr.mxu0 0.0
  %10033 = vmatpush1.msra.mxu0 0.0
  %10034 = vmatprep.subr.mxu0 0.0
  %10035 = vmatpush1.msra.mxu0 0.0
  %10036 = vmatprep.subr.mxu0 0.0
  %10037 = vmatpush1.msra.mxu0 0.0
  %10038 = vmatprep.subr.mxu0 0.0
  %10039 = vmatpush1.msra.mxu0 0.0
  %10040 = vmatprep.subr.mxu0 0.0
  %10041 = vmatpush1.msra.mxu0 0.0
  %10042 = vmatprep.subr.mxu0 0.0
  %10043 = vmatpush1.msra.mxu0 0.0
  %10044 = vmatprep.subr.mxu0 0.0
  %10045 = vmatpush1.msra.mxu0 0.0
  %10046 = vmatprep.subr.mxu0 0.0
  %10047 = vmatpush1.msra.mxu0 0.0
  %10048 = vmatprep.subr.mxu0 0.0
  %10049 = vmatpush1.msra.mxu0 0.0
  %10050 = vmatprep.subr.mxu0 0.0
  %10051 = vmatpush1.msra.mxu0 0.0
  %10052 = vmatprep.subr.mxu0 0.0
  %10053 = vmatpush1.msra.mxu0 0.0
  %10054 = vmatprep.subr.mxu0 0.0
  %10055 = vmatpush1.msra.mxu0 0.0
  %10056 = vmatprep.subr.mxu0 0.0
  %10057 = vmatpush1.msra.mxu0 0.0
  %10058 = vmatprep.subr.mxu0 0.0
  %10059 = vmatpush1.msra.mxu0 0.0
  %10060 = vmatprep.subr.mxu0 0.0
  %10061 = vmatpush1.msra.mxu0 0.0
  %10062 = vmatprep.subr.mxu0 0.0
  %10063 = vmatpush1.msra.mxu0 0.0
  %10064 = vmatprep.subr.mxu0 0.0
  %10065 = vmatpush1.msra.mxu0 0.0
  %10066 = vmatprep.subr.mxu0 0.0
  %10067 = vmatpush1.msra.mxu0 0.0
  %10068 = vmatprep.subr.mxu0 0.0
  %10069 = vmatpush1.msra.mxu0 0.0
  %10070 = vmatprep.subr.mxu0 0.0
  %10071 = vmatpush1.msra.mxu0 0.0
  %10072 = vmatprep.subr.mxu0 0.0
  %10073 = vmatpush1.msra.mxu0 0.0
  %10074 = vmatprep.subr.mxu0 0.0
  %10075 = vmatpush1.msra.mxu0 0.0
  %10076 = vmatprep.subr.mxu0 0.0
  %10077 = vmatpush1.msra.mxu0 0.0
  %10078 = vmatprep.subr.mxu0 0.0
  %10079 = vmatpush1.msra.mxu0 0.0
  %10080 = vmatprep.mubr.f32.mxu0 0.0
  %10081 = vmatmul.mubr.f32.gmra.mrb[0].mxu0 %v10014
  %v10082 = vpop.f32.mrb[0].mxu0
  %v10083 = vadd.f32 0.0, %v10082
  %v10084 = vpop.f32.mrb[0].mxu0
  %v10085 = vadd.f32 0.0, %v10084
  %10086 = vdwg.mxu0
  %v10087 = vadd.f32 %v10002, %v10083
  %v10088 = vadd.f32 %v10003, %v10085
  %s10089 = scalar_lea.vmem %s3, 64
  %v10090 = vld [vmem:[%s10089] sm:$0xff]
  %10092 = vset.pattern.permute.xlu0 0
  %10093 = vperm.xlu0 %10092, %v10090
  %v10094 = vpop.permute.xlu0 %10093
  %v10096 = vadd.f32 %v10087, %v10094
  %v10097 = vadd.f32 %v10088, %v10094
  %s10098 = scalar_lea.vmem %s3, 80
  %v10099 = vld [vmem:[%s10098] sm:$0xff]
  %s10100 = scalar_lea.vmem %s3, 96
  %v10101 = vld [vmem:[%s10100] sm:$0xff]
  %v10102 = vmul.f32 %v10096, %v9270
  %v10103 = vmul.f32 %v10097, %v9268
  %v10104 = vsel %vm48, %v10103, 0.0
  %v10105 = vadd.f32 %v10102, %v10104
  %10106 = vadd.xlane.f32.xlu0 %v10105
  %v10107 = vpop.xlane.xlu0 %10106
  %v10108 = vmul.f32 %v10107, 0.0078125
  %v10109 = vmul.f32 %v10102, %v10102
  %v10110 = vmul.f32 %v10103, %v10103
  %v10111 = vsel %vm48, %v10110, 0.0
  %v10112 = vadd.f32 %v10109, %v10111
  %10113 = vadd.xlane.f32.xlu0 %v10112
  %v10114 = vpop.xlane.xlu0 %10113
  %v10115 = vmul.f32 %v10114, 0.0078125
  %v10116 = vmul.f32 %v10108, %v10108
  %v10117 = vsub.f32 %v10115, %v10116
  %v10118 = vadd.f32 %v10117, 1e-05
  %v10119 = vrsqrt.pop %v10118
  %v10120 = vmul.f32 %v10099, %v10119
  %v10121 = vmul.f32 %v10108, %v10120
  %v10122 = vsub.f32 %v10101, %v10121
  %10124 = vset.pattern.permute.xlu0 0
  %10125 = vperm.xlu0 %10124, %v10120
  %v10126 = vpop.permute.xlu0 %10125
  %v10128 = vmul.f32 %v10102, %v10126
  %v10129 = vmul.f32 %v10103, %v10126
  %10131 = vset.pattern.permute.xlu0 0
  %10132 = vperm.xlu0 %10131, %v10122
  %v10133 = vpop.permute.xlu0 %10132
  %v10135 = vadd.f32 %v10128, %v10133
  %v10136 = vadd.f32 %v10129, %v10133
  %v10137 = vmax.f32 %v10135, 0.0
  %v10138 = vmax.f32 %v10136, 0.0
  %v10139 = vmul.f32 %v10137, %v9270
  %v10140 = vmul.f32 %v10138, %v9268
  %v10141 = vadd.f32 %v10139, %v8821
  %v10142 = vadd.f32 %v10140, %v8820
  %10145 = vrot.lane.b32.xlu0 %v10141, 32
  %v10146 = vpop.permute.xlu0 %10145
  %10147 = vrot.lane.b32.xlu0 %v10142, 32
  %v10148 = vpop.permute.xlu0 %10147
  %v10149 = vsel %vm2358, %v10146, %v10148
  %10152 = vst.msk [vmem:[#allocation3] sm:$0xff] %vm2370, %v10146
  %10153 = vst.msk [vmem:[#allocation3 + $0x8] sm:$0xff] %vm9322, %v10149
  %s10154 = scalar_lea.vmem %s2, 32
  %v10155 = vld [vmem:[%s10154] sm:$0xff]
  %v10156 = vld [vmem:[#allocation3] sm:$0xff]
  %v10157 = vld [vmem:[#allocation3 + $0x8] sm:$0xff]
  %s10158 = scalar_lea.vmem %s2, 40
  %v10159 = vld [vmem:[%s10158] sm:$0xff]
  %10162 = vrot.lane.b32.xlu0 %v10156, 95
  %v10163 = vpop.permute.xlu0 %10162
  %10164 = vrot.lane.b32.xlu0 %v10157, 95
  %v10165 = vpop.permute.xlu0 %10164
  %v10166 = vsel %vm1307, %v10163, %v10165
  %v10170 = vsel %vm52, %v10159, 0
  %10172 = vmatprep.subr.mxu0 %v10165
  %10173 = vmatpush1.msra.mxu0 %v10166
  %10174 = vmatprep.subr.mxu0 0.0
  %10175 = vmatpush1.msra.mxu0 0.0
  %10176 = vmatprep.subr.mxu0 0.0
  %10177 = vmatpush1.msra.mxu0 0.0
  %10178 = vmatprep.subr.mxu0 0.0
  %10179 = vmatpush1.msra.mxu0 0.0
  %10180 = vmatprep.subr.mxu0 0.0
  %10181 = vmatpush1.msra.mxu0 0.0
  %10182 = vmatprep.subr.mxu0 0.0
  %10183 = vmatpush1.msra.mxu0 0.0
  %10184 = vmatprep.subr.mxu0 0.0
  %10185 = vmatpush1.msra.mxu0 0.0
  %10186 = vmatprep.subr.mxu0 0.0
  %10187 = vmatpush1.msra.mxu0 0.0
  %10188 = vmatprep.subr.mxu0 0.0
  %10189 = vmatpush1.msra.mxu0 0.0
  %10190 = vmatprep.subr.mxu0 0.0
  %10191 = vmatpush1.msra.mxu0 0.0
  %10192 = vmatprep.subr.mxu0 0.0
  %10193 = vmatpush1.msra.mxu0 0.0
  %10194 = vmatprep.subr.mxu0 0.0
  %10195 = vmatpush1.msra.mxu0 0.0
  %10196 = vmatprep.subr.mxu0 0.0
  %10197 = vmatpush1.msra.mxu0 0.0
  %10198 = vmatprep.subr.mxu0 0.0
  %10199 = vmatpush1.msra.mxu0 0.0
  %10200 = vmatprep.subr.mxu0 0.0
  %10201 = vmatpush1.msra.mxu0 0.0
  %10202 = vmatprep.subr.mxu0 0.0
  %10203 = vmatpush1.msra.mxu0 0.0
  %10204 = vmatprep.subr.mxu0 0.0
  %10205 = vmatpush1.msra.mxu0 0.0
  %10206 = vmatprep.subr.mxu0 0.0
  %10207 = vmatpush1.msra.mxu0 0.0
  %10208 = vmatprep.subr.mxu0 0.0
  %10209 = vmatpush1.msra.mxu0 0.0
  %10210 = vmatprep.subr.mxu0 0.0
  %10211 = vmatpush1.msra.mxu0 0.0
  %10212 = vmatprep.subr.mxu0 0.0
  %10213 = vmatpush1.msra.mxu0 0.0
  %10214 = vmatprep.subr.mxu0 0.0
  %10215 = vmatpush1.msra.mxu0 0.0
  %10216 = vmatprep.subr.mxu0 0.0
  %10217 = vmatpush1.msra.mxu0 0.0
  %10218 = vmatprep.subr.mxu0 0.0
  %10219 = vmatpush1.msra.mxu0 0.0
  %10220 = vmatprep.subr.mxu0 0.0
  %10221 = vmatpush1.msra.mxu0 0.0
  %10222 = vmatprep.subr.mxu0 0.0
  %10223 = vmatpush1.msra.mxu0 0.0
  %10224 = vmatprep.subr.mxu0 0.0
  %10225 = vmatpush1.msra.mxu0 0.0
  %10226 = vmatprep.subr.mxu0 0.0
  %10227 = vmatpush1.msra.mxu0 0.0
  %10228 = vmatprep.subr.mxu0 0.0
  %10229 = vmatpush1.msra.mxu0 0.0
  %10230 = vmatprep.subr.mxu0 0.0
  %10231 = vmatpush1.msra.mxu0 0.0
  %10232 = vmatprep.subr.mxu0 0.0
  %10233 = vmatpush1.msra.mxu0 0.0
  %10234 = vmatprep.subr.mxu0 0.0
  %10235 = vmatpush1.msra.mxu0 0.0
  %10236 = vmatprep.mubr.f32.mxu0 0.0
  %10237 = vmatmul.mubr.f32.gmra.mrb[0].mxu0 %v10170
  %v10238 = vpop.f32.mrb[0].mxu0
  %v10239 = vadd.f32 0.0, %v10238
  %v10240 = vpop.f32.mrb[0].mxu0
  %v10241 = vadd.f32 0.0, %v10240
  %10242 = vdwg.mxu0
  %10243 = vrot.lane.b32.xlu0 %v10156, 96
  %v10244 = vpop.permute.xlu0 %10243
  %10245 = vrot.lane.b32.xlu0 %v10157, 96
  %v10246 = vpop.permute.xlu0 %10245
  %v10247 = vsel %vm1059, %v10244, %v10246
  %v10251 = vsel %vm52, %v10155, 0
  %10253 = vmatprep.subr.mxu0 %v10246
  %10254 = vmatpush1.msra.mxu0 %v10247
  %10255 = vmatprep.subr.mxu0 0.0
  %10256 = vmatpush1.msra.mxu0 0.0
  %10257 = vmatprep.subr.mxu0 0.0
  %10258 = vmatpush1.msra.mxu0 0.0
  %10259 = vmatprep.subr.mxu0 0.0
  %10260 = vmatpush1.msra.mxu0 0.0
  %10261 = vmatprep.subr.mxu0 0.0
  %10262 = vmatpush1.msra.mxu0 0.0
  %10263 = vmatprep.subr.mxu0 0.0
  %10264 = vmatpush1.msra.mxu0 0.0
  %10265 = vmatprep.subr.mxu0 0.0
  %10266 = vmatpush1.msra.mxu0 0.0
  %10267 = vmatprep.subr.mxu0 0.0
  %10268 = vmatpush1.msra.mxu0 0.0
  %10269 = vmatprep.subr.mxu0 0.0
  %10270 = vmatpush1.msra.mxu0 0.0
  %10271 = vmatprep.subr.mxu0 0.0
  %10272 = vmatpush1.msra.mxu0 0.0
  %10273 = vmatprep.subr.mxu0 0.0
  %10274 = vmatpush1.msra.mxu0 0.0
  %10275 = vmatprep.subr.mxu0 0.0
  %10276 = vmatpush1.msra.mxu0 0.0
  %10277 = vmatprep.subr.mxu0 0.0
  %10278 = vmatpush1.msra.mxu0 0.0
  %10279 = vmatprep.subr.mxu0 0.0
  %10280 = vmatpush1.msra.mxu0 0.0
  %10281 = vmatprep.subr.mxu0 0.0
  %10282 = vmatpush1.msra.mxu0 0.0
  %10283 = vmatprep.subr.mxu0 0.0
  %10284 = vmatpush1.msra.mxu0 0.0
  %10285 = vmatprep.subr.mxu0 0.0
  %10286 = vmatpush1.msra.mxu0 0.0
  %10287 = vmatprep.subr.mxu0 0.0
  %10288 = vmatpush1.msra.mxu0 0.0
  %10289 = vmatprep.subr.mxu0 0.0
  %10290 = vmatpush1.msra.mxu0 0.0
  %10291 = vmatprep.subr.mxu0 0.0
  %10292 = vmatpush1.msra.mxu0 0.0
  %10293 = vmatprep.subr.mxu0 0.0
  %10294 = vmatpush1.msra.mxu0 0.0
  %10295 = vmatprep.subr.mxu0 0.0
  %10296 = vmatpush1.msra.mxu0 0.0
  %10297 = vmatprep.subr.mxu0 0.0
  %10298 = vmatpush1.msra.mxu0 0.0
  %10299 = vmatprep.subr.mxu0 0.0
  %10300 = vmatpush1.msra.mxu0 0.0
  %10301 = vmatprep.subr.mxu0 0.0
  %10302 = vmatpush1.msra.mxu0 0.0
  %10303 = vmatprep.subr.mxu0 0.0
  %10304 = vmatpush1.msra.mxu0 0.0
  %10305 = vmatprep.subr.mxu0 0.0
  %10306 = vmatpush1.msra.mxu0 0.0
  %10307 = vmatprep.subr.mxu0 0.0
  %10308 = vmatpush1.msra.mxu0 0.0
  %10309 = vmatprep.subr.mxu0 0.0
  %10310 = vmatpush1.msra.mxu0 0.0
  %10311 = vmatprep.subr.mxu0 0.0
  %10312 = vmatpush1.msra.mxu0 0.0
  %10313 = vmatprep.subr.mxu0 0.0
  %10314 = vmatpush1.msra.mxu0 0.0
  %10315 = vmatprep.subr.mxu0 0.0
  %10316 = vmatpush1.msra.mxu0 0.0
  %10317 = vmatprep.mubr.f32.mxu0 0.0
  %10318 = vmatmul.mubr.f32.gmra.mrb[0].mxu0 %v10251
  %v10319 = vpop.f32.mrb[0].mxu0
  %v10320 = vadd.f32 %v10239, %v10319
  %v10321 = vpop.f32.mrb[0].mxu0
  %v10322 = vadd.f32 %v10241, %v10321
  %10323 = vdwg.mxu0
  %s10324 = scalar_lea.vmem %s2, 48
  %v10325 = vld [vmem:[%s10324] sm:$0xff]
  %10326 = vrot.lane.b32.xlu0 %v10156, 86
  %v10327 = vpop.permute.xlu0 %10326
  %10328 = vrot.lane.b32.xlu0 %v10157, 86
  %v10329 = vpop.permute.xlu0 %10328
  %v10330 = vsel %vm9077, %v10327, %v10329
  %v10334 = vsel %vm52, %v10325, 0
  %10336 = vmatprep.subr.mxu0 %v10329
  %10337 = vmatpush1.msra.mxu0 %v10330
  %10338 = vmatprep.subr.mxu0 0.0
  %10339 = vmatpush1.msra.mxu0 0.0
  %10340 = vmatprep.subr.mxu0 0.0
  %10341 = vmatpush1.msra.mxu0 0.0
  %10342 = vmatprep.subr.mxu0 0.0
  %10343 = vmatpush1.msra.mxu0 0.0
  %10344 = vmatprep.subr.mxu0 0.0
  %10345 = vmatpush1.msra.mxu0 0.0
  %10346 = vmatprep.subr.mxu0 0.0
  %10347 = vmatpush1.msra.mxu0 0.0
  %10348 = vmatprep.subr.mxu0 0.0
  %10349 = vmatpush1.msra.mxu0 0.0
  %10350 = vmatprep.subr.mxu0 0.0
  %10351 = vmatpush1.msra.mxu0 0.0
  %10352 = vmatprep.subr.mxu0 0.0
  %10353 = vmatpush1.msra.mxu0 0.0
  %10354 = vmatprep.subr.mxu0 0.0
  %10355 = vmatpush1.msra.mxu0 0.0
  %10356 = vmatprep.subr.mxu0 0.0
  %10357 = vmatpush1.msra.mxu0 0.0
  %10358 = vmatprep.subr.mxu0 0.0
  %10359 = vmatpush1.msra.mxu0 0.0
  %10360 = vmatprep.subr.mxu0 0.0
  %10361 = vmatpush1.msra.mxu0 0.0
  %10362 = vmatprep.subr.mxu0 0.0
  %10363 = vmatpush1.msra.mxu0 0.0
  %10364 = vmatprep.subr.mxu0 0.0
  %10365 = vmatpush1.msra.mxu0 0.0
  %10366 = vmatprep.subr.mxu0 0.0
  %10367 = vmatpush1.msra.mxu0 0.0
  %10368 = vmatprep.subr.mxu0 0.0
  %10369 = vmatpush1.msra.mxu0 0.0
  %10370 = vmatprep.subr.mxu0 0.0
  %10371 = vmatpush1.msra.mxu0 0.0
  %10372 = vmatprep.subr.mxu0 0.0
  %10373 = vmatpush1.msra.mxu0 0.0
  %10374 = vmatprep.subr.mxu0 0.0
  %10375 = vmatpush1.msra.mxu0 0.0
  %10376 = vmatprep.subr.mxu0 0.0
  %10377 = vmatpush1.msra.mxu0 0.0
  %10378 = vmatprep.subr.mxu0 0.0
  %10379 = vmatpush1.msra.mxu0 0.0
  %10380 = vmatprep.subr.mxu0 0.0
  %10381 = vmatpush1.msra.mxu0 0.0
  %10382 = vmatprep.subr.mxu0 0.0
  %10383 = vmatpush1.msra.mxu0 0.0
  %10384 = vmatprep.subr.mxu0 0.0
  %10385 = vmatpush1.msra.mxu0 0.0
  %10386 = vmatprep.subr.mxu0 0.0
  %10387 = vmatpush1.msra.mxu0 0.0
  %10388 = vmatprep.subr.mxu0 0.0
  %10389 = vmatpush1.msra.mxu0 0.0
  %10390 = vmatprep.subr.mxu0 0.0
  %10391 = vmatpush1.msra.mxu0 0.0
  %10392 = vmatprep.subr.mxu0 0.0
  %10393 = vmatpush1.msra.mxu0 0.0
  %10394 = vmatprep.subr.mxu0 0.0
  %10395 = vmatpush1.msra.mxu0 0.0
  %10396 = vmatprep.subr.mxu0 0.0
  %10397 = vmatpush1.msra.mxu0 0.0
  %10398 = vmatprep.subr.mxu0 0.0
  %10399 = vmatpush1.msra.mxu0 0.0
  %10400 = vmatprep.mubr.f32.mxu0 0.0
  %10401 = vmatmul.mubr.f32.gmra.mrb[0].mxu0 %v10334
  %v10402 = vpop.f32.mrb[0].mxu0
  %v10403 = vadd.f32 0.0, %v10402
  %v10404 = vpop.f32.mrb[0].mxu0
  %v10405 = vadd.f32 0.0, %v10404
  %10406 = vdwg.mxu0
  %v10407 = vadd.f32 %v10320, %v10403
  %v10408 = vadd.f32 %v10322, %v10405
  %s10409 = scalar_lea.vmem %s2, 56
  %v10410 = vld [vmem:[%s10409] sm:$0xff]
  %10411 = vrot.lane.b32.xlu0 %v10156, 85
  %v10412 = vpop.permute.xlu0 %10411
  %10413 = vrot.lane.b32.xlu0 %v10157, 85
  %v10414 = vpop.permute.xlu0 %10413
  %v10415 = vsel %vm9163, %v10412, %v10414
  %v10419 = vsel %vm52, %v10410, 0
  %10421 = vmatprep.subr.mxu0 %v10414
  %10422 = vmatpush1.msra.mxu0 %v10415
  %10423 = vmatprep.subr.mxu0 0.0
  %10424 = vmatpush1.msra.mxu0 0.0
  %10425 = vmatprep.subr.mxu0 0.0
  %10426 = vmatpush1.msra.mxu0 0.0
  %10427 = vmatprep.subr.mxu0 0.0
  %10428 = vmatpush1.msra.mxu0 0.0
  %10429 = vmatprep.subr.mxu0 0.0
  %10430 = vmatpush1.msra.mxu0 0.0
  %10431 = vmatprep.subr.mxu0 0.0
  %10432 = vmatpush1.msra.mxu0 0.0
  %10433 = vmatprep.subr.mxu0 0.0
  %10434 = vmatpush1.msra.mxu0 0.0
  %10435 = vmatprep.subr.mxu0 0.0
  %10436 = vmatpush1.msra.mxu0 0.0
  %10437 = vmatprep.subr.mxu0 0.0
  %10438 = vmatpush1.msra.mxu0 0.0
  %10439 = vmatprep.subr.mxu0 0.0
  %10440 = vmatpush1.msra.mxu0 0.0
  %10441 = vmatprep.subr.mxu0 0.0
  %10442 = vmatpush1.msra.mxu0 0.0
  %10443 = vmatprep.subr.mxu0 0.0
  %10444 = vmatpush1.msra.mxu0 0.0
  %10445 = vmatprep.subr.mxu0 0.0
  %10446 = vmatpush1.msra.mxu0 0.0
  %10447 = vmatprep.subr.mxu0 0.0
  %10448 = vmatpush1.msra.mxu0 0.0
  %10449 = vmatprep.subr.mxu0 0.0
  %10450 = vmatpush1.msra.mxu0 0.0
  %10451 = vmatprep.subr.mxu0 0.0
  %10452 = vmatpush1.msra.mxu0 0.0
  %10453 = vmatprep.subr.mxu0 0.0
  %10454 = vmatpush1.msra.mxu0 0.0
  %10455 = vmatprep.subr.mxu0 0.0
  %10456 = vmatpush1.msra.mxu0 0.0
  %10457 = vmatprep.subr.mxu0 0.0
  %10458 = vmatpush1.msra.mxu0 0.0
  %10459 = vmatprep.subr.mxu0 0.0
  %10460 = vmatpush1.msra.mxu0 0.0
  %10461 = vmatprep.subr.mxu0 0.0
  %10462 = vmatpush1.msra.mxu0 0.0
  %10463 = vmatprep.subr.mxu0 0.0
  %10464 = vmatpush1.msra.mxu0 0.0
  %10465 = vmatprep.subr.mxu0 0.0
  %10466 = vmatpush1.msra.mxu0 0.0
  %10467 = vmatprep.subr.mxu0 0.0
  %10468 = vmatpush1.msra.mxu0 0.0
  %10469 = vmatprep.subr.mxu0 0.0
  %10470 = vmatpush1.msra.mxu0 0.0
  %10471 = vmatprep.subr.mxu0 0.0
  %10472 = vmatpush1.msra.mxu0 0.0
  %10473 = vmatprep.subr.mxu0 0.0
  %10474 = vmatpush1.msra.mxu0 0.0
  %10475 = vmatprep.subr.mxu0 0.0
  %10476 = vmatpush1.msra.mxu0 0.0
  %10477 = vmatprep.subr.mxu0 0.0
  %10478 = vmatpush1.msra.mxu0 0.0
  %10479 = vmatprep.subr.mxu0 0.0
  %10480 = vmatpush1.msra.mxu0 0.0
  %10481 = vmatprep.subr.mxu0 0.0
  %10482 = vmatpush1.msra.mxu0 0.0
  %10483 = vmatprep.subr.mxu0 0.0
  %10484 = vmatpush1.msra.mxu0 0.0
  %10485 = vmatprep.mubr.f32.mxu0 0.0
  %10486 = vmatmul.mubr.f32.gmra.mrb[0].mxu0 %v10419
  %v10487 = vpop.f32.mrb[0].mxu0
  %v10488 = vadd.f32 0.0, %v10487
  %v10489 = vpop.f32.mrb[0].mxu0
  %v10490 = vadd.f32 0.0, %v10489
  %10491 = vdwg.mxu0
  %v10492 = vadd.f32 %v10407, %v10488
  %v10493 = vadd.f32 %v10408, %v10490
  %v10494 = vld [vmem:[%s7] sm:$0xff]
  %v10495 = vld [vmem:[%s7 + $0x8] sm:$0xff]
  %v10496 = vld [vmem:[%s7 + $0x10] sm:$0xff]
  %v10497 = vld [vmem:[%s7 + $0x18] sm:$0xff]
  %v10498 = vld [vmem:[%s7 + $0x20] sm:$0xff]
  %v10499 = vld [vmem:[%s7 + $0x28] sm:$0xff]
  %v10500 = vld [vmem:[%s7 + $0x30] sm:$0xff]
  %v10501 = vld [vmem:[%s7 + $0x38] sm:$0xff]
  %v10502 = vld [vmem:[%s7 + $0x40] sm:$0xff]
  %v10503 = vld [vmem:[%s7 + $0x48] sm:$0xff]
  %v10504 = vld [vmem:[%s7 + $0x50] sm:$0xff]
  %v10505 = vld [vmem:[%s7 + $0x58] sm:$0xff]
  %v10506 = vld [vmem:[%s7 + $0x60] sm:$0xf]
  %vm10507 = vcmask 818176
  %v10509 = vsel %vm10507, %v10492, 0
  %v10512 = vsel %vm8109, %v10506, 0
  %10514 = vmatprep.subr.mxu0 0.0
  %10515 = vmatpush1.msra.mxu0 %v10494
  %10516 = vmatprep.subr.mxu0 0.0
  %10517 = vmatpush1.msra.mxu0 %v10495
  %10518 = vmatprep.subr.mxu0 0.0
  %10519 = vmatpush1.msra.mxu0 %v10496
  %10520 = vmatprep.subr.mxu0 0.0
  %10521 = vmatpush1.msra.mxu0 %v10497
  %10522 = vmatprep.subr.mxu0 0.0
  %10523 = vmatpush1.msra.mxu0 %v10498
  %10524 = vmatprep.subr.mxu0 0.0
  %10525 = vmatpush1.msra.mxu0 %v10499
  %10526 = vmatprep.subr.mxu0 0.0
  %10527 = vmatpush1.msra.mxu0 %v10500
  %10528 = vmatprep.subr.mxu0 0.0
  %10529 = vmatpush1.msra.mxu0 %v10501
  %10530 = vmatprep.subr.mxu0 0.0
  %10531 = vmatpush1.msra.mxu0 %v10502
  %10532 = vmatprep.subr.mxu0 0.0
  %10533 = vmatpush1.msra.mxu0 %v10503
  %10534 = vmatprep.subr.mxu0 0.0
  %10535 = vmatpush1.msra.mxu0 %v10504
  %10536 = vmatprep.subr.mxu0 0.0
  %10537 = vmatpush1.msra.mxu0 %v10505
  %10538 = vmatprep.subr.mxu0 0.0
  %10539 = vmatpush1.msra.mxu0 %v10512
  %10540 = vmatprep.subr.mxu0 0.0
  %10541 = vmatpush1.msra.mxu0 0.0
  %10542 = vmatprep.subr.mxu0 0.0
  %10543 = vmatpush1.msra.mxu0 0.0
  %10544 = vmatprep.subr.mxu0 0.0
  %10545 = vmatpush1.msra.mxu0 0.0
  %10546 = vmatprep.subr.mxu0 0.0
  %10547 = vmatpush1.msra.mxu0 0.0
  %10548 = vmatprep.subr.mxu0 0.0
  %10549 = vmatpush1.msra.mxu0 0.0
  %10550 = vmatprep.subr.mxu0 0.0
  %10551 = vmatpush1.msra.mxu0 0.0
  %10552 = vmatprep.subr.mxu0 0.0
  %10553 = vmatpush1.msra.mxu0 0.0
  %10554 = vmatprep.subr.mxu0 0.0
  %10555 = vmatpush1.msra.mxu0 0.0
  %10556 = vmatprep.subr.mxu0 0.0
  %10557 = vmatpush1.msra.mxu0 0.0
  %10558 = vmatprep.subr.mxu0 0.0
  %10559 = vmatpush1.msra.mxu0 0.0
  %10560 = vmatprep.subr.mxu0 0.0
  %10561 = vmatpush1.msra.mxu0 0.0
  %10562 = vmatprep.subr.mxu0 0.0
  %10563 = vmatpush1.msra.mxu0 0.0
  %10564 = vmatprep.subr.mxu0 0.0
  %10565 = vmatpush1.msra.mxu0 0.0
  %10566 = vmatprep.subr.mxu0 0.0
  %10567 = vmatpush1.msra.mxu0 0.0
  %10568 = vmatprep.subr.mxu0 0.0
  %10569 = vmatpush1.msra.mxu0 0.0
  %10570 = vmatprep.subr.mxu0 0.0
  %10571 = vmatpush1.msra.mxu0 0.0
  %10572 = vmatprep.subr.mxu0 0.0
  %10573 = vmatpush1.msra.mxu0 0.0
  %10574 = vmatprep.subr.mxu0 0.0
  %10575 = vmatpush1.msra.mxu0 0.0
  %10576 = vmatprep.subr.mxu0 0.0
  %10577 = vmatpush1.msra.mxu0 0.0
  %10578 = vmatprep.mubr.f32.mxu0 0.0
  %10579 = vmatmul.mubr.f32.gmra.mrb[0].mxu0 %v10509
  %v10580 = vpop.f32.mrb[0].mxu0
  %v10581 = vadd.f32 0.0, %v10580
  %v10582 = vpop.f32.mrb[0].mxu0
  %10583 = vdwg.mxu0
  %10585 = vrot.lane.b32.xlu0 %v10492, 28
  %v10586 = vpop.permute.xlu0 %10585
  %10587 = vrot.lane.b32.xlu0 %v10493, 28
  %v10588 = vpop.permute.xlu0 %10587
  %vm10589 = vcmask 228352
  %v10590 = vsel %vm10589, %v10586, %v10588
  %v10591 = vsel %vm10507, %v10590, 0
  %10593 = vmatprep.subr.mxu0 0.0
  %10594 = vmatpush1.msra.mxu0 %v10494
  %10595 = vmatprep.subr.mxu0 0.0
  %10596 = vmatpush1.msra.mxu0 %v10495
  %10597 = vmatprep.subr.mxu0 0.0
  %10598 = vmatpush1.msra.mxu0 %v10496
  %10599 = vmatprep.subr.mxu0 0.0
  %10600 = vmatpush1.msra.mxu0 %v10497
  %10601 = vmatprep.subr.mxu0 0.0
  %10602 = vmatpush1.msra.mxu0 %v10498
  %10603 = vmatprep.subr.mxu0 0.0
  %10604 = vmatpush1.msra.mxu0 %v10499
  %10605 = vmatprep.subr.mxu0 0.0
  %10606 = vmatpush1.msra.mxu0 %v10500
  %10607 = vmatprep.subr.mxu0 0.0
  %10608 = vmatpush1.msra.mxu0 %v10501
  %10609 = vmatprep.subr.mxu0 0.0
  %10610 = vmatpush1.msra.mxu0 %v10502
  %10611 = vmatprep.subr.mxu0 0.0
  %10612 = vmatpush1.msra.mxu0 %v10503
  %10613 = vmatprep.subr.mxu0 0.0
  %10614 = vmatpush1.msra.mxu0 %v10504
  %10615 = vmatprep.subr.mxu0 0.0
  %10616 = vmatpush1.msra.mxu0 %v10505
  %10617 = vmatprep.subr.mxu0 0.0
  %10618 = vmatpush1.msra.mxu0 %v10512
  %10619 = vmatprep.subr.mxu0 0.0
  %10620 = vmatpush1.msra.mxu0 0.0
  %10621 = vmatprep.subr.mxu0 0.0
  %10622 = vmatpush1.msra.mxu0 0.0
  %10623 = vmatprep.subr.mxu0 0.0
  %10624 = vmatpush1.msra.mxu0 0.0
  %10625 = vmatprep.subr.mxu0 0.0
  %10626 = vmatpush1.msra.mxu0 0.0
  %10627 = vmatprep.subr.mxu0 0.0
  %10628 = vmatpush1.msra.mxu0 0.0
  %10629 = vmatprep.subr.mxu0 0.0
  %10630 = vmatpush1.msra.mxu0 0.0
  %10631 = vmatprep.subr.mxu0 0.0
  %10632 = vmatpush1.msra.mxu0 0.0
  %10633 = vmatprep.subr.mxu0 0.0
  %10634 = vmatpush1.msra.mxu0 0.0
  %10635 = vmatprep.subr.mxu0 0.0
  %10636 = vmatpush1.msra.mxu0 0.0
  %10637 = vmatprep.subr.mxu0 0.0
  %10638 = vmatpush1.msra.mxu0 0.0
  %10639 = vmatprep.subr.mxu0 0.0
  %10640 = vmatpush1.msra.mxu0 0.0
  %10641 = vmatprep.subr.mxu0 0.0
  %10642 = vmatpush1.msra.mxu0 0.0
  %10643 = vmatprep.subr.mxu0 0.0
  %10644 = vmatpush1.msra.mxu0 0.0
  %10645 = vmatprep.subr.mxu0 0.0
  %10646 = vmatpush1.msra.mxu0 0.0
  %10647 = vmatprep.subr.mxu0 0.0
  %10648 = vmatpush1.msra.mxu0 0.0
  %10649 = vmatprep.subr.mxu0 0.0
  %10650 = vmatpush1.msra.mxu0 0.0
  %10651 = vmatprep.subr.mxu0 0.0
  %10652 = vmatpush1.msra.mxu0 0.0
  %10653 = vmatprep.subr.mxu0 0.0
  %10654 = vmatpush1.msra.mxu0 0.0
  %10655 = vmatprep.subr.mxu0 0.0
  %10656 = vmatpush1.msra.mxu0 0.0
  %10657 = vmatprep.mubr.f32.mxu0 0.0
  %10658 = vmatmul.mubr.f32.gmra.mrb[0].mxu0 %v10591
  %v10659 = vpop.f32.mrb[0].mxu0
  %v10660 = vadd.f32 0.0, %v10659
  %v10661 = vpop.f32.mrb[0].mxu0
  %10662 = vdwg.mxu0
  %10664 = vrot.lane.b32.xlu0 %v10660, 16
  %v10665 = vpop.permute.xlu0 %10664
  %vm10667 = vcmask 130048
  %v10668 = vsel %vm10667, %v10581, %v10665
  %s10669 = scalar_lea.vmem %s3, 104
  %v10670 = vld [vmem:[%s10669] sm:$0xff]
  %10672 = vset.pattern.permute.xlu0 0
  %10673 = vperm.xlu0 %10672, %v10670
  %v10674 = vpop.permute.xlu0 %10673
  %v10676 = vadd.f32 %v10668, %v10674
  %v10677 = vmax.f32 %v10676, 0.0
  %v10678 = vld [vmem:[%s8] sm:$0xff]
  %v10679 = vld [vmem:[%s8 + $0x8] sm:$0xff]
  %v10680 = vld [vmem:[%s8 + $0x10] sm:$0xff]
  %v10681 = vld [vmem:[%s8 + $0x18] sm:$0xff]
  %v10682 = vlaneseq
  %v10683 = vshrl.u32 %v10682, 7
  %v10684 = vsub.s32 0, %v10683
  %v10685 = vrot.slane %v10677, %v10684
  %v10686 = vmul.f32 %v10678, %v10685
  %v10687 = vmul.f32 %v10679, %v10685
  %v10688 = vmul.f32 %v10680, %v10685
  %v10689 = vmul.f32 %v10681, %v10685
  %s10690 = scalar_lea.vmem %s8, 32
  %v10691 = vld [vmem:[%s10690] sm:$0xff]
  %v10692 = vld [vmem:[%s10690 + $0x8] sm:$0xff]
  %v10693 = vld [vmem:[%s10690 + $0x10] sm:$0xff]
  %v10694 = vld [vmem:[%s10690 + $0x18] sm:$0xff]
  %v10695 = vlaneseq
  %v10696 = vshrl.u32 %v10695, 7
  %v10697 = vsub.s32 1, %v10696
  %v10698 = vrot.slane %v10677, %v10697
  %v10699 = vmul.f32 %v10691, %v10698
  %v10700 = vmul.f32 %v10692, %v10698
  %v10701 = vmul.f32 %v10693, %v10698
  %v10702 = vmul.f32 %v10694, %v10698
  %v10703 = vadd.f32 %v10686, %v10699
  %v10704 = vadd.f32 %v10687, %v10700
  %v10705 = vadd.f32 %v10688, %v10701
  %v10706 = vadd.f32 %v10689, %v10702
  %s10707 = scalar_lea.vmem %s8, 64
  %v10708 = vld [vmem:[%s10707] sm:$0xff]
  %v10709 = vld [vmem:[%s10707 + $0x8] sm:$0xff]
  %v10710 = vld [vmem:[%s10707 + $0x10] sm:$0xff]
  %v10711 = vld [vmem:[%s10707 + $0x18] sm:$0xff]
  %v10712 = vlaneseq
  %v10713 = vshrl.u32 %v10712, 7
  %v10714 = vsub.s32 2, %v10713
  %v10715 = vrot.slane %v10677, %v10714
  %v10716 = vmul.f32 %v10708, %v10715
  %v10717 = vmul.f32 %v10709, %v10715
  %v10718 = vmul.f32 %v10710, %v10715
  %v10719 = vmul.f32 %v10711, %v10715
  %v10720 = vadd.f32 %v10703, %v10716
  %v10721 = vadd.f32 %v10704, %v10717
  %v10722 = vadd.f32 %v10705, %v10718
  %v10723 = vadd.f32 %v10706, %v10719
  %s10724 = scalar_lea.vmem %s8, 96
  %v10725 = vld [vmem:[%s10724] sm:$0xff]
  %v10726 = vld [vmem:[%s10724 + $0x8] sm:$0xff]
  %v10727 = vld [vmem:[%s10724 + $0x10] sm:$0xff]
  %v10728 = vld [vmem:[%s10724 + $0x18] sm:$0xff]
  %v10729 = vlaneseq
  %v10730 = vshrl.u32 %v10729, 7
  %v10731 = vsub.s32 3, %v10730
  %v10732 = vrot.slane %v10677, %v10731
  %v10733 = vmul.f32 %v10725, %v10732
  %v10734 = vmul.f32 %v10726, %v10732
  %v10735 = vmul.f32 %v10727, %v10732
  %v10736 = vmul.f32 %v10728, %v10732
  %v10737 = vadd.f32 %v10720, %v10733
  %v10738 = vadd.f32 %v10721, %v10734
  %v10739 = vadd.f32 %v10722, %v10735
  %v10740 = vadd.f32 %v10723, %v10736
  %s10741 = scalar_lea.vmem %s8, 128
  %v10742 = vld [vmem:[%s10741] sm:$0xff]
  %v10743 = vld [vmem:[%s10741 + $0x8] sm:$0xff]
  %v10744 = vld [vmem:[%s10741 + $0x10] sm:$0xff]
  %v10745 = vld [vmem:[%s10741 + $0x18] sm:$0xff]
  %v10746 = vlaneseq
  %v10747 = vshrl.u32 %v10746, 7
  %v10748 = vsub.s32 4, %v10747
  %v10749 = vrot.slane %v10677, %v10748
  %v10750 = vmul.f32 %v10742, %v10749
  %v10751 = vmul.f32 %v10743, %v10749
  %v10752 = vmul.f32 %v10744, %v10749
  %v10753 = vmul.f32 %v10745, %v10749
  %v10754 = vadd.f32 %v10737, %v10750
  %v10755 = vadd.f32 %v10738, %v10751
  %v10756 = vadd.f32 %v10739, %v10752
  %v10757 = vadd.f32 %v10740, %v10753
  %s10758 = scalar_lea.vmem %s8, 160
  %v10759 = vld [vmem:[%s10758] sm:$0xff]
  %v10760 = vld [vmem:[%s10758 + $0x8] sm:$0xff]
  %v10761 = vld [vmem:[%s10758 + $0x10] sm:$0xff]
  %v10762 = vld [vmem:[%s10758 + $0x18] sm:$0xff]
  %v10763 = vlaneseq
  %v10764 = vshrl.u32 %v10763, 7
  %v10765 = vsub.s32 5, %v10764
  %v10766 = vrot.slane %v10677, %v10765
  %v10767 = vmul.f32 %v10759, %v10766
  %v10768 = vmul.f32 %v10760, %v10766
  %v10769 = vmul.f32 %v10761, %v10766
  %v10770 = vmul.f32 %v10762, %v10766
  %v10771 = vadd.f32 %v10754, %v10767
  %v10772 = vadd.f32 %v10755, %v10768
  %v10773 = vadd.f32 %v10756, %v10769
  %v10774 = vadd.f32 %v10757, %v10770
  %s10775 = scalar_lea.vmem %s8, 192
  %v10776 = vld [vmem:[%s10775] sm:$0xff]
  %v10777 = vld [vmem:[%s10775 + $0x8] sm:$0xff]
  %v10778 = vld [vmem:[%s10775 + $0x10] sm:$0xff]
  %v10779 = vld [vmem:[%s10775 + $0x18] sm:$0xff]
  %v10780 = vlaneseq
  %v10781 = vshrl.u32 %v10780, 7
  %v10782 = vsub.s32 6, %v10781
  %v10783 = vrot.slane %v10677, %v10782
  %v10784 = vmul.f32 %v10776, %v10783
  %v10785 = vmul.f32 %v10777, %v10783
  %v10786 = vmul.f32 %v10778, %v10783
  %v10787 = vmul.f32 %v10779, %v10783
  %v10788 = vadd.f32 %v10771, %v10784
  %v10789 = vadd.f32 %v10772, %v10785
  %v10790 = vadd.f32 %v10773, %v10786
  %v10791 = vadd.f32 %v10774, %v10787
  %s10792 = scalar_lea.vmem %s8, 224
  %v10793 = vld [vmem:[%s10792] sm:$0xff]
  %v10794 = vld [vmem:[%s10792 + $0x8] sm:$0xff]
  %v10795 = vld [vmem:[%s10792 + $0x10] sm:$0xff]
  %v10796 = vld [vmem:[%s10792 + $0x18] sm:$0xff]
  %v10797 = vlaneseq
  %v10798 = vshrl.u32 %v10797, 7
  %v10799 = vsub.s32 7, %v10798
  %v10800 = vrot.slane %v10677, %v10799
  %v10801 = vmul.f32 %v10793, %v10800
  %v10802 = vmul.f32 %v10794, %v10800
  %v10803 = vmul.f32 %v10795, %v10800
  %v10804 = vmul.f32 %v10796, %v10800
  %v10805 = vadd.f32 %v10788, %v10801
  %v10806 = vadd.f32 %v10789, %v10802
  %v10807 = vadd.f32 %v10790, %v10803
  %v10808 = vadd.f32 %v10791, %v10804
  %v10809 = vld [vmem:[%s9] sm:$0xff]
  %v10810 = vld [vmem:[%s9 + $0x8] sm:$0xff]
  %v10811 = vld [vmem:[%s9 + $0x10] sm:$0xff]
  %v10812 = vld [vmem:[%s9 + $0x18] sm:$0xff]
  %v10813 = vld [vmem:[%s10] sm:$0xff]
  %v10814 = vld [vmem:[%s10 + $0x8] sm:$0xff]
  %v10815 = vld [vmem:[%s10 + $0x10] sm:$0xff]
  %v10816 = vld [vmem:[%s10 + $0x18] sm:$0xff]
  %10818 = vset.pattern.permute.xlu0 0
  %10819 = vperm.xlu0 %10818, %v10813
  %v10820 = vpop.permute.xlu0 %10819
  %10823 = vset.pattern.permute.xlu0 0
  %10824 = vperm.xlu0 %10823, %v10814
  %v10825 = vpop.permute.xlu0 %10824
  %10828 = vset.pattern.permute.xlu0 0
  %10829 = vperm.xlu0 %10828, %v10815
  %v10830 = vpop.permute.xlu0 %10829
  %10833 = vset.pattern.permute.xlu0 0
  %10834 = vperm.xlu0 %10833, %v10816
  %v10835 = vpop.permute.xlu0 %10834
  %v10838 = vsel %vm2358, %v10805, 0
  %v10841 = vsel %vm2358, %v10806, 0
  %v10844 = vsel %vm2358, %v10807, 0
  %v10847 = vsel %vm2358, %v10808, 0
  %10849 = vmatprep.subr.mxu0 0.0
  %10850 = vmatpush1.msra.mxu0 %v10809
  %10851 = vmatprep.subr.mxu0 0.0
  %10852 = vmatpush1.msra.mxu0 %v10810
  %10853 = vmatprep.subr.mxu0 0.0
  %10854 = vmatpush1.msra.mxu0 %v10811
  %10855 = vmatprep.subr.mxu0 0.0
  %10856 = vmatpush1.msra.mxu0 %v10812
  %10857 = vmatprep.subr.mxu0 0.0
  %10858 = vmatpush1.msra.mxu0 0.0
  %10859 = vmatprep.subr.mxu0 0.0
  %10860 = vmatpush1.msra.mxu0 0.0
  %10861 = vmatprep.subr.mxu0 0.0
  %10862 = vmatpush1.msra.mxu0 0.0
  %10863 = vmatprep.subr.mxu0 0.0
  %10864 = vmatpush1.msra.mxu0 0.0
  %10865 = vmatprep.subr.mxu0 0.0
  %10866 = vmatpush1.msra.mxu0 0.0
  %10867 = vmatprep.subr.mxu0 0.0
  %10868 = vmatpush1.msra.mxu0 0.0
  %10869 = vmatprep.subr.mxu0 0.0
  %10870 = vmatpush1.msra.mxu0 0.0
  %10871 = vmatprep.subr.mxu0 0.0
  %10872 = vmatpush1.msra.mxu0 0.0
  %10873 = vmatprep.subr.mxu0 0.0
  %10874 = vmatpush1.msra.mxu0 0.0
  %10875 = vmatprep.subr.mxu0 0.0
  %10876 = vmatpush1.msra.mxu0 0.0
  %10877 = vmatprep.subr.mxu0 0.0
  %10878 = vmatpush1.msra.mxu0 0.0
  %10879 = vmatprep.subr.mxu0 0.0
  %10880 = vmatpush1.msra.mxu0 0.0
  %10881 = vmatprep.subr.mxu0 0.0
  %10882 = vmatpush1.msra.mxu0 0.0
  %10883 = vmatprep.subr.mxu0 0.0
  %10884 = vmatpush1.msra.mxu0 0.0
  %10885 = vmatprep.subr.mxu0 0.0
  %10886 = vmatpush1.msra.mxu0 0.0
  %10887 = vmatprep.subr.mxu0 0.0
  %10888 = vmatpush1.msra.mxu0 0.0
  %10889 = vmatprep.subr.mxu0 0.0
  %10890 = vmatpush1.msra.mxu0 0.0
  %10891 = vmatprep.subr.mxu0 0.0
  %10892 = vmatpush1.msra.mxu0 0.0
  %10893 = vmatprep.subr.mxu0 0.0
  %10894 = vmatpush1.msra.mxu0 0.0
  %10895 = vmatprep.subr.mxu0 0.0
  %10896 = vmatpush1.msra.mxu0 0.0
  %10897 = vmatprep.subr.mxu0 0.0
  %10898 = vmatpush1.msra.mxu0 0.0
  %10899 = vmatprep.subr.mxu0 0.0
  %10900 = vmatpush1.msra.mxu0 0.0
  %10901 = vmatprep.subr.mxu0 0.0
  %10902 = vmatpush1.msra.mxu0 0.0
  %10903 = vmatprep.subr.mxu0 0.0
  %10904 = vmatpush1.msra.mxu0 0.0
  %10905 = vmatprep.subr.mxu0 0.0
  %10906 = vmatpush1.msra.mxu0 0.0
  %10907 = vmatprep.subr.mxu0 0.0
  %10908 = vmatpush1.msra.mxu0 0.0
  %10909 = vmatprep.subr.mxu0 0.0
  %10910 = vmatpush1.msra.mxu0 0.0
  %10911 = vmatprep.subr.mxu0 0.0
  %10912 = vmatpush1.msra.mxu0 0.0
  %10913 = vmatprep.mubr.f32.mxu0 0.0
  %10914 = vmatmul.mubr.f32.gmra.mrb[0].mxu0 %v10838
  %v10915 = vpop.f32.mrb[0].mxu0
  %v10916 = vadd.f32 %v10820, %v10915
  %v10917 = vpop.f32.mrb[0].mxu0
  %10918 = vmatprep.mubr.f32.mxu0 0.0
  %10919 = vmatmul.mubr.f32.gmra.mrb[0].mxu0 %v10841
  %v10920 = vpop.f32.mrb[0].mxu0
  %v10921 = vadd.f32 %v10825, %v10920
  %v10922 = vpop.f32.mrb[0].mxu0
  %10923 = vmatprep.mubr.f32.mxu0 0.0
  %10924 = vmatmul.mubr.f32.gmra.mrb[0].mxu0 %v10844
  %v10925 = vpop.f32.mrb[0].mxu0
  %v10926 = vadd.f32 %v10830, %v10925
  %v10927 = vpop.f32.mrb[0].mxu0
  %10928 = vmatprep.mubr.f32.mxu0 0.0
  %10929 = vmatmul.mubr.f32.gmra.mrb[0].mxu0 %v10847
  %v10930 = vpop.f32.mrb[0].mxu0
  %v10931 = vadd.f32 %v10835, %v10930
  %v10932 = vpop.f32.mrb[0].mxu0
  %10933 = vdwg.mxu0
  %v10934 = vmax.f32 %v10916, 0.0
  %v10935 = vmax.f32 %v10921, 0.0
  %v10936 = vmax.f32 %v10926, 0.0
  %v10937 = vmax.f32 %v10931, 0.0
  %v10938 = vld [vmem:[%s11] sm:$0xff]
  %10940 = vset.pattern.permute.xlu0 32
  %10941 = vperm.xlu0 %10940, %v10938
  %v10942 = vpop.permute.xlu0 %10941
  %v10944 = vsel %vm2358, %v10938, 0
  %10946 = vmatprep.subr.mxu0 0.0
  %10947 = vmatpush1.msra.mxu0 %v10934
  %10948 = vmatprep.subr.mxu0 0.0
  %10949 = vmatpush1.msra.mxu0 %v10935
  %10950 = vmatprep.subr.mxu0 0.0
  %10951 = vmatpush1.msra.mxu0 %v10936
  %10952 = vmatprep.subr.mxu0 0.0
  %10953 = vmatpush1.msra.mxu0 %v10937
  %10954 = vmatprep.subr.mxu0 0.0
  %10955 = vmatpush1.msra.mxu0 0.0
  %10956 = vmatprep.subr.mxu0 0.0
  %10957 = vmatpush1.msra.mxu0 0.0
  %10958 = vmatprep.subr.mxu0 0.0
  %10959 = vmatpush1.msra.mxu0 0.0
  %10960 = vmatprep.subr.mxu0 0.0
  %10961 = vmatpush1.msra.mxu0 0.0
  %10962 = vmatprep.subr.mxu0 0.0
  %10963 = vmatpush1.msra.mxu0 0.0
  %10964 = vmatprep.subr.mxu0 0.0
  %10965 = vmatpush1.msra.mxu0 0.0
  %10966 = vmatprep.subr.mxu0 0.0
  %10967 = vmatpush1.msra.mxu0 0.0
  %10968 = vmatprep.subr.mxu0 0.0
  %10969 = vmatpush1.msra.mxu0 0.0
  %10970 = vmatprep.subr.mxu0 0.0
  %10971 = vmatpush1.msra.mxu0 0.0
  %10972 = vmatprep.subr.mxu0 0.0
  %10973 = vmatpush1.msra.mxu0 0.0
  %10974 = vmatprep.subr.mxu0 0.0
  %10975 = vmatpush1.msra.mxu0 0.0
  %10976 = vmatprep.subr.mxu0 0.0
  %10977 = vmatpush1.msra.mxu0 0.0
  %10978 = vmatprep.subr.mxu0 0.0
  %10979 = vmatpush1.msra.mxu0 0.0
  %10980 = vmatprep.subr.mxu0 0.0
  %10981 = vmatpush1.msra.mxu0 0.0
  %10982 = vmatprep.subr.mxu0 0.0
  %10983 = vmatpush1.msra.mxu0 0.0
  %10984 = vmatprep.subr.mxu0 0.0
  %10985 = vmatpush1.msra.mxu0 0.0
  %10986 = vmatprep.subr.mxu0 0.0
  %10987 = vmatpush1.msra.mxu0 0.0
  %10988 = vmatprep.subr.mxu0 0.0
  %10989 = vmatpush1.msra.mxu0 0.0
  %10990 = vmatprep.subr.mxu0 0.0
  %10991 = vmatpush1.msra.mxu0 0.0
  %10992 = vmatprep.subr.mxu0 0.0
  %10993 = vmatpush1.msra.mxu0 0.0
  %10994 = vmatprep.subr.mxu0 0.0
  %10995 = vmatpush1.msra.mxu0 0.0
  %10996 = vmatprep.subr.mxu0 0.0
  %10997 = vmatpush1.msra.mxu0 0.0
  %10998 = vmatprep.subr.mxu0 0.0
  %10999 = vmatpush1.msra.mxu0 0.0
  %11000 = vmatprep.subr.mxu0 0.0
  %11001 = vmatpush1.msra.mxu0 0.0
  %11002 = vmatprep.subr.mxu0 0.0
  %11003 = vmatpush1.msra.mxu0 0.0
  %11004 = vmatprep.subr.mxu0 0.0
  %11005 = vmatpush1.msra.mxu0 0.0
  %11006 = vmatprep.subr.mxu0 0.0
  %11007 = vmatpush1.msra.mxu0 0.0
  %11008 = vmatprep.subr.mxu0 0.0
  %11009 = vmatpush1.msra.mxu0 0.0
  %11010 = vmatprep.mubr.f32.mxu0 0.0
  %11011 = vmatmul.mubr.f32.gmra.mrb[0].mxu0 %v10944
  %v11012 = vpop.f32.mrb[0].mxu0
  %v11013 = vadd.f32 %v10942, %v11012
  %v11014 = vpop.f32.mrb[0].mxu0
  %11015 = vdwg.mxu0
  %vm11016 = vcmask 15360
  %11017 = vst.msk [vmem:[%s12] sm:$0xff] %vm11016, %v11013
  // Predicated region
  $region50: #{_lambda_.1} parent=0 // pred_check
    _
  $region51: #{_lambda_.1} parent=0 // pred_check_branch
    %11019 = sbr.rel (0) target = $region53
  $region52: #{_lambda_.1} parent=0 // pred_region
    _
  $region53: #{_lambda_.1} parent=0 // pred_fallthru
    _
  // Predicated region
  $region54: #{_lambda_.1} parent=0 // pred_check
    _
  $region55: #{_lambda_.1} parent=0 // pred_check_branch
    %11021 = sbr.rel (0) target = $region57
  $region56: #{_lambda_.1} parent=0 // pred_region
    _
  $region57: #{_lambda_.1} parent=0 // pred_fallthru
    _

</llo_original>
